<compile_context>
chip_gen: v7x
topology: tpu7x:2x2x1
jax: 0.10.0
libtpu: 0.0.40
codegen_flags: <defaults>
</compile_context>

<pallas_src>
import functools

import jax
import jax.numpy as jnp
from jax.experimental import pallas as pl
from jax.experimental.pallas import tpu as pltpu


def _round_up(x, m):
    return (x + m - 1) // m * m


def _encoder_block_kernel(K, C, C4, TH,
                          xpad_ref, dww_ref, dwb_ref, lnw_ref, lnb_ref,
                          w1_ref, b1_ref, gg_ref, gb_ref, w2_ref, b2_ref,
                          o_ref, h_scr, ss_scr):
    # xpad_ref: (1, H+2p, W+2p, Cp) padded NHWC input (interior == residual)
    # o_ref:    (1, H, W, Cp)
    # h_scr:    (H*W, C4p) bf16 hidden activations between the two passes
    # ss_scr:   (1, C4p)  f32 GRN sum-of-squares accumulator
    pad = K // 2
    H = o_ref.shape[1]
    W = o_ref.shape[2]
    Cp = o_ref.shape[3]
    C4p = h_scr.shape[1]

    f32 = jnp.float32
    bf16 = jnp.bfloat16
    inv_c = 1.0 / C
    pad_lanes = float(Cp - C)

    # Hoisted parameter loads (shared across all row tiles of this image).
    dww = dww_ref[...].astype(f32)          # (K*K, Cp)
    dwb = dwb_ref[0, :].astype(f32)         # (Cp,)
    lnw = lnw_ref[0, :].astype(f32)
    lnb = lnb_ref[0, :].astype(f32)
    w1 = w1_ref[...]                        # (Cp, C4p)  bf16
    b1 = b1_ref[0, :].astype(f32)
    gg = gg_ref[0, :].astype(f32)
    gb = gb_ref[0, :].astype(f32)
    w2 = w2_ref[...]                        # (C4p, Cp)  bf16
    b2 = b2_ref[0, :].astype(f32)

    n_full = H // TH
    rem = H - n_full * TH

    def for_each_tile(tile_fn):
        # Small tile counts: static unroll (tight code, the common case).
        # Large H: visible loop so live ranges stay bounded per iteration
        # instead of unrolling many copies of the conv + matmul body.
        if n_full <= 4:
            for t in range(n_full):
                tile_fn(t * TH, TH)
        else:
            @pl.loop(0, n_full)
            def _(t):
                tile_fn(t * TH, TH)
        if rem > 0:
            tile_fn(n_full * TH, rem)       # ragged tail, static size

    # ---------- pass 1: dwconv -> LayerNorm -> pwconv1 -> GELU (per tile) ---
    ss_scr[...] = jnp.zeros_like(ss_scr)

    def pass1_tile(h0, th):
        # Depthwise 7x7: each tap loads its shifted (th, W, Cp) slice directly
        # from the resident VMEM block (no pre-materialized bands -> no vreg
        # spill; the extra vld per tap hides under the VALU-bound accumulate).
        # TODO(synk): on v6e/v7x the taps could run in bf16 (2x VALU packing)
        # or be offloaded to the MXU; kept f32 so the same kernel is safe on
        # v5e (no bf16 VPU) and bit-closer to the fp32 reference.
        acc = jnp.zeros((th, W, Cp), f32) + dwb
        for ki in range(K):
            for kj in range(K):
                band = xpad_ref[0, pl.ds(h0 + ki, th), kj:kj + W, :].astype(f32)
                acc = acc + band * dww[ki * K + kj]

        # LayerNorm over the real channel count, centered variance (no
        # E[x^2]-E[x]^2 cancellation).  Padded lanes of acc are exactly zero,
        # so after centering each contributes mean^2 -> subtract that term.
        mean = jnp.sum(acc, axis=-1, keepdims=True) * inv_c
        cen = acc - mean
        var = (jnp.sum(cen * cen, axis=-1, keepdims=True)
               - pad_lanes * (mean * mean)) * inv_c
        xn = cen * jax.lax.rsqrt(var + 1e-6) * lnw + lnb   # padded lanes -> 0

        # pwconv1 on the MXU: bf16 inputs, f32 accumulation.
        xm = xn.reshape(th * W, Cp).astype(bf16)
        h = jnp.dot(xm, w1, preferred_element_type=f32) + b1
        # tanh-GELU runs on the EUP; exact erf would be a long VALU polynomial
        # over the widest tensor in the kernel.  (~1e-3 vs nn.GELU default.)
        h = jax.nn.gelu(h, approximate=True)

        ss_scr[...] += jnp.sum(h * h, axis=0, keepdims=True)
        h_scr[pl.ds(h0 * W, th * W), :] = h.astype(bf16)

    for_each_tile(pass1_tile)

    # ---------- GRN statistics (global L2 over H*W, mean over real channels)
    gx = jnp.sqrt(ss_scr[...])                               # (1, C4p)
    mean_gx = jnp.sum(gx, axis=-1, keepdims=True) * (1.0 / C4)
    nx = gx * pl.reciprocal(mean_gx + 1e-6, approx=True)     # EUP divide
    # Fold gamma*Nx + identity into one per-channel scale: pass-2 apply is a
    # single mul + add over (th*W, C4p).
    grn_scale = gg * nx + 1.0                                 # (1, C4p)

    # ---------- pass 2: GRN apply -> pwconv2 -> residual (per tile) ---------
    def pass2_tile(h0, th):
        h = h_scr[pl.ds(h0 * W, th * W), :].astype(f32)
        hg = h * grn_scale + gb
        y = jnp.dot(hg.astype(bf16), w2, preferred_element_type=f32) + b2
        y = y.reshape(th, W, Cp)

        # Residual straight from the interior of the padded input block:
        # no separate residual HBM stream or VMEM double-buffer.
        res = xpad_ref[0, pl.ds(pad + h0, th), pad:pad + W, :].astype(f32)
        o_ref[0, pl.ds(h0, th), :, :] = (res + y).astype(o_ref.dtype)

    for_each_tile(pass2_tile)


def _pick_tile_rows(H, W):
    """Rows per MXU M-tile: ~128 on v5e (4x128x128 MXU), ~256 on v6e/v7x,
    nudged down so tile_rows*W is sublane (8) aligned when possible."""
    try:
        kind = jax.devices()[0].device_kind.lower()
    except Exception:
        kind = ""
    m_target = 128 if "v5" in kind else 256
    th = max(1, min(H, max(1, m_target // max(1, W))))
    while th > 1 and (th * W) % 8 != 0:
        th -= 1
    return th


@functools.partial(jax.jit, static_argnames=("kernel_size",))
def encoder_block(x_nchw, params, kernel_size=7):
    """x_nchw: (B, C, H, W) float32.  Returns (B, C, H, W)."""
    B, C, H, W = x_nchw.shape
    K = kernel_size
    pad = K // 2
    Hp, Wp = H + 2 * pad, W + 2 * pad
    C4 = 4 * C
    Cp = _round_up(C, 128)       # lane-dense channel dim
    C4p = _round_up(C4, 128)

    f32 = jnp.float32
    bf16 = jnp.bfloat16

    # NCHW -> NHWC, channel pad to Cp, spatial pad for the depthwise conv.
    # The interior of this one padded block doubles as the residual, so there
    # is exactly one activation stream into the kernel.
    # TODO(synk): x_pad could be shipped as bf16 to halve the HBM read; kept
    # f32 so the residual add stays exact.
    x_nhwc = jnp.transpose(x_nchw, (0, 2, 3, 1))
    x_pad = jnp.pad(x_nhwc, ((0, 0), (pad, pad), (pad, pad), (0, Cp - C)))

    def pad_last(a, t):
        return jnp.pad(a, ((0, 0), (0, t - a.shape[-1])))

    dww = pad_last(params["dw_w"], Cp)                                   # (K*K, Cp)
    dwb = pad_last(params["dw_b"], Cp)
    lnw = pad_last(params["ln_w"], Cp)
    lnb = pad_last(params["ln_b"], Cp)
    w1 = jnp.pad(params["w1"], ((0, Cp - C), (0, C4p - C4))).astype(bf16)
    b1 = pad_last(params["b1"], C4p)
    gg = pad_last(params["grn_g"], C4p)
    gb = pad_last(params["grn_b"], C4p)
    w2 = jnp.pad(params["w2"], ((0, C4p - C4), (0, Cp - C))).astype(bf16)
    b2 = pad_last(params["b2"], Cp)

    TH = _pick_tile_rows(H, W)

    # Per-step VMEM footprint estimate -> scoped limit with 8 MiB headroom
    # below the physical capacity reported by the hardware (128 MiB on
    # v5e/v6e, 64 MiB per TensorCore on v7x).
    est = (
        2 * Hp * Wp * Cp * 4              # double-buffered padded input block
        + 2 * H * W * Cp * 4              # double-buffered output block
        + H * W * C4p * 2                 # bf16 h scratch
        + 4 * TH * W * Cp * 4             # per-tile conv/LN temporaries
        + 3 * TH * W * C4p * 4            # per-tile hidden temporaries
        + 2 * 2 * Cp * C4p * 2            # bf16 w1/w2 (double-buffered)
        + (K * K + 16) * max(Cp, C4p) * 4
    )
    try:
        vmem_cap = int(pltpu.get_tpu_info().vmem_capacity_bytes)
    except Exception:
        vmem_cap = 64 * 1024 * 1024
    vmem_limit = int(min(vmem_cap - 8 * 1024 * 1024,
                         max(32 * 1024 * 1024, 2 * est)))

    full = lambda a: pl.BlockSpec(a.shape, lambda b: (0,) * a.ndim)
    # TODO(synk): these parameter blocks are grid-invariant; single-buffering
    # them (pipeline_mode buffer_count=1) would halve their VMEM at the
    # C=768 stages on v7x.

    out = pl.pallas_call(
        functools.partial(_encoder_block_kernel, K, C, C4, TH),
        out_shape=jax.ShapeDtypeStruct((B, H, W, Cp), x_nchw.dtype),
        grid=(B,),
        in_specs=[
            pl.BlockSpec((1, Hp, Wp, Cp), lambda b: (b, 0, 0, 0)),
            full(dww), full(dwb), full(lnw), full(lnb),
            full(w1), full(b1), full(gg), full(gb),
            full(w2), full(b2),
        ],
        out_specs=pl.BlockSpec((1, H, W, Cp), lambda b: (b, 0, 0, 0)),
        scratch_shapes=[pltpu.VMEM((H * W, C4p), bf16),
                        pltpu.VMEM((1, C4p), f32)],
        compiler_params=pltpu.CompilerParams(
            dimension_semantics=("parallel",),     # batch-independent: megacore
            vmem_limit_bytes=vmem_limit),
    )(x_pad, dww, dwb, lnw, lnb, w1, b1, gg, gb, w2, b2)

    out = out[..., :C]                     # drop padded channels
    return jnp.transpose(out, (0, 3, 1, 2))


def _reference(x_nchw, params, kernel_size=7):
    """Pure-JAX fp32 reference (mirrors the PyTorch forward, exact GELU)."""
    B, C, H, W = x_nchw.shape
    pad = kernel_size // 2
    x = jnp.transpose(x_nchw, (0, 2, 3, 1))
    xp = jnp.pad(x, ((0, 0), (pad, pad), (pad, pad), (0, 0)))
    acc = jnp.zeros((B, H, W, C), jnp.float32)
    for ki in range(kernel_size):
        for kj in range(kernel_size):
            acc = acc + xp[:, ki:ki + H, kj:kj + W, :] * params["dw_w"][ki * kernel_size + kj]
    acc = acc + params["dw_b"][0]
    mean = jnp.mean(acc, axis=-1, keepdims=True)
    var = jnp.mean((acc - mean) ** 2, axis=-1, keepdims=True)
    xn = (acc - mean) / jnp.sqrt(var + 1e-6) * params["ln_w"][0] + params["ln_b"][0]
    h = jnp.einsum("bhwc,cd->bhwd", xn, params["w1"]) + params["b1"][0]
    h = jax.nn.gelu(h, approximate=False)
    gx = jnp.sqrt(jnp.sum(h * h, axis=(1, 2), keepdims=True))
    nx = gx / (jnp.mean(gx, axis=-1, keepdims=True) + 1e-6)
    h = params["grn_g"][0] * (h * nx) + params["grn_b"][0] + h
    y = jnp.einsum("bhwd,dc->bhwc", h, params["w2"]) + params["b2"][0]
    return x_nchw + jnp.transpose(y, (0, 3, 1, 2))


def make_params(key, dim, kernel_size=7):
    ks = jax.random.split(key, 8)
    C, C4, K = dim, 4 * dim, kernel_size
    return {
        "dw_w": 0.1 * jax.random.normal(ks[0], (K * K, C), jnp.float32),
        "dw_b": 0.1 * jax.random.normal(ks[1], (1, C), jnp.float32),
        "ln_w": jnp.ones((1, C), jnp.float32),
        "ln_b": jnp.zeros((1, C), jnp.float32),
        "w1": 0.1 * jax.random.normal(ks[2], (C, C4), jnp.float32),
        "b1": 0.1 * jax.random.normal(ks[3], (1, C4), jnp.float32),
        "grn_g": 0.1 * jax.random.normal(ks[4], (1, C4), jnp.float32),
        "grn_b": 0.1 * jax.random.normal(ks[5], (1, C4), jnp.float32),
        "w2": 0.1 * jax.random.normal(ks[6], (C4, C), jnp.float32),
        "b2": 0.1 * jax.random.normal(ks[7], (1, C), jnp.float32),
    }


if __name__ == "__main__":
    key = jax.random.PRNGKey(0)
    kx, kp, kx2, kp2 = jax.random.split(key, 4)

    # Tolerance 2e-2 covers the documented kernel approximations (bf16 MXU
    # inputs, tanh-GELU, approx reciprocal, bf16 h stash); observed ~1e-3.

    # Primary small config (single row tile).
    B, C, H, W = 2, 4, 16, 16
    x = jax.random.normal(kx, (B, C, H, W), jnp.float32)
    params = make_params(kp, C, kernel_size=7)
    out = jax.block_until_ready(encoder_block(x, params, kernel_size=7))
    ref = _reference(x, params, kernel_size=7)
    assert out.shape == (B, C, H, W)
    err = float(jnp.max(jnp.abs(out - ref)))
    assert err < 2e-2, err

    # Second config exercising ragged row tiles (H not divisible by the tile).
    B2, C2, H2, W2 = 1, 8, 22, 20
    x2 = jax.random.normal(kx2, (B2, C2, H2, W2), jnp.float32)
    params2 = make_params(kp2, C2, kernel_size=7)
    out2 = jax.block_until_ready(encoder_block(x2, params2, kernel_size=7))
    ref2 = _reference(x2, params2, kernel_size=7)
    err2 = float(jnp.max(jnp.abs(out2 - ref2)))
    assert err2 < 2e-2, err2

    print("KERNEL_OK")
</pallas_src>

<mosaic_0001>
module attributes {stable_mosaic.version = 11 : i64} {
  func.func @_encoder_block_kernel(%arg0: i32, %arg1: memref<1x22x22x128xf32, #tpu.memory_space<vmem>>, %arg2: memref<49x128xf32, #tpu.memory_space<vmem>>, %arg3: memref<1x128xf32, #tpu.memory_space<vmem>>, %arg4: memref<1x128xf32, #tpu.memory_space<vmem>>, %arg5: memref<1x128xf32, #tpu.memory_space<vmem>>, %arg6: memref<128x128xbf16, #tpu.memory_space<vmem>>, %arg7: memref<1x128xf32, #tpu.memory_space<vmem>>, %arg8: memref<1x128xf32, #tpu.memory_space<vmem>>, %arg9: memref<1x128xf32, #tpu.memory_space<vmem>>, %arg10: memref<128x128xbf16, #tpu.memory_space<vmem>>, %arg11: memref<1x128xf32, #tpu.memory_space<vmem>>, %arg12: memref<1x16x16x128xf32, #tpu.memory_space<vmem>>, %arg13: memref<256x128xbf16, #tpu.memory_space<vmem>>, %arg14: memref<1x128xf32, #tpu.memory_space<vmem>>) attributes {dimension_semantics = [#tpu.dimension_semantics<parallel>], iteration_bounds = array<i64: 2>, scalar_prefetch = 0 : i64, scratch_operands = 2 : i64, tpu.core_type = #tpu.core_type<tc>, window_params = [{transform_indices = @transform_0, window_bounds = array<i64: 1, 22, 22, 128>}, {pipeline_mode = #tpu.pipeline_mode<synchronous>, transform_indices = @transform_1, window_bounds = array<i64: 49, 128>}, {pipeline_mode = #tpu.pipeline_mode<synchronous>, transform_indices = @transform_2, window_bounds = array<i64: 1, 128>}, {pipeline_mode = #tpu.pipeline_mode<synchronous>, transform_indices = @transform_3, window_bounds = array<i64: 1, 128>}, {pipeline_mode = #tpu.pipeline_mode<synchronous>, transform_indices = @transform_4, window_bounds = array<i64: 1, 128>}, {pipeline_mode = #tpu.pipeline_mode<synchronous>, transform_indices = @transform_5, window_bounds = array<i64: 128, 128>}, {pipeline_mode = #tpu.pipeline_mode<synchronous>, transform_indices = @transform_6, window_bounds = array<i64: 1, 128>}, {pipeline_mode = #tpu.pipeline_mode<synchronous>, transform_indices = @transform_7, window_bounds = array<i64: 1, 128>}, {pipeline_mode = #tpu.pipeline_mode<synchronous>, transform_indices = @transform_8, window_bounds = array<i64: 1, 128>}, {pipeline_mode = #tpu.pipeline_mode<synchronous>, transform_indices = @transform_9, window_bounds = array<i64: 128, 128>}, {pipeline_mode = #tpu.pipeline_mode<synchronous>, transform_indices = @transform_10, window_bounds = array<i64: 1, 128>}, {transform_indices = @transform_11, window_bounds = array<i64: 1, 16, 16, 128>}]} {
    %c0 = arith.constant 0 : index
    %c0_0 = arith.constant 0 : index
    %0 = vector.load %arg2[%c0, %c0_0] : memref<49x128xf32, #tpu.memory_space<vmem>>, vector<49x128xf32>
    %c0_1 = arith.constant 0 : index
    %c0_2 = arith.constant 0 : index
    %1 = vector.load %arg3[%c0_1, %c0_2] : memref<1x128xf32, #tpu.memory_space<vmem>>, vector<1x128xf32>
    %2 = vector.shape_cast %1 : vector<1x128xf32> to vector<128xf32>
    %c0_3 = arith.constant 0 : index
    %c0_4 = arith.constant 0 : index
    %3 = vector.load %arg4[%c0_3, %c0_4] : memref<1x128xf32, #tpu.memory_space<vmem>>, vector<1x128xf32>
    %4 = vector.shape_cast %3 : vector<1x128xf32> to vector<128xf32>
    %c0_5 = arith.constant 0 : index
    %c0_6 = arith.constant 0 : index
    %5 = vector.load %arg5[%c0_5, %c0_6] : memref<1x128xf32, #tpu.memory_space<vmem>>, vector<1x128xf32>
    %6 = vector.shape_cast %5 : vector<1x128xf32> to vector<128xf32>
    %c0_7 = arith.constant 0 : index
    %c0_8 = arith.constant 0 : index
    %7 = vector.load %arg6[%c0_7, %c0_8] : memref<128x128xbf16, #tpu.memory_space<vmem>>, vector<128x128xbf16>
    %c0_9 = arith.constant 0 : index
    %c0_10 = arith.constant 0 : index
    %8 = vector.load %arg7[%c0_9, %c0_10] : memref<1x128xf32, #tpu.memory_space<vmem>>, vector<1x128xf32>
    %9 = vector.shape_cast %8 : vector<1x128xf32> to vector<128xf32>
    %c0_11 = arith.constant 0 : index
    %c0_12 = arith.constant 0 : index
    %10 = vector.load %arg8[%c0_11, %c0_12] : memref<1x128xf32, #tpu.memory_space<vmem>>, vector<1x128xf32>
    %11 = vector.shape_cast %10 : vector<1x128xf32> to vector<128xf32>
    %c0_13 = arith.constant 0 : index
    %c0_14 = arith.constant 0 : index
    %12 = vector.load %arg9[%c0_13, %c0_14] : memref<1x128xf32, #tpu.memory_space<vmem>>, vector<1x128xf32>
    %13 = vector.shape_cast %12 : vector<1x128xf32> to vector<128xf32>
    %c0_15 = arith.constant 0 : index
    %c0_16 = arith.constant 0 : index
    %14 = vector.load %arg10[%c0_15, %c0_16] : memref<128x128xbf16, #tpu.memory_space<vmem>>, vector<128x128xbf16>
    %c0_17 = arith.constant 0 : index
    %c0_18 = arith.constant 0 : index
    %15 = vector.load %arg11[%c0_17, %c0_18] : memref<1x128xf32, #tpu.memory_space<vmem>>, vector<1x128xf32>
    %16 = vector.shape_cast %15 : vector<1x128xf32> to vector<128xf32>
    %cst = arith.constant 0.000000e+00 : f32
    %17 = vector.broadcast %cst : f32 to vector<1x128xf32>
    %c0_19 = arith.constant 0 : index
    %c0_20 = arith.constant 0 : index
    %18 = vector.load %arg14[%c0_19, %c0_20] : memref<1x128xf32, #tpu.memory_space<vmem>>, vector<1x128xf32>
    tpu.vector_store %arg14[%c0_19, %c0_20], %17 {strides = array<i32>} : memref<1x128xf32, #tpu.memory_space<vmem>>, vector<1x128xf32>,
    %cst_21 = arith.constant 0.000000e+00 : f32
    %19 = vector.broadcast %cst_21 : f32 to vector<16x16x128xf32>
    %20 = vector.shape_cast %2 : vector<128xf32> to vector<1x1x128xf32>
    %21 = vector.broadcast %20 : vector<1x1x128xf32> to vector<16x16x128xf32>
    %22 = arith.addf %19, %21 : vector<16x16x128xf32>
    %c0_22 = arith.constant 0 : index
    %c0_23 = arith.constant 0 : index
    %c0_24 = arith.constant 0 : index
    %c0_25 = arith.constant 0 : index
    %23 = vector.load %arg1[%c0_22, %c0_23, %c0_24, %c0_25] : memref<1x22x22x128xf32, #tpu.memory_space<vmem>>, vector<1x16x16x128xf32>
    %24 = vector.shape_cast %23 : vector<1x16x16x128xf32> to vector<16x16x128xf32>
    %25 = vector.extract_strided_slice %0 {offsets = [0, 0], sizes = [1, 128], strides = [1, 1]} : vector<49x128xf32> to vector<1x128xf32>
    %26 = vector.shape_cast %25 : vector<1x128xf32> to vector<128xf32>
    %27 = vector.shape_cast %26 : vector<128xf32> to vector<1x1x128xf32>
    %28 = vector.broadcast %27 : vector<1x1x128xf32> to vector<16x16x128xf32>
    %29 = arith.mulf %24, %28 : vector<16x16x128xf32>
    %30 = arith.addf %22, %29 : vector<16x16x128xf32>
    %c0_26 = arith.constant 0 : index
    %c0_27 = arith.constant 0 : index
    %c1 = arith.constant 1 : index
    %c0_28 = arith.constant 0 : index
    %31 = vector.load %arg1[%c0_26, %c0_27, %c1, %c0_28] : memref<1x22x22x128xf32, #tpu.memory_space<vmem>>, vector<1x16x16x128xf32>
    %32 = vector.shape_cast %31 : vector<1x16x16x128xf32> to vector<16x16x128xf32>
    %33 = vector.extract_strided_slice %0 {offsets = [1, 0], sizes = [1, 128], strides = [1, 1]} : vector<49x128xf32> to vector<1x128xf32>
    %34 = vector.shape_cast %33 : vector<1x128xf32> to vector<128xf32>
    %35 = vector.shape_cast %34 : vector<128xf32> to vector<1x1x128xf32>
    %36 = vector.broadcast %35 : vector<1x1x128xf32> to vector<16x16x128xf32>
    %37 = arith.mulf %32, %36 : vector<16x16x128xf32>
    %38 = arith.addf %30, %37 : vector<16x16x128xf32>
    %c0_29 = arith.constant 0 : index
    %c0_30 = arith.constant 0 : index
    %c2 = arith.constant 2 : index
    %c0_31 = arith.constant 0 : index
    %39 = vector.load %arg1[%c0_29, %c0_30, %c2, %c0_31] : memref<1x22x22x128xf32, #tpu.memory_space<vmem>>, vector<1x16x16x128xf32>
    %40 = vector.shape_cast %39 : vector<1x16x16x128xf32> to vector<16x16x128xf32>
    %41 = vector.extract_strided_slice %0 {offsets = [2, 0], sizes = [1, 128], strides = [1, 1]} : vector<49x128xf32> to vector<1x128xf32>
    %42 = vector.shape_cast %41 : vector<1x128xf32> to vector<128xf32>
    %43 = vector.shape_cast %42 : vector<128xf32> to vector<1x1x128xf32>
    %44 = vector.broadcast %43 : vector<1x1x128xf32> to vector<16x16x128xf32>
    %45 = arith.mulf %40, %44 : vector<16x16x128xf32>
    %46 = arith.addf %38, %45 : vector<16x16x128xf32>
    %c0_32 = arith.constant 0 : index
    %c0_33 = arith.constant 0 : index
    %c3 = arith.constant 3 : index
    %c0_34 = arith.constant 0 : index
    %47 = vector.load %arg1[%c0_32, %c0_33, %c3, %c0_34] : memref<1x22x22x128xf32, #tpu.memory_space<vmem>>, vector<1x16x16x128xf32>
    %48 = vector.shape_cast %47 : vector<1x16x16x128xf32> to vector<16x16x128xf32>
    %49 = vector.extract_strided_slice %0 {offsets = [3, 0], sizes = [1, 128], strides = [1, 1]} : vector<49x128xf32> to vector<1x128xf32>
    %50 = vector.shape_cast %49 : vector<1x128xf32> to vector<128xf32>
    %51 = vector.shape_cast %50 : vector<128xf32> to vector<1x1x128xf32>
    %52 = vector.broadcast %51 : vector<1x1x128xf32> to vector<16x16x128xf32>
    %53 = arith.mulf %48, %52 : vector<16x16x128xf32>
    %54 = arith.addf %46, %53 : vector<16x16x128xf32>
    %c0_35 = arith.constant 0 : index
    %c0_36 = arith.constant 0 : index
    %c4 = arith.constant 4 : index
    %c0_37 = arith.constant 0 : index
    %55 = vector.load %arg1[%c0_35, %c0_36, %c4, %c0_37] : memref<1x22x22x128xf32, #tpu.memory_space<vmem>>, vector<1x16x16x128xf32>
    %56 = vector.shape_cast %55 : vector<1x16x16x128xf32> to vector<16x16x128xf32>
    %57 = vector.extract_strided_slice %0 {offsets = [4, 0], sizes = [1, 128], strides = [1, 1]} : vector<49x128xf32> to vector<1x128xf32>
    %58 = vector.shape_cast %57 : vector<1x128xf32> to vector<128xf32>
    %59 = vector.shape_cast %58 : vector<128xf32> to vector<1x1x128xf32>
    %60 = vector.broadcast %59 : vector<1x1x128xf32> to vector<16x16x128xf32>
    %61 = arith.mulf %56, %60 : vector<16x16x128xf32>
    %62 = arith.addf %54, %61 : vector<16x16x128xf32>
    %c0_38 = arith.constant 0 : index
    %c0_39 = arith.constant 0 : index
    %c5 = arith.constant 5 : index
    %c0_40 = arith.constant 0 : index
    %63 = vector.load %arg1[%c0_38, %c0_39, %c5, %c0_40] : memref<1x22x22x128xf32, #tpu.memory_space<vmem>>, vector<1x16x16x128xf32>
    %64 = vector.shape_cast %63 : vector<1x16x16x128xf32> to vector<16x16x128xf32>
    %65 = vector.extract_strided_slice %0 {offsets = [5, 0], sizes = [1, 128], strides = [1, 1]} : vector<49x128xf32> to vector<1x128xf32>
    %66 = vector.shape_cast %65 : vector<1x128xf32> to vector<128xf32>
    %67 = vector.shape_cast %66 : vector<128xf32> to vector<1x1x128xf32>
    %68 = vector.broadcast %67 : vector<1x1x128xf32> to vector<16x16x128xf32>
    %69 = arith.mulf %64, %68 : vector<16x16x128xf32>
    %70 = arith.addf %62, %69 : vector<16x16x128xf32>
    %c0_41 = arith.constant 0 : index
    %c0_42 = arith.constant 0 : index
    %c6 = arith.constant 6 : index
    %c0_43 = arith.constant 0 : index
    %71 = vector.load %arg1[%c0_41, %c0_42, %c6, %c0_43] : memref<1x22x22x128xf32, #tpu.memory_space<vmem>>, vector<1x16x16x128xf32>
    %72 = vector.shape_cast %71 : vector<1x16x16x128xf32> to vector<16x16x128xf32>
    %73 = vector.extract_strided_slice %0 {offsets = [6, 0], sizes = [1, 128], strides = [1, 1]} : vector<49x128xf32> to vector<1x128xf32>
    %74 = vector.shape_cast %73 : vector<1x128xf32> to vector<128xf32>
    %75 = vector.shape_cast %74 : vector<128xf32> to vector<1x1x128xf32>
    %76 = vector.broadcast %75 : vector<1x1x128xf32> to vector<16x16x128xf32>
    %77 = arith.mulf %72, %76 : vector<16x16x128xf32>
    %78 = arith.addf %70, %77 : vector<16x16x128xf32>
    %c0_44 = arith.constant 0 : index
    %c1_45 = arith.constant 1 : index
    %c0_46 = arith.constant 0 : index
    %c0_47 = arith.constant 0 : index
    %79 = vector.load %arg1[%c0_44, %c1_45, %c0_46, %c0_47] : memref<1x22x22x128xf32, #tpu.memory_space<vmem>>, vector<1x16x16x128xf32>
    %80 = vector.shape_cast %79 : vector<1x16x16x128xf32> to vector<16x16x128xf32>
    %81 = vector.extract_strided_slice %0 {offsets = [7, 0], sizes = [1, 128], strides = [1, 1]} : vector<49x128xf32> to vector<1x128xf32>
    %82 = vector.shape_cast %81 : vector<1x128xf32> to vector<128xf32>
    %83 = vector.shape_cast %82 : vector<128xf32> to vector<1x1x128xf32>
    %84 = vector.broadcast %83 : vector<1x1x128xf32> to vector<16x16x128xf32>
    %85 = arith.mulf %80, %84 : vector<16x16x128xf32>
    %86 = arith.addf %78, %85 : vector<16x16x128xf32>
    %c0_48 = arith.constant 0 : index
    %c1_49 = arith.constant 1 : index
    %c1_50 = arith.constant 1 : index
    %c0_51 = arith.constant 0 : index
    %87 = vector.load %arg1[%c0_48, %c1_49, %c1_50, %c0_51] : memref<1x22x22x128xf32, #tpu.memory_space<vmem>>, vector<1x16x16x128xf32>
    %88 = vector.shape_cast %87 : vector<1x16x16x128xf32> to vector<16x16x128xf32>
    %89 = vector.extract_strided_slice %0 {offsets = [8, 0], sizes = [1, 128], strides = [1, 1]} : vector<49x128xf32> to vector<1x128xf32>
    %90 = vector.shape_cast %89 : vector<1x128xf32> to vector<128xf32>
    %91 = vector.shape_cast %90 : vector<128xf32> to vector<1x1x128xf32>
    %92 = vector.broadcast %91 : vector<1x1x128xf32> to vector<16x16x128xf32>
    %93 = arith.mulf %88, %92 : vector<16x16x128xf32>
    %94 = arith.addf %86, %93 : vector<16x16x128xf32>
    %c0_52 = arith.constant 0 : index
    %c1_53 = arith.constant 1 : index
    %c2_54 = arith.constant 2 : index
    %c0_55 = arith.constant 0 : index
    %95 = vector.load %arg1[%c0_52, %c1_53, %c2_54, %c0_55] : memref<1x22x22x128xf32, #tpu.memory_space<vmem>>, vector<1x16x16x128xf32>
    %96 = vector.shape_cast %95 : vector<1x16x16x128xf32> to vector<16x16x128xf32>
    %97 = vector.extract_strided_slice %0 {offsets = [9, 0], sizes = [1, 128], strides = [1, 1]} : vector<49x128xf32> to vector<1x128xf32>
    %98 = vector.shape_cast %97 : vector<1x128xf32> to vector<128xf32>
    %99 = vector.shape_cast %98 : vector<128xf32> to vector<1x1x128xf32>
    %100 = vector.broadcast %99 : vector<1x1x128xf32> to vector<16x16x128xf32>
    %101 = arith.mulf %96, %100 : vector<16x16x128xf32>
    %102 = arith.addf %94, %101 : vector<16x16x128xf32>
    %c0_56 = arith.constant 0 : index
    %c1_57 = arith.constant 1 : index
    %c3_58 = arith.constant 3 : index
    %c0_59 = arith.constant 0 : index
    %103 = vector.load %arg1[%c0_56, %c1_57, %c3_58, %c0_59] : memref<1x22x22x128xf32, #tpu.memory_space<vmem>>, vector<1x16x16x128xf32>
    %104 = vector.shape_cast %103 : vector<1x16x16x128xf32> to vector<16x16x128xf32>
    %105 = vector.extract_strided_slice %0 {offsets = [10, 0], sizes = [1, 128], strides = [1, 1]} : vector<49x128xf32> to vector<1x128xf32>
    %106 = vector.shape_cast %105 : vector<1x128xf32> to vector<128xf32>
    %107 = vector.shape_cast %106 : vector<128xf32> to vector<1x1x128xf32>
    %108 = vector.broadcast %107 : vector<1x1x128xf32> to vector<16x16x128xf32>
    %109 = arith.mulf %104, %108 : vector<16x16x128xf32>
    %110 = arith.addf %102, %109 : vector<16x16x128xf32>
    %c0_60 = arith.constant 0 : index
    %c1_61 = arith.constant 1 : index
    %c4_62 = arith.constant 4 : index
    %c0_63 = arith.constant 0 : index
    %111 = vector.load %arg1[%c0_60, %c1_61, %c4_62, %c0_63] : memref<1x22x22x128xf32, #tpu.memory_space<vmem>>, vector<1x16x16x128xf32>
    %112 = vector.shape_cast %111 : vector<1x16x16x128xf32> to vector<16x16x128xf32>
    %113 = vector.extract_strided_slice %0 {offsets = [11, 0], sizes = [1, 128], strides = [1, 1]} : vector<49x128xf32> to vector<1x128xf32>
    %114 = vector.shape_cast %113 : vector<1x128xf32> to vector<128xf32>
    %115 = vector.shape_cast %114 : vector<128xf32> to vector<1x1x128xf32>
    %116 = vector.broadcast %115 : vector<1x1x128xf32> to vector<16x16x128xf32>
    %117 = arith.mulf %112, %116 : vector<16x16x128xf32>
    %118 = arith.addf %110, %117 : vector<16x16x128xf32>
    %c0_64 = arith.constant 0 : index
    %c1_65 = arith.constant 1 : index
    %c5_66 = arith.constant 5 : index
    %c0_67 = arith.constant 0 : index
    %119 = vector.load %arg1[%c0_64, %c1_65, %c5_66, %c0_67] : memref<1x22x22x128xf32, #tpu.memory_space<vmem>>, vector<1x16x16x128xf32>
    %120 = vector.shape_cast %119 : vector<1x16x16x128xf32> to vector<16x16x128xf32>
    %121 = vector.extract_strided_slice %0 {offsets = [12, 0], sizes = [1, 128], strides = [1, 1]} : vector<49x128xf32> to vector<1x128xf32>
    %122 = vector.shape_cast %121 : vector<1x128xf32> to vector<128xf32>
    %123 = vector.shape_cast %122 : vector<128xf32> to vector<1x1x128xf32>
    %124 = vector.broadcast %123 : vector<1x1x128xf32> to vector<16x16x128xf32>
    %125 = arith.mulf %120, %124 : vector<16x16x128xf32>
    %126 = arith.addf %118, %125 : vector<16x16x128xf32>
    %c0_68 = arith.constant 0 : index
    %c1_69 = arith.constant 1 : index
    %c6_70 = arith.constant 6 : index
    %c0_71 = arith.constant 0 : index
    %127 = vector.load %arg1[%c0_68, %c1_69, %c6_70, %c0_71] : memref<1x22x22x128xf32, #tpu.memory_space<vmem>>, vector<1x16x16x128xf32>
    %128 = vector.shape_cast %127 : vector<1x16x16x128xf32> to vector<16x16x128xf32>
    %129 = vector.extract_strided_slice %0 {offsets = [13, 0], sizes = [1, 128], strides = [1, 1]} : vector<49x128xf32> to vector<1x128xf32>
    %130 = vector.shape_cast %129 : vector<1x128xf32> to vector<128xf32>
    %131 = vector.shape_cast %130 : vector<128xf32> to vector<1x1x128xf32>
    %132 = vector.broadcast %131 : vector<1x1x128xf32> to vector<16x16x128xf32>
    %133 = arith.mulf %128, %132 : vector<16x16x128xf32>
    %134 = arith.addf %126, %133 : vector<16x16x128xf32>
    %c0_72 = arith.constant 0 : index
    %c2_73 = arith.constant 2 : index
    %c0_74 = arith.constant 0 : index
    %c0_75 = arith.constant 0 : index
    %135 = vector.load %arg1[%c0_72, %c2_73, %c0_74, %c0_75] : memref<1x22x22x128xf32, #tpu.memory_space<vmem>>, vector<1x16x16x128xf32>
    %136 = vector.shape_cast %135 : vector<1x16x16x128xf32> to vector<16x16x128xf32>
    %137 = vector.extract_strided_slice %0 {offsets = [14, 0], sizes = [1, 128], strides = [1, 1]} : vector<49x128xf32> to vector<1x128xf32>
    %138 = vector.shape_cast %137 : vector<1x128xf32> to vector<128xf32>
    %139 = vector.shape_cast %138 : vector<128xf32> to vector<1x1x128xf32>
    %140 = vector.broadcast %139 : vector<1x1x128xf32> to vector<16x16x128xf32>
    %141 = arith.mulf %136, %140 : vector<16x16x128xf32>
    %142 = arith.addf %134, %141 : vector<16x16x128xf32>
    %c0_76 = arith.constant 0 : index
    %c2_77 = arith.constant 2 : index
    %c1_78 = arith.constant 1 : index
    %c0_79 = arith.constant 0 : index
    %143 = vector.load %arg1[%c0_76, %c2_77, %c1_78, %c0_79] : memref<1x22x22x128xf32, #tpu.memory_space<vmem>>, vector<1x16x16x128xf32>
    %144 = vector.shape_cast %143 : vector<1x16x16x128xf32> to vector<16x16x128xf32>
    %145 = vector.extract_strided_slice %0 {offsets = [15, 0], sizes = [1, 128], strides = [1, 1]} : vector<49x128xf32> to vector<1x128xf32>
    %146 = vector.shape_cast %145 : vector<1x128xf32> to vector<128xf32>
    %147 = vector.shape_cast %146 : vector<128xf32> to vector<1x1x128xf32>
    %148 = vector.broadcast %147 : vector<1x1x128xf32> to vector<16x16x128xf32>
    %149 = arith.mulf %144, %148 : vector<16x16x128xf32>
    %150 = arith.addf %142, %149 : vector<16x16x128xf32>
    %c0_80 = arith.constant 0 : index
    %c2_81 = arith.constant 2 : index
    %c2_82 = arith.constant 2 : index
    %c0_83 = arith.constant 0 : index
    %151 = vector.load %arg1[%c0_80, %c2_81, %c2_82, %c0_83] : memref<1x22x22x128xf32, #tpu.memory_space<vmem>>, vector<1x16x16x128xf32>
    %152 = vector.shape_cast %151 : vector<1x16x16x128xf32> to vector<16x16x128xf32>
    %153 = vector.extract_strided_slice %0 {offsets = [16, 0], sizes = [1, 128], strides = [1, 1]} : vector<49x128xf32> to vector<1x128xf32>
    %154 = vector.shape_cast %153 : vector<1x128xf32> to vector<128xf32>
    %155 = vector.shape_cast %154 : vector<128xf32> to vector<1x1x128xf32>
    %156 = vector.broadcast %155 : vector<1x1x128xf32> to vector<16x16x128xf32>
    %157 = arith.mulf %152, %156 : vector<16x16x128xf32>
    %158 = arith.addf %150, %157 : vector<16x16x128xf32>
    %c0_84 = arith.constant 0 : index
    %c2_85 = arith.constant 2 : index
    %c3_86 = arith.constant 3 : index
    %c0_87 = arith.constant 0 : index
    %159 = vector.load %arg1[%c0_84, %c2_85, %c3_86, %c0_87] : memref<1x22x22x128xf32, #tpu.memory_space<vmem>>, vector<1x16x16x128xf32>
    %160 = vector.shape_cast %159 : vector<1x16x16x128xf32> to vector<16x16x128xf32>
    %161 = vector.extract_strided_slice %0 {offsets = [17, 0], sizes = [1, 128], strides = [1, 1]} : vector<49x128xf32> to vector<1x128xf32>
    %162 = vector.shape_cast %161 : vector<1x128xf32> to vector<128xf32>
    %163 = vector.shape_cast %162 : vector<128xf32> to vector<1x1x128xf32>
    %164 = vector.broadcast %163 : vector<1x1x128xf32> to vector<16x16x128xf32>
    %165 = arith.mulf %160, %164 : vector<16x16x128xf32>
    %166 = arith.addf %158, %165 : vector<16x16x128xf32>
    %c0_88 = arith.constant 0 : index
    %c2_89 = arith.constant 2 : index
    %c4_90 = arith.constant 4 : index
    %c0_91 = arith.constant 0 : index
    %167 = vector.load %arg1[%c0_88, %c2_89, %c4_90, %c0_91] : memref<1x22x22x128xf32, #tpu.memory_space<vmem>>, vector<1x16x16x128xf32>
    %168 = vector.shape_cast %167 : vector<1x16x16x128xf32> to vector<16x16x128xf32>
    %169 = vector.extract_strided_slice %0 {offsets = [18, 0], sizes = [1, 128], strides = [1, 1]} : vector<49x128xf32> to vector<1x128xf32>
    %170 = vector.shape_cast %169 : vector<1x128xf32> to vector<128xf32>
    %171 = vector.shape_cast %170 : vector<128xf32> to vector<1x1x128xf32>
    %172 = vector.broadcast %171 : vector<1x1x128xf32> to vector<16x16x128xf32>
    %173 = arith.mulf %168, %172 : vector<16x16x128xf32>
    %174 = arith.addf %166, %173 : vector<16x16x128xf32>
    %c0_92 = arith.constant 0 : index
    %c2_93 = arith.constant 2 : index
    %c5_94 = arith.constant 5 : index
    %c0_95 = arith.constant 0 : index
    %175 = vector.load %arg1[%c0_92, %c2_93, %c5_94, %c0_95] : memref<1x22x22x128xf32, #tpu.memory_space<vmem>>, vector<1x16x16x128xf32>
    %176 = vector.shape_cast %175 : vector<1x16x16x128xf32> to vector<16x16x128xf32>
    %177 = vector.extract_strided_slice %0 {offsets = [19, 0], sizes = [1, 128], strides = [1, 1]} : vector<49x128xf32> to vector<1x128xf32>
    %178 = vector.shape_cast %177 : vector<1x128xf32> to vector<128xf32>
    %179 = vector.shape_cast %178 : vector<128xf32> to vector<1x1x128xf32>
    %180 = vector.broadcast %179 : vector<1x1x128xf32> to vector<16x16x128xf32>
    %181 = arith.mulf %176, %180 : vector<16x16x128xf32>
    %182 = arith.addf %174, %181 : vector<16x16x128xf32>
    %c0_96 = arith.constant 0 : index
    %c2_97 = arith.constant 2 : index
    %c6_98 = arith.constant 6 : index
    %c0_99 = arith.constant 0 : index
    %183 = vector.load %arg1[%c0_96, %c2_97, %c6_98, %c0_99] : memref<1x22x22x128xf32, #tpu.memory_space<vmem>>, vector<1x16x16x128xf32>
    %184 = vector.shape_cast %183 : vector<1x16x16x128xf32> to vector<16x16x128xf32>
    %185 = vector.extract_strided_slice %0 {offsets = [20, 0], sizes = [1, 128], strides = [1, 1]} : vector<49x128xf32> to vector<1x128xf32>
    %186 = vector.shape_cast %185 : vector<1x128xf32> to vector<128xf32>
    %187 = vector.shape_cast %186 : vector<128xf32> to vector<1x1x128xf32>
    %188 = vector.broadcast %187 : vector<1x1x128xf32> to vector<16x16x128xf32>
    %189 = arith.mulf %184, %188 : vector<16x16x128xf32>
    %190 = arith.addf %182, %189 : vector<16x16x128xf32>
    %c0_100 = arith.constant 0 : index
    %c3_101 = arith.constant 3 : index
    %c0_102 = arith.constant 0 : index
    %c0_103 = arith.constant 0 : index
    %191 = vector.load %arg1[%c0_100, %c3_101, %c0_102, %c0_103] : memref<1x22x22x128xf32, #tpu.memory_space<vmem>>, vector<1x16x16x128xf32>
    %192 = vector.shape_cast %191 : vector<1x16x16x128xf32> to vector<16x16x128xf32>
    %193 = vector.extract_strided_slice %0 {offsets = [21, 0], sizes = [1, 128], strides = [1, 1]} : vector<49x128xf32> to vector<1x128xf32>
    %194 = vector.shape_cast %193 : vector<1x128xf32> to vector<128xf32>
    %195 = vector.shape_cast %194 : vector<128xf32> to vector<1x1x128xf32>
    %196 = vector.broadcast %195 : vector<1x1x128xf32> to vector<16x16x128xf32>
    %197 = arith.mulf %192, %196 : vector<16x16x128xf32>
    %198 = arith.addf %190, %197 : vector<16x16x128xf32>
    %c0_104 = arith.constant 0 : index
    %c3_105 = arith.constant 3 : index
    %c1_106 = arith.constant 1 : index
    %c0_107 = arith.constant 0 : index
    %199 = vector.load %arg1[%c0_104, %c3_105, %c1_106, %c0_107] : memref<1x22x22x128xf32, #tpu.memory_space<vmem>>, vector<1x16x16x128xf32>
    %200 = vector.shape_cast %199 : vector<1x16x16x128xf32> to vector<16x16x128xf32>
    %201 = vector.extract_strided_slice %0 {offsets = [22, 0], sizes = [1, 128], strides = [1, 1]} : vector<49x128xf32> to vector<1x128xf32>
    %202 = vector.shape_cast %201 : vector<1x128xf32> to vector<128xf32>
    %203 = vector.shape_cast %202 : vector<128xf32> to vector<1x1x128xf32>
    %204 = vector.broadcast %203 : vector<1x1x128xf32> to vector<16x16x128xf32>
    %205 = arith.mulf %200, %204 : vector<16x16x128xf32>
    %206 = arith.addf %198, %205 : vector<16x16x128xf32>
    %c0_108 = arith.constant 0 : index
    %c3_109 = arith.constant 3 : index
    %c2_110 = arith.constant 2 : index
    %c0_111 = arith.constant 0 : index
    %207 = vector.load %arg1[%c0_108, %c3_109, %c2_110, %c0_111] : memref<1x22x22x128xf32, #tpu.memory_space<vmem>>, vector<1x16x16x128xf32>
    %208 = vector.shape_cast %207 : vector<1x16x16x128xf32> to vector<16x16x128xf32>
    %209 = vector.extract_strided_slice %0 {offsets = [23, 0], sizes = [1, 128], strides = [1, 1]} : vector<49x128xf32> to vector<1x128xf32>
    %210 = vector.shape_cast %209 : vector<1x128xf32> to vector<128xf32>
    %211 = vector.shape_cast %210 : vector<128xf32> to vector<1x1x128xf32>
    %212 = vector.broadcast %211 : vector<1x1x128xf32> to vector<16x16x128xf32>
    %213 = arith.mulf %208, %212 : vector<16x16x128xf32>
    %214 = arith.addf %206, %213 : vector<16x16x128xf32>
    %c0_112 = arith.constant 0 : index
    %c3_113 = arith.constant 3 : index
    %c3_114 = arith.constant 3 : index
    %c0_115 = arith.constant 0 : index
    %215 = vector.load %arg1[%c0_112, %c3_113, %c3_114, %c0_115] : memref<1x22x22x128xf32, #tpu.memory_space<vmem>>, vector<1x16x16x128xf32>
    %216 = vector.shape_cast %215 : vector<1x16x16x128xf32> to vector<16x16x128xf32>
    %217 = vector.extract_strided_slice %0 {offsets = [24, 0], sizes = [1, 128], strides = [1, 1]} : vector<49x128xf32> to vector<1x128xf32>
    %218 = vector.shape_cast %217 : vector<1x128xf32> to vector<128xf32>
    %219 = vector.shape_cast %218 : vector<128xf32> to vector<1x1x128xf32>
    %220 = vector.broadcast %219 : vector<1x1x128xf32> to vector<16x16x128xf32>
    %221 = arith.mulf %216, %220 : vector<16x16x128xf32>
    %222 = arith.addf %214, %221 : vector<16x16x128xf32>
    %c0_116 = arith.constant 0 : index
    %c3_117 = arith.constant 3 : index
    %c4_118 = arith.constant 4 : index
    %c0_119 = arith.constant 0 : index
    %223 = vector.load %arg1[%c0_116, %c3_117, %c4_118, %c0_119] : memref<1x22x22x128xf32, #tpu.memory_space<vmem>>, vector<1x16x16x128xf32>
    %224 = vector.shape_cast %223 : vector<1x16x16x128xf32> to vector<16x16x128xf32>
    %225 = vector.extract_strided_slice %0 {offsets = [25, 0], sizes = [1, 128], strides = [1, 1]} : vector<49x128xf32> to vector<1x128xf32>
    %226 = vector.shape_cast %225 : vector<1x128xf32> to vector<128xf32>
    %227 = vector.shape_cast %226 : vector<128xf32> to vector<1x1x128xf32>
    %228 = vector.broadcast %227 : vector<1x1x128xf32> to vector<16x16x128xf32>
    %229 = arith.mulf %224, %228 : vector<16x16x128xf32>
    %230 = arith.addf %222, %229 : vector<16x16x128xf32>
    %c0_120 = arith.constant 0 : index
    %c3_121 = arith.constant 3 : index
    %c5_122 = arith.constant 5 : index
    %c0_123 = arith.constant 0 : index
    %231 = vector.load %arg1[%c0_120, %c3_121, %c5_122, %c0_123] : memref<1x22x22x128xf32, #tpu.memory_space<vmem>>, vector<1x16x16x128xf32>
    %232 = vector.shape_cast %231 : vector<1x16x16x128xf32> to vector<16x16x128xf32>
    %233 = vector.extract_strided_slice %0 {offsets = [26, 0], sizes = [1, 128], strides = [1, 1]} : vector<49x128xf32> to vector<1x128xf32>
    %234 = vector.shape_cast %233 : vector<1x128xf32> to vector<128xf32>
    %235 = vector.shape_cast %234 : vector<128xf32> to vector<1x1x128xf32>
    %236 = vector.broadcast %235 : vector<1x1x128xf32> to vector<16x16x128xf32>
    %237 = arith.mulf %232, %236 : vector<16x16x128xf32>
    %238 = arith.addf %230, %237 : vector<16x16x128xf32>
    %c0_124 = arith.constant 0 : index
    %c3_125 = arith.constant 3 : index
    %c6_126 = arith.constant 6 : index
    %c0_127 = arith.constant 0 : index
    %239 = vector.load %arg1[%c0_124, %c3_125, %c6_126, %c0_127] : memref<1x22x22x128xf32, #tpu.memory_space<vmem>>, vector<1x16x16x128xf32>
    %240 = vector.shape_cast %239 : vector<1x16x16x128xf32> to vector<16x16x128xf32>
    %241 = vector.extract_strided_slice %0 {offsets = [27, 0], sizes = [1, 128], strides = [1, 1]} : vector<49x128xf32> to vector<1x128xf32>
    %242 = vector.shape_cast %241 : vector<1x128xf32> to vector<128xf32>
    %243 = vector.shape_cast %242 : vector<128xf32> to vector<1x1x128xf32>
    %244 = vector.broadcast %243 : vector<1x1x128xf32> to vector<16x16x128xf32>
    %245 = arith.mulf %240, %244 : vector<16x16x128xf32>
    %246 = arith.addf %238, %245 : vector<16x16x128xf32>
    %c0_128 = arith.constant 0 : index
    %c4_129 = arith.constant 4 : index
    %c0_130 = arith.constant 0 : index
    %c0_131 = arith.constant 0 : index
    %247 = vector.load %arg1[%c0_128, %c4_129, %c0_130, %c0_131] : memref<1x22x22x128xf32, #tpu.memory_space<vmem>>, vector<1x16x16x128xf32>
    %248 = vector.shape_cast %247 : vector<1x16x16x128xf32> to vector<16x16x128xf32>
    %249 = vector.extract_strided_slice %0 {offsets = [28, 0], sizes = [1, 128], strides = [1, 1]} : vector<49x128xf32> to vector<1x128xf32>
    %250 = vector.shape_cast %249 : vector<1x128xf32> to vector<128xf32>
    %251 = vector.shape_cast %250 : vector<128xf32> to vector<1x1x128xf32>
    %252 = vector.broadcast %251 : vector<1x1x128xf32> to vector<16x16x128xf32>
    %253 = arith.mulf %248, %252 : vector<16x16x128xf32>
    %254 = arith.addf %246, %253 : vector<16x16x128xf32>
    %c0_132 = arith.constant 0 : index
    %c4_133 = arith.constant 4 : index
    %c1_134 = arith.constant 1 : index
    %c0_135 = arith.constant 0 : index
    %255 = vector.load %arg1[%c0_132, %c4_133, %c1_134, %c0_135] : memref<1x22x22x128xf32, #tpu.memory_space<vmem>>, vector<1x16x16x128xf32>
    %256 = vector.shape_cast %255 : vector<1x16x16x128xf32> to vector<16x16x128xf32>
    %257 = vector.extract_strided_slice %0 {offsets = [29, 0], sizes = [1, 128], strides = [1, 1]} : vector<49x128xf32> to vector<1x128xf32>
    %258 = vector.shape_cast %257 : vector<1x128xf32> to vector<128xf32>
    %259 = vector.shape_cast %258 : vector<128xf32> to vector<1x1x128xf32>
    %260 = vector.broadcast %259 : vector<1x1x128xf32> to vector<16x16x128xf32>
    %261 = arith.mulf %256, %260 : vector<16x16x128xf32>
    %262 = arith.addf %254, %261 : vector<16x16x128xf32>
    %c0_136 = arith.constant 0 : index
    %c4_137 = arith.constant 4 : index
    %c2_138 = arith.constant 2 : index
    %c0_139 = arith.constant 0 : index
    %263 = vector.load %arg1[%c0_136, %c4_137, %c2_138, %c0_139] : memref<1x22x22x128xf32, #tpu.memory_space<vmem>>, vector<1x16x16x128xf32>
    %264 = vector.shape_cast %263 : vector<1x16x16x128xf32> to vector<16x16x128xf32>
    %265 = vector.extract_strided_slice %0 {offsets = [30, 0], sizes = [1, 128], strides = [1, 1]} : vector<49x128xf32> to vector<1x128xf32>
    %266 = vector.shape_cast %265 : vector<1x128xf32> to vector<128xf32>
    %267 = vector.shape_cast %266 : vector<128xf32> to vector<1x1x128xf32>
    %268 = vector.broadcast %267 : vector<1x1x128xf32> to vector<16x16x128xf32>
    %269 = arith.mulf %264, %268 : vector<16x16x128xf32>
    %270 = arith.addf %262, %269 : vector<16x16x128xf32>
    %c0_140 = arith.constant 0 : index
    %c4_141 = arith.constant 4 : index
    %c3_142 = arith.constant 3 : index
    %c0_143 = arith.constant 0 : index
    %271 = vector.load %arg1[%c0_140, %c4_141, %c3_142, %c0_143] : memref<1x22x22x128xf32, #tpu.memory_space<vmem>>, vector<1x16x16x128xf32>
    %272 = vector.shape_cast %271 : vector<1x16x16x128xf32> to vector<16x16x128xf32>
    %273 = vector.extract_strided_slice %0 {offsets = [31, 0], sizes = [1, 128], strides = [1, 1]} : vector<49x128xf32> to vector<1x128xf32>
    %274 = vector.shape_cast %273 : vector<1x128xf32> to vector<128xf32>
    %275 = vector.shape_cast %274 : vector<128xf32> to vector<1x1x128xf32>
    %276 = vector.broadcast %275 : vector<1x1x128xf32> to vector<16x16x128xf32>
    %277 = arith.mulf %272, %276 : vector<16x16x128xf32>
    %278 = arith.addf %270, %277 : vector<16x16x128xf32>
    %c0_144 = arith.constant 0 : index
    %c4_145 = arith.constant 4 : index
    %c4_146 = arith.constant 4 : index
    %c0_147 = arith.constant 0 : index
    %279 = vector.load %arg1[%c0_144, %c4_145, %c4_146, %c0_147] : memref<1x22x22x128xf32, #tpu.memory_space<vmem>>, vector<1x16x16x128xf32>
    %280 = vector.shape_cast %279 : vector<1x16x16x128xf32> to vector<16x16x128xf32>
    %281 = vector.extract_strided_slice %0 {offsets = [32, 0], sizes = [1, 128], strides = [1, 1]} : vector<49x128xf32> to vector<1x128xf32>
    %282 = vector.shape_cast %281 : vector<1x128xf32> to vector<128xf32>
    %283 = vector.shape_cast %282 : vector<128xf32> to vector<1x1x128xf32>
    %284 = vector.broadcast %283 : vector<1x1x128xf32> to vector<16x16x128xf32>
    %285 = arith.mulf %280, %284 : vector<16x16x128xf32>
    %286 = arith.addf %278, %285 : vector<16x16x128xf32>
    %c0_148 = arith.constant 0 : index
    %c4_149 = arith.constant 4 : index
    %c5_150 = arith.constant 5 : index
    %c0_151 = arith.constant 0 : index
    %287 = vector.load %arg1[%c0_148, %c4_149, %c5_150, %c0_151] : memref<1x22x22x128xf32, #tpu.memory_space<vmem>>, vector<1x16x16x128xf32>
    %288 = vector.shape_cast %287 : vector<1x16x16x128xf32> to vector<16x16x128xf32>
    %289 = vector.extract_strided_slice %0 {offsets = [33, 0], sizes = [1, 128], strides = [1, 1]} : vector<49x128xf32> to vector<1x128xf32>
    %290 = vector.shape_cast %289 : vector<1x128xf32> to vector<128xf32>
    %291 = vector.shape_cast %290 : vector<128xf32> to vector<1x1x128xf32>
    %292 = vector.broadcast %291 : vector<1x1x128xf32> to vector<16x16x128xf32>
    %293 = arith.mulf %288, %292 : vector<16x16x128xf32>
    %294 = arith.addf %286, %293 : vector<16x16x128xf32>
    %c0_152 = arith.constant 0 : index
    %c4_153 = arith.constant 4 : index
    %c6_154 = arith.constant 6 : index
    %c0_155 = arith.constant 0 : index
    %295 = vector.load %arg1[%c0_152, %c4_153, %c6_154, %c0_155] : memref<1x22x22x128xf32, #tpu.memory_space<vmem>>, vector<1x16x16x128xf32>
    %296 = vector.shape_cast %295 : vector<1x16x16x128xf32> to vector<16x16x128xf32>
    %297 = vector.extract_strided_slice %0 {offsets = [34, 0], sizes = [1, 128], strides = [1, 1]} : vector<49x128xf32> to vector<1x128xf32>
    %298 = vector.shape_cast %297 : vector<1x128xf32> to vector<128xf32>
    %299 = vector.shape_cast %298 : vector<128xf32> to vector<1x1x128xf32>
    %300 = vector.broadcast %299 : vector<1x1x128xf32> to vector<16x16x128xf32>
    %301 = arith.mulf %296, %300 : vector<16x16x128xf32>
    %302 = arith.addf %294, %301 : vector<16x16x128xf32>
    %c0_156 = arith.constant 0 : index
    %c5_157 = arith.constant 5 : index
    %c0_158 = arith.constant 0 : index
    %c0_159 = arith.constant 0 : index
    %303 = vector.load %arg1[%c0_156, %c5_157, %c0_158, %c0_159] : memref<1x22x22x128xf32, #tpu.memory_space<vmem>>, vector<1x16x16x128xf32>
    %304 = vector.shape_cast %303 : vector<1x16x16x128xf32> to vector<16x16x128xf32>
    %305 = vector.extract_strided_slice %0 {offsets = [35, 0], sizes = [1, 128], strides = [1, 1]} : vector<49x128xf32> to vector<1x128xf32>
    %306 = vector.shape_cast %305 : vector<1x128xf32> to vector<128xf32>
    %307 = vector.shape_cast %306 : vector<128xf32> to vector<1x1x128xf32>
    %308 = vector.broadcast %307 : vector<1x1x128xf32> to vector<16x16x128xf32>
    %309 = arith.mulf %304, %308 : vector<16x16x128xf32>
    %310 = arith.addf %302, %309 : vector<16x16x128xf32>
    %c0_160 = arith.constant 0 : index
    %c5_161 = arith.constant 5 : index
    %c1_162 = arith.constant 1 : index
    %c0_163 = arith.constant 0 : index
    %311 = vector.load %arg1[%c0_160, %c5_161, %c1_162, %c0_163] : memref<1x22x22x128xf32, #tpu.memory_space<vmem>>, vector<1x16x16x128xf32>
    %312 = vector.shape_cast %311 : vector<1x16x16x128xf32> to vector<16x16x128xf32>
    %313 = vector.extract_strided_slice %0 {offsets = [36, 0], sizes = [1, 128], strides = [1, 1]} : vector<49x128xf32> to vector<1x128xf32>
    %314 = vector.shape_cast %313 : vector<1x128xf32> to vector<128xf32>
    %315 = vector.shape_cast %314 : vector<128xf32> to vector<1x1x128xf32>
    %316 = vector.broadcast %315 : vector<1x1x128xf32> to vector<16x16x128xf32>
    %317 = arith.mulf %312, %316 : vector<16x16x128xf32>
    %318 = arith.addf %310, %317 : vector<16x16x128xf32>
    %c0_164 = arith.constant 0 : index
    %c5_165 = arith.constant 5 : index
    %c2_166 = arith.constant 2 : index
    %c0_167 = arith.constant 0 : index
    %319 = vector.load %arg1[%c0_164, %c5_165, %c2_166, %c0_167] : memref<1x22x22x128xf32, #tpu.memory_space<vmem>>, vector<1x16x16x128xf32>
    %320 = vector.shape_cast %319 : vector<1x16x16x128xf32> to vector<16x16x128xf32>
    %321 = vector.extract_strided_slice %0 {offsets = [37, 0], sizes = [1, 128], strides = [1, 1]} : vector<49x128xf32> to vector<1x128xf32>
    %322 = vector.shape_cast %321 : vector<1x128xf32> to vector<128xf32>
    %323 = vector.shape_cast %322 : vector<128xf32> to vector<1x1x128xf32>
    %324 = vector.broadcast %323 : vector<1x1x128xf32> to vector<16x16x128xf32>
    %325 = arith.mulf %320, %324 : vector<16x16x128xf32>
    %326 = arith.addf %318, %325 : vector<16x16x128xf32>
    %c0_168 = arith.constant 0 : index
    %c5_169 = arith.constant 5 : index
    %c3_170 = arith.constant 3 : index
    %c0_171 = arith.constant 0 : index
    %327 = vector.load %arg1[%c0_168, %c5_169, %c3_170, %c0_171] : memref<1x22x22x128xf32, #tpu.memory_space<vmem>>, vector<1x16x16x128xf32>
    %328 = vector.shape_cast %327 : vector<1x16x16x128xf32> to vector<16x16x128xf32>
    %329 = vector.extract_strided_slice %0 {offsets = [38, 0], sizes = [1, 128], strides = [1, 1]} : vector<49x128xf32> to vector<1x128xf32>
    %330 = vector.shape_cast %329 : vector<1x128xf32> to vector<128xf32>
    %331 = vector.shape_cast %330 : vector<128xf32> to vector<1x1x128xf32>
    %332 = vector.broadcast %331 : vector<1x1x128xf32> to vector<16x16x128xf32>
    %333 = arith.mulf %328, %332 : vector<16x16x128xf32>
    %334 = arith.addf %326, %333 : vector<16x16x128xf32>
    %c0_172 = arith.constant 0 : index
    %c5_173 = arith.constant 5 : index
    %c4_174 = arith.constant 4 : index
    %c0_175 = arith.constant 0 : index
    %335 = vector.load %arg1[%c0_172, %c5_173, %c4_174, %c0_175] : memref<1x22x22x128xf32, #tpu.memory_space<vmem>>, vector<1x16x16x128xf32>
    %336 = vector.shape_cast %335 : vector<1x16x16x128xf32> to vector<16x16x128xf32>
    %337 = vector.extract_strided_slice %0 {offsets = [39, 0], sizes = [1, 128], strides = [1, 1]} : vector<49x128xf32> to vector<1x128xf32>
    %338 = vector.shape_cast %337 : vector<1x128xf32> to vector<128xf32>
    %339 = vector.shape_cast %338 : vector<128xf32> to vector<1x1x128xf32>
    %340 = vector.broadcast %339 : vector<1x1x128xf32> to vector<16x16x128xf32>
    %341 = arith.mulf %336, %340 : vector<16x16x128xf32>
    %342 = arith.addf %334, %341 : vector<16x16x128xf32>
    %c0_176 = arith.constant 0 : index
    %c5_177 = arith.constant 5 : index
    %c5_178 = arith.constant 5 : index
    %c0_179 = arith.constant 0 : index
    %343 = vector.load %arg1[%c0_176, %c5_177, %c5_178, %c0_179] : memref<1x22x22x128xf32, #tpu.memory_space<vmem>>, vector<1x16x16x128xf32>
    %344 = vector.shape_cast %343 : vector<1x16x16x128xf32> to vector<16x16x128xf32>
    %345 = vector.extract_strided_slice %0 {offsets = [40, 0], sizes = [1, 128], strides = [1, 1]} : vector<49x128xf32> to vector<1x128xf32>
    %346 = vector.shape_cast %345 : vector<1x128xf32> to vector<128xf32>
    %347 = vector.shape_cast %346 : vector<128xf32> to vector<1x1x128xf32>
    %348 = vector.broadcast %347 : vector<1x1x128xf32> to vector<16x16x128xf32>
    %349 = arith.mulf %344, %348 : vector<16x16x128xf32>
    %350 = arith.addf %342, %349 : vector<16x16x128xf32>
    %c0_180 = arith.constant 0 : index
    %c5_181 = arith.constant 5 : index
    %c6_182 = arith.constant 6 : index
    %c0_183 = arith.constant 0 : index
    %351 = vector.load %arg1[%c0_180, %c5_181, %c6_182, %c0_183] : memref<1x22x22x128xf32, #tpu.memory_space<vmem>>, vector<1x16x16x128xf32>
    %352 = vector.shape_cast %351 : vector<1x16x16x128xf32> to vector<16x16x128xf32>
    %353 = vector.extract_strided_slice %0 {offsets = [41, 0], sizes = [1, 128], strides = [1, 1]} : vector<49x128xf32> to vector<1x128xf32>
    %354 = vector.shape_cast %353 : vector<1x128xf32> to vector<128xf32>
    %355 = vector.shape_cast %354 : vector<128xf32> to vector<1x1x128xf32>
    %356 = vector.broadcast %355 : vector<1x1x128xf32> to vector<16x16x128xf32>
    %357 = arith.mulf %352, %356 : vector<16x16x128xf32>
    %358 = arith.addf %350, %357 : vector<16x16x128xf32>
    %c0_184 = arith.constant 0 : index
    %c6_185 = arith.constant 6 : index
    %c0_186 = arith.constant 0 : index
    %c0_187 = arith.constant 0 : index
    %359 = vector.load %arg1[%c0_184, %c6_185, %c0_186, %c0_187] : memref<1x22x22x128xf32, #tpu.memory_space<vmem>>, vector<1x16x16x128xf32>
    %360 = vector.shape_cast %359 : vector<1x16x16x128xf32> to vector<16x16x128xf32>
    %361 = vector.extract_strided_slice %0 {offsets = [42, 0], sizes = [1, 128], strides = [1, 1]} : vector<49x128xf32> to vector<1x128xf32>
    %362 = vector.shape_cast %361 : vector<1x128xf32> to vector<128xf32>
    %363 = vector.shape_cast %362 : vector<128xf32> to vector<1x1x128xf32>
    %364 = vector.broadcast %363 : vector<1x1x128xf32> to vector<16x16x128xf32>
    %365 = arith.mulf %360, %364 : vector<16x16x128xf32>
    %366 = arith.addf %358, %365 : vector<16x16x128xf32>
    %c0_188 = arith.constant 0 : index
    %c6_189 = arith.constant 6 : index
    %c1_190 = arith.constant 1 : index
    %c0_191 = arith.constant 0 : index
    %367 = vector.load %arg1[%c0_188, %c6_189, %c1_190, %c0_191] : memref<1x22x22x128xf32, #tpu.memory_space<vmem>>, vector<1x16x16x128xf32>
    %368 = vector.shape_cast %367 : vector<1x16x16x128xf32> to vector<16x16x128xf32>
    %369 = vector.extract_strided_slice %0 {offsets = [43, 0], sizes = [1, 128], strides = [1, 1]} : vector<49x128xf32> to vector<1x128xf32>
    %370 = vector.shape_cast %369 : vector<1x128xf32> to vector<128xf32>
    %371 = vector.shape_cast %370 : vector<128xf32> to vector<1x1x128xf32>
    %372 = vector.broadcast %371 : vector<1x1x128xf32> to vector<16x16x128xf32>
    %373 = arith.mulf %368, %372 : vector<16x16x128xf32>
    %374 = arith.addf %366, %373 : vector<16x16x128xf32>
    %c0_192 = arith.constant 0 : index
    %c6_193 = arith.constant 6 : index
    %c2_194 = arith.constant 2 : index
    %c0_195 = arith.constant 0 : index
    %375 = vector.load %arg1[%c0_192, %c6_193, %c2_194, %c0_195] : memref<1x22x22x128xf32, #tpu.memory_space<vmem>>, vector<1x16x16x128xf32>
    %376 = vector.shape_cast %375 : vector<1x16x16x128xf32> to vector<16x16x128xf32>
    %377 = vector.extract_strided_slice %0 {offsets = [44, 0], sizes = [1, 128], strides = [1, 1]} : vector<49x128xf32> to vector<1x128xf32>
    %378 = vector.shape_cast %377 : vector<1x128xf32> to vector<128xf32>
    %379 = vector.shape_cast %378 : vector<128xf32> to vector<1x1x128xf32>
    %380 = vector.broadcast %379 : vector<1x1x128xf32> to vector<16x16x128xf32>
    %381 = arith.mulf %376, %380 : vector<16x16x128xf32>
    %382 = arith.addf %374, %381 : vector<16x16x128xf32>
    %c0_196 = arith.constant 0 : index
    %c6_197 = arith.constant 6 : index
    %c3_198 = arith.constant 3 : index
    %c0_199 = arith.constant 0 : index
    %383 = vector.load %arg1[%c0_196, %c6_197, %c3_198, %c0_199] : memref<1x22x22x128xf32, #tpu.memory_space<vmem>>, vector<1x16x16x128xf32>
    %384 = vector.shape_cast %383 : vector<1x16x16x128xf32> to vector<16x16x128xf32>
    %385 = vector.extract_strided_slice %0 {offsets = [45, 0], sizes = [1, 128], strides = [1, 1]} : vector<49x128xf32> to vector<1x128xf32>
    %386 = vector.shape_cast %385 : vector<1x128xf32> to vector<128xf32>
    %387 = vector.shape_cast %386 : vector<128xf32> to vector<1x1x128xf32>
    %388 = vector.broadcast %387 : vector<1x1x128xf32> to vector<16x16x128xf32>
    %389 = arith.mulf %384, %388 : vector<16x16x128xf32>
    %390 = arith.addf %382, %389 : vector<16x16x128xf32>
    %c0_200 = arith.constant 0 : index
    %c6_201 = arith.constant 6 : index
    %c4_202 = arith.constant 4 : index
    %c0_203 = arith.constant 0 : index
    %391 = vector.load %arg1[%c0_200, %c6_201, %c4_202, %c0_203] : memref<1x22x22x128xf32, #tpu.memory_space<vmem>>, vector<1x16x16x128xf32>
    %392 = vector.shape_cast %391 : vector<1x16x16x128xf32> to vector<16x16x128xf32>
    %393 = vector.extract_strided_slice %0 {offsets = [46, 0], sizes = [1, 128], strides = [1, 1]} : vector<49x128xf32> to vector<1x128xf32>
    %394 = vector.shape_cast %393 : vector<1x128xf32> to vector<128xf32>
    %395 = vector.shape_cast %394 : vector<128xf32> to vector<1x1x128xf32>
    %396 = vector.broadcast %395 : vector<1x1x128xf32> to vector<16x16x128xf32>
    %397 = arith.mulf %392, %396 : vector<16x16x128xf32>
    %398 = arith.addf %390, %397 : vector<16x16x128xf32>
    %c0_204 = arith.constant 0 : index
    %c6_205 = arith.constant 6 : index
    %c5_206 = arith.constant 5 : index
    %c0_207 = arith.constant 0 : index
    %399 = vector.load %arg1[%c0_204, %c6_205, %c5_206, %c0_207] : memref<1x22x22x128xf32, #tpu.memory_space<vmem>>, vector<1x16x16x128xf32>
    %400 = vector.shape_cast %399 : vector<1x16x16x128xf32> to vector<16x16x128xf32>
    %401 = vector.extract_strided_slice %0 {offsets = [47, 0], sizes = [1, 128], strides = [1, 1]} : vector<49x128xf32> to vector<1x128xf32>
    %402 = vector.shape_cast %401 : vector<1x128xf32> to vector<128xf32>
    %403 = vector.shape_cast %402 : vector<128xf32> to vector<1x1x128xf32>
    %404 = vector.broadcast %403 : vector<1x1x128xf32> to vector<16x16x128xf32>
    %405 = arith.mulf %400, %404 : vector<16x16x128xf32>
    %406 = arith.addf %398, %405 : vector<16x16x128xf32>
    %c0_208 = arith.constant 0 : index
    %c6_209 = arith.constant 6 : index
    %c6_210 = arith.constant 6 : index
    %c0_211 = arith.constant 0 : index
    %407 = vector.load %arg1[%c0_208, %c6_209, %c6_210, %c0_211] : memref<1x22x22x128xf32, #tpu.memory_space<vmem>>, vector<1x16x16x128xf32>
    %408 = vector.shape_cast %407 : vector<1x16x16x128xf32> to vector<16x16x128xf32>
    %409 = vector.extract_strided_slice %0 {offsets = [48, 0], sizes = [1, 128], strides = [1, 1]} : vector<49x128xf32> to vector<1x128xf32>
    %410 = vector.shape_cast %409 : vector<1x128xf32> to vector<128xf32>
    %411 = vector.shape_cast %410 : vector<128xf32> to vector<1x1x128xf32>
    %412 = vector.broadcast %411 : vector<1x1x128xf32> to vector<16x16x128xf32>
    %413 = arith.mulf %408, %412 : vector<16x16x128xf32>
    %414 = arith.addf %406, %413 : vector<16x16x128xf32>
    %cst_212 = arith.constant dense<0.000000e+00> : vector<16x16xf32>
    %415 = vector.multi_reduction <add>, %414, %cst_212 [2] : vector<16x16x128xf32> to vector<16x16xf32>
    %416 = vector.shape_cast %415 : vector<16x16xf32> to vector<16x16x1xf32>
    %cst_213 = arith.constant 2.500000e-01 : f32
    %417 = vector.broadcast %cst_213 : f32 to vector<16x16x1xf32>
    %418 = arith.mulf %416, %417 : vector<16x16x1xf32>
    %419 = vector.broadcast %418 : vector<16x16x1xf32> to vector<16x16x128xf32>
    %420 = arith.subf %414, %419 : vector<16x16x128xf32>
    %421 = arith.mulf %420, %420 : vector<16x16x128xf32>
    %cst_214 = arith.constant dense<0.000000e+00> : vector<16x16xf32>
    %422 = vector.multi_reduction <add>, %421, %cst_214 [2] : vector<16x16x128xf32> to vector<16x16xf32>
    %423 = vector.shape_cast %422 : vector<16x16xf32> to vector<16x16x1xf32>
    %424 = arith.mulf %418, %418 : vector<16x16x1xf32>
    %cst_215 = arith.constant 1.240000e+02 : f32
    %425 = vector.broadcast %cst_215 : f32 to vector<16x16x1xf32>
    %426 = arith.mulf %425, %424 : vector<16x16x1xf32>
    %427 = arith.subf %423, %426 : vector<16x16x1xf32>
    %cst_216 = arith.constant 2.500000e-01 : f32
    %428 = vector.broadcast %cst_216 : f32 to vector<16x16x1xf32>
    %429 = arith.mulf %427, %428 : vector<16x16x1xf32>
    %cst_217 = arith.constant 9.99999997E-7 : f32
    %430 = vector.broadcast %cst_217 : f32 to vector<16x16x1xf32>
    %431 = arith.addf %429, %430 : vector<16x16x1xf32>
    %432 = math.rsqrt %431 : vector<16x16x1xf32>
    %433 = vector.broadcast %432 : vector<16x16x1xf32> to vector<16x16x128xf32>
    %434 = arith.mulf %420, %433 : vector<16x16x128xf32>
    %435 = vector.shape_cast %4 : vector<128xf32> to vector<1x1x128xf32>
    %436 = vector.broadcast %435 : vector<1x1x128xf32> to vector<16x16x128xf32>
    %437 = arith.mulf %434, %436 : vector<16x16x128xf32>
    %438 = vector.shape_cast %6 : vector<128xf32> to vector<1x1x128xf32>
    %439 = vector.broadcast %438 : vector<1x1x128xf32> to vector<16x16x128xf32>
    %440 = arith.addf %437, %439 : vector<16x16x128xf32>
    %441 = vector.shape_cast %440 : vector<16x16x128xf32> to vector<256x128xf32>
    %442 = arith.truncf %441 : vector<256x128xf32> to vector<256x128xbf16>
    %cst_218 = arith.constant dense<0.000000e+00> : vector<256x128xf32>
    %443 = tpu.matmul %442, %7, %cst_218 {dimension_numbers = #tpu.dot_dimension_numbers<[1], [0], [0], [1], [0, 0, 1, 1], [], []>} : vector<256x128xbf16>, vector<128x128xbf16>, vector<256x128xf32> -> vector<256x128xf32>
    %444 = vector.shape_cast %9 : vector<128xf32> to vector<1x128xf32>
    %445 = vector.broadcast %444 : vector<1x128xf32> to vector<256x128xf32>
    %446 = arith.addf %443, %445 : vector<256x128xf32>
    %447 = arith.mulf %446, %446 : vector<256x128xf32>
    %448 = arith.mulf %446, %447 : vector<256x128xf32>
    %cst_219 = arith.constant 4.471500e-02 : f32
    %449 = vector.broadcast %cst_219 : f32 to vector<256x128xf32>
    %450 = arith.mulf %449, %448 : vector<256x128xf32>
    %451 = arith.addf %446, %450 : vector<256x128xf32>
    %cst_220 = arith.constant 0.797884583 : f32
    %452 = vector.broadcast %cst_220 : f32 to vector<256x128xf32>
    %453 = arith.mulf %452, %451 : vector<256x128xf32>
    %454 = math.tanh %453 : vector<256x128xf32>
    %cst_221 = arith.constant 1.000000e+00 : f32
    %455 = vector.broadcast %cst_221 : f32 to vector<256x128xf32>
    %456 = arith.addf %455, %454 : vector<256x128xf32>
    %cst_222 = arith.constant 5.000000e-01 : f32
    %457 = vector.broadcast %cst_222 : f32 to vector<256x128xf32>
    %458 = arith.mulf %457, %456 : vector<256x128xf32>
    %459 = arith.mulf %446, %458 : vector<256x128xf32>
    %c0_223 = arith.constant 0 : index
    %c0_224 = arith.constant 0 : index
    %460 = vector.load %arg14[%c0_223, %c0_224] : memref<1x128xf32, #tpu.memory_space<vmem>>, vector<1x128xf32>
    %461 = arith.mulf %459, %459 : vector<256x128xf32>
    %cst_225 = arith.constant dense<0.000000e+00> : vector<128xf32>
    %462 = vector.multi_reduction <add>, %461, %cst_225 [0] : vector<256x128xf32> to vector<128xf32>
    %463 = vector.shape_cast %462 : vector<128xf32> to vector<1x128xf32>
    %464 = arith.addf %460, %463 : vector<1x128xf32>
    %c0_226 = arith.constant 0 : index
    %c0_227 = arith.constant 0 : index
    %465 = vector.load %arg14[%c0_226, %c0_227] : memref<1x128xf32, #tpu.memory_space<vmem>>, vector<1x128xf32>
    tpu.vector_store %arg14[%c0_226, %c0_227], %464 {strides = array<i32>} : memref<1x128xf32, #tpu.memory_space<vmem>>, vector<1x128xf32>,
    %466 = arith.truncf %459 : vector<256x128xf32> to vector<256x128xbf16>
    %c0_228 = arith.constant 0 : index
    %c0_229 = arith.constant 0 : index
    %467 = vector.load %arg13[%c0_228, %c0_229] : memref<256x128xbf16, #tpu.memory_space<vmem>>, vector<256x128xbf16>
    tpu.vector_store %arg13[%c0_228, %c0_229], %466 {strides = array<i32>} : memref<256x128xbf16, #tpu.memory_space<vmem>>, vector<256x128xbf16>,
    %c0_230 = arith.constant 0 : index
    %c0_231 = arith.constant 0 : index
    %468 = vector.load %arg14[%c0_230, %c0_231] : memref<1x128xf32, #tpu.memory_space<vmem>>, vector<1x128xf32>
    %469 = math.sqrt %468 : vector<1x128xf32>
    %cst_232 = arith.constant dense<0.000000e+00> : vector<1xf32>
    %470 = vector.multi_reduction <add>, %469, %cst_232 [1] : vector<1x128xf32> to vector<1xf32>
    %471 = vector.shape_cast %470 : vector<1xf32> to vector<1x1xf32>
    %cst_233 = arith.constant 6.250000e-02 : f32
    %472 = vector.broadcast %cst_233 : f32 to vector<1x1xf32>
    %473 = arith.mulf %471, %472 : vector<1x1xf32>
    %cst_234 = arith.constant 9.99999997E-7 : f32
    %474 = vector.broadcast %cst_234 : f32 to vector<1x1xf32>
    %475 = arith.addf %473, %474 : vector<1x1xf32>
    %476 = tpu.reciprocal %475 {approx = true} : vector<1x1xf32> -> vector<1x1xf32>
    %477 = vector.broadcast %476 : vector<1x1xf32> to vector<1x128xf32>
    %478 = arith.mulf %469, %477 : vector<1x128xf32>
    %479 = vector.shape_cast %11 : vector<128xf32> to vector<1x128xf32>
    %480 = arith.mulf %479, %478 : vector<1x128xf32>
    %cst_235 = arith.constant 1.000000e+00 : f32
    %481 = vector.broadcast %cst_235 : f32 to vector<1x128xf32>
    %482 = arith.addf %480, %481 : vector<1x128xf32>
    %c0_236 = arith.constant 0 : index
    %c0_237 = arith.constant 0 : index
    %483 = vector.load %arg13[%c0_236, %c0_237] : memref<256x128xbf16, #tpu.memory_space<vmem>>, vector<256x128xbf16>
    %484 = arith.extf %483 : vector<256x128xbf16> to vector<256x128xf32>
    %485 = vector.broadcast %482 : vector<1x128xf32> to vector<256x128xf32>
    %486 = arith.mulf %484, %485 : vector<256x128xf32>
    %487 = vector.shape_cast %13 : vector<128xf32> to vector<1x128xf32>
    %488 = vector.broadcast %487 : vector<1x128xf32> to vector<256x128xf32>
    %489 = arith.addf %486, %488 : vector<256x128xf32>
    %490 = arith.truncf %489 : vector<256x128xf32> to vector<256x128xbf16>
    %cst_238 = arith.constant dense<0.000000e+00> : vector<256x128xf32>
    %491 = tpu.matmul %490, %14, %cst_238 {dimension_numbers = #tpu.dot_dimension_numbers<[1], [0], [0], [1], [0, 0, 1, 1], [], []>} : vector<256x128xbf16>, vector<128x128xbf16>, vector<256x128xf32> -> vector<256x128xf32>
    %492 = vector.shape_cast %16 : vector<128xf32> to vector<1x128xf32>
    %493 = vector.broadcast %492 : vector<1x128xf32> to vector<256x128xf32>
    %494 = arith.addf %491, %493 : vector<256x128xf32>
    %495 = vector.shape_cast %494 : vector<256x128xf32> to vector<16x16x128xf32>
    %c0_239 = arith.constant 0 : index
    %c3_240 = arith.constant 3 : index
    %c3_241 = arith.constant 3 : index
    %c0_242 = arith.constant 0 : index
    %496 = vector.load %arg1[%c0_239, %c3_240, %c3_241, %c0_242] : memref<1x22x22x128xf32, #tpu.memory_space<vmem>>, vector<1x16x16x128xf32>
    %497 = vector.shape_cast %496 : vector<1x16x16x128xf32> to vector<16x16x128xf32>
    %498 = arith.addf %497, %495 : vector<16x16x128xf32>
    %c0_243 = arith.constant 0 : index
    %c0_244 = arith.constant 0 : index
    %c0_245 = arith.constant 0 : index
    %c0_246 = arith.constant 0 : index
    %499 = vector.load %arg12[%c0_243, %c0_244, %c0_245, %c0_246] : memref<1x16x16x128xf32, #tpu.memory_space<vmem>>, vector<1x16x16x128xf32>
    %500 = vector.shape_cast %499 : vector<1x16x16x128xf32> to vector<16x16x128xf32>
    %501 = vector.shape_cast %498 : vector<16x16x128xf32> to vector<1x16x16x128xf32>
    tpu.vector_store %arg12[%c0_243, %c0_244, %c0_245, %c0_246], %501 {strides = array<i32>} : memref<1x16x16x128xf32, #tpu.memory_space<vmem>>, vector<1x16x16x128xf32>,
    return
  }
  func.func @transform_0(%arg0: i32) -> (i32, i32, i32, i32) {
    %c0_i32 = arith.constant 0 : i32
    %c0_i32_0 = arith.constant 0 : i32
    %c0_i32_1 = arith.constant 0 : i32
    %c0_i32_2 = arith.constant 0 : i32
    return %arg0, %c0_i32, %c0_i32_0, %c0_i32_1 : i32, i32, i32, i32
  }
  func.func @transform_1(%arg0: i32) -> (i32, i32) {
    %c0_i32 = arith.constant 0 : i32
    %c0_i32_0 = arith.constant 0 : i32
    %c0_i32_1 = arith.constant 0 : i32
    return %c0_i32, %c0_i32_0 : i32, i32
  }
  func.func @transform_2(%arg0: i32) -> (i32, i32) {
    %c0_i32 = arith.constant 0 : i32
    %c0_i32_0 = arith.constant 0 : i32
    %c0_i32_1 = arith.constant 0 : i32
    return %c0_i32, %c0_i32_0 : i32, i32
  }
  func.func @transform_3(%arg0: i32) -> (i32, i32) {
    %c0_i32 = arith.constant 0 : i32
    %c0_i32_0 = arith.constant 0 : i32
    %c0_i32_1 = arith.constant 0 : i32
    return %c0_i32, %c0_i32_0 : i32, i32
  }
  func.func @transform_4(%arg0: i32) -> (i32, i32) {
    %c0_i32 = arith.constant 0 : i32
    %c0_i32_0 = arith.constant 0 : i32
    %c0_i32_1 = arith.constant 0 : i32
    return %c0_i32, %c0_i32_0 : i32, i32
  }
  func.func @transform_5(%arg0: i32) -> (i32, i32) {
    %c0_i32 = arith.constant 0 : i32
    %c0_i32_0 = arith.constant 0 : i32
    %c0_i32_1 = arith.constant 0 : i32
    return %c0_i32, %c0_i32_0 : i32, i32
  }
  func.func @transform_6(%arg0: i32) -> (i32, i32) {
    %c0_i32 = arith.constant 0 : i32
    %c0_i32_0 = arith.constant 0 : i32
    %c0_i32_1 = arith.constant 0 : i32
    return %c0_i32, %c0_i32_0 : i32, i32
  }
  func.func @transform_7(%arg0: i32) -> (i32, i32) {
    %c0_i32 = arith.constant 0 : i32
    %c0_i32_0 = arith.constant 0 : i32
    %c0_i32_1 = arith.constant 0 : i32
    return %c0_i32, %c0_i32_0 : i32, i32
  }
  func.func @transform_8(%arg0: i32) -> (i32, i32) {
    %c0_i32 = arith.constant 0 : i32
    %c0_i32_0 = arith.constant 0 : i32
    %c0_i32_1 = arith.constant 0 : i32
    return %c0_i32, %c0_i32_0 : i32, i32
  }
  func.func @transform_9(%arg0: i32) -> (i32, i32) {
    %c0_i32 = arith.constant 0 : i32
    %c0_i32_0 = arith.constant 0 : i32
    %c0_i32_1 = arith.constant 0 : i32
    return %c0_i32, %c0_i32_0 : i32, i32
  }
  func.func @transform_10(%arg0: i32) -> (i32, i32) {
    %c0_i32 = arith.constant 0 : i32
    %c0_i32_0 = arith.constant 0 : i32
    %c0_i32_1 = arith.constant 0 : i32
    return %c0_i32, %c0_i32_0 : i32, i32
  }
  func.func @transform_11(%arg0: i32) -> (i32, i32, i32, i32) {
    %c0_i32 = arith.constant 0 : i32
    %c0_i32_0 = arith.constant 0 : i32
    %c0_i32_1 = arith.constant 0 : i32
    %c0_i32_2 = arith.constant 0 : i32
    return %arg0, %c0_i32, %c0_i32_0, %c0_i32_1 : i32, i32, i32, i32
  }
}

</mosaic_0001>

<llo_original>
// kernel: encoder_block.1
$region0: #{encoder_block.1}
  #allocation0 [shape = 'u32[]', space=smem, size = 0x4, offset = 0x4, fixed_abs, tag = 'smem constant byte address 0x4 - core index']
  #allocation1 [shape = 'u32[144,128]{1,0:T(1,128)}', space=vmem, size = 0x12000, scoped, tag = 'internal scratch']
  #allocation2 [shape = 'bf16[256,128]{1,0:T(16,128)(2,1)}', space=vmem, size = 0x10000, scoped, tag = 'scratch operand']
  #allocation3 [shape = 'f32[1,128]{1,0:T(1,128)}', space=vmem, size = 0x200, scoped, tag = 'scratch operand']
  %s0 = inlined_call_operand.vmem [shape: f32[2,22,22,128], index: 0, kind: input, shape index: {}]
  %s1 = inlined_call_operand.vmem [shape: f32[49,128], index: 1, kind: input, shape index: {}]
  %s2 = inlined_call_operand.vmem [shape: f32[1,128], index: 2, kind: input, shape index: {}]
  %s3 = inlined_call_operand.vmem [shape: f32[1,128], index: 3, kind: input, shape index: {}]
  %s4 = inlined_call_operand.vmem [shape: f32[1,128], index: 4, kind: input, shape index: {}]
  %s5 = inlined_call_operand.vmem [shape: bf16[128,128], index: 5, kind: input, shape index: {}]
  %s6 = inlined_call_operand.vmem [shape: f32[1,128], index: 6, kind: input, shape index: {}]
  %s7 = inlined_call_operand.vmem [shape: f32[1,128], index: 7, kind: input, shape index: {}]
  %s8 = inlined_call_operand.vmem [shape: f32[1,128], index: 8, kind: input, shape index: {}]
  %s9 = inlined_call_operand.vmem [shape: bf16[128,128], index: 9, kind: input, shape index: {}]
  %s10 = inlined_call_operand.vmem [shape: f32[1,128], index: 10, kind: input, shape index: {}]
  %s11 = inlined_call_operand.vmem [shape: f32[2,16,16,128], index: 11, kind: output, shape index: {}]
  %s12 = sld [smem:[#allocation0]]
  $region77: #{encoder_block.1} parent=0
    _
  %s14 = ssub.s32 1, %s12
  %s15 = scalar_select 0, %s14, %s12
  loop: start=0, step=1, limit=4
  $region2: #{encoder_block.1} parent=0 // loop_pre_header
    _
  $region3: #{encoder_block.1} parent=0 // loop_header
    %s17 = sphi 0, %s21
    %p18 = scmp.ge.s32.totalorder %s17, 4
    %s27 = sphi 0, %s29
    %s30 = sphi 0, %s27
    %s31 = sphi 0, %s30
    %s47 = sphi 0, %s31
    %s51 = sphi 0, %s51
    %s53 = sphi 0, %s51
    %s54 = sphi 0, %s53
    %s68 = sphi 0, %s54
    %s72 = sphi 0, %s72
    %s74 = sphi 0, %s72
    %s75 = sphi 0, %s74
    %s89 = sphi 0, %s75
    %s93 = sphi 0, %s93
    %s95 = sphi 0, %s93
    %s96 = sphi 0, %s95
    %s110 = sphi 0, %s96
    %s114 = sphi 0, %s114
    %s116 = sphi 0, %s114
    %s117 = sphi 0, %s116
    %s131 = sphi 0, %s117
    %s135 = sphi 0, %s135
    %s137 = sphi 0, %s135
    %s138 = sphi 0, %s137
    %s152 = sphi 0, %s138
    %s156 = sphi 0, %s156
    %s158 = sphi 0, %s156
    %s159 = sphi 0, %s158
    %s173 = sphi 0, %s159
    %s177 = sphi 0, %s177
    %s179 = sphi 0, %s177
    %s180 = sphi 0, %s179
    %s194 = sphi 0, %s180
    %s198 = sphi 0, %s198
    %s200 = sphi 0, %s198
    %s201 = sphi 0, %s200
    %s215 = sphi 0, %s201
    %s219 = sphi 0, %s219
    %s221 = sphi 0, %s219
    %s222 = sphi 0, %s221
    %s236 = sphi 0, %s222
    %s240 = sphi 0, %s240
    %s242 = sphi 0, %s240
    %s243 = sphi 0, %s242
    %s257 = sphi 0, %s243
    %s263 = sphi 0, %s265
    %s266 = sphi 0, %s263
    %s267 = sphi 0, %s266
    %s283 = sphi 0, %s267
  $region4: #{encoder_block.1} parent=0 // loop_header_branch
    %20 = sbr.rel (%p18) target = $region8
  $region5: #{encoder_block.1} parent=0 // loop_body
    %s22 = ssub.s32 %s17, 1
    %s23 = ssub.s32 %s17, 2
    %s24 = sadd.s32 %s17, 1
    %s25 = ssub.s32 %s17, %s24
    %p26 = scmp.eq.s32.totalorder %s25, 0
    %s28 = sadd.s32 %s27, 1
    %s29 = scalar_select %p26, %s27, %s28
    %p32 = pneg %p26
    %p33 = scmp.eq.s32.totalorder %s17, 1
    %p34 = por %p32, %p33
    %p35 = scmp.ne.s32.totalorder %s27, %s30
    %p36 = scmp.eq.s32.totalorder %s17, 0
    %p37 = por %p35, %p36
    %p38 = scmp.ne.s32.totalorder %s27, %s30
    %p39 = scmp.eq.s32.totalorder %s22, 1
    %p40 = por %p38, %p39
    %p41 = scmp.ne.s32.totalorder %s30, %s31
    %p42 = scmp.eq.s32.totalorder %s22, 0
    %p43 = por %p41, %p42
    %p44 = scmp.ne.s32.totalorder %s30, %s31
    %p45 = scmp.eq.s32.totalorder %s23, 1
    %p46 = por %p44, %p45
    %p48 = scmp.ne.s32.totalorder %s31, %s47
    %p49 = scmp.eq.s32.totalorder %s23, 0
    %p50 = por %p48, %p49
    %s52 = sadd.s32 %s51, 1
    %p55 = scmp.eq.s32.totalorder %s17, 1
    %p56 = scmp.ne.s32.totalorder %s51, %s53
    %p57 = scmp.eq.s32.totalorder %s17, 0
    %p58 = por %p56, %p57
    %p59 = scmp.ne.s32.totalorder %s51, %s53
    %p60 = scmp.eq.s32.totalorder %s22, 1
    %p61 = por %p59, %p60
    %p62 = scmp.ne.s32.totalorder %s53, %s54
    %p63 = scmp.eq.s32.totalorder %s22, 0
    %p64 = por %p62, %p63
    %p65 = scmp.ne.s32.totalorder %s53, %s54
    %p66 = scmp.eq.s32.totalorder %s23, 1
    %p67 = por %p65, %p66
    %p69 = scmp.ne.s32.totalorder %s54, %s68
    %p70 = scmp.eq.s32.totalorder %s23, 0
    %p71 = por %p69, %p70
    %s73 = sadd.s32 %s72, 1
    %p76 = scmp.eq.s32.totalorder %s17, 1
    %p77 = scmp.ne.s32.totalorder %s72, %s74
    %p78 = scmp.eq.s32.totalorder %s17, 0
    %p79 = por %p77, %p78
    %p80 = scmp.ne.s32.totalorder %s72, %s74
    %p81 = scmp.eq.s32.totalorder %s22, 1
    %p82 = por %p80, %p81
    %p83 = scmp.ne.s32.totalorder %s74, %s75
    %p84 = scmp.eq.s32.totalorder %s22, 0
    %p85 = por %p83, %p84
    %p86 = scmp.ne.s32.totalorder %s74, %s75
    %p87 = scmp.eq.s32.totalorder %s23, 1
    %p88 = por %p86, %p87
    %p90 = scmp.ne.s32.totalorder %s75, %s89
    %p91 = scmp.eq.s32.totalorder %s23, 0
    %p92 = por %p90, %p91
    %s94 = sadd.s32 %s93, 1
    %p97 = scmp.eq.s32.totalorder %s17, 1
    %p98 = scmp.ne.s32.totalorder %s93, %s95
    %p99 = scmp.eq.s32.totalorder %s17, 0
    %p100 = por %p98, %p99
    %p101 = scmp.ne.s32.totalorder %s93, %s95
    %p102 = scmp.eq.s32.totalorder %s22, 1
    %p103 = por %p101, %p102
    %p104 = scmp.ne.s32.totalorder %s95, %s96
    %p105 = scmp.eq.s32.totalorder %s22, 0
    %p106 = por %p104, %p105
    %p107 = scmp.ne.s32.totalorder %s95, %s96
    %p108 = scmp.eq.s32.totalorder %s23, 1
    %p109 = por %p107, %p108
    %p111 = scmp.ne.s32.totalorder %s96, %s110
    %p112 = scmp.eq.s32.totalorder %s23, 0
    %p113 = por %p111, %p112
    %s115 = sadd.s32 %s114, 1
    %p118 = scmp.eq.s32.totalorder %s17, 1
    %p119 = scmp.ne.s32.totalorder %s114, %s116
    %p120 = scmp.eq.s32.totalorder %s17, 0
    %p121 = por %p119, %p120
    %p122 = scmp.ne.s32.totalorder %s114, %s116
    %p123 = scmp.eq.s32.totalorder %s22, 1
    %p124 = por %p122, %p123
    %p125 = scmp.ne.s32.totalorder %s116, %s117
    %p126 = scmp.eq.s32.totalorder %s22, 0
    %p127 = por %p125, %p126
    %p128 = scmp.ne.s32.totalorder %s116, %s117
    %p129 = scmp.eq.s32.totalorder %s23, 1
    %p130 = por %p128, %p129
    %p132 = scmp.ne.s32.totalorder %s117, %s131
    %p133 = scmp.eq.s32.totalorder %s23, 0
    %p134 = por %p132, %p133
    %s136 = sadd.s32 %s135, 1
    %p139 = scmp.eq.s32.totalorder %s17, 1
    %p140 = scmp.ne.s32.totalorder %s135, %s137
    %p141 = scmp.eq.s32.totalorder %s17, 0
    %p142 = por %p140, %p141
    %p143 = scmp.ne.s32.totalorder %s135, %s137
    %p144 = scmp.eq.s32.totalorder %s22, 1
    %p145 = por %p143, %p144
    %p146 = scmp.ne.s32.totalorder %s137, %s138
    %p147 = scmp.eq.s32.totalorder %s22, 0
    %p148 = por %p146, %p147
    %p149 = scmp.ne.s32.totalorder %s137, %s138
    %p150 = scmp.eq.s32.totalorder %s23, 1
    %p151 = por %p149, %p150
    %p153 = scmp.ne.s32.totalorder %s138, %s152
    %p154 = scmp.eq.s32.totalorder %s23, 0
    %p155 = por %p153, %p154
    %s157 = sadd.s32 %s156, 1
    %p160 = scmp.eq.s32.totalorder %s17, 1
    %p161 = scmp.ne.s32.totalorder %s156, %s158
    %p162 = scmp.eq.s32.totalorder %s17, 0
    %p163 = por %p161, %p162
    %p164 = scmp.ne.s32.totalorder %s156, %s158
    %p165 = scmp.eq.s32.totalorder %s22, 1
    %p166 = por %p164, %p165
    %p167 = scmp.ne.s32.totalorder %s158, %s159
    %p168 = scmp.eq.s32.totalorder %s22, 0
    %p169 = por %p167, %p168
    %p170 = scmp.ne.s32.totalorder %s158, %s159
    %p171 = scmp.eq.s32.totalorder %s23, 1
    %p172 = por %p170, %p171
    %p174 = scmp.ne.s32.totalorder %s159, %s173
    %p175 = scmp.eq.s32.totalorder %s23, 0
    %p176 = por %p174, %p175
    %s178 = sadd.s32 %s177, 1
    %p181 = scmp.eq.s32.totalorder %s17, 1
    %p182 = scmp.ne.s32.totalorder %s177, %s179
    %p183 = scmp.eq.s32.totalorder %s17, 0
    %p184 = por %p182, %p183
    %p185 = scmp.ne.s32.totalorder %s177, %s179
    %p186 = scmp.eq.s32.totalorder %s22, 1
    %p187 = por %p185, %p186
    %p188 = scmp.ne.s32.totalorder %s179, %s180
    %p189 = scmp.eq.s32.totalorder %s22, 0
    %p190 = por %p188, %p189
    %p191 = scmp.ne.s32.totalorder %s179, %s180
    %p192 = scmp.eq.s32.totalorder %s23, 1
    %p193 = por %p191, %p192
    %p195 = scmp.ne.s32.totalorder %s180, %s194
    %p196 = scmp.eq.s32.totalorder %s23, 0
    %p197 = por %p195, %p196
    %s199 = sadd.s32 %s198, 1
    %p202 = scmp.eq.s32.totalorder %s17, 1
    %p203 = scmp.ne.s32.totalorder %s198, %s200
    %p204 = scmp.eq.s32.totalorder %s17, 0
    %p205 = por %p203, %p204
    %p206 = scmp.ne.s32.totalorder %s198, %s200
    %p207 = scmp.eq.s32.totalorder %s22, 1
    %p208 = por %p206, %p207
    %p209 = scmp.ne.s32.totalorder %s200, %s201
    %p210 = scmp.eq.s32.totalorder %s22, 0
    %p211 = por %p209, %p210
    %p212 = scmp.ne.s32.totalorder %s200, %s201
    %p213 = scmp.eq.s32.totalorder %s23, 1
    %p214 = por %p212, %p213
    %p216 = scmp.ne.s32.totalorder %s201, %s215
    %p217 = scmp.eq.s32.totalorder %s23, 0
    %p218 = por %p216, %p217
    %s220 = sadd.s32 %s219, 1
    %p223 = scmp.eq.s32.totalorder %s17, 1
    %p224 = scmp.ne.s32.totalorder %s219, %s221
    %p225 = scmp.eq.s32.totalorder %s17, 0
    %p226 = por %p224, %p225
    %p227 = scmp.ne.s32.totalorder %s219, %s221
    %p228 = scmp.eq.s32.totalorder %s22, 1
    %p229 = por %p227, %p228
    %p230 = scmp.ne.s32.totalorder %s221, %s222
    %p231 = scmp.eq.s32.totalorder %s22, 0
    %p232 = por %p230, %p231
    %p233 = scmp.ne.s32.totalorder %s221, %s222
    %p234 = scmp.eq.s32.totalorder %s23, 1
    %p235 = por %p233, %p234
    %p237 = scmp.ne.s32.totalorder %s222, %s236
    %p238 = scmp.eq.s32.totalorder %s23, 0
    %p239 = por %p237, %p238
    %s241 = sadd.s32 %s240, 1
    %p244 = scmp.eq.s32.totalorder %s17, 1
    %p245 = scmp.ne.s32.totalorder %s240, %s242
    %p246 = scmp.eq.s32.totalorder %s17, 0
    %p247 = por %p245, %p246
    %p248 = scmp.ne.s32.totalorder %s240, %s242
    %p249 = scmp.eq.s32.totalorder %s22, 1
    %p250 = por %p248, %p249
    %p251 = scmp.ne.s32.totalorder %s242, %s243
    %p252 = scmp.eq.s32.totalorder %s22, 0
    %p253 = por %p251, %p252
    %p254 = scmp.ne.s32.totalorder %s242, %s243
    %p255 = scmp.eq.s32.totalorder %s23, 1
    %p256 = por %p254, %p255
    %p258 = scmp.ne.s32.totalorder %s243, %s257
    %p259 = scmp.eq.s32.totalorder %s23, 0
    %p260 = por %p258, %p259
    %s261 = ssub.s32 %s17, %s24
    %p262 = scmp.eq.s32.totalorder %s261, 0
    %s264 = sadd.s32 %s263, 1
    %s265 = scalar_select %p262, %s263, %s264
    %p268 = pneg %p262
    %p269 = scmp.eq.s32.totalorder %s17, 1
    %p270 = por %p268, %p269
    %p271 = scmp.ne.s32.totalorder %s263, %s266
    %p272 = scmp.eq.s32.totalorder %s17, 0
    %p273 = por %p271, %p272
    %p274 = scmp.ne.s32.totalorder %s263, %s266
    %p275 = scmp.eq.s32.totalorder %s22, 1
    %p276 = por %p274, %p275
    %p277 = scmp.ne.s32.totalorder %s266, %s267
    %p278 = scmp.eq.s32.totalorder %s22, 0
    %p279 = por %p277, %p278
    %p280 = scmp.ne.s32.totalorder %s266, %s267
    %p281 = scmp.eq.s32.totalorder %s23, 1
    %p282 = por %p280, %p281
    %p284 = scmp.ne.s32.totalorder %s267, %s283
    %p285 = scmp.eq.s32.totalorder %s23, 0
    %p286 = por %p284, %p285
    %p287 = scmp.le.s32.totalorder 1, %s17
    %p288 = scmp.lt.s32.totalorder %s17, 3
    %p289 = pnand %p287, %p288
    %p290 = pneg %p289
    // Predicated region
    $region9: #{encoder_block.1} parent=5 // pred_check
      _
    $region10: #{encoder_block.1} parent=5 // pred_check_branch
      %292 = sbr.rel (%p289) target = $region12
    $region11: #{encoder_block.1} parent=5 // pred_region
      %s293 = ssub.s32 %s17, 1
      // Predicated region
      $region13: #{encoder_block.1} parent=11 // pred_check
        %p294 = pneg %p64
      $region14: #{encoder_block.1} parent=11 // pred_check_branch
        %296 = sbr.rel (%p294) target = $region16
      $region15: #{encoder_block.1} parent=11 // pred_region
        _
      $region16: #{encoder_block.1} parent=11 // pred_fallthru
        _
      // Predicated region
      $region17: #{encoder_block.1} parent=11 // pred_check
        %p297 = pneg %p85
      $region18: #{encoder_block.1} parent=11 // pred_check_branch
        %299 = sbr.rel (%p297) target = $region20
      $region19: #{encoder_block.1} parent=11 // pred_region
        _
      $region20: #{encoder_block.1} parent=11 // pred_fallthru
        _
      // Predicated region
      $region21: #{encoder_block.1} parent=11 // pred_check
        %p300 = pneg %p106
      $region22: #{encoder_block.1} parent=11 // pred_check_branch
        %302 = sbr.rel (%p300) target = $region24
      $region23: #{encoder_block.1} parent=11 // pred_region
        _
      $region24: #{encoder_block.1} parent=11 // pred_fallthru
        _
      // Predicated region
      $region25: #{encoder_block.1} parent=11 // pred_check
        %p303 = pneg %p127
      $region26: #{encoder_block.1} parent=11 // pred_check_branch
        %305 = sbr.rel (%p303) target = $region28
      $region27: #{encoder_block.1} parent=11 // pred_region
        _
      $region28: #{encoder_block.1} parent=11 // pred_fallthru
        _
      // Predicated region
      $region29: #{encoder_block.1} parent=11 // pred_check
        %p306 = pneg %p148
      $region30: #{encoder_block.1} parent=11 // pred_check_branch
        %308 = sbr.rel (%p306) target = $region32
      $region31: #{encoder_block.1} parent=11 // pred_region
        _
      $region32: #{encoder_block.1} parent=11 // pred_fallthru
        _
      // Predicated region
      $region33: #{encoder_block.1} parent=11 // pred_check
        %p309 = pneg %p169
      $region34: #{encoder_block.1} parent=11 // pred_check_branch
        %311 = sbr.rel (%p309) target = $region36
      $region35: #{encoder_block.1} parent=11 // pred_region
        _
      $region36: #{encoder_block.1} parent=11 // pred_fallthru
        _
      // Predicated region
      $region37: #{encoder_block.1} parent=11 // pred_check
        %p312 = pneg %p190
      $region38: #{encoder_block.1} parent=11 // pred_check_branch
        %314 = sbr.rel (%p312) target = $region40
      $region39: #{encoder_block.1} parent=11 // pred_region
        _
      $region40: #{encoder_block.1} parent=11 // pred_fallthru
        _
      // Predicated region
      $region41: #{encoder_block.1} parent=11 // pred_check
        %p315 = pneg %p211
      $region42: #{encoder_block.1} parent=11 // pred_check_branch
        %317 = sbr.rel (%p315) target = $region44
      $region43: #{encoder_block.1} parent=11 // pred_region
        _
      $region44: #{encoder_block.1} parent=11 // pred_fallthru
        _
      // Predicated region
      $region45: #{encoder_block.1} parent=11 // pred_check
        %p318 = pneg %p232
      $region46: #{encoder_block.1} parent=11 // pred_check_branch
        %320 = sbr.rel (%p318) target = $region48
      $region47: #{encoder_block.1} parent=11 // pred_region
        _
      $region48: #{encoder_block.1} parent=11 // pred_fallthru
        _
      // Predicated region
      $region49: #{encoder_block.1} parent=11 // pred_check
        %p321 = pneg %p253
      $region50: #{encoder_block.1} parent=11 // pred_check_branch
        %323 = sbr.rel (%p321) target = $region52
      $region51: #{encoder_block.1} parent=11 // pred_region
        _
      $region52: #{encoder_block.1} parent=11 // pred_fallthru
        _
    $region12: #{encoder_block.1} parent=5 // pred_fallthru
      _
    %p324 = scmp.lt.s32.totalorder %s17, 2
    // Predicated region
    $region53: #{encoder_block.1} parent=5 // pred_check
      %p325 = pneg %p324
    $region54: #{encoder_block.1} parent=5 // pred_check_branch
      %327 = sbr.rel (%p325) target = $region56
    $region55: #{encoder_block.1} parent=5 // pred_region
      // Predicated region
      $region57: #{encoder_block.1} parent=55 // pred_check
        %p328 = pneg %p37
      $region58: #{encoder_block.1} parent=55 // pred_check_branch
        %330 = sbr.rel (%p328) target = $region60
      $region59: #{encoder_block.1} parent=55 // pred_region
        %p331 = scmp.lt.s32.totalorder %s17, 1
        %s332 = scalar_select %p331, %s17, 1
        %s333 = smul.addr %s332, 66
        %s334 = smul.addr %s333, 8
        %s335 = scalar_lea.vmem %s0, %s334
      $region60: #{encoder_block.1} parent=55 // pred_fallthru
        _
    $region56: #{encoder_block.1} parent=5 // pred_fallthru
      _
    %p336 = scmp.le.s32.totalorder 1, %s17
    %p337 = scmp.lt.s32.totalorder %s17, 3
    %p338 = pnand %p336, %p337
    %p339 = pneg %p338
    // Predicated region
    $region61: #{encoder_block.1} parent=5 // pred_check
      _
    $region62: #{encoder_block.1} parent=5 // pred_check_branch
      %341 = sbr.rel (%p338) target = $region64
    $region63: #{encoder_block.1} parent=5 // pred_region
      %s342 = ssub.s32 %s17, 1
      %p343 = scmp.lt.s32.totalorder %s22, 1
      %s344 = scalar_select %p343, %s22, 1
      %s345 = smul.addr %s344, 66
      %s346 = smul.addr %s345, 8
      %s347 = scalar_lea.vmem %s0, %s346
      %p348 = pneg %p43
      %p349 = pneg %p40
      %p350 = pneg %p64
      %p351 = pneg %p61
      %p352 = pneg %p85
      %p353 = pneg %p82
      %p354 = pneg %p106
      %p355 = pneg %p103
      %p356 = pneg %p127
      %p357 = pneg %p124
      %p358 = pneg %p148
      %p359 = pneg %p145
      %p360 = pneg %p169
      %p361 = pneg %p166
      %p362 = pneg %p190
      %p363 = pneg %p187
      %p364 = pneg %p211
      %p365 = pneg %p208
      %p366 = pneg %p232
      %p367 = pneg %p229
      %p368 = pneg %p253
      %p369 = pneg %p250
      %p370 = pneg %p279
      %p371 = pneg %p276
      %p372 = scmp.lt.s32.totalorder %s22, 1
      %s373 = scalar_select %p372, %s22, 1
      %s374 = smul.addr %s373, 32
      %s375 = smul.addr %s374, 8
      %s376 = scalar_lea.vmem %s11, %s375
      %p377 = scmp.lt.s32.totalorder %s22, 1
      %s378 = scalar_select %p377, %s22, 1
      %s379 = smul.addr %s378, 66
      %s380 = smul.addr %s379, 8
      %s381 = scalar_lea.vmem %s0, %s380
      %p382 = scmp.lt.s32.totalorder %s22, 1
      %s383 = scalar_select %p382, %s22, 1
      %s384 = smul.addr %s383, 32
      %s385 = smul.addr %s384, 8
      %s386 = scalar_lea.vmem %s11, %s385
      %v388 = vld [vmem:[%s1] sm:$0xff]
      %v389 = vld [vmem:[%s1 + $0x8] sm:$0xff]
      %v390 = vld [vmem:[%s1 + $0x10] sm:$0xff]
      %v391 = vld [vmem:[%s1 + $0x18] sm:$0xff]
      %v392 = vld [vmem:[%s1 + $0x20] sm:$0xff]
      %v393 = vld [vmem:[%s1 + $0x28] sm:$0xff]
      %v394 = vld [vmem:[%s1 + $0x30] sm:$0x1]
      %v395 = vld [vmem:[%s2] sm:$0x1]
      %v396 = vld [vmem:[%s3] sm:$0x1]
      %v397 = vld [vmem:[%s4] sm:$0x1]
      %v398 = vld [vmem:[%s5] sm:$0xf]
      %v399 = vld [vmem:[%s5 + $0x4] sm:$0xf]
      %v400 = vld [vmem:[%s5 + $0x8] sm:$0xf]
      %v401 = vld [vmem:[%s5 + $0xc] sm:$0xf]
      %v402 = vld [vmem:[%s5 + $0x10] sm:$0xf]
      %v403 = vld [vmem:[%s5 + $0x14] sm:$0xf]
      %v404 = vld [vmem:[%s5 + $0x18] sm:$0xf]
      %v405 = vld [vmem:[%s5 + $0x1c] sm:$0xf]
      %v406 = vld [vmem:[%s5 + $0x20] sm:$0xf]
      %v407 = vld [vmem:[%s5 + $0x24] sm:$0xf]
      %v408 = vld [vmem:[%s5 + $0x28] sm:$0xf]
      %v409 = vld [vmem:[%s5 + $0x2c] sm:$0xf]
      %v410 = vld [vmem:[%s5 + $0x30] sm:$0xf]
      %v411 = vld [vmem:[%s5 + $0x34] sm:$0xf]
      %v412 = vld [vmem:[%s5 + $0x38] sm:$0xf]
      %v413 = vld [vmem:[%s5 + $0x3c] sm:$0xf]
      %v414 = vld [vmem:[%s6] sm:$0x1]
      %v415 = vld [vmem:[%s7] sm:$0x1]
      %v416 = vld [vmem:[%s8] sm:$0x1]
      %v417 = vld [vmem:[%s9] sm:$0xf]
      %v418 = vld [vmem:[%s9 + $0x4] sm:$0xf]
      %v419 = vld [vmem:[%s9 + $0x8] sm:$0xf]
      %v420 = vld [vmem:[%s9 + $0xc] sm:$0xf]
      %v421 = vld [vmem:[%s9 + $0x10] sm:$0xf]
      %v422 = vld [vmem:[%s9 + $0x14] sm:$0xf]
      %v423 = vld [vmem:[%s9 + $0x18] sm:$0xf]
      %v424 = vld [vmem:[%s9 + $0x1c] sm:$0xf]
      %v425 = vld [vmem:[%s9 + $0x20] sm:$0xf]
      %v426 = vld [vmem:[%s9 + $0x24] sm:$0xf]
      %v427 = vld [vmem:[%s9 + $0x28] sm:$0xf]
      %v428 = vld [vmem:[%s9 + $0x2c] sm:$0xf]
      %v429 = vld [vmem:[%s9 + $0x30] sm:$0xf]
      %v430 = vld [vmem:[%s9 + $0x34] sm:$0xf]
      %v431 = vld [vmem:[%s9 + $0x38] sm:$0xf]
      %v432 = vld [vmem:[%s9 + $0x3c] sm:$0xf]
      %v433 = vld [vmem:[%s10] sm:$0x1]
      %434 = vst [vmem:[#allocation3] sm:$0x1] 0.0
      %v436 = vlaneseq
      %v437 = vshrl.u32 %v436, 7
      %v438 = vsub.s32 0, %v437
      %v439 = vrot.slane %v395, %v438
      %v441 = vadd.f32 %v439, 0.0
      %v442 = vld [vmem:[%s381] sm:$0xff]
      %v443 = vld [vmem:[%s381 + $0x8] sm:$0xff]
      %v444 = vld [vmem:[%s381 + $0x18] sm:$0xff]
      %v445 = vld [vmem:[%s381 + $0x20] sm:$0xff]
      %v446 = vld [vmem:[%s381 + $0x30] sm:$0xff]
      %v447 = vld [vmem:[%s381 + $0x38] sm:$0xff]
      %v448 = vld [vmem:[%s381 + $0x48] sm:$0xff]
      %v449 = vld [vmem:[%s381 + $0x50] sm:$0xff]
      %v450 = vld [vmem:[%s381 + $0x60] sm:$0xff]
      %v451 = vld [vmem:[%s381 + $0x68] sm:$0xff]
      %v452 = vld [vmem:[%s381 + $0x78] sm:$0xff]
      %v453 = vld [vmem:[%s381 + $0x80] sm:$0xff]
      %v454 = vld [vmem:[%s381 + $0x90] sm:$0xff]
      %v455 = vld [vmem:[%s381 + $0x98] sm:$0xff]
      %v456 = vld [vmem:[%s381 + $0xa8] sm:$0xff]
      %v457 = vld [vmem:[%s381 + $0xb0] sm:$0xff]
      %v458 = vld [vmem:[%s381 + $0xc0] sm:$0xff]
      %v459 = vld [vmem:[%s381 + $0xc8] sm:$0xff]
      %v460 = vld [vmem:[%s381 + $0xd8] sm:$0xff]
      %v461 = vld [vmem:[%s381 + $0xe0] sm:$0xff]
      %v462 = vld [vmem:[%s381 + $0xf0] sm:$0xff]
      %v463 = vld [vmem:[%s381 + $0xf8] sm:$0xff]
      %v464 = vld [vmem:[%s381 + $0x108] sm:$0xff]
      %v465 = vld [vmem:[%s381 + $0x110] sm:$0xff]
      %v466 = vld [vmem:[%s381 + $0x120] sm:$0xff]
      %v467 = vld [vmem:[%s381 + $0x128] sm:$0xff]
      %v468 = vld [vmem:[%s381 + $0x138] sm:$0xff]
      %v469 = vld [vmem:[%s381 + $0x140] sm:$0xff]
      %v470 = vld [vmem:[%s381 + $0x150] sm:$0xff]
      %v471 = vld [vmem:[%s381 + $0x158] sm:$0xff]
      %v472 = vld [vmem:[%s381 + $0x168] sm:$0xff]
      %v473 = vld [vmem:[%s381 + $0x170] sm:$0xff]
      %v474 = vlaneseq
      %v475 = vshrl.u32 %v474, 7
      %v476 = vsub.s32 0, %v475
      %v477 = vrot.slane %v388, %v476
      %v478 = vmul.f32 %v442, %v477
      %v479 = vmul.f32 %v443, %v477
      %v480 = vmul.f32 %v444, %v477
      %v481 = vmul.f32 %v445, %v477
      %v482 = vmul.f32 %v446, %v477
      %v483 = vmul.f32 %v447, %v477
      %v484 = vmul.f32 %v448, %v477
      %v485 = vmul.f32 %v449, %v477
      %v486 = vmul.f32 %v450, %v477
      %v487 = vmul.f32 %v451, %v477
      %v488 = vmul.f32 %v452, %v477
      %v489 = vmul.f32 %v453, %v477
      %v490 = vmul.f32 %v454, %v477
      %v491 = vmul.f32 %v455, %v477
      %v492 = vmul.f32 %v456, %v477
      %v493 = vmul.f32 %v457, %v477
      %v494 = vmul.f32 %v458, %v477
      %v495 = vmul.f32 %v459, %v477
      %v496 = vmul.f32 %v460, %v477
      %v497 = vmul.f32 %v461, %v477
      %v498 = vmul.f32 %v462, %v477
      %v499 = vmul.f32 %v463, %v477
      %v500 = vmul.f32 %v464, %v477
      %v501 = vmul.f32 %v465, %v477
      %v502 = vmul.f32 %v466, %v477
      %v503 = vmul.f32 %v467, %v477
      %v504 = vmul.f32 %v468, %v477
      %v505 = vmul.f32 %v469, %v477
      %v506 = vmul.f32 %v470, %v477
      %v507 = vmul.f32 %v471, %v477
      %v508 = vmul.f32 %v472, %v477
      %v509 = vmul.f32 %v473, %v477
      %v510 = vadd.f32 %v441, %v478
      %v511 = vadd.f32 %v441, %v479
      %v512 = vadd.f32 %v441, %v480
      %v513 = vadd.f32 %v441, %v481
      %v514 = vadd.f32 %v441, %v482
      %v515 = vadd.f32 %v441, %v483
      %v516 = vadd.f32 %v441, %v484
      %v517 = vadd.f32 %v441, %v485
      %v518 = vadd.f32 %v441, %v486
      %v519 = vadd.f32 %v441, %v487
      %v520 = vadd.f32 %v441, %v488
      %v521 = vadd.f32 %v441, %v489
      %v522 = vadd.f32 %v441, %v490
      %v523 = vadd.f32 %v441, %v491
      %v524 = vadd.f32 %v441, %v492
      %v525 = vadd.f32 %v441, %v493
      %v526 = vadd.f32 %v441, %v494
      %v527 = vadd.f32 %v441, %v495
      %v528 = vadd.f32 %v441, %v496
      %v529 = vadd.f32 %v441, %v497
      %v530 = vadd.f32 %v441, %v498
      %v531 = vadd.f32 %v441, %v499
      %v532 = vadd.f32 %v441, %v500
      %v533 = vadd.f32 %v441, %v501
      %v534 = vadd.f32 %v441, %v502
      %v535 = vadd.f32 %v441, %v503
      %v536 = vadd.f32 %v441, %v504
      %v537 = vadd.f32 %v441, %v505
      %v538 = vadd.f32 %v441, %v506
      %v539 = vadd.f32 %v441, %v507
      %v540 = vadd.f32 %v441, %v508
      %v541 = vadd.f32 %v441, %v509
      %v542 = vld [vmem:[%s381 + $0x1] sm:$0xff]
      %v543 = vld [vmem:[%s381 + $0x9] sm:$0xff]
      %v544 = vld [vmem:[%s381 + $0x19] sm:$0xff]
      %v545 = vld [vmem:[%s381 + $0x21] sm:$0xff]
      %v546 = vld [vmem:[%s381 + $0x31] sm:$0xff]
      %v547 = vld [vmem:[%s381 + $0x39] sm:$0xff]
      %v548 = vld [vmem:[%s381 + $0x49] sm:$0xff]
      %v549 = vld [vmem:[%s381 + $0x51] sm:$0xff]
      %v550 = vld [vmem:[%s381 + $0x61] sm:$0xff]
      %v551 = vld [vmem:[%s381 + $0x69] sm:$0xff]
      %v552 = vld [vmem:[%s381 + $0x79] sm:$0xff]
      %v553 = vld [vmem:[%s381 + $0x81] sm:$0xff]
      %v554 = vld [vmem:[%s381 + $0x91] sm:$0xff]
      %v555 = vld [vmem:[%s381 + $0x99] sm:$0xff]
      %v556 = vld [vmem:[%s381 + $0xa9] sm:$0xff]
      %v557 = vld [vmem:[%s381 + $0xb1] sm:$0xff]
      %v558 = vld [vmem:[%s381 + $0xc1] sm:$0xff]
      %v559 = vld [vmem:[%s381 + $0xc9] sm:$0xff]
      %v560 = vld [vmem:[%s381 + $0xd9] sm:$0xff]
      %v561 = vld [vmem:[%s381 + $0xe1] sm:$0xff]
      %v562 = vld [vmem:[%s381 + $0xf1] sm:$0xff]
      %v563 = vld [vmem:[%s381 + $0xf9] sm:$0xff]
      %v564 = vld [vmem:[%s381 + $0x109] sm:$0xff]
      %v565 = vld [vmem:[%s381 + $0x111] sm:$0xff]
      %v566 = vld [vmem:[%s381 + $0x121] sm:$0xff]
      %v567 = vld [vmem:[%s381 + $0x129] sm:$0xff]
      %v568 = vld [vmem:[%s381 + $0x139] sm:$0xff]
      %v569 = vld [vmem:[%s381 + $0x141] sm:$0xff]
      %v570 = vld [vmem:[%s381 + $0x151] sm:$0xff]
      %v571 = vld [vmem:[%s381 + $0x159] sm:$0xff]
      %v572 = vld [vmem:[%s381 + $0x169] sm:$0xff]
      %v573 = vld [vmem:[%s381 + $0x171] sm:$0xff]
      %v574 = vlaneseq
      %v575 = vshrl.u32 %v574, 7
      %v576 = vsub.s32 1, %v575
      %v577 = vrot.slane %v388, %v576
      %v578 = vmul.f32 %v542, %v577
      %v579 = vmul.f32 %v543, %v577
      %v580 = vmul.f32 %v544, %v577
      %v581 = vmul.f32 %v545, %v577
      %v582 = vmul.f32 %v546, %v577
      %v583 = vmul.f32 %v547, %v577
      %v584 = vmul.f32 %v548, %v577
      %v585 = vmul.f32 %v549, %v577
      %v586 = vmul.f32 %v550, %v577
      %v587 = vmul.f32 %v551, %v577
      %v588 = vmul.f32 %v552, %v577
      %v589 = vmul.f32 %v553, %v577
      %v590 = vmul.f32 %v554, %v577
      %v591 = vmul.f32 %v555, %v577
      %v592 = vmul.f32 %v556, %v577
      %v593 = vmul.f32 %v557, %v577
      %v594 = vmul.f32 %v558, %v577
      %v595 = vmul.f32 %v559, %v577
      %v596 = vmul.f32 %v560, %v577
      %v597 = vmul.f32 %v561, %v577
      %v598 = vmul.f32 %v562, %v577
      %v599 = vmul.f32 %v563, %v577
      %v600 = vmul.f32 %v564, %v577
      %v601 = vmul.f32 %v565, %v577
      %v602 = vmul.f32 %v566, %v577
      %v603 = vmul.f32 %v567, %v577
      %v604 = vmul.f32 %v568, %v577
      %v605 = vmul.f32 %v569, %v577
      %v606 = vmul.f32 %v570, %v577
      %v607 = vmul.f32 %v571, %v577
      %v608 = vmul.f32 %v572, %v577
      %v609 = vmul.f32 %v573, %v577
      %v610 = vadd.f32 %v510, %v578
      %v611 = vadd.f32 %v511, %v579
      %v612 = vadd.f32 %v512, %v580
      %v613 = vadd.f32 %v513, %v581
      %v614 = vadd.f32 %v514, %v582
      %v615 = vadd.f32 %v515, %v583
      %v616 = vadd.f32 %v516, %v584
      %v617 = vadd.f32 %v517, %v585
      %v618 = vadd.f32 %v518, %v586
      %v619 = vadd.f32 %v519, %v587
      %v620 = vadd.f32 %v520, %v588
      %v621 = vadd.f32 %v521, %v589
      %v622 = vadd.f32 %v522, %v590
      %v623 = vadd.f32 %v523, %v591
      %v624 = vadd.f32 %v524, %v592
      %v625 = vadd.f32 %v525, %v593
      %v626 = vadd.f32 %v526, %v594
      %v627 = vadd.f32 %v527, %v595
      %v628 = vadd.f32 %v528, %v596
      %v629 = vadd.f32 %v529, %v597
      %v630 = vadd.f32 %v530, %v598
      %v631 = vadd.f32 %v531, %v599
      %v632 = vadd.f32 %v532, %v600
      %v633 = vadd.f32 %v533, %v601
      %v634 = vadd.f32 %v534, %v602
      %v635 = vadd.f32 %v535, %v603
      %v636 = vadd.f32 %v536, %v604
      %v637 = vadd.f32 %v537, %v605
      %v638 = vadd.f32 %v538, %v606
      %v639 = vadd.f32 %v539, %v607
      %v640 = vadd.f32 %v540, %v608
      %v641 = vadd.f32 %v541, %v609
      %v642 = vld [vmem:[%s381 + $0x2] sm:$0xff]
      %v643 = vld [vmem:[%s381 + $0xa] sm:$0xff]
      %v644 = vld [vmem:[%s381 + $0x1a] sm:$0xff]
      %v645 = vld [vmem:[%s381 + $0x22] sm:$0xff]
      %v646 = vld [vmem:[%s381 + $0x32] sm:$0xff]
      %v647 = vld [vmem:[%s381 + $0x3a] sm:$0xff]
      %v648 = vld [vmem:[%s381 + $0x4a] sm:$0xff]
      %v649 = vld [vmem:[%s381 + $0x52] sm:$0xff]
      %v650 = vld [vmem:[%s381 + $0x62] sm:$0xff]
      %v651 = vld [vmem:[%s381 + $0x6a] sm:$0xff]
      %v652 = vld [vmem:[%s381 + $0x7a] sm:$0xff]
      %v653 = vld [vmem:[%s381 + $0x82] sm:$0xff]
      %v654 = vld [vmem:[%s381 + $0x92] sm:$0xff]
      %v655 = vld [vmem:[%s381 + $0x9a] sm:$0xff]
      %v656 = vld [vmem:[%s381 + $0xaa] sm:$0xff]
      %v657 = vld [vmem:[%s381 + $0xb2] sm:$0xff]
      %v658 = vld [vmem:[%s381 + $0xc2] sm:$0xff]
      %v659 = vld [vmem:[%s381 + $0xca] sm:$0xff]
      %v660 = vld [vmem:[%s381 + $0xda] sm:$0xff]
      %v661 = vld [vmem:[%s381 + $0xe2] sm:$0xff]
      %v662 = vld [vmem:[%s381 + $0xf2] sm:$0xff]
      %v663 = vld [vmem:[%s381 + $0xfa] sm:$0xff]
      %v664 = vld [vmem:[%s381 + $0x10a] sm:$0xff]
      %v665 = vld [vmem:[%s381 + $0x112] sm:$0xff]
      %v666 = vld [vmem:[%s381 + $0x122] sm:$0xff]
      %v667 = vld [vmem:[%s381 + $0x12a] sm:$0xff]
      %v668 = vld [vmem:[%s381 + $0x13a] sm:$0xff]
      %v669 = vld [vmem:[%s381 + $0x142] sm:$0xff]
      %v670 = vld [vmem:[%s381 + $0x152] sm:$0xff]
      %v671 = vld [vmem:[%s381 + $0x15a] sm:$0xff]
      %v672 = vld [vmem:[%s381 + $0x16a] sm:$0xff]
      %v673 = vld [vmem:[%s381 + $0x172] sm:$0xff]
      %v674 = vlaneseq
      %v675 = vshrl.u32 %v674, 7
      %v676 = vsub.s32 2, %v675
      %v677 = vrot.slane %v388, %v676
      %v678 = vmul.f32 %v642, %v677
      %v679 = vmul.f32 %v643, %v677
      %v680 = vmul.f32 %v644, %v677
      %v681 = vmul.f32 %v645, %v677
      %v682 = vmul.f32 %v646, %v677
      %v683 = vmul.f32 %v647, %v677
      %v684 = vmul.f32 %v648, %v677
      %v685 = vmul.f32 %v649, %v677
      %v686 = vmul.f32 %v650, %v677
      %v687 = vmul.f32 %v651, %v677
      %v688 = vmul.f32 %v652, %v677
      %v689 = vmul.f32 %v653, %v677
      %v690 = vmul.f32 %v654, %v677
      %v691 = vmul.f32 %v655, %v677
      %v692 = vmul.f32 %v656, %v677
      %v693 = vmul.f32 %v657, %v677
      %v694 = vmul.f32 %v658, %v677
      %v695 = vmul.f32 %v659, %v677
      %v696 = vmul.f32 %v660, %v677
      %v697 = vmul.f32 %v661, %v677
      %v698 = vmul.f32 %v662, %v677
      %v699 = vmul.f32 %v663, %v677
      %v700 = vmul.f32 %v664, %v677
      %v701 = vmul.f32 %v665, %v677
      %v702 = vmul.f32 %v666, %v677
      %v703 = vmul.f32 %v667, %v677
      %v704 = vmul.f32 %v668, %v677
      %v705 = vmul.f32 %v669, %v677
      %v706 = vmul.f32 %v670, %v677
      %v707 = vmul.f32 %v671, %v677
      %v708 = vmul.f32 %v672, %v677
      %v709 = vmul.f32 %v673, %v677
      %v710 = vadd.f32 %v610, %v678
      %v711 = vadd.f32 %v611, %v679
      %v712 = vadd.f32 %v612, %v680
      %v713 = vadd.f32 %v613, %v681
      %v714 = vadd.f32 %v614, %v682
      %v715 = vadd.f32 %v615, %v683
      %v716 = vadd.f32 %v616, %v684
      %v717 = vadd.f32 %v617, %v685
      %v718 = vadd.f32 %v618, %v686
      %v719 = vadd.f32 %v619, %v687
      %v720 = vadd.f32 %v620, %v688
      %v721 = vadd.f32 %v621, %v689
      %v722 = vadd.f32 %v622, %v690
      %v723 = vadd.f32 %v623, %v691
      %v724 = vadd.f32 %v624, %v692
      %v725 = vadd.f32 %v625, %v693
      %v726 = vadd.f32 %v626, %v694
      %v727 = vadd.f32 %v627, %v695
      %v728 = vadd.f32 %v628, %v696
      %v729 = vadd.f32 %v629, %v697
      %v730 = vadd.f32 %v630, %v698
      %v731 = vadd.f32 %v631, %v699
      %v732 = vadd.f32 %v632, %v700
      %v733 = vadd.f32 %v633, %v701
      %v734 = vadd.f32 %v634, %v702
      %v735 = vadd.f32 %v635, %v703
      %v736 = vadd.f32 %v636, %v704
      %v737 = vadd.f32 %v637, %v705
      %v738 = vadd.f32 %v638, %v706
      %v739 = vadd.f32 %v639, %v707
      %v740 = vadd.f32 %v640, %v708
      %v741 = vadd.f32 %v641, %v709
      %v742 = vld [vmem:[%s381 + $0x3] sm:$0xff]
      %v743 = vld [vmem:[%s381 + $0xb] sm:$0xff]
      %v744 = vld [vmem:[%s381 + $0x1b] sm:$0xff]
      %v745 = vld [vmem:[%s381 + $0x23] sm:$0xff]
      %v746 = vld [vmem:[%s381 + $0x33] sm:$0xff]
      %v747 = vld [vmem:[%s381 + $0x3b] sm:$0xff]
      %v748 = vld [vmem:[%s381 + $0x4b] sm:$0xff]
      %v749 = vld [vmem:[%s381 + $0x53] sm:$0xff]
      %v750 = vld [vmem:[%s381 + $0x63] sm:$0xff]
      %v751 = vld [vmem:[%s381 + $0x6b] sm:$0xff]
      %v752 = vld [vmem:[%s381 + $0x7b] sm:$0xff]
      %v753 = vld [vmem:[%s381 + $0x83] sm:$0xff]
      %v754 = vld [vmem:[%s381 + $0x93] sm:$0xff]
      %v755 = vld [vmem:[%s381 + $0x9b] sm:$0xff]
      %v756 = vld [vmem:[%s381 + $0xab] sm:$0xff]
      %v757 = vld [vmem:[%s381 + $0xb3] sm:$0xff]
      %v758 = vld [vmem:[%s381 + $0xc3] sm:$0xff]
      %v759 = vld [vmem:[%s381 + $0xcb] sm:$0xff]
      %v760 = vld [vmem:[%s381 + $0xdb] sm:$0xff]
      %v761 = vld [vmem:[%s381 + $0xe3] sm:$0xff]
      %v762 = vld [vmem:[%s381 + $0xf3] sm:$0xff]
      %v763 = vld [vmem:[%s381 + $0xfb] sm:$0xff]
      %v764 = vld [vmem:[%s381 + $0x10b] sm:$0xff]
      %v765 = vld [vmem:[%s381 + $0x113] sm:$0xff]
      %v766 = vld [vmem:[%s381 + $0x123] sm:$0xff]
      %v767 = vld [vmem:[%s381 + $0x12b] sm:$0xff]
      %v768 = vld [vmem:[%s381 + $0x13b] sm:$0xff]
      %v769 = vld [vmem:[%s381 + $0x143] sm:$0xff]
      %v770 = vld [vmem:[%s381 + $0x153] sm:$0xff]
      %v771 = vld [vmem:[%s381 + $0x15b] sm:$0xff]
      %v772 = vld [vmem:[%s381 + $0x16b] sm:$0xff]
      %v773 = vld [vmem:[%s381 + $0x173] sm:$0xff]
      %v774 = vlaneseq
      %v775 = vshrl.u32 %v774, 7
      %v776 = vsub.s32 3, %v775
      %v777 = vrot.slane %v388, %v776
      %v778 = vmul.f32 %v742, %v777
      %v779 = vmul.f32 %v743, %v777
      %v780 = vmul.f32 %v744, %v777
      %v781 = vmul.f32 %v745, %v777
      %v782 = vmul.f32 %v746, %v777
      %v783 = vmul.f32 %v747, %v777
      %v784 = vmul.f32 %v748, %v777
      %v785 = vmul.f32 %v749, %v777
      %v786 = vmul.f32 %v750, %v777
      %v787 = vmul.f32 %v751, %v777
      %v788 = vmul.f32 %v752, %v777
      %v789 = vmul.f32 %v753, %v777
      %v790 = vmul.f32 %v754, %v777
      %v791 = vmul.f32 %v755, %v777
      %v792 = vmul.f32 %v756, %v777
      %v793 = vmul.f32 %v757, %v777
      %v794 = vmul.f32 %v758, %v777
      %v795 = vmul.f32 %v759, %v777
      %v796 = vmul.f32 %v760, %v777
      %v797 = vmul.f32 %v761, %v777
      %v798 = vmul.f32 %v762, %v777
      %v799 = vmul.f32 %v763, %v777
      %v800 = vmul.f32 %v764, %v777
      %v801 = vmul.f32 %v765, %v777
      %v802 = vmul.f32 %v766, %v777
      %v803 = vmul.f32 %v767, %v777
      %v804 = vmul.f32 %v768, %v777
      %v805 = vmul.f32 %v769, %v777
      %v806 = vmul.f32 %v770, %v777
      %v807 = vmul.f32 %v771, %v777
      %v808 = vmul.f32 %v772, %v777
      %v809 = vmul.f32 %v773, %v777
      %v810 = vadd.f32 %v710, %v778
      %v811 = vadd.f32 %v711, %v779
      %v812 = vadd.f32 %v712, %v780
      %v813 = vadd.f32 %v713, %v781
      %v814 = vadd.f32 %v714, %v782
      %v815 = vadd.f32 %v715, %v783
      %v816 = vadd.f32 %v716, %v784
      %v817 = vadd.f32 %v717, %v785
      %v818 = vadd.f32 %v718, %v786
      %v819 = vadd.f32 %v719, %v787
      %v820 = vadd.f32 %v720, %v788
      %v821 = vadd.f32 %v721, %v789
      %v822 = vadd.f32 %v722, %v790
      %v823 = vadd.f32 %v723, %v791
      %v824 = vadd.f32 %v724, %v792
      %v825 = vadd.f32 %v725, %v793
      %v826 = vadd.f32 %v726, %v794
      %v827 = vadd.f32 %v727, %v795
      %v828 = vadd.f32 %v728, %v796
      %v829 = vadd.f32 %v729, %v797
      %v830 = vadd.f32 %v730, %v798
      %v831 = vadd.f32 %v731, %v799
      %v832 = vadd.f32 %v732, %v800
      %v833 = vadd.f32 %v733, %v801
      %v834 = vadd.f32 %v734, %v802
      %v835 = vadd.f32 %v735, %v803
      %v836 = vadd.f32 %v736, %v804
      %v837 = vadd.f32 %v737, %v805
      %v838 = vadd.f32 %v738, %v806
      %v839 = vadd.f32 %v739, %v807
      %v840 = vadd.f32 %v740, %v808
      %v841 = vadd.f32 %v741, %v809
      %v842 = vld [vmem:[%s381 + $0x4] sm:$0xff]
      %v843 = vld [vmem:[%s381 + $0xc] sm:$0xff]
      %v844 = vld [vmem:[%s381 + $0x1c] sm:$0xff]
      %v845 = vld [vmem:[%s381 + $0x24] sm:$0xff]
      %v846 = vld [vmem:[%s381 + $0x34] sm:$0xff]
      %v847 = vld [vmem:[%s381 + $0x3c] sm:$0xff]
      %v848 = vld [vmem:[%s381 + $0x4c] sm:$0xff]
      %v849 = vld [vmem:[%s381 + $0x54] sm:$0xff]
      %v850 = vld [vmem:[%s381 + $0x64] sm:$0xff]
      %v851 = vld [vmem:[%s381 + $0x6c] sm:$0xff]
      %v852 = vld [vmem:[%s381 + $0x7c] sm:$0xff]
      %v853 = vld [vmem:[%s381 + $0x84] sm:$0xff]
      %v854 = vld [vmem:[%s381 + $0x94] sm:$0xff]
      %v855 = vld [vmem:[%s381 + $0x9c] sm:$0xff]
      %v856 = vld [vmem:[%s381 + $0xac] sm:$0xff]
      %v857 = vld [vmem:[%s381 + $0xb4] sm:$0xff]
      %v858 = vld [vmem:[%s381 + $0xc4] sm:$0xff]
      %v859 = vld [vmem:[%s381 + $0xcc] sm:$0xff]
      %v860 = vld [vmem:[%s381 + $0xdc] sm:$0xff]
      %v861 = vld [vmem:[%s381 + $0xe4] sm:$0xff]
      %v862 = vld [vmem:[%s381 + $0xf4] sm:$0xff]
      %v863 = vld [vmem:[%s381 + $0xfc] sm:$0xff]
      %v864 = vld [vmem:[%s381 + $0x10c] sm:$0xff]
      %v865 = vld [vmem:[%s381 + $0x114] sm:$0xff]
      %v866 = vld [vmem:[%s381 + $0x124] sm:$0xff]
      %v867 = vld [vmem:[%s381 + $0x12c] sm:$0xff]
      %v868 = vld [vmem:[%s381 + $0x13c] sm:$0xff]
      %v869 = vld [vmem:[%s381 + $0x144] sm:$0xff]
      %v870 = vld [vmem:[%s381 + $0x154] sm:$0xff]
      %v871 = vld [vmem:[%s381 + $0x15c] sm:$0xff]
      %v872 = vld [vmem:[%s381 + $0x16c] sm:$0xff]
      %v873 = vld [vmem:[%s381 + $0x174] sm:$0xff]
      %v874 = vlaneseq
      %v875 = vshrl.u32 %v874, 7
      %v876 = vsub.s32 4, %v875
      %v877 = vrot.slane %v388, %v876
      %v878 = vmul.f32 %v842, %v877
      %v879 = vmul.f32 %v843, %v877
      %v880 = vmul.f32 %v844, %v877
      %v881 = vmul.f32 %v845, %v877
      %v882 = vmul.f32 %v846, %v877
      %v883 = vmul.f32 %v847, %v877
      %v884 = vmul.f32 %v848, %v877
      %v885 = vmul.f32 %v849, %v877
      %v886 = vmul.f32 %v850, %v877
      %v887 = vmul.f32 %v851, %v877
      %v888 = vmul.f32 %v852, %v877
      %v889 = vmul.f32 %v853, %v877
      %v890 = vmul.f32 %v854, %v877
      %v891 = vmul.f32 %v855, %v877
      %v892 = vmul.f32 %v856, %v877
      %v893 = vmul.f32 %v857, %v877
      %v894 = vmul.f32 %v858, %v877
      %v895 = vmul.f32 %v859, %v877
      %v896 = vmul.f32 %v860, %v877
      %v897 = vmul.f32 %v861, %v877
      %v898 = vmul.f32 %v862, %v877
      %v899 = vmul.f32 %v863, %v877
      %v900 = vmul.f32 %v864, %v877
      %v901 = vmul.f32 %v865, %v877
      %v902 = vmul.f32 %v866, %v877
      %v903 = vmul.f32 %v867, %v877
      %v904 = vmul.f32 %v868, %v877
      %v905 = vmul.f32 %v869, %v877
      %v906 = vmul.f32 %v870, %v877
      %v907 = vmul.f32 %v871, %v877
      %v908 = vmul.f32 %v872, %v877
      %v909 = vmul.f32 %v873, %v877
      %v910 = vadd.f32 %v810, %v878
      %v911 = vadd.f32 %v811, %v879
      %v912 = vadd.f32 %v812, %v880
      %v913 = vadd.f32 %v813, %v881
      %v914 = vadd.f32 %v814, %v882
      %v915 = vadd.f32 %v815, %v883
      %v916 = vadd.f32 %v816, %v884
      %v917 = vadd.f32 %v817, %v885
      %v918 = vadd.f32 %v818, %v886
      %v919 = vadd.f32 %v819, %v887
      %v920 = vadd.f32 %v820, %v888
      %v921 = vadd.f32 %v821, %v889
      %v922 = vadd.f32 %v822, %v890
      %v923 = vadd.f32 %v823, %v891
      %v924 = vadd.f32 %v824, %v892
      %v925 = vadd.f32 %v825, %v893
      %v926 = vadd.f32 %v826, %v894
      %v927 = vadd.f32 %v827, %v895
      %v928 = vadd.f32 %v828, %v896
      %v929 = vadd.f32 %v829, %v897
      %v930 = vadd.f32 %v830, %v898
      %v931 = vadd.f32 %v831, %v899
      %v932 = vadd.f32 %v832, %v900
      %v933 = vadd.f32 %v833, %v901
      %v934 = vadd.f32 %v834, %v902
      %v935 = vadd.f32 %v835, %v903
      %v936 = vadd.f32 %v836, %v904
      %v937 = vadd.f32 %v837, %v905
      %v938 = vadd.f32 %v838, %v906
      %v939 = vadd.f32 %v839, %v907
      %v940 = vadd.f32 %v840, %v908
      %v941 = vadd.f32 %v841, %v909
      %v942 = vld [vmem:[%s381 + $0x5] sm:$0xff]
      %v943 = vld [vmem:[%s381 + $0xd] sm:$0xff]
      %v944 = vld [vmem:[%s381 + $0x1d] sm:$0xff]
      %v945 = vld [vmem:[%s381 + $0x25] sm:$0xff]
      %v946 = vld [vmem:[%s381 + $0x35] sm:$0xff]
      %v947 = vld [vmem:[%s381 + $0x3d] sm:$0xff]
      %v948 = vld [vmem:[%s381 + $0x4d] sm:$0xff]
      %v949 = vld [vmem:[%s381 + $0x55] sm:$0xff]
      %v950 = vld [vmem:[%s381 + $0x65] sm:$0xff]
      %v951 = vld [vmem:[%s381 + $0x6d] sm:$0xff]
      %v952 = vld [vmem:[%s381 + $0x7d] sm:$0xff]
      %v953 = vld [vmem:[%s381 + $0x85] sm:$0xff]
      %v954 = vld [vmem:[%s381 + $0x95] sm:$0xff]
      %v955 = vld [vmem:[%s381 + $0x9d] sm:$0xff]
      %v956 = vld [vmem:[%s381 + $0xad] sm:$0xff]
      %v957 = vld [vmem:[%s381 + $0xb5] sm:$0xff]
      %v958 = vld [vmem:[%s381 + $0xc5] sm:$0xff]
      %v959 = vld [vmem:[%s381 + $0xcd] sm:$0xff]
      %v960 = vld [vmem:[%s381 + $0xdd] sm:$0xff]
      %v961 = vld [vmem:[%s381 + $0xe5] sm:$0xff]
      %v962 = vld [vmem:[%s381 + $0xf5] sm:$0xff]
      %v963 = vld [vmem:[%s381 + $0xfd] sm:$0xff]
      %v964 = vld [vmem:[%s381 + $0x10d] sm:$0xff]
      %v965 = vld [vmem:[%s381 + $0x115] sm:$0xff]
      %v966 = vld [vmem:[%s381 + $0x125] sm:$0xff]
      %v967 = vld [vmem:[%s381 + $0x12d] sm:$0xff]
      %v968 = vld [vmem:[%s381 + $0x13d] sm:$0xff]
      %v969 = vld [vmem:[%s381 + $0x145] sm:$0xff]
      %v970 = vld [vmem:[%s381 + $0x155] sm:$0xff]
      %v971 = vld [vmem:[%s381 + $0x15d] sm:$0xff]
      %v972 = vld [vmem:[%s381 + $0x16d] sm:$0xff]
      %v973 = vld [vmem:[%s381 + $0x175] sm:$0xff]
      %v974 = vlaneseq
      %v975 = vshrl.u32 %v974, 7
      %v976 = vsub.s32 5, %v975
      %v977 = vrot.slane %v388, %v976
      %v978 = vmul.f32 %v942, %v977
      %v979 = vmul.f32 %v943, %v977
      %v980 = vmul.f32 %v944, %v977
      %v981 = vmul.f32 %v945, %v977
      %v982 = vmul.f32 %v946, %v977
      %v983 = vmul.f32 %v947, %v977
      %v984 = vmul.f32 %v948, %v977
      %v985 = vmul.f32 %v949, %v977
      %v986 = vmul.f32 %v950, %v977
      %v987 = vmul.f32 %v951, %v977
      %v988 = vmul.f32 %v952, %v977
      %v989 = vmul.f32 %v953, %v977
      %v990 = vmul.f32 %v954, %v977
      %v991 = vmul.f32 %v955, %v977
      %v992 = vmul.f32 %v956, %v977
      %v993 = vmul.f32 %v957, %v977
      %v994 = vmul.f32 %v958, %v977
      %v995 = vmul.f32 %v959, %v977
      %v996 = vmul.f32 %v960, %v977
      %v997 = vmul.f32 %v961, %v977
      %v998 = vmul.f32 %v962, %v977
      %v999 = vmul.f32 %v963, %v977
      %v1000 = vmul.f32 %v964, %v977
      %v1001 = vmul.f32 %v965, %v977
      %v1002 = vmul.f32 %v966, %v977
      %v1003 = vmul.f32 %v967, %v977
      %v1004 = vmul.f32 %v968, %v977
      %v1005 = vmul.f32 %v969, %v977
      %v1006 = vmul.f32 %v970, %v977
      %v1007 = vmul.f32 %v971, %v977
      %v1008 = vmul.f32 %v972, %v977
      %v1009 = vmul.f32 %v973, %v977
      %v1010 = vadd.f32 %v910, %v978
      %v1011 = vadd.f32 %v911, %v979
      %v1012 = vadd.f32 %v912, %v980
      %v1013 = vadd.f32 %v913, %v981
      %v1014 = vadd.f32 %v914, %v982
      %v1015 = vadd.f32 %v915, %v983
      %v1016 = vadd.f32 %v916, %v984
      %v1017 = vadd.f32 %v917, %v985
      %v1018 = vadd.f32 %v918, %v986
      %v1019 = vadd.f32 %v919, %v987
      %v1020 = vadd.f32 %v920, %v988
      %v1021 = vadd.f32 %v921, %v989
      %v1022 = vadd.f32 %v922, %v990
      %v1023 = vadd.f32 %v923, %v991
      %v1024 = vadd.f32 %v924, %v992
      %v1025 = vadd.f32 %v925, %v993
      %v1026 = vadd.f32 %v926, %v994
      %v1027 = vadd.f32 %v927, %v995
      %v1028 = vadd.f32 %v928, %v996
      %v1029 = vadd.f32 %v929, %v997
      %v1030 = vadd.f32 %v930, %v998
      %v1031 = vadd.f32 %v931, %v999
      %v1032 = vadd.f32 %v932, %v1000
      %v1033 = vadd.f32 %v933, %v1001
      %v1034 = vadd.f32 %v934, %v1002
      %v1035 = vadd.f32 %v935, %v1003
      %v1036 = vadd.f32 %v936, %v1004
      %v1037 = vadd.f32 %v937, %v1005
      %v1038 = vadd.f32 %v938, %v1006
      %v1039 = vadd.f32 %v939, %v1007
      %v1040 = vadd.f32 %v940, %v1008
      %v1041 = vadd.f32 %v941, %v1009
      %v1042 = vld [vmem:[%s381 + $0x6] sm:$0xff]
      %v1043 = vld [vmem:[%s381 + $0xe] sm:$0xff]
      %v1044 = vld [vmem:[%s381 + $0x1e] sm:$0xff]
      %v1045 = vld [vmem:[%s381 + $0x26] sm:$0xff]
      %v1046 = vld [vmem:[%s381 + $0x36] sm:$0xff]
      %v1047 = vld [vmem:[%s381 + $0x3e] sm:$0xff]
      %v1048 = vld [vmem:[%s381 + $0x4e] sm:$0xff]
      %v1049 = vld [vmem:[%s381 + $0x56] sm:$0xff]
      %v1050 = vld [vmem:[%s381 + $0x66] sm:$0xff]
      %v1051 = vld [vmem:[%s381 + $0x6e] sm:$0xff]
      %v1052 = vld [vmem:[%s381 + $0x7e] sm:$0xff]
      %v1053 = vld [vmem:[%s381 + $0x86] sm:$0xff]
      %v1054 = vld [vmem:[%s381 + $0x96] sm:$0xff]
      %v1055 = vld [vmem:[%s381 + $0x9e] sm:$0xff]
      %v1056 = vld [vmem:[%s381 + $0xae] sm:$0xff]
      %v1057 = vld [vmem:[%s381 + $0xb6] sm:$0xff]
      %v1058 = vld [vmem:[%s381 + $0xc6] sm:$0xff]
      %v1059 = vld [vmem:[%s381 + $0xce] sm:$0xff]
      %v1060 = vld [vmem:[%s381 + $0xde] sm:$0xff]
      %v1061 = vld [vmem:[%s381 + $0xe6] sm:$0xff]
      %v1062 = vld [vmem:[%s381 + $0xf6] sm:$0xff]
      %v1063 = vld [vmem:[%s381 + $0xfe] sm:$0xff]
      %v1064 = vld [vmem:[%s381 + $0x10e] sm:$0xff]
      %v1065 = vld [vmem:[%s381 + $0x116] sm:$0xff]
      %v1066 = vld [vmem:[%s381 + $0x126] sm:$0xff]
      %v1067 = vld [vmem:[%s381 + $0x12e] sm:$0xff]
      %v1068 = vld [vmem:[%s381 + $0x13e] sm:$0xff]
      %v1069 = vld [vmem:[%s381 + $0x146] sm:$0xff]
      %v1070 = vld [vmem:[%s381 + $0x156] sm:$0xff]
      %v1071 = vld [vmem:[%s381 + $0x15e] sm:$0xff]
      %v1072 = vld [vmem:[%s381 + $0x16e] sm:$0xff]
      %v1073 = vld [vmem:[%s381 + $0x176] sm:$0xff]
      %v1074 = vlaneseq
      %v1075 = vshrl.u32 %v1074, 7
      %v1076 = vsub.s32 6, %v1075
      %v1077 = vrot.slane %v388, %v1076
      %v1078 = vmul.f32 %v1042, %v1077
      %v1079 = vmul.f32 %v1043, %v1077
      %v1080 = vmul.f32 %v1044, %v1077
      %v1081 = vmul.f32 %v1045, %v1077
      %v1082 = vmul.f32 %v1046, %v1077
      %v1083 = vmul.f32 %v1047, %v1077
      %v1084 = vmul.f32 %v1048, %v1077
      %v1085 = vmul.f32 %v1049, %v1077
      %v1086 = vmul.f32 %v1050, %v1077
      %v1087 = vmul.f32 %v1051, %v1077
      %v1088 = vmul.f32 %v1052, %v1077
      %v1089 = vmul.f32 %v1053, %v1077
      %v1090 = vmul.f32 %v1054, %v1077
      %v1091 = vmul.f32 %v1055, %v1077
      %v1092 = vmul.f32 %v1056, %v1077
      %v1093 = vmul.f32 %v1057, %v1077
      %v1094 = vmul.f32 %v1058, %v1077
      %v1095 = vmul.f32 %v1059, %v1077
      %v1096 = vmul.f32 %v1060, %v1077
      %v1097 = vmul.f32 %v1061, %v1077
      %v1098 = vmul.f32 %v1062, %v1077
      %v1099 = vmul.f32 %v1063, %v1077
      %v1100 = vmul.f32 %v1064, %v1077
      %v1101 = vmul.f32 %v1065, %v1077
      %v1102 = vmul.f32 %v1066, %v1077
      %v1103 = vmul.f32 %v1067, %v1077
      %v1104 = vmul.f32 %v1068, %v1077
      %v1105 = vmul.f32 %v1069, %v1077
      %v1106 = vmul.f32 %v1070, %v1077
      %v1107 = vmul.f32 %v1071, %v1077
      %v1108 = vmul.f32 %v1072, %v1077
      %v1109 = vmul.f32 %v1073, %v1077
      %v1110 = vadd.f32 %v1010, %v1078
      %v1111 = vadd.f32 %v1011, %v1079
      %v1112 = vadd.f32 %v1012, %v1080
      %v1113 = vadd.f32 %v1013, %v1081
      %v1114 = vadd.f32 %v1014, %v1082
      %v1115 = vadd.f32 %v1015, %v1083
      %v1116 = vadd.f32 %v1016, %v1084
      %v1117 = vadd.f32 %v1017, %v1085
      %v1118 = vadd.f32 %v1018, %v1086
      %v1119 = vadd.f32 %v1019, %v1087
      %v1120 = vadd.f32 %v1020, %v1088
      %v1121 = vadd.f32 %v1021, %v1089
      %v1122 = vadd.f32 %v1022, %v1090
      %v1123 = vadd.f32 %v1023, %v1091
      %v1124 = vadd.f32 %v1024, %v1092
      %v1125 = vadd.f32 %v1025, %v1093
      %v1126 = vadd.f32 %v1026, %v1094
      %v1127 = vadd.f32 %v1027, %v1095
      %v1128 = vadd.f32 %v1028, %v1096
      %v1129 = vadd.f32 %v1029, %v1097
      %v1130 = vadd.f32 %v1030, %v1098
      %v1131 = vadd.f32 %v1031, %v1099
      %v1132 = vadd.f32 %v1032, %v1100
      %v1133 = vadd.f32 %v1033, %v1101
      %v1134 = vadd.f32 %v1034, %v1102
      %v1135 = vadd.f32 %v1035, %v1103
      %v1136 = vadd.f32 %v1036, %v1104
      %v1137 = vadd.f32 %v1037, %v1105
      %v1138 = vadd.f32 %v1038, %v1106
      %v1139 = vadd.f32 %v1039, %v1107
      %v1140 = vadd.f32 %v1040, %v1108
      %v1141 = vadd.f32 %v1041, %v1109
      %s1142 = scalar_lea.vmem %s381, 24
      %v1143 = vld [vmem:[%s1142] sm:$0xff]
      %v1144 = vld [vmem:[%s1142 + $0x8] sm:$0xff]
      %v1145 = vld [vmem:[%s1142 + $0x18] sm:$0xff]
      %v1146 = vld [vmem:[%s1142 + $0x20] sm:$0xff]
      %v1147 = vld [vmem:[%s1142 + $0x30] sm:$0xff]
      %v1148 = vld [vmem:[%s1142 + $0x38] sm:$0xff]
      %v1149 = vld [vmem:[%s1142 + $0x48] sm:$0xff]
      %v1150 = vld [vmem:[%s1142 + $0x50] sm:$0xff]
      %v1151 = vld [vmem:[%s1142 + $0x60] sm:$0xff]
      %v1152 = vld [vmem:[%s1142 + $0x68] sm:$0xff]
      %v1153 = vld [vmem:[%s1142 + $0x78] sm:$0xff]
      %v1154 = vld [vmem:[%s1142 + $0x80] sm:$0xff]
      %v1155 = vld [vmem:[%s1142 + $0x90] sm:$0xff]
      %v1156 = vld [vmem:[%s1142 + $0x98] sm:$0xff]
      %v1157 = vld [vmem:[%s1142 + $0xa8] sm:$0xff]
      %v1158 = vld [vmem:[%s1142 + $0xb0] sm:$0xff]
      %v1159 = vld [vmem:[%s1142 + $0xc0] sm:$0xff]
      %v1160 = vld [vmem:[%s1142 + $0xc8] sm:$0xff]
      %v1161 = vld [vmem:[%s1142 + $0xd8] sm:$0xff]
      %v1162 = vld [vmem:[%s1142 + $0xe0] sm:$0xff]
      %v1163 = vld [vmem:[%s1142 + $0xf0] sm:$0xff]
      %v1164 = vld [vmem:[%s1142 + $0xf8] sm:$0xff]
      %v1165 = vld [vmem:[%s1142 + $0x108] sm:$0xff]
      %v1166 = vld [vmem:[%s1142 + $0x110] sm:$0xff]
      %v1167 = vld [vmem:[%s1142 + $0x120] sm:$0xff]
      %v1168 = vld [vmem:[%s1142 + $0x128] sm:$0xff]
      %v1169 = vld [vmem:[%s1142 + $0x138] sm:$0xff]
      %v1170 = vld [vmem:[%s1142 + $0x140] sm:$0xff]
      %v1171 = vld [vmem:[%s1142 + $0x150] sm:$0xff]
      %v1172 = vld [vmem:[%s1142 + $0x158] sm:$0xff]
      %v1173 = vld [vmem:[%s1142 + $0x168] sm:$0xff]
      %v1174 = vld [vmem:[%s1142 + $0x170] sm:$0xff]
      %v1175 = vlaneseq
      %v1176 = vshrl.u32 %v1175, 7
      %v1177 = vsub.s32 7, %v1176
      %v1178 = vrot.slane %v388, %v1177
      %v1179 = vmul.f32 %v1143, %v1178
      %v1180 = vmul.f32 %v1144, %v1178
      %v1181 = vmul.f32 %v1145, %v1178
      %v1182 = vmul.f32 %v1146, %v1178
      %v1183 = vmul.f32 %v1147, %v1178
      %v1184 = vmul.f32 %v1148, %v1178
      %v1185 = vmul.f32 %v1149, %v1178
      %v1186 = vmul.f32 %v1150, %v1178
      %v1187 = vmul.f32 %v1151, %v1178
      %v1188 = vmul.f32 %v1152, %v1178
      %v1189 = vmul.f32 %v1153, %v1178
      %v1190 = vmul.f32 %v1154, %v1178
      %v1191 = vmul.f32 %v1155, %v1178
      %v1192 = vmul.f32 %v1156, %v1178
      %v1193 = vmul.f32 %v1157, %v1178
      %v1194 = vmul.f32 %v1158, %v1178
      %v1195 = vmul.f32 %v1159, %v1178
      %v1196 = vmul.f32 %v1160, %v1178
      %v1197 = vmul.f32 %v1161, %v1178
      %v1198 = vmul.f32 %v1162, %v1178
      %v1199 = vmul.f32 %v1163, %v1178
      %v1200 = vmul.f32 %v1164, %v1178
      %v1201 = vmul.f32 %v1165, %v1178
      %v1202 = vmul.f32 %v1166, %v1178
      %v1203 = vmul.f32 %v1167, %v1178
      %v1204 = vmul.f32 %v1168, %v1178
      %v1205 = vmul.f32 %v1169, %v1178
      %v1206 = vmul.f32 %v1170, %v1178
      %v1207 = vmul.f32 %v1171, %v1178
      %v1208 = vmul.f32 %v1172, %v1178
      %v1209 = vmul.f32 %v1173, %v1178
      %v1210 = vmul.f32 %v1174, %v1178
      %v1211 = vadd.f32 %v1110, %v1179
      %v1212 = vadd.f32 %v1111, %v1180
      %v1213 = vadd.f32 %v1112, %v1181
      %v1214 = vadd.f32 %v1113, %v1182
      %v1215 = vadd.f32 %v1114, %v1183
      %v1216 = vadd.f32 %v1115, %v1184
      %v1217 = vadd.f32 %v1116, %v1185
      %v1218 = vadd.f32 %v1117, %v1186
      %v1219 = vadd.f32 %v1118, %v1187
      %v1220 = vadd.f32 %v1119, %v1188
      %v1221 = vadd.f32 %v1120, %v1189
      %v1222 = vadd.f32 %v1121, %v1190
      %v1223 = vadd.f32 %v1122, %v1191
      %v1224 = vadd.f32 %v1123, %v1192
      %v1225 = vadd.f32 %v1124, %v1193
      %v1226 = vadd.f32 %v1125, %v1194
      %v1227 = vadd.f32 %v1126, %v1195
      %v1228 = vadd.f32 %v1127, %v1196
      %v1229 = vadd.f32 %v1128, %v1197
      %v1230 = vadd.f32 %v1129, %v1198
      %v1231 = vadd.f32 %v1130, %v1199
      %v1232 = vadd.f32 %v1131, %v1200
      %v1233 = vadd.f32 %v1132, %v1201
      %v1234 = vadd.f32 %v1133, %v1202
      %v1235 = vadd.f32 %v1134, %v1203
      %v1236 = vadd.f32 %v1135, %v1204
      %v1237 = vadd.f32 %v1136, %v1205
      %v1238 = vadd.f32 %v1137, %v1206
      %v1239 = vadd.f32 %v1138, %v1207
      %v1240 = vadd.f32 %v1139, %v1208
      %v1241 = vadd.f32 %v1140, %v1209
      %v1242 = vadd.f32 %v1141, %v1210
      %v1243 = vld [vmem:[%s1142 + $0x1] sm:$0xff]
      %v1244 = vld [vmem:[%s1142 + $0x9] sm:$0xff]
      %v1245 = vld [vmem:[%s1142 + $0x19] sm:$0xff]
      %v1246 = vld [vmem:[%s1142 + $0x21] sm:$0xff]
      %v1247 = vld [vmem:[%s1142 + $0x31] sm:$0xff]
      %v1248 = vld [vmem:[%s1142 + $0x39] sm:$0xff]
      %v1249 = vld [vmem:[%s1142 + $0x49] sm:$0xff]
      %v1250 = vld [vmem:[%s1142 + $0x51] sm:$0xff]
      %v1251 = vld [vmem:[%s1142 + $0x61] sm:$0xff]
      %v1252 = vld [vmem:[%s1142 + $0x69] sm:$0xff]
      %v1253 = vld [vmem:[%s1142 + $0x79] sm:$0xff]
      %v1254 = vld [vmem:[%s1142 + $0x81] sm:$0xff]
      %v1255 = vld [vmem:[%s1142 + $0x91] sm:$0xff]
      %v1256 = vld [vmem:[%s1142 + $0x99] sm:$0xff]
      %v1257 = vld [vmem:[%s1142 + $0xa9] sm:$0xff]
      %v1258 = vld [vmem:[%s1142 + $0xb1] sm:$0xff]
      %v1259 = vld [vmem:[%s1142 + $0xc1] sm:$0xff]
      %v1260 = vld [vmem:[%s1142 + $0xc9] sm:$0xff]
      %v1261 = vld [vmem:[%s1142 + $0xd9] sm:$0xff]
      %v1262 = vld [vmem:[%s1142 + $0xe1] sm:$0xff]
      %v1263 = vld [vmem:[%s1142 + $0xf1] sm:$0xff]
      %v1264 = vld [vmem:[%s1142 + $0xf9] sm:$0xff]
      %v1265 = vld [vmem:[%s1142 + $0x109] sm:$0xff]
      %v1266 = vld [vmem:[%s1142 + $0x111] sm:$0xff]
      %v1267 = vld [vmem:[%s1142 + $0x121] sm:$0xff]
      %v1268 = vld [vmem:[%s1142 + $0x129] sm:$0xff]
      %v1269 = vld [vmem:[%s1142 + $0x139] sm:$0xff]
      %v1270 = vld [vmem:[%s1142 + $0x141] sm:$0xff]
      %v1271 = vld [vmem:[%s1142 + $0x151] sm:$0xff]
      %v1272 = vld [vmem:[%s1142 + $0x159] sm:$0xff]
      %v1273 = vld [vmem:[%s1142 + $0x169] sm:$0xff]
      %v1274 = vld [vmem:[%s1142 + $0x171] sm:$0xff]
      %v1275 = vlaneseq
      %v1276 = vshrl.u32 %v1275, 7
      %v1277 = vsub.s32 0, %v1276
      %v1278 = vrot.slane %v389, %v1277
      %v1279 = vmul.f32 %v1243, %v1278
      %v1280 = vmul.f32 %v1244, %v1278
      %v1281 = vmul.f32 %v1245, %v1278
      %v1282 = vmul.f32 %v1246, %v1278
      %v1283 = vmul.f32 %v1247, %v1278
      %v1284 = vmul.f32 %v1248, %v1278
      %v1285 = vmul.f32 %v1249, %v1278
      %v1286 = vmul.f32 %v1250, %v1278
      %v1287 = vmul.f32 %v1251, %v1278
      %v1288 = vmul.f32 %v1252, %v1278
      %v1289 = vmul.f32 %v1253, %v1278
      %v1290 = vmul.f32 %v1254, %v1278
      %v1291 = vmul.f32 %v1255, %v1278
      %v1292 = vmul.f32 %v1256, %v1278
      %v1293 = vmul.f32 %v1257, %v1278
      %v1294 = vmul.f32 %v1258, %v1278
      %v1295 = vmul.f32 %v1259, %v1278
      %v1296 = vmul.f32 %v1260, %v1278
      %v1297 = vmul.f32 %v1261, %v1278
      %v1298 = vmul.f32 %v1262, %v1278
      %v1299 = vmul.f32 %v1263, %v1278
      %v1300 = vmul.f32 %v1264, %v1278
      %v1301 = vmul.f32 %v1265, %v1278
      %v1302 = vmul.f32 %v1266, %v1278
      %v1303 = vmul.f32 %v1267, %v1278
      %v1304 = vmul.f32 %v1268, %v1278
      %v1305 = vmul.f32 %v1269, %v1278
      %v1306 = vmul.f32 %v1270, %v1278
      %v1307 = vmul.f32 %v1271, %v1278
      %v1308 = vmul.f32 %v1272, %v1278
      %v1309 = vmul.f32 %v1273, %v1278
      %v1310 = vmul.f32 %v1274, %v1278
      %v1311 = vadd.f32 %v1211, %v1279
      %v1312 = vadd.f32 %v1212, %v1280
      %v1313 = vadd.f32 %v1213, %v1281
      %v1314 = vadd.f32 %v1214, %v1282
      %v1315 = vadd.f32 %v1215, %v1283
      %v1316 = vadd.f32 %v1216, %v1284
      %v1317 = vadd.f32 %v1217, %v1285
      %v1318 = vadd.f32 %v1218, %v1286
      %v1319 = vadd.f32 %v1219, %v1287
      %v1320 = vadd.f32 %v1220, %v1288
      %v1321 = vadd.f32 %v1221, %v1289
      %v1322 = vadd.f32 %v1222, %v1290
      %v1323 = vadd.f32 %v1223, %v1291
      %v1324 = vadd.f32 %v1224, %v1292
      %v1325 = vadd.f32 %v1225, %v1293
      %v1326 = vadd.f32 %v1226, %v1294
      %v1327 = vadd.f32 %v1227, %v1295
      %v1328 = vadd.f32 %v1228, %v1296
      %v1329 = vadd.f32 %v1229, %v1297
      %v1330 = vadd.f32 %v1230, %v1298
      %v1331 = vadd.f32 %v1231, %v1299
      %v1332 = vadd.f32 %v1232, %v1300
      %v1333 = vadd.f32 %v1233, %v1301
      %v1334 = vadd.f32 %v1234, %v1302
      %v1335 = vadd.f32 %v1235, %v1303
      %v1336 = vadd.f32 %v1236, %v1304
      %v1337 = vadd.f32 %v1237, %v1305
      %v1338 = vadd.f32 %v1238, %v1306
      %v1339 = vadd.f32 %v1239, %v1307
      %v1340 = vadd.f32 %v1240, %v1308
      %v1341 = vadd.f32 %v1241, %v1309
      %v1342 = vadd.f32 %v1242, %v1310
      %v1343 = vld [vmem:[%s1142 + $0x2] sm:$0xff]
      %v1344 = vld [vmem:[%s1142 + $0xa] sm:$0xff]
      %v1345 = vld [vmem:[%s1142 + $0x1a] sm:$0xff]
      %v1346 = vld [vmem:[%s1142 + $0x22] sm:$0xff]
      %v1347 = vld [vmem:[%s1142 + $0x32] sm:$0xff]
      %v1348 = vld [vmem:[%s1142 + $0x3a] sm:$0xff]
      %v1349 = vld [vmem:[%s1142 + $0x4a] sm:$0xff]
      %v1350 = vld [vmem:[%s1142 + $0x52] sm:$0xff]
      %v1351 = vld [vmem:[%s1142 + $0x62] sm:$0xff]
      %v1352 = vld [vmem:[%s1142 + $0x6a] sm:$0xff]
      %v1353 = vld [vmem:[%s1142 + $0x7a] sm:$0xff]
      %v1354 = vld [vmem:[%s1142 + $0x82] sm:$0xff]
      %v1355 = vld [vmem:[%s1142 + $0x92] sm:$0xff]
      %v1356 = vld [vmem:[%s1142 + $0x9a] sm:$0xff]
      %v1357 = vld [vmem:[%s1142 + $0xaa] sm:$0xff]
      %v1358 = vld [vmem:[%s1142 + $0xb2] sm:$0xff]
      %v1359 = vld [vmem:[%s1142 + $0xc2] sm:$0xff]
      %v1360 = vld [vmem:[%s1142 + $0xca] sm:$0xff]
      %v1361 = vld [vmem:[%s1142 + $0xda] sm:$0xff]
      %v1362 = vld [vmem:[%s1142 + $0xe2] sm:$0xff]
      %v1363 = vld [vmem:[%s1142 + $0xf2] sm:$0xff]
      %v1364 = vld [vmem:[%s1142 + $0xfa] sm:$0xff]
      %v1365 = vld [vmem:[%s1142 + $0x10a] sm:$0xff]
      %v1366 = vld [vmem:[%s1142 + $0x112] sm:$0xff]
      %v1367 = vld [vmem:[%s1142 + $0x122] sm:$0xff]
      %v1368 = vld [vmem:[%s1142 + $0x12a] sm:$0xff]
      %v1369 = vld [vmem:[%s1142 + $0x13a] sm:$0xff]
      %v1370 = vld [vmem:[%s1142 + $0x142] sm:$0xff]
      %v1371 = vld [vmem:[%s1142 + $0x152] sm:$0xff]
      %v1372 = vld [vmem:[%s1142 + $0x15a] sm:$0xff]
      %v1373 = vld [vmem:[%s1142 + $0x16a] sm:$0xff]
      %v1374 = vld [vmem:[%s1142 + $0x172] sm:$0xff]
      %v1375 = vlaneseq
      %v1376 = vshrl.u32 %v1375, 7
      %v1377 = vsub.s32 1, %v1376
      %v1378 = vrot.slane %v389, %v1377
      %v1379 = vmul.f32 %v1343, %v1378
      %v1380 = vmul.f32 %v1344, %v1378
      %v1381 = vmul.f32 %v1345, %v1378
      %v1382 = vmul.f32 %v1346, %v1378
      %v1383 = vmul.f32 %v1347, %v1378
      %v1384 = vmul.f32 %v1348, %v1378
      %v1385 = vmul.f32 %v1349, %v1378
      %v1386 = vmul.f32 %v1350, %v1378
      %v1387 = vmul.f32 %v1351, %v1378
      %v1388 = vmul.f32 %v1352, %v1378
      %v1389 = vmul.f32 %v1353, %v1378
      %v1390 = vmul.f32 %v1354, %v1378
      %v1391 = vmul.f32 %v1355, %v1378
      %v1392 = vmul.f32 %v1356, %v1378
      %v1393 = vmul.f32 %v1357, %v1378
      %v1394 = vmul.f32 %v1358, %v1378
      %v1395 = vmul.f32 %v1359, %v1378
      %v1396 = vmul.f32 %v1360, %v1378
      %v1397 = vmul.f32 %v1361, %v1378
      %v1398 = vmul.f32 %v1362, %v1378
      %v1399 = vmul.f32 %v1363, %v1378
      %v1400 = vmul.f32 %v1364, %v1378
      %v1401 = vmul.f32 %v1365, %v1378
      %v1402 = vmul.f32 %v1366, %v1378
      %v1403 = vmul.f32 %v1367, %v1378
      %v1404 = vmul.f32 %v1368, %v1378
      %v1405 = vmul.f32 %v1369, %v1378
      %v1406 = vmul.f32 %v1370, %v1378
      %v1407 = vmul.f32 %v1371, %v1378
      %v1408 = vmul.f32 %v1372, %v1378
      %v1409 = vmul.f32 %v1373, %v1378
      %v1410 = vmul.f32 %v1374, %v1378
      %v1411 = vadd.f32 %v1311, %v1379
      %v1412 = vadd.f32 %v1312, %v1380
      %v1413 = vadd.f32 %v1313, %v1381
      %v1414 = vadd.f32 %v1314, %v1382
      %v1415 = vadd.f32 %v1315, %v1383
      %v1416 = vadd.f32 %v1316, %v1384
      %v1417 = vadd.f32 %v1317, %v1385
      %v1418 = vadd.f32 %v1318, %v1386
      %v1419 = vadd.f32 %v1319, %v1387
      %v1420 = vadd.f32 %v1320, %v1388
      %v1421 = vadd.f32 %v1321, %v1389
      %v1422 = vadd.f32 %v1322, %v1390
      %v1423 = vadd.f32 %v1323, %v1391
      %v1424 = vadd.f32 %v1324, %v1392
      %v1425 = vadd.f32 %v1325, %v1393
      %v1426 = vadd.f32 %v1326, %v1394
      %v1427 = vadd.f32 %v1327, %v1395
      %v1428 = vadd.f32 %v1328, %v1396
      %v1429 = vadd.f32 %v1329, %v1397
      %v1430 = vadd.f32 %v1330, %v1398
      %v1431 = vadd.f32 %v1331, %v1399
      %v1432 = vadd.f32 %v1332, %v1400
      %v1433 = vadd.f32 %v1333, %v1401
      %v1434 = vadd.f32 %v1334, %v1402
      %v1435 = vadd.f32 %v1335, %v1403
      %v1436 = vadd.f32 %v1336, %v1404
      %v1437 = vadd.f32 %v1337, %v1405
      %v1438 = vadd.f32 %v1338, %v1406
      %v1439 = vadd.f32 %v1339, %v1407
      %v1440 = vadd.f32 %v1340, %v1408
      %v1441 = vadd.f32 %v1341, %v1409
      %v1442 = vadd.f32 %v1342, %v1410
      %v1443 = vld [vmem:[%s1142 + $0x3] sm:$0xff]
      %v1444 = vld [vmem:[%s1142 + $0xb] sm:$0xff]
      %v1445 = vld [vmem:[%s1142 + $0x1b] sm:$0xff]
      %v1446 = vld [vmem:[%s1142 + $0x23] sm:$0xff]
      %v1447 = vld [vmem:[%s1142 + $0x33] sm:$0xff]
      %v1448 = vld [vmem:[%s1142 + $0x3b] sm:$0xff]
      %v1449 = vld [vmem:[%s1142 + $0x4b] sm:$0xff]
      %v1450 = vld [vmem:[%s1142 + $0x53] sm:$0xff]
      %v1451 = vld [vmem:[%s1142 + $0x63] sm:$0xff]
      %v1452 = vld [vmem:[%s1142 + $0x6b] sm:$0xff]
      %v1453 = vld [vmem:[%s1142 + $0x7b] sm:$0xff]
      %v1454 = vld [vmem:[%s1142 + $0x83] sm:$0xff]
      %v1455 = vld [vmem:[%s1142 + $0x93] sm:$0xff]
      %v1456 = vld [vmem:[%s1142 + $0x9b] sm:$0xff]
      %v1457 = vld [vmem:[%s1142 + $0xab] sm:$0xff]
      %v1458 = vld [vmem:[%s1142 + $0xb3] sm:$0xff]
      %v1459 = vld [vmem:[%s1142 + $0xc3] sm:$0xff]
      %v1460 = vld [vmem:[%s1142 + $0xcb] sm:$0xff]
      %v1461 = vld [vmem:[%s1142 + $0xdb] sm:$0xff]
      %v1462 = vld [vmem:[%s1142 + $0xe3] sm:$0xff]
      %v1463 = vld [vmem:[%s1142 + $0xf3] sm:$0xff]
      %v1464 = vld [vmem:[%s1142 + $0xfb] sm:$0xff]
      %v1465 = vld [vmem:[%s1142 + $0x10b] sm:$0xff]
      %v1466 = vld [vmem:[%s1142 + $0x113] sm:$0xff]
      %v1467 = vld [vmem:[%s1142 + $0x123] sm:$0xff]
      %v1468 = vld [vmem:[%s1142 + $0x12b] sm:$0xff]
      %v1469 = vld [vmem:[%s1142 + $0x13b] sm:$0xff]
      %v1470 = vld [vmem:[%s1142 + $0x143] sm:$0xff]
      %v1471 = vld [vmem:[%s1142 + $0x153] sm:$0xff]
      %v1472 = vld [vmem:[%s1142 + $0x15b] sm:$0xff]
      %v1473 = vld [vmem:[%s1142 + $0x16b] sm:$0xff]
      %v1474 = vld [vmem:[%s1142 + $0x173] sm:$0xff]
      %v1475 = vlaneseq
      %v1476 = vshrl.u32 %v1475, 7
      %v1477 = vsub.s32 2, %v1476
      %v1478 = vrot.slane %v389, %v1477
      %v1479 = vmul.f32 %v1443, %v1478
      %v1480 = vmul.f32 %v1444, %v1478
      %v1481 = vmul.f32 %v1445, %v1478
      %v1482 = vmul.f32 %v1446, %v1478
      %v1483 = vmul.f32 %v1447, %v1478
      %v1484 = vmul.f32 %v1448, %v1478
      %v1485 = vmul.f32 %v1449, %v1478
      %v1486 = vmul.f32 %v1450, %v1478
      %v1487 = vmul.f32 %v1451, %v1478
      %v1488 = vmul.f32 %v1452, %v1478
      %v1489 = vmul.f32 %v1453, %v1478
      %v1490 = vmul.f32 %v1454, %v1478
      %v1491 = vmul.f32 %v1455, %v1478
      %v1492 = vmul.f32 %v1456, %v1478
      %v1493 = vmul.f32 %v1457, %v1478
      %v1494 = vmul.f32 %v1458, %v1478
      %v1495 = vmul.f32 %v1459, %v1478
      %v1496 = vmul.f32 %v1460, %v1478
      %v1497 = vmul.f32 %v1461, %v1478
      %v1498 = vmul.f32 %v1462, %v1478
      %v1499 = vmul.f32 %v1463, %v1478
      %v1500 = vmul.f32 %v1464, %v1478
      %v1501 = vmul.f32 %v1465, %v1478
      %v1502 = vmul.f32 %v1466, %v1478
      %v1503 = vmul.f32 %v1467, %v1478
      %v1504 = vmul.f32 %v1468, %v1478
      %v1505 = vmul.f32 %v1469, %v1478
      %v1506 = vmul.f32 %v1470, %v1478
      %v1507 = vmul.f32 %v1471, %v1478
      %v1508 = vmul.f32 %v1472, %v1478
      %v1509 = vmul.f32 %v1473, %v1478
      %v1510 = vmul.f32 %v1474, %v1478
      %v1511 = vadd.f32 %v1411, %v1479
      %v1512 = vadd.f32 %v1412, %v1480
      %v1513 = vadd.f32 %v1413, %v1481
      %v1514 = vadd.f32 %v1414, %v1482
      %v1515 = vadd.f32 %v1415, %v1483
      %v1516 = vadd.f32 %v1416, %v1484
      %v1517 = vadd.f32 %v1417, %v1485
      %v1518 = vadd.f32 %v1418, %v1486
      %v1519 = vadd.f32 %v1419, %v1487
      %v1520 = vadd.f32 %v1420, %v1488
      %v1521 = vadd.f32 %v1421, %v1489
      %v1522 = vadd.f32 %v1422, %v1490
      %v1523 = vadd.f32 %v1423, %v1491
      %v1524 = vadd.f32 %v1424, %v1492
      %v1525 = vadd.f32 %v1425, %v1493
      %v1526 = vadd.f32 %v1426, %v1494
      %v1527 = vadd.f32 %v1427, %v1495
      %v1528 = vadd.f32 %v1428, %v1496
      %v1529 = vadd.f32 %v1429, %v1497
      %v1530 = vadd.f32 %v1430, %v1498
      %v1531 = vadd.f32 %v1431, %v1499
      %v1532 = vadd.f32 %v1432, %v1500
      %v1533 = vadd.f32 %v1433, %v1501
      %v1534 = vadd.f32 %v1434, %v1502
      %v1535 = vadd.f32 %v1435, %v1503
      %v1536 = vadd.f32 %v1436, %v1504
      %v1537 = vadd.f32 %v1437, %v1505
      %v1538 = vadd.f32 %v1438, %v1506
      %v1539 = vadd.f32 %v1439, %v1507
      %v1540 = vadd.f32 %v1440, %v1508
      %v1541 = vadd.f32 %v1441, %v1509
      %v1542 = vadd.f32 %v1442, %v1510
      %v1543 = vld [vmem:[%s1142 + $0x4] sm:$0xff]
      %v1544 = vld [vmem:[%s1142 + $0xc] sm:$0xff]
      %v1545 = vld [vmem:[%s1142 + $0x1c] sm:$0xff]
      %v1546 = vld [vmem:[%s1142 + $0x24] sm:$0xff]
      %v1547 = vld [vmem:[%s1142 + $0x34] sm:$0xff]
      %v1548 = vld [vmem:[%s1142 + $0x3c] sm:$0xff]
      %v1549 = vld [vmem:[%s1142 + $0x4c] sm:$0xff]
      %v1550 = vld [vmem:[%s1142 + $0x54] sm:$0xff]
      %v1551 = vld [vmem:[%s1142 + $0x64] sm:$0xff]
      %v1552 = vld [vmem:[%s1142 + $0x6c] sm:$0xff]
      %v1553 = vld [vmem:[%s1142 + $0x7c] sm:$0xff]
      %v1554 = vld [vmem:[%s1142 + $0x84] sm:$0xff]
      %v1555 = vld [vmem:[%s1142 + $0x94] sm:$0xff]
      %v1556 = vld [vmem:[%s1142 + $0x9c] sm:$0xff]
      %v1557 = vld [vmem:[%s1142 + $0xac] sm:$0xff]
      %v1558 = vld [vmem:[%s1142 + $0xb4] sm:$0xff]
      %v1559 = vld [vmem:[%s1142 + $0xc4] sm:$0xff]
      %v1560 = vld [vmem:[%s1142 + $0xcc] sm:$0xff]
      %v1561 = vld [vmem:[%s1142 + $0xdc] sm:$0xff]
      %v1562 = vld [vmem:[%s1142 + $0xe4] sm:$0xff]
      %v1563 = vld [vmem:[%s1142 + $0xf4] sm:$0xff]
      %v1564 = vld [vmem:[%s1142 + $0xfc] sm:$0xff]
      %v1565 = vld [vmem:[%s1142 + $0x10c] sm:$0xff]
      %v1566 = vld [vmem:[%s1142 + $0x114] sm:$0xff]
      %v1567 = vld [vmem:[%s1142 + $0x124] sm:$0xff]
      %v1568 = vld [vmem:[%s1142 + $0x12c] sm:$0xff]
      %v1569 = vld [vmem:[%s1142 + $0x13c] sm:$0xff]
      %v1570 = vld [vmem:[%s1142 + $0x144] sm:$0xff]
      %v1571 = vld [vmem:[%s1142 + $0x154] sm:$0xff]
      %v1572 = vld [vmem:[%s1142 + $0x15c] sm:$0xff]
      %v1573 = vld [vmem:[%s1142 + $0x16c] sm:$0xff]
      %v1574 = vld [vmem:[%s1142 + $0x174] sm:$0xff]
      %v1575 = vlaneseq
      %v1576 = vshrl.u32 %v1575, 7
      %v1577 = vsub.s32 3, %v1576
      %v1578 = vrot.slane %v389, %v1577
      %v1579 = vmul.f32 %v1543, %v1578
      %v1580 = vmul.f32 %v1544, %v1578
      %v1581 = vmul.f32 %v1545, %v1578
      %v1582 = vmul.f32 %v1546, %v1578
      %v1583 = vmul.f32 %v1547, %v1578
      %v1584 = vmul.f32 %v1548, %v1578
      %v1585 = vmul.f32 %v1549, %v1578
      %v1586 = vmul.f32 %v1550, %v1578
      %v1587 = vmul.f32 %v1551, %v1578
      %v1588 = vmul.f32 %v1552, %v1578
      %v1589 = vmul.f32 %v1553, %v1578
      %v1590 = vmul.f32 %v1554, %v1578
      %v1591 = vmul.f32 %v1555, %v1578
      %v1592 = vmul.f32 %v1556, %v1578
      %v1593 = vmul.f32 %v1557, %v1578
      %v1594 = vmul.f32 %v1558, %v1578
      %v1595 = vmul.f32 %v1559, %v1578
      %v1596 = vmul.f32 %v1560, %v1578
      %v1597 = vmul.f32 %v1561, %v1578
      %v1598 = vmul.f32 %v1562, %v1578
      %v1599 = vmul.f32 %v1563, %v1578
      %v1600 = vmul.f32 %v1564, %v1578
      %v1601 = vmul.f32 %v1565, %v1578
      %v1602 = vmul.f32 %v1566, %v1578
      %v1603 = vmul.f32 %v1567, %v1578
      %v1604 = vmul.f32 %v1568, %v1578
      %v1605 = vmul.f32 %v1569, %v1578
      %v1606 = vmul.f32 %v1570, %v1578
      %v1607 = vmul.f32 %v1571, %v1578
      %v1608 = vmul.f32 %v1572, %v1578
      %v1609 = vmul.f32 %v1573, %v1578
      %v1610 = vmul.f32 %v1574, %v1578
      %v1611 = vadd.f32 %v1511, %v1579
      %v1612 = vadd.f32 %v1512, %v1580
      %v1613 = vadd.f32 %v1513, %v1581
      %v1614 = vadd.f32 %v1514, %v1582
      %v1615 = vadd.f32 %v1515, %v1583
      %v1616 = vadd.f32 %v1516, %v1584
      %v1617 = vadd.f32 %v1517, %v1585
      %v1618 = vadd.f32 %v1518, %v1586
      %v1619 = vadd.f32 %v1519, %v1587
      %v1620 = vadd.f32 %v1520, %v1588
      %v1621 = vadd.f32 %v1521, %v1589
      %v1622 = vadd.f32 %v1522, %v1590
      %v1623 = vadd.f32 %v1523, %v1591
      %v1624 = vadd.f32 %v1524, %v1592
      %v1625 = vadd.f32 %v1525, %v1593
      %v1626 = vadd.f32 %v1526, %v1594
      %v1627 = vadd.f32 %v1527, %v1595
      %v1628 = vadd.f32 %v1528, %v1596
      %v1629 = vadd.f32 %v1529, %v1597
      %v1630 = vadd.f32 %v1530, %v1598
      %v1631 = vadd.f32 %v1531, %v1599
      %v1632 = vadd.f32 %v1532, %v1600
      %v1633 = vadd.f32 %v1533, %v1601
      %v1634 = vadd.f32 %v1534, %v1602
      %v1635 = vadd.f32 %v1535, %v1603
      %v1636 = vadd.f32 %v1536, %v1604
      %v1637 = vadd.f32 %v1537, %v1605
      %v1638 = vadd.f32 %v1538, %v1606
      %v1639 = vadd.f32 %v1539, %v1607
      %v1640 = vadd.f32 %v1540, %v1608
      %v1641 = vadd.f32 %v1541, %v1609
      %v1642 = vadd.f32 %v1542, %v1610
      %v1643 = vld [vmem:[%s1142 + $0x5] sm:$0xff]
      %v1644 = vld [vmem:[%s1142 + $0xd] sm:$0xff]
      %v1645 = vld [vmem:[%s1142 + $0x1d] sm:$0xff]
      %v1646 = vld [vmem:[%s1142 + $0x25] sm:$0xff]
      %v1647 = vld [vmem:[%s1142 + $0x35] sm:$0xff]
      %v1648 = vld [vmem:[%s1142 + $0x3d] sm:$0xff]
      %v1649 = vld [vmem:[%s1142 + $0x4d] sm:$0xff]
      %v1650 = vld [vmem:[%s1142 + $0x55] sm:$0xff]
      %v1651 = vld [vmem:[%s1142 + $0x65] sm:$0xff]
      %v1652 = vld [vmem:[%s1142 + $0x6d] sm:$0xff]
      %v1653 = vld [vmem:[%s1142 + $0x7d] sm:$0xff]
      %v1654 = vld [vmem:[%s1142 + $0x85] sm:$0xff]
      %v1655 = vld [vmem:[%s1142 + $0x95] sm:$0xff]
      %v1656 = vld [vmem:[%s1142 + $0x9d] sm:$0xff]
      %v1657 = vld [vmem:[%s1142 + $0xad] sm:$0xff]
      %v1658 = vld [vmem:[%s1142 + $0xb5] sm:$0xff]
      %v1659 = vld [vmem:[%s1142 + $0xc5] sm:$0xff]
      %v1660 = vld [vmem:[%s1142 + $0xcd] sm:$0xff]
      %v1661 = vld [vmem:[%s1142 + $0xdd] sm:$0xff]
      %v1662 = vld [vmem:[%s1142 + $0xe5] sm:$0xff]
      %v1663 = vld [vmem:[%s1142 + $0xf5] sm:$0xff]
      %v1664 = vld [vmem:[%s1142 + $0xfd] sm:$0xff]
      %v1665 = vld [vmem:[%s1142 + $0x10d] sm:$0xff]
      %v1666 = vld [vmem:[%s1142 + $0x115] sm:$0xff]
      %v1667 = vld [vmem:[%s1142 + $0x125] sm:$0xff]
      %v1668 = vld [vmem:[%s1142 + $0x12d] sm:$0xff]
      %v1669 = vld [vmem:[%s1142 + $0x13d] sm:$0xff]
      %v1670 = vld [vmem:[%s1142 + $0x145] sm:$0xff]
      %v1671 = vld [vmem:[%s1142 + $0x155] sm:$0xff]
      %v1672 = vld [vmem:[%s1142 + $0x15d] sm:$0xff]
      %v1673 = vld [vmem:[%s1142 + $0x16d] sm:$0xff]
      %v1674 = vld [vmem:[%s1142 + $0x175] sm:$0xff]
      %v1675 = vlaneseq
      %v1676 = vshrl.u32 %v1675, 7
      %v1677 = vsub.s32 4, %v1676
      %v1678 = vrot.slane %v389, %v1677
      %v1679 = vmul.f32 %v1643, %v1678
      %v1680 = vmul.f32 %v1644, %v1678
      %v1681 = vmul.f32 %v1645, %v1678
      %v1682 = vmul.f32 %v1646, %v1678
      %v1683 = vmul.f32 %v1647, %v1678
      %v1684 = vmul.f32 %v1648, %v1678
      %v1685 = vmul.f32 %v1649, %v1678
      %v1686 = vmul.f32 %v1650, %v1678
      %v1687 = vmul.f32 %v1651, %v1678
      %v1688 = vmul.f32 %v1652, %v1678
      %v1689 = vmul.f32 %v1653, %v1678
      %v1690 = vmul.f32 %v1654, %v1678
      %v1691 = vmul.f32 %v1655, %v1678
      %v1692 = vmul.f32 %v1656, %v1678
      %v1693 = vmul.f32 %v1657, %v1678
      %v1694 = vmul.f32 %v1658, %v1678
      %v1695 = vmul.f32 %v1659, %v1678
      %v1696 = vmul.f32 %v1660, %v1678
      %v1697 = vmul.f32 %v1661, %v1678
      %v1698 = vmul.f32 %v1662, %v1678
      %v1699 = vmul.f32 %v1663, %v1678
      %v1700 = vmul.f32 %v1664, %v1678
      %v1701 = vmul.f32 %v1665, %v1678
      %v1702 = vmul.f32 %v1666, %v1678
      %v1703 = vmul.f32 %v1667, %v1678
      %v1704 = vmul.f32 %v1668, %v1678
      %v1705 = vmul.f32 %v1669, %v1678
      %v1706 = vmul.f32 %v1670, %v1678
      %v1707 = vmul.f32 %v1671, %v1678
      %v1708 = vmul.f32 %v1672, %v1678
      %v1709 = vmul.f32 %v1673, %v1678
      %v1710 = vmul.f32 %v1674, %v1678
      %v1711 = vadd.f32 %v1611, %v1679
      %v1712 = vadd.f32 %v1612, %v1680
      %v1713 = vadd.f32 %v1613, %v1681
      %v1714 = vadd.f32 %v1614, %v1682
      %v1715 = vadd.f32 %v1615, %v1683
      %v1716 = vadd.f32 %v1616, %v1684
      %v1717 = vadd.f32 %v1617, %v1685
      %v1718 = vadd.f32 %v1618, %v1686
      %v1719 = vadd.f32 %v1619, %v1687
      %v1720 = vadd.f32 %v1620, %v1688
      %v1721 = vadd.f32 %v1621, %v1689
      %v1722 = vadd.f32 %v1622, %v1690
      %v1723 = vadd.f32 %v1623, %v1691
      %v1724 = vadd.f32 %v1624, %v1692
      %v1725 = vadd.f32 %v1625, %v1693
      %v1726 = vadd.f32 %v1626, %v1694
      %v1727 = vadd.f32 %v1627, %v1695
      %v1728 = vadd.f32 %v1628, %v1696
      %v1729 = vadd.f32 %v1629, %v1697
      %v1730 = vadd.f32 %v1630, %v1698
      %v1731 = vadd.f32 %v1631, %v1699
      %v1732 = vadd.f32 %v1632, %v1700
      %v1733 = vadd.f32 %v1633, %v1701
      %v1734 = vadd.f32 %v1634, %v1702
      %v1735 = vadd.f32 %v1635, %v1703
      %v1736 = vadd.f32 %v1636, %v1704
      %v1737 = vadd.f32 %v1637, %v1705
      %v1738 = vadd.f32 %v1638, %v1706
      %v1739 = vadd.f32 %v1639, %v1707
      %v1740 = vadd.f32 %v1640, %v1708
      %v1741 = vadd.f32 %v1641, %v1709
      %v1742 = vadd.f32 %v1642, %v1710
      %v1743 = vld [vmem:[%s1142 + $0x6] sm:$0xff]
      %v1744 = vld [vmem:[%s1142 + $0xe] sm:$0xff]
      %v1745 = vld [vmem:[%s1142 + $0x1e] sm:$0xff]
      %v1746 = vld [vmem:[%s1142 + $0x26] sm:$0xff]
      %v1747 = vld [vmem:[%s1142 + $0x36] sm:$0xff]
      %v1748 = vld [vmem:[%s1142 + $0x3e] sm:$0xff]
      %v1749 = vld [vmem:[%s1142 + $0x4e] sm:$0xff]
      %v1750 = vld [vmem:[%s1142 + $0x56] sm:$0xff]
      %v1751 = vld [vmem:[%s1142 + $0x66] sm:$0xff]
      %v1752 = vld [vmem:[%s1142 + $0x6e] sm:$0xff]
      %v1753 = vld [vmem:[%s1142 + $0x7e] sm:$0xff]
      %v1754 = vld [vmem:[%s1142 + $0x86] sm:$0xff]
      %v1755 = vld [vmem:[%s1142 + $0x96] sm:$0xff]
      %v1756 = vld [vmem:[%s1142 + $0x9e] sm:$0xff]
      %v1757 = vld [vmem:[%s1142 + $0xae] sm:$0xff]
      %v1758 = vld [vmem:[%s1142 + $0xb6] sm:$0xff]
      %v1759 = vld [vmem:[%s1142 + $0xc6] sm:$0xff]
      %v1760 = vld [vmem:[%s1142 + $0xce] sm:$0xff]
      %v1761 = vld [vmem:[%s1142 + $0xde] sm:$0xff]
      %v1762 = vld [vmem:[%s1142 + $0xe6] sm:$0xff]
      %v1763 = vld [vmem:[%s1142 + $0xf6] sm:$0xff]
      %v1764 = vld [vmem:[%s1142 + $0xfe] sm:$0xff]
      %v1765 = vld [vmem:[%s1142 + $0x10e] sm:$0xff]
      %v1766 = vld [vmem:[%s1142 + $0x116] sm:$0xff]
      %v1767 = vld [vmem:[%s1142 + $0x126] sm:$0xff]
      %v1768 = vld [vmem:[%s1142 + $0x12e] sm:$0xff]
      %v1769 = vld [vmem:[%s1142 + $0x13e] sm:$0xff]
      %v1770 = vld [vmem:[%s1142 + $0x146] sm:$0xff]
      %v1771 = vld [vmem:[%s1142 + $0x156] sm:$0xff]
      %v1772 = vld [vmem:[%s1142 + $0x15e] sm:$0xff]
      %v1773 = vld [vmem:[%s1142 + $0x16e] sm:$0xff]
      %v1774 = vld [vmem:[%s1142 + $0x176] sm:$0xff]
      %v1775 = vlaneseq
      %v1776 = vshrl.u32 %v1775, 7
      %v1777 = vsub.s32 5, %v1776
      %v1778 = vrot.slane %v389, %v1777
      %v1779 = vmul.f32 %v1743, %v1778
      %v1780 = vmul.f32 %v1744, %v1778
      %v1781 = vmul.f32 %v1745, %v1778
      %v1782 = vmul.f32 %v1746, %v1778
      %v1783 = vmul.f32 %v1747, %v1778
      %v1784 = vmul.f32 %v1748, %v1778
      %v1785 = vmul.f32 %v1749, %v1778
      %v1786 = vmul.f32 %v1750, %v1778
      %v1787 = vmul.f32 %v1751, %v1778
      %v1788 = vmul.f32 %v1752, %v1778
      %v1789 = vmul.f32 %v1753, %v1778
      %v1790 = vmul.f32 %v1754, %v1778
      %v1791 = vmul.f32 %v1755, %v1778
      %v1792 = vmul.f32 %v1756, %v1778
      %v1793 = vmul.f32 %v1757, %v1778
      %v1794 = vmul.f32 %v1758, %v1778
      %v1795 = vmul.f32 %v1759, %v1778
      %v1796 = vmul.f32 %v1760, %v1778
      %v1797 = vmul.f32 %v1761, %v1778
      %v1798 = vmul.f32 %v1762, %v1778
      %v1799 = vmul.f32 %v1763, %v1778
      %v1800 = vmul.f32 %v1764, %v1778
      %v1801 = vmul.f32 %v1765, %v1778
      %v1802 = vmul.f32 %v1766, %v1778
      %v1803 = vmul.f32 %v1767, %v1778
      %v1804 = vmul.f32 %v1768, %v1778
      %v1805 = vmul.f32 %v1769, %v1778
      %v1806 = vmul.f32 %v1770, %v1778
      %v1807 = vmul.f32 %v1771, %v1778
      %v1808 = vmul.f32 %v1772, %v1778
      %v1809 = vmul.f32 %v1773, %v1778
      %v1810 = vmul.f32 %v1774, %v1778
      %v1811 = vadd.f32 %v1711, %v1779
      %v1812 = vadd.f32 %v1712, %v1780
      %v1813 = vadd.f32 %v1713, %v1781
      %v1814 = vadd.f32 %v1714, %v1782
      %v1815 = vadd.f32 %v1715, %v1783
      %v1816 = vadd.f32 %v1716, %v1784
      %v1817 = vadd.f32 %v1717, %v1785
      %v1818 = vadd.f32 %v1718, %v1786
      %v1819 = vadd.f32 %v1719, %v1787
      %v1820 = vadd.f32 %v1720, %v1788
      %v1821 = vadd.f32 %v1721, %v1789
      %v1822 = vadd.f32 %v1722, %v1790
      %v1823 = vadd.f32 %v1723, %v1791
      %v1824 = vadd.f32 %v1724, %v1792
      %v1825 = vadd.f32 %v1725, %v1793
      %v1826 = vadd.f32 %v1726, %v1794
      %v1827 = vadd.f32 %v1727, %v1795
      %v1828 = vadd.f32 %v1728, %v1796
      %v1829 = vadd.f32 %v1729, %v1797
      %v1830 = vadd.f32 %v1730, %v1798
      %v1831 = vadd.f32 %v1731, %v1799
      %v1832 = vadd.f32 %v1732, %v1800
      %v1833 = vadd.f32 %v1733, %v1801
      %v1834 = vadd.f32 %v1734, %v1802
      %v1835 = vadd.f32 %v1735, %v1803
      %v1836 = vadd.f32 %v1736, %v1804
      %v1837 = vadd.f32 %v1737, %v1805
      %v1838 = vadd.f32 %v1738, %v1806
      %v1839 = vadd.f32 %v1739, %v1807
      %v1840 = vadd.f32 %v1740, %v1808
      %v1841 = vadd.f32 %v1741, %v1809
      %v1842 = vadd.f32 %v1742, %v1810
      %s1843 = scalar_lea.vmem %s381, 48
      %v1844 = vld [vmem:[%s1843] sm:$0xff]
      %v1845 = vld [vmem:[%s1843 + $0x8] sm:$0xff]
      %v1846 = vld [vmem:[%s1843 + $0x18] sm:$0xff]
      %v1847 = vld [vmem:[%s1843 + $0x20] sm:$0xff]
      %v1848 = vld [vmem:[%s1843 + $0x30] sm:$0xff]
      %v1849 = vld [vmem:[%s1843 + $0x38] sm:$0xff]
      %v1850 = vld [vmem:[%s1843 + $0x48] sm:$0xff]
      %v1851 = vld [vmem:[%s1843 + $0x50] sm:$0xff]
      %v1852 = vld [vmem:[%s1843 + $0x60] sm:$0xff]
      %v1853 = vld [vmem:[%s1843 + $0x68] sm:$0xff]
      %v1854 = vld [vmem:[%s1843 + $0x78] sm:$0xff]
      %v1855 = vld [vmem:[%s1843 + $0x80] sm:$0xff]
      %v1856 = vld [vmem:[%s1843 + $0x90] sm:$0xff]
      %v1857 = vld [vmem:[%s1843 + $0x98] sm:$0xff]
      %v1858 = vld [vmem:[%s1843 + $0xa8] sm:$0xff]
      %v1859 = vld [vmem:[%s1843 + $0xb0] sm:$0xff]
      %v1860 = vld [vmem:[%s1843 + $0xc0] sm:$0xff]
      %v1861 = vld [vmem:[%s1843 + $0xc8] sm:$0xff]
      %v1862 = vld [vmem:[%s1843 + $0xd8] sm:$0xff]
      %v1863 = vld [vmem:[%s1843 + $0xe0] sm:$0xff]
      %v1864 = vld [vmem:[%s1843 + $0xf0] sm:$0xff]
      %v1865 = vld [vmem:[%s1843 + $0xf8] sm:$0xff]
      %v1866 = vld [vmem:[%s1843 + $0x108] sm:$0xff]
      %v1867 = vld [vmem:[%s1843 + $0x110] sm:$0xff]
      %v1868 = vld [vmem:[%s1843 + $0x120] sm:$0xff]
      %v1869 = vld [vmem:[%s1843 + $0x128] sm:$0xff]
      %v1870 = vld [vmem:[%s1843 + $0x138] sm:$0xff]
      %v1871 = vld [vmem:[%s1843 + $0x140] sm:$0xff]
      %v1872 = vld [vmem:[%s1843 + $0x150] sm:$0xff]
      %v1873 = vld [vmem:[%s1843 + $0x158] sm:$0xff]
      %v1874 = vld [vmem:[%s1843 + $0x168] sm:$0xff]
      %v1875 = vld [vmem:[%s1843 + $0x170] sm:$0xff]
      %v1876 = vlaneseq
      %v1877 = vshrl.u32 %v1876, 7
      %v1878 = vsub.s32 6, %v1877
      %v1879 = vrot.slane %v389, %v1878
      %v1880 = vmul.f32 %v1844, %v1879
      %v1881 = vmul.f32 %v1845, %v1879
      %v1882 = vmul.f32 %v1846, %v1879
      %v1883 = vmul.f32 %v1847, %v1879
      %v1884 = vmul.f32 %v1848, %v1879
      %v1885 = vmul.f32 %v1849, %v1879
      %v1886 = vmul.f32 %v1850, %v1879
      %v1887 = vmul.f32 %v1851, %v1879
      %v1888 = vmul.f32 %v1852, %v1879
      %v1889 = vmul.f32 %v1853, %v1879
      %v1890 = vmul.f32 %v1854, %v1879
      %v1891 = vmul.f32 %v1855, %v1879
      %v1892 = vmul.f32 %v1856, %v1879
      %v1893 = vmul.f32 %v1857, %v1879
      %v1894 = vmul.f32 %v1858, %v1879
      %v1895 = vmul.f32 %v1859, %v1879
      %v1896 = vmul.f32 %v1860, %v1879
      %v1897 = vmul.f32 %v1861, %v1879
      %v1898 = vmul.f32 %v1862, %v1879
      %v1899 = vmul.f32 %v1863, %v1879
      %v1900 = vmul.f32 %v1864, %v1879
      %v1901 = vmul.f32 %v1865, %v1879
      %v1902 = vmul.f32 %v1866, %v1879
      %v1903 = vmul.f32 %v1867, %v1879
      %v1904 = vmul.f32 %v1868, %v1879
      %v1905 = vmul.f32 %v1869, %v1879
      %v1906 = vmul.f32 %v1870, %v1879
      %v1907 = vmul.f32 %v1871, %v1879
      %v1908 = vmul.f32 %v1872, %v1879
      %v1909 = vmul.f32 %v1873, %v1879
      %v1910 = vmul.f32 %v1874, %v1879
      %v1911 = vmul.f32 %v1875, %v1879
      %v1912 = vadd.f32 %v1811, %v1880
      %v1913 = vadd.f32 %v1812, %v1881
      %v1914 = vadd.f32 %v1813, %v1882
      %v1915 = vadd.f32 %v1814, %v1883
      %v1916 = vadd.f32 %v1815, %v1884
      %v1917 = vadd.f32 %v1816, %v1885
      %v1918 = vadd.f32 %v1817, %v1886
      %v1919 = vadd.f32 %v1818, %v1887
      %v1920 = vadd.f32 %v1819, %v1888
      %v1921 = vadd.f32 %v1820, %v1889
      %v1922 = vadd.f32 %v1821, %v1890
      %v1923 = vadd.f32 %v1822, %v1891
      %v1924 = vadd.f32 %v1823, %v1892
      %v1925 = vadd.f32 %v1824, %v1893
      %v1926 = vadd.f32 %v1825, %v1894
      %v1927 = vadd.f32 %v1826, %v1895
      %v1928 = vadd.f32 %v1827, %v1896
      %v1929 = vadd.f32 %v1828, %v1897
      %v1930 = vadd.f32 %v1829, %v1898
      %v1931 = vadd.f32 %v1830, %v1899
      %v1932 = vadd.f32 %v1831, %v1900
      %v1933 = vadd.f32 %v1832, %v1901
      %v1934 = vadd.f32 %v1833, %v1902
      %v1935 = vadd.f32 %v1834, %v1903
      %v1936 = vadd.f32 %v1835, %v1904
      %v1937 = vadd.f32 %v1836, %v1905
      %v1938 = vadd.f32 %v1837, %v1906
      %v1939 = vadd.f32 %v1838, %v1907
      %v1940 = vadd.f32 %v1839, %v1908
      %v1941 = vadd.f32 %v1840, %v1909
      %v1942 = vadd.f32 %v1841, %v1910
      %v1943 = vadd.f32 %v1842, %v1911
      %v1944 = vld [vmem:[%s1843 + $0x1] sm:$0xff]
      %v1945 = vld [vmem:[%s1843 + $0x9] sm:$0xff]
      %v1946 = vld [vmem:[%s1843 + $0x19] sm:$0xff]
      %v1947 = vld [vmem:[%s1843 + $0x21] sm:$0xff]
      %v1948 = vld [vmem:[%s1843 + $0x31] sm:$0xff]
      %v1949 = vld [vmem:[%s1843 + $0x39] sm:$0xff]
      %v1950 = vld [vmem:[%s1843 + $0x49] sm:$0xff]
      %v1951 = vld [vmem:[%s1843 + $0x51] sm:$0xff]
      %v1952 = vld [vmem:[%s1843 + $0x61] sm:$0xff]
      %v1953 = vld [vmem:[%s1843 + $0x69] sm:$0xff]
      %v1954 = vld [vmem:[%s1843 + $0x79] sm:$0xff]
      %v1955 = vld [vmem:[%s1843 + $0x81] sm:$0xff]
      %v1956 = vld [vmem:[%s1843 + $0x91] sm:$0xff]
      %v1957 = vld [vmem:[%s1843 + $0x99] sm:$0xff]
      %v1958 = vld [vmem:[%s1843 + $0xa9] sm:$0xff]
      %v1959 = vld [vmem:[%s1843 + $0xb1] sm:$0xff]
      %v1960 = vld [vmem:[%s1843 + $0xc1] sm:$0xff]
      %v1961 = vld [vmem:[%s1843 + $0xc9] sm:$0xff]
      %v1962 = vld [vmem:[%s1843 + $0xd9] sm:$0xff]
      %v1963 = vld [vmem:[%s1843 + $0xe1] sm:$0xff]
      %v1964 = vld [vmem:[%s1843 + $0xf1] sm:$0xff]
      %v1965 = vld [vmem:[%s1843 + $0xf9] sm:$0xff]
      %v1966 = vld [vmem:[%s1843 + $0x109] sm:$0xff]
      %v1967 = vld [vmem:[%s1843 + $0x111] sm:$0xff]
      %v1968 = vld [vmem:[%s1843 + $0x121] sm:$0xff]
      %v1969 = vld [vmem:[%s1843 + $0x129] sm:$0xff]
      %v1970 = vld [vmem:[%s1843 + $0x139] sm:$0xff]
      %v1971 = vld [vmem:[%s1843 + $0x141] sm:$0xff]
      %v1972 = vld [vmem:[%s1843 + $0x151] sm:$0xff]
      %v1973 = vld [vmem:[%s1843 + $0x159] sm:$0xff]
      %v1974 = vld [vmem:[%s1843 + $0x169] sm:$0xff]
      %v1975 = vld [vmem:[%s1843 + $0x171] sm:$0xff]
      %v1976 = vlaneseq
      %v1977 = vshrl.u32 %v1976, 7
      %v1978 = vsub.s32 7, %v1977
      %v1979 = vrot.slane %v389, %v1978
      %v1980 = vmul.f32 %v1944, %v1979
      %v1981 = vmul.f32 %v1945, %v1979
      %v1982 = vmul.f32 %v1946, %v1979
      %v1983 = vmul.f32 %v1947, %v1979
      %v1984 = vmul.f32 %v1948, %v1979
      %v1985 = vmul.f32 %v1949, %v1979
      %v1986 = vmul.f32 %v1950, %v1979
      %v1987 = vmul.f32 %v1951, %v1979
      %v1988 = vmul.f32 %v1952, %v1979
      %v1989 = vmul.f32 %v1953, %v1979
      %v1990 = vmul.f32 %v1954, %v1979
      %v1991 = vmul.f32 %v1955, %v1979
      %v1992 = vmul.f32 %v1956, %v1979
      %v1993 = vmul.f32 %v1957, %v1979
      %v1994 = vmul.f32 %v1958, %v1979
      %v1995 = vmul.f32 %v1959, %v1979
      %v1996 = vmul.f32 %v1960, %v1979
      %v1997 = vmul.f32 %v1961, %v1979
      %v1998 = vmul.f32 %v1962, %v1979
      %v1999 = vmul.f32 %v1963, %v1979
      %v2000 = vmul.f32 %v1964, %v1979
      %v2001 = vmul.f32 %v1965, %v1979
      %v2002 = vmul.f32 %v1966, %v1979
      %v2003 = vmul.f32 %v1967, %v1979
      %v2004 = vmul.f32 %v1968, %v1979
      %v2005 = vmul.f32 %v1969, %v1979
      %v2006 = vmul.f32 %v1970, %v1979
      %v2007 = vmul.f32 %v1971, %v1979
      %v2008 = vmul.f32 %v1972, %v1979
      %v2009 = vmul.f32 %v1973, %v1979
      %v2010 = vmul.f32 %v1974, %v1979
      %v2011 = vmul.f32 %v1975, %v1979
      %v2012 = vadd.f32 %v1912, %v1980
      %v2013 = vadd.f32 %v1913, %v1981
      %v2014 = vadd.f32 %v1914, %v1982
      %v2015 = vadd.f32 %v1915, %v1983
      %v2016 = vadd.f32 %v1916, %v1984
      %v2017 = vadd.f32 %v1917, %v1985
      %v2018 = vadd.f32 %v1918, %v1986
      %v2019 = vadd.f32 %v1919, %v1987
      %v2020 = vadd.f32 %v1920, %v1988
      %v2021 = vadd.f32 %v1921, %v1989
      %v2022 = vadd.f32 %v1922, %v1990
      %v2023 = vadd.f32 %v1923, %v1991
      %v2024 = vadd.f32 %v1924, %v1992
      %v2025 = vadd.f32 %v1925, %v1993
      %v2026 = vadd.f32 %v1926, %v1994
      %v2027 = vadd.f32 %v1927, %v1995
      %v2028 = vadd.f32 %v1928, %v1996
      %v2029 = vadd.f32 %v1929, %v1997
      %v2030 = vadd.f32 %v1930, %v1998
      %v2031 = vadd.f32 %v1931, %v1999
      %v2032 = vadd.f32 %v1932, %v2000
      %v2033 = vadd.f32 %v1933, %v2001
      %v2034 = vadd.f32 %v1934, %v2002
      %v2035 = vadd.f32 %v1935, %v2003
      %v2036 = vadd.f32 %v1936, %v2004
      %v2037 = vadd.f32 %v1937, %v2005
      %v2038 = vadd.f32 %v1938, %v2006
      %v2039 = vadd.f32 %v1939, %v2007
      %v2040 = vadd.f32 %v1940, %v2008
      %v2041 = vadd.f32 %v1941, %v2009
      %v2042 = vadd.f32 %v1942, %v2010
      %v2043 = vadd.f32 %v1943, %v2011
      %v2044 = vld [vmem:[%s1843 + $0x2] sm:$0xff]
      %v2045 = vld [vmem:[%s1843 + $0xa] sm:$0xff]
      %v2046 = vld [vmem:[%s1843 + $0x1a] sm:$0xff]
      %v2047 = vld [vmem:[%s1843 + $0x22] sm:$0xff]
      %v2048 = vld [vmem:[%s1843 + $0x32] sm:$0xff]
      %v2049 = vld [vmem:[%s1843 + $0x3a] sm:$0xff]
      %v2050 = vld [vmem:[%s1843 + $0x4a] sm:$0xff]
      %v2051 = vld [vmem:[%s1843 + $0x52] sm:$0xff]
      %v2052 = vld [vmem:[%s1843 + $0x62] sm:$0xff]
      %v2053 = vld [vmem:[%s1843 + $0x6a] sm:$0xff]
      %v2054 = vld [vmem:[%s1843 + $0x7a] sm:$0xff]
      %v2055 = vld [vmem:[%s1843 + $0x82] sm:$0xff]
      %v2056 = vld [vmem:[%s1843 + $0x92] sm:$0xff]
      %v2057 = vld [vmem:[%s1843 + $0x9a] sm:$0xff]
      %v2058 = vld [vmem:[%s1843 + $0xaa] sm:$0xff]
      %v2059 = vld [vmem:[%s1843 + $0xb2] sm:$0xff]
      %v2060 = vld [vmem:[%s1843 + $0xc2] sm:$0xff]
      %v2061 = vld [vmem:[%s1843 + $0xca] sm:$0xff]
      %v2062 = vld [vmem:[%s1843 + $0xda] sm:$0xff]
      %v2063 = vld [vmem:[%s1843 + $0xe2] sm:$0xff]
      %v2064 = vld [vmem:[%s1843 + $0xf2] sm:$0xff]
      %v2065 = vld [vmem:[%s1843 + $0xfa] sm:$0xff]
      %v2066 = vld [vmem:[%s1843 + $0x10a] sm:$0xff]
      %v2067 = vld [vmem:[%s1843 + $0x112] sm:$0xff]
      %v2068 = vld [vmem:[%s1843 + $0x122] sm:$0xff]
      %v2069 = vld [vmem:[%s1843 + $0x12a] sm:$0xff]
      %v2070 = vld [vmem:[%s1843 + $0x13a] sm:$0xff]
      %v2071 = vld [vmem:[%s1843 + $0x142] sm:$0xff]
      %v2072 = vld [vmem:[%s1843 + $0x152] sm:$0xff]
      %v2073 = vld [vmem:[%s1843 + $0x15a] sm:$0xff]
      %v2074 = vld [vmem:[%s1843 + $0x16a] sm:$0xff]
      %v2075 = vld [vmem:[%s1843 + $0x172] sm:$0xff]
      %v2076 = vlaneseq
      %v2077 = vshrl.u32 %v2076, 7
      %v2078 = vsub.s32 0, %v2077
      %v2079 = vrot.slane %v390, %v2078
      %v2080 = vmul.f32 %v2044, %v2079
      %v2081 = vmul.f32 %v2045, %v2079
      %v2082 = vmul.f32 %v2046, %v2079
      %v2083 = vmul.f32 %v2047, %v2079
      %v2084 = vmul.f32 %v2048, %v2079
      %v2085 = vmul.f32 %v2049, %v2079
      %v2086 = vmul.f32 %v2050, %v2079
      %v2087 = vmul.f32 %v2051, %v2079
      %v2088 = vmul.f32 %v2052, %v2079
      %v2089 = vmul.f32 %v2053, %v2079
      %v2090 = vmul.f32 %v2054, %v2079
      %v2091 = vmul.f32 %v2055, %v2079
      %v2092 = vmul.f32 %v2056, %v2079
      %v2093 = vmul.f32 %v2057, %v2079
      %v2094 = vmul.f32 %v2058, %v2079
      %v2095 = vmul.f32 %v2059, %v2079
      %v2096 = vmul.f32 %v2060, %v2079
      %v2097 = vmul.f32 %v2061, %v2079
      %v2098 = vmul.f32 %v2062, %v2079
      %v2099 = vmul.f32 %v2063, %v2079
      %v2100 = vmul.f32 %v2064, %v2079
      %v2101 = vmul.f32 %v2065, %v2079
      %v2102 = vmul.f32 %v2066, %v2079
      %v2103 = vmul.f32 %v2067, %v2079
      %v2104 = vmul.f32 %v2068, %v2079
      %v2105 = vmul.f32 %v2069, %v2079
      %v2106 = vmul.f32 %v2070, %v2079
      %v2107 = vmul.f32 %v2071, %v2079
      %v2108 = vmul.f32 %v2072, %v2079
      %v2109 = vmul.f32 %v2073, %v2079
      %v2110 = vmul.f32 %v2074, %v2079
      %v2111 = vmul.f32 %v2075, %v2079
      %v2112 = vadd.f32 %v2012, %v2080
      %v2113 = vadd.f32 %v2013, %v2081
      %v2114 = vadd.f32 %v2014, %v2082
      %v2115 = vadd.f32 %v2015, %v2083
      %v2116 = vadd.f32 %v2016, %v2084
      %v2117 = vadd.f32 %v2017, %v2085
      %v2118 = vadd.f32 %v2018, %v2086
      %v2119 = vadd.f32 %v2019, %v2087
      %v2120 = vadd.f32 %v2020, %v2088
      %v2121 = vadd.f32 %v2021, %v2089
      %v2122 = vadd.f32 %v2022, %v2090
      %v2123 = vadd.f32 %v2023, %v2091
      %v2124 = vadd.f32 %v2024, %v2092
      %v2125 = vadd.f32 %v2025, %v2093
      %v2126 = vadd.f32 %v2026, %v2094
      %v2127 = vadd.f32 %v2027, %v2095
      %v2128 = vadd.f32 %v2028, %v2096
      %v2129 = vadd.f32 %v2029, %v2097
      %v2130 = vadd.f32 %v2030, %v2098
      %v2131 = vadd.f32 %v2031, %v2099
      %v2132 = vadd.f32 %v2032, %v2100
      %v2133 = vadd.f32 %v2033, %v2101
      %v2134 = vadd.f32 %v2034, %v2102
      %v2135 = vadd.f32 %v2035, %v2103
      %v2136 = vadd.f32 %v2036, %v2104
      %v2137 = vadd.f32 %v2037, %v2105
      %v2138 = vadd.f32 %v2038, %v2106
      %v2139 = vadd.f32 %v2039, %v2107
      %v2140 = vadd.f32 %v2040, %v2108
      %v2141 = vadd.f32 %v2041, %v2109
      %v2142 = vadd.f32 %v2042, %v2110
      %v2143 = vadd.f32 %v2043, %v2111
      %v2144 = vld [vmem:[%s1843 + $0x3] sm:$0xff]
      %v2145 = vld [vmem:[%s1843 + $0xb] sm:$0xff]
      %v2146 = vld [vmem:[%s1843 + $0x1b] sm:$0xff]
      %v2147 = vld [vmem:[%s1843 + $0x23] sm:$0xff]
      %v2148 = vld [vmem:[%s1843 + $0x33] sm:$0xff]
      %v2149 = vld [vmem:[%s1843 + $0x3b] sm:$0xff]
      %v2150 = vld [vmem:[%s1843 + $0x4b] sm:$0xff]
      %v2151 = vld [vmem:[%s1843 + $0x53] sm:$0xff]
      %v2152 = vld [vmem:[%s1843 + $0x63] sm:$0xff]
      %v2153 = vld [vmem:[%s1843 + $0x6b] sm:$0xff]
      %v2154 = vld [vmem:[%s1843 + $0x7b] sm:$0xff]
      %v2155 = vld [vmem:[%s1843 + $0x83] sm:$0xff]
      %v2156 = vld [vmem:[%s1843 + $0x93] sm:$0xff]
      %v2157 = vld [vmem:[%s1843 + $0x9b] sm:$0xff]
      %v2158 = vld [vmem:[%s1843 + $0xab] sm:$0xff]
      %v2159 = vld [vmem:[%s1843 + $0xb3] sm:$0xff]
      %v2160 = vld [vmem:[%s1843 + $0xc3] sm:$0xff]
      %v2161 = vld [vmem:[%s1843 + $0xcb] sm:$0xff]
      %v2162 = vld [vmem:[%s1843 + $0xdb] sm:$0xff]
      %v2163 = vld [vmem:[%s1843 + $0xe3] sm:$0xff]
      %v2164 = vld [vmem:[%s1843 + $0xf3] sm:$0xff]
      %v2165 = vld [vmem:[%s1843 + $0xfb] sm:$0xff]
      %v2166 = vld [vmem:[%s1843 + $0x10b] sm:$0xff]
      %v2167 = vld [vmem:[%s1843 + $0x113] sm:$0xff]
      %v2168 = vld [vmem:[%s1843 + $0x123] sm:$0xff]
      %v2169 = vld [vmem:[%s1843 + $0x12b] sm:$0xff]
      %v2170 = vld [vmem:[%s1843 + $0x13b] sm:$0xff]
      %v2171 = vld [vmem:[%s1843 + $0x143] sm:$0xff]
      %v2172 = vld [vmem:[%s1843 + $0x153] sm:$0xff]
      %v2173 = vld [vmem:[%s1843 + $0x15b] sm:$0xff]
      %v2174 = vld [vmem:[%s1843 + $0x16b] sm:$0xff]
      %v2175 = vld [vmem:[%s1843 + $0x173] sm:$0xff]
      %v2176 = vlaneseq
      %v2177 = vshrl.u32 %v2176, 7
      %v2178 = vsub.s32 1, %v2177
      %v2179 = vrot.slane %v390, %v2178
      %v2180 = vmul.f32 %v2144, %v2179
      %v2181 = vmul.f32 %v2145, %v2179
      %v2182 = vmul.f32 %v2146, %v2179
      %v2183 = vmul.f32 %v2147, %v2179
      %v2184 = vmul.f32 %v2148, %v2179
      %v2185 = vmul.f32 %v2149, %v2179
      %v2186 = vmul.f32 %v2150, %v2179
      %v2187 = vmul.f32 %v2151, %v2179
      %v2188 = vmul.f32 %v2152, %v2179
      %v2189 = vmul.f32 %v2153, %v2179
      %v2190 = vmul.f32 %v2154, %v2179
      %v2191 = vmul.f32 %v2155, %v2179
      %v2192 = vmul.f32 %v2156, %v2179
      %v2193 = vmul.f32 %v2157, %v2179
      %v2194 = vmul.f32 %v2158, %v2179
      %v2195 = vmul.f32 %v2159, %v2179
      %v2196 = vmul.f32 %v2160, %v2179
      %v2197 = vmul.f32 %v2161, %v2179
      %v2198 = vmul.f32 %v2162, %v2179
      %v2199 = vmul.f32 %v2163, %v2179
      %v2200 = vmul.f32 %v2164, %v2179
      %v2201 = vmul.f32 %v2165, %v2179
      %v2202 = vmul.f32 %v2166, %v2179
      %v2203 = vmul.f32 %v2167, %v2179
      %v2204 = vmul.f32 %v2168, %v2179
      %v2205 = vmul.f32 %v2169, %v2179
      %v2206 = vmul.f32 %v2170, %v2179
      %v2207 = vmul.f32 %v2171, %v2179
      %v2208 = vmul.f32 %v2172, %v2179
      %v2209 = vmul.f32 %v2173, %v2179
      %v2210 = vmul.f32 %v2174, %v2179
      %v2211 = vmul.f32 %v2175, %v2179
      %v2212 = vadd.f32 %v2112, %v2180
      %v2213 = vadd.f32 %v2113, %v2181
      %v2214 = vadd.f32 %v2114, %v2182
      %v2215 = vadd.f32 %v2115, %v2183
      %v2216 = vadd.f32 %v2116, %v2184
      %v2217 = vadd.f32 %v2117, %v2185
      %v2218 = vadd.f32 %v2118, %v2186
      %v2219 = vadd.f32 %v2119, %v2187
      %v2220 = vadd.f32 %v2120, %v2188
      %v2221 = vadd.f32 %v2121, %v2189
      %v2222 = vadd.f32 %v2122, %v2190
      %v2223 = vadd.f32 %v2123, %v2191
      %v2224 = vadd.f32 %v2124, %v2192
      %v2225 = vadd.f32 %v2125, %v2193
      %v2226 = vadd.f32 %v2126, %v2194
      %v2227 = vadd.f32 %v2127, %v2195
      %v2228 = vadd.f32 %v2128, %v2196
      %v2229 = vadd.f32 %v2129, %v2197
      %v2230 = vadd.f32 %v2130, %v2198
      %v2231 = vadd.f32 %v2131, %v2199
      %v2232 = vadd.f32 %v2132, %v2200
      %v2233 = vadd.f32 %v2133, %v2201
      %v2234 = vadd.f32 %v2134, %v2202
      %v2235 = vadd.f32 %v2135, %v2203
      %v2236 = vadd.f32 %v2136, %v2204
      %v2237 = vadd.f32 %v2137, %v2205
      %v2238 = vadd.f32 %v2138, %v2206
      %v2239 = vadd.f32 %v2139, %v2207
      %v2240 = vadd.f32 %v2140, %v2208
      %v2241 = vadd.f32 %v2141, %v2209
      %v2242 = vadd.f32 %v2142, %v2210
      %v2243 = vadd.f32 %v2143, %v2211
      %v2244 = vld [vmem:[%s1843 + $0x4] sm:$0xff]
      %v2245 = vld [vmem:[%s1843 + $0xc] sm:$0xff]
      %v2246 = vld [vmem:[%s1843 + $0x1c] sm:$0xff]
      %v2247 = vld [vmem:[%s1843 + $0x24] sm:$0xff]
      %v2248 = vld [vmem:[%s1843 + $0x34] sm:$0xff]
      %v2249 = vld [vmem:[%s1843 + $0x3c] sm:$0xff]
      %v2250 = vld [vmem:[%s1843 + $0x4c] sm:$0xff]
      %v2251 = vld [vmem:[%s1843 + $0x54] sm:$0xff]
      %v2252 = vld [vmem:[%s1843 + $0x64] sm:$0xff]
      %v2253 = vld [vmem:[%s1843 + $0x6c] sm:$0xff]
      %v2254 = vld [vmem:[%s1843 + $0x7c] sm:$0xff]
      %v2255 = vld [vmem:[%s1843 + $0x84] sm:$0xff]
      %v2256 = vld [vmem:[%s1843 + $0x94] sm:$0xff]
      %v2257 = vld [vmem:[%s1843 + $0x9c] sm:$0xff]
      %v2258 = vld [vmem:[%s1843 + $0xac] sm:$0xff]
      %v2259 = vld [vmem:[%s1843 + $0xb4] sm:$0xff]
      %v2260 = vld [vmem:[%s1843 + $0xc4] sm:$0xff]
      %v2261 = vld [vmem:[%s1843 + $0xcc] sm:$0xff]
      %v2262 = vld [vmem:[%s1843 + $0xdc] sm:$0xff]
      %v2263 = vld [vmem:[%s1843 + $0xe4] sm:$0xff]
      %v2264 = vld [vmem:[%s1843 + $0xf4] sm:$0xff]
      %v2265 = vld [vmem:[%s1843 + $0xfc] sm:$0xff]
      %v2266 = vld [vmem:[%s1843 + $0x10c] sm:$0xff]
      %v2267 = vld [vmem:[%s1843 + $0x114] sm:$0xff]
      %v2268 = vld [vmem:[%s1843 + $0x124] sm:$0xff]
      %v2269 = vld [vmem:[%s1843 + $0x12c] sm:$0xff]
      %v2270 = vld [vmem:[%s1843 + $0x13c] sm:$0xff]
      %v2271 = vld [vmem:[%s1843 + $0x144] sm:$0xff]
      %v2272 = vld [vmem:[%s1843 + $0x154] sm:$0xff]
      %v2273 = vld [vmem:[%s1843 + $0x15c] sm:$0xff]
      %v2274 = vld [vmem:[%s1843 + $0x16c] sm:$0xff]
      %v2275 = vld [vmem:[%s1843 + $0x174] sm:$0xff]
      %v2276 = vlaneseq
      %v2277 = vshrl.u32 %v2276, 7
      %v2278 = vsub.s32 2, %v2277
      %v2279 = vrot.slane %v390, %v2278
      %v2280 = vmul.f32 %v2244, %v2279
      %v2281 = vmul.f32 %v2245, %v2279
      %v2282 = vmul.f32 %v2246, %v2279
      %v2283 = vmul.f32 %v2247, %v2279
      %v2284 = vmul.f32 %v2248, %v2279
      %v2285 = vmul.f32 %v2249, %v2279
      %v2286 = vmul.f32 %v2250, %v2279
      %v2287 = vmul.f32 %v2251, %v2279
      %v2288 = vmul.f32 %v2252, %v2279
      %v2289 = vmul.f32 %v2253, %v2279
      %v2290 = vmul.f32 %v2254, %v2279
      %v2291 = vmul.f32 %v2255, %v2279
      %v2292 = vmul.f32 %v2256, %v2279
      %v2293 = vmul.f32 %v2257, %v2279
      %v2294 = vmul.f32 %v2258, %v2279
      %v2295 = vmul.f32 %v2259, %v2279
      %v2296 = vmul.f32 %v2260, %v2279
      %v2297 = vmul.f32 %v2261, %v2279
      %v2298 = vmul.f32 %v2262, %v2279
      %v2299 = vmul.f32 %v2263, %v2279
      %v2300 = vmul.f32 %v2264, %v2279
      %v2301 = vmul.f32 %v2265, %v2279
      %v2302 = vmul.f32 %v2266, %v2279
      %v2303 = vmul.f32 %v2267, %v2279
      %v2304 = vmul.f32 %v2268, %v2279
      %v2305 = vmul.f32 %v2269, %v2279
      %v2306 = vmul.f32 %v2270, %v2279
      %v2307 = vmul.f32 %v2271, %v2279
      %v2308 = vmul.f32 %v2272, %v2279
      %v2309 = vmul.f32 %v2273, %v2279
      %v2310 = vmul.f32 %v2274, %v2279
      %v2311 = vmul.f32 %v2275, %v2279
      %v2312 = vadd.f32 %v2212, %v2280
      %v2313 = vadd.f32 %v2213, %v2281
      %v2314 = vadd.f32 %v2214, %v2282
      %v2315 = vadd.f32 %v2215, %v2283
      %v2316 = vadd.f32 %v2216, %v2284
      %v2317 = vadd.f32 %v2217, %v2285
      %v2318 = vadd.f32 %v2218, %v2286
      %v2319 = vadd.f32 %v2219, %v2287
      %v2320 = vadd.f32 %v2220, %v2288
      %v2321 = vadd.f32 %v2221, %v2289
      %v2322 = vadd.f32 %v2222, %v2290
      %v2323 = vadd.f32 %v2223, %v2291
      %v2324 = vadd.f32 %v2224, %v2292
      %v2325 = vadd.f32 %v2225, %v2293
      %v2326 = vadd.f32 %v2226, %v2294
      %v2327 = vadd.f32 %v2227, %v2295
      %v2328 = vadd.f32 %v2228, %v2296
      %v2329 = vadd.f32 %v2229, %v2297
      %v2330 = vadd.f32 %v2230, %v2298
      %v2331 = vadd.f32 %v2231, %v2299
      %v2332 = vadd.f32 %v2232, %v2300
      %v2333 = vadd.f32 %v2233, %v2301
      %v2334 = vadd.f32 %v2234, %v2302
      %v2335 = vadd.f32 %v2235, %v2303
      %v2336 = vadd.f32 %v2236, %v2304
      %v2337 = vadd.f32 %v2237, %v2305
      %v2338 = vadd.f32 %v2238, %v2306
      %v2339 = vadd.f32 %v2239, %v2307
      %v2340 = vadd.f32 %v2240, %v2308
      %v2341 = vadd.f32 %v2241, %v2309
      %v2342 = vadd.f32 %v2242, %v2310
      %v2343 = vadd.f32 %v2243, %v2311
      %v2344 = vld [vmem:[%s1843 + $0x5] sm:$0xff]
      %v2345 = vld [vmem:[%s1843 + $0xd] sm:$0xff]
      %v2346 = vld [vmem:[%s1843 + $0x1d] sm:$0xff]
      %v2347 = vld [vmem:[%s1843 + $0x25] sm:$0xff]
      %v2348 = vld [vmem:[%s1843 + $0x35] sm:$0xff]
      %v2349 = vld [vmem:[%s1843 + $0x3d] sm:$0xff]
      %v2350 = vld [vmem:[%s1843 + $0x4d] sm:$0xff]
      %v2351 = vld [vmem:[%s1843 + $0x55] sm:$0xff]
      %v2352 = vld [vmem:[%s1843 + $0x65] sm:$0xff]
      %v2353 = vld [vmem:[%s1843 + $0x6d] sm:$0xff]
      %v2354 = vld [vmem:[%s1843 + $0x7d] sm:$0xff]
      %v2355 = vld [vmem:[%s1843 + $0x85] sm:$0xff]
      %v2356 = vld [vmem:[%s1843 + $0x95] sm:$0xff]
      %v2357 = vld [vmem:[%s1843 + $0x9d] sm:$0xff]
      %v2358 = vld [vmem:[%s1843 + $0xad] sm:$0xff]
      %v2359 = vld [vmem:[%s1843 + $0xb5] sm:$0xff]
      %v2360 = vld [vmem:[%s1843 + $0xc5] sm:$0xff]
      %v2361 = vld [vmem:[%s1843 + $0xcd] sm:$0xff]
      %v2362 = vld [vmem:[%s1843 + $0xdd] sm:$0xff]
      %v2363 = vld [vmem:[%s1843 + $0xe5] sm:$0xff]
      %v2364 = vld [vmem:[%s1843 + $0xf5] sm:$0xff]
      %v2365 = vld [vmem:[%s1843 + $0xfd] sm:$0xff]
      %v2366 = vld [vmem:[%s1843 + $0x10d] sm:$0xff]
      %v2367 = vld [vmem:[%s1843 + $0x115] sm:$0xff]
      %v2368 = vld [vmem:[%s1843 + $0x125] sm:$0xff]
      %v2369 = vld [vmem:[%s1843 + $0x12d] sm:$0xff]
      %v2370 = vld [vmem:[%s1843 + $0x13d] sm:$0xff]
      %v2371 = vld [vmem:[%s1843 + $0x145] sm:$0xff]
      %v2372 = vld [vmem:[%s1843 + $0x155] sm:$0xff]
      %v2373 = vld [vmem:[%s1843 + $0x15d] sm:$0xff]
      %v2374 = vld [vmem:[%s1843 + $0x16d] sm:$0xff]
      %v2375 = vld [vmem:[%s1843 + $0x175] sm:$0xff]
      %v2376 = vlaneseq
      %v2377 = vshrl.u32 %v2376, 7
      %v2378 = vsub.s32 3, %v2377
      %v2379 = vrot.slane %v390, %v2378
      %v2380 = vmul.f32 %v2344, %v2379
      %v2381 = vmul.f32 %v2345, %v2379
      %v2382 = vmul.f32 %v2346, %v2379
      %v2383 = vmul.f32 %v2347, %v2379
      %v2384 = vmul.f32 %v2348, %v2379
      %v2385 = vmul.f32 %v2349, %v2379
      %v2386 = vmul.f32 %v2350, %v2379
      %v2387 = vmul.f32 %v2351, %v2379
      %v2388 = vmul.f32 %v2352, %v2379
      %v2389 = vmul.f32 %v2353, %v2379
      %v2390 = vmul.f32 %v2354, %v2379
      %v2391 = vmul.f32 %v2355, %v2379
      %v2392 = vmul.f32 %v2356, %v2379
      %v2393 = vmul.f32 %v2357, %v2379
      %v2394 = vmul.f32 %v2358, %v2379
      %v2395 = vmul.f32 %v2359, %v2379
      %v2396 = vmul.f32 %v2360, %v2379
      %v2397 = vmul.f32 %v2361, %v2379
      %v2398 = vmul.f32 %v2362, %v2379
      %v2399 = vmul.f32 %v2363, %v2379
      %v2400 = vmul.f32 %v2364, %v2379
      %v2401 = vmul.f32 %v2365, %v2379
      %v2402 = vmul.f32 %v2366, %v2379
      %v2403 = vmul.f32 %v2367, %v2379
      %v2404 = vmul.f32 %v2368, %v2379
      %v2405 = vmul.f32 %v2369, %v2379
      %v2406 = vmul.f32 %v2370, %v2379
      %v2407 = vmul.f32 %v2371, %v2379
      %v2408 = vmul.f32 %v2372, %v2379
      %v2409 = vmul.f32 %v2373, %v2379
      %v2410 = vmul.f32 %v2374, %v2379
      %v2411 = vmul.f32 %v2375, %v2379
      %v2412 = vadd.f32 %v2312, %v2380
      %v2413 = vadd.f32 %v2313, %v2381
      %v2414 = vadd.f32 %v2314, %v2382
      %v2415 = vadd.f32 %v2315, %v2383
      %v2416 = vadd.f32 %v2316, %v2384
      %v2417 = vadd.f32 %v2317, %v2385
      %v2418 = vadd.f32 %v2318, %v2386
      %v2419 = vadd.f32 %v2319, %v2387
      %v2420 = vadd.f32 %v2320, %v2388
      %v2421 = vadd.f32 %v2321, %v2389
      %v2422 = vadd.f32 %v2322, %v2390
      %v2423 = vadd.f32 %v2323, %v2391
      %v2424 = vadd.f32 %v2324, %v2392
      %v2425 = vadd.f32 %v2325, %v2393
      %v2426 = vadd.f32 %v2326, %v2394
      %v2427 = vadd.f32 %v2327, %v2395
      %v2428 = vadd.f32 %v2328, %v2396
      %v2429 = vadd.f32 %v2329, %v2397
      %v2430 = vadd.f32 %v2330, %v2398
      %v2431 = vadd.f32 %v2331, %v2399
      %v2432 = vadd.f32 %v2332, %v2400
      %v2433 = vadd.f32 %v2333, %v2401
      %v2434 = vadd.f32 %v2334, %v2402
      %v2435 = vadd.f32 %v2335, %v2403
      %v2436 = vadd.f32 %v2336, %v2404
      %v2437 = vadd.f32 %v2337, %v2405
      %v2438 = vadd.f32 %v2338, %v2406
      %v2439 = vadd.f32 %v2339, %v2407
      %v2440 = vadd.f32 %v2340, %v2408
      %v2441 = vadd.f32 %v2341, %v2409
      %v2442 = vadd.f32 %v2342, %v2410
      %v2443 = vadd.f32 %v2343, %v2411
      %v2444 = vld [vmem:[%s1843 + $0x6] sm:$0xff]
      %v2445 = vld [vmem:[%s1843 + $0xe] sm:$0xff]
      %v2446 = vld [vmem:[%s1843 + $0x1e] sm:$0xff]
      %v2447 = vld [vmem:[%s1843 + $0x26] sm:$0xff]
      %v2448 = vld [vmem:[%s1843 + $0x36] sm:$0xff]
      %v2449 = vld [vmem:[%s1843 + $0x3e] sm:$0xff]
      %v2450 = vld [vmem:[%s1843 + $0x4e] sm:$0xff]
      %v2451 = vld [vmem:[%s1843 + $0x56] sm:$0xff]
      %v2452 = vld [vmem:[%s1843 + $0x66] sm:$0xff]
      %v2453 = vld [vmem:[%s1843 + $0x6e] sm:$0xff]
      %v2454 = vld [vmem:[%s1843 + $0x7e] sm:$0xff]
      %v2455 = vld [vmem:[%s1843 + $0x86] sm:$0xff]
      %v2456 = vld [vmem:[%s1843 + $0x96] sm:$0xff]
      %v2457 = vld [vmem:[%s1843 + $0x9e] sm:$0xff]
      %v2458 = vld [vmem:[%s1843 + $0xae] sm:$0xff]
      %v2459 = vld [vmem:[%s1843 + $0xb6] sm:$0xff]
      %v2460 = vld [vmem:[%s1843 + $0xc6] sm:$0xff]
      %v2461 = vld [vmem:[%s1843 + $0xce] sm:$0xff]
      %v2462 = vld [vmem:[%s1843 + $0xde] sm:$0xff]
      %v2463 = vld [vmem:[%s1843 + $0xe6] sm:$0xff]
      %v2464 = vld [vmem:[%s1843 + $0xf6] sm:$0xff]
      %v2465 = vld [vmem:[%s1843 + $0xfe] sm:$0xff]
      %v2466 = vld [vmem:[%s1843 + $0x10e] sm:$0xff]
      %v2467 = vld [vmem:[%s1843 + $0x116] sm:$0xff]
      %v2468 = vld [vmem:[%s1843 + $0x126] sm:$0xff]
      %v2469 = vld [vmem:[%s1843 + $0x12e] sm:$0xff]
      %v2470 = vld [vmem:[%s1843 + $0x13e] sm:$0xff]
      %v2471 = vld [vmem:[%s1843 + $0x146] sm:$0xff]
      %v2472 = vld [vmem:[%s1843 + $0x156] sm:$0xff]
      %v2473 = vld [vmem:[%s1843 + $0x15e] sm:$0xff]
      %v2474 = vld [vmem:[%s1843 + $0x16e] sm:$0xff]
      %v2475 = vld [vmem:[%s1843 + $0x176] sm:$0xff]
      %v2476 = vlaneseq
      %v2477 = vshrl.u32 %v2476, 7
      %v2478 = vsub.s32 4, %v2477
      %v2479 = vrot.slane %v390, %v2478
      %v2480 = vmul.f32 %v2444, %v2479
      %v2481 = vmul.f32 %v2445, %v2479
      %v2482 = vmul.f32 %v2446, %v2479
      %v2483 = vmul.f32 %v2447, %v2479
      %v2484 = vmul.f32 %v2448, %v2479
      %v2485 = vmul.f32 %v2449, %v2479
      %v2486 = vmul.f32 %v2450, %v2479
      %v2487 = vmul.f32 %v2451, %v2479
      %v2488 = vmul.f32 %v2452, %v2479
      %v2489 = vmul.f32 %v2453, %v2479
      %v2490 = vmul.f32 %v2454, %v2479
      %v2491 = vmul.f32 %v2455, %v2479
      %v2492 = vmul.f32 %v2456, %v2479
      %v2493 = vmul.f32 %v2457, %v2479
      %v2494 = vmul.f32 %v2458, %v2479
      %v2495 = vmul.f32 %v2459, %v2479
      %v2496 = vmul.f32 %v2460, %v2479
      %v2497 = vmul.f32 %v2461, %v2479
      %v2498 = vmul.f32 %v2462, %v2479
      %v2499 = vmul.f32 %v2463, %v2479
      %v2500 = vmul.f32 %v2464, %v2479
      %v2501 = vmul.f32 %v2465, %v2479
      %v2502 = vmul.f32 %v2466, %v2479
      %v2503 = vmul.f32 %v2467, %v2479
      %v2504 = vmul.f32 %v2468, %v2479
      %v2505 = vmul.f32 %v2469, %v2479
      %v2506 = vmul.f32 %v2470, %v2479
      %v2507 = vmul.f32 %v2471, %v2479
      %v2508 = vmul.f32 %v2472, %v2479
      %v2509 = vmul.f32 %v2473, %v2479
      %v2510 = vmul.f32 %v2474, %v2479
      %v2511 = vmul.f32 %v2475, %v2479
      %v2512 = vadd.f32 %v2412, %v2480
      %v2513 = vadd.f32 %v2413, %v2481
      %v2514 = vadd.f32 %v2414, %v2482
      %v2515 = vadd.f32 %v2415, %v2483
      %v2516 = vadd.f32 %v2416, %v2484
      %v2517 = vadd.f32 %v2417, %v2485
      %v2518 = vadd.f32 %v2418, %v2486
      %v2519 = vadd.f32 %v2419, %v2487
      %v2520 = vadd.f32 %v2420, %v2488
      %v2521 = vadd.f32 %v2421, %v2489
      %v2522 = vadd.f32 %v2422, %v2490
      %v2523 = vadd.f32 %v2423, %v2491
      %v2524 = vadd.f32 %v2424, %v2492
      %v2525 = vadd.f32 %v2425, %v2493
      %v2526 = vadd.f32 %v2426, %v2494
      %v2527 = vadd.f32 %v2427, %v2495
      %v2528 = vadd.f32 %v2428, %v2496
      %v2529 = vadd.f32 %v2429, %v2497
      %v2530 = vadd.f32 %v2430, %v2498
      %v2531 = vadd.f32 %v2431, %v2499
      %v2532 = vadd.f32 %v2432, %v2500
      %v2533 = vadd.f32 %v2433, %v2501
      %v2534 = vadd.f32 %v2434, %v2502
      %v2535 = vadd.f32 %v2435, %v2503
      %v2536 = vadd.f32 %v2436, %v2504
      %v2537 = vadd.f32 %v2437, %v2505
      %v2538 = vadd.f32 %v2438, %v2506
      %v2539 = vadd.f32 %v2439, %v2507
      %v2540 = vadd.f32 %v2440, %v2508
      %v2541 = vadd.f32 %v2441, %v2509
      %v2542 = vadd.f32 %v2442, %v2510
      %v2543 = vadd.f32 %v2443, %v2511
      %s2544 = scalar_lea.vmem %s381, 72
      %v2545 = vld [vmem:[%s2544] sm:$0xff]
      %v2546 = vld [vmem:[%s2544 + $0x8] sm:$0xff]
      %v2547 = vld [vmem:[%s2544 + $0x18] sm:$0xff]
      %v2548 = vld [vmem:[%s2544 + $0x20] sm:$0xff]
      %v2549 = vld [vmem:[%s2544 + $0x30] sm:$0xff]
      %v2550 = vld [vmem:[%s2544 + $0x38] sm:$0xff]
      %v2551 = vld [vmem:[%s2544 + $0x48] sm:$0xff]
      %v2552 = vld [vmem:[%s2544 + $0x50] sm:$0xff]
      %v2553 = vld [vmem:[%s2544 + $0x60] sm:$0xff]
      %v2554 = vld [vmem:[%s2544 + $0x68] sm:$0xff]
      %v2555 = vld [vmem:[%s2544 + $0x78] sm:$0xff]
      %v2556 = vld [vmem:[%s2544 + $0x80] sm:$0xff]
      %v2557 = vld [vmem:[%s2544 + $0x90] sm:$0xff]
      %v2558 = vld [vmem:[%s2544 + $0x98] sm:$0xff]
      %v2559 = vld [vmem:[%s2544 + $0xa8] sm:$0xff]
      %v2560 = vld [vmem:[%s2544 + $0xb0] sm:$0xff]
      %v2561 = vld [vmem:[%s2544 + $0xc0] sm:$0xff]
      %v2562 = vld [vmem:[%s2544 + $0xc8] sm:$0xff]
      %v2563 = vld [vmem:[%s2544 + $0xd8] sm:$0xff]
      %v2564 = vld [vmem:[%s2544 + $0xe0] sm:$0xff]
      %v2565 = vld [vmem:[%s2544 + $0xf0] sm:$0xff]
      %v2566 = vld [vmem:[%s2544 + $0xf8] sm:$0xff]
      %v2567 = vld [vmem:[%s2544 + $0x108] sm:$0xff]
      %v2568 = vld [vmem:[%s2544 + $0x110] sm:$0xff]
      %v2569 = vld [vmem:[%s2544 + $0x120] sm:$0xff]
      %v2570 = vld [vmem:[%s2544 + $0x128] sm:$0xff]
      %v2571 = vld [vmem:[%s2544 + $0x138] sm:$0xff]
      %v2572 = vld [vmem:[%s2544 + $0x140] sm:$0xff]
      %v2573 = vld [vmem:[%s2544 + $0x150] sm:$0xff]
      %v2574 = vld [vmem:[%s2544 + $0x158] sm:$0xff]
      %v2575 = vld [vmem:[%s2544 + $0x168] sm:$0xff]
      %v2576 = vld [vmem:[%s2544 + $0x170] sm:$0xff]
      %v2577 = vlaneseq
      %v2578 = vshrl.u32 %v2577, 7
      %v2579 = vsub.s32 5, %v2578
      %v2580 = vrot.slane %v390, %v2579
      %v2581 = vmul.f32 %v2545, %v2580
      %v2582 = vmul.f32 %v2546, %v2580
      %v2583 = vmul.f32 %v2547, %v2580
      %v2584 = vmul.f32 %v2548, %v2580
      %v2585 = vmul.f32 %v2549, %v2580
      %v2586 = vmul.f32 %v2550, %v2580
      %v2587 = vmul.f32 %v2551, %v2580
      %v2588 = vmul.f32 %v2552, %v2580
      %v2589 = vmul.f32 %v2553, %v2580
      %v2590 = vmul.f32 %v2554, %v2580
      %v2591 = vmul.f32 %v2555, %v2580
      %v2592 = vmul.f32 %v2556, %v2580
      %v2593 = vmul.f32 %v2557, %v2580
      %v2594 = vmul.f32 %v2558, %v2580
      %v2595 = vmul.f32 %v2559, %v2580
      %v2596 = vmul.f32 %v2560, %v2580
      %v2597 = vmul.f32 %v2561, %v2580
      %v2598 = vmul.f32 %v2562, %v2580
      %v2599 = vmul.f32 %v2563, %v2580
      %v2600 = vmul.f32 %v2564, %v2580
      %v2601 = vmul.f32 %v2565, %v2580
      %v2602 = vmul.f32 %v2566, %v2580
      %v2603 = vmul.f32 %v2567, %v2580
      %v2604 = vmul.f32 %v2568, %v2580
      %v2605 = vmul.f32 %v2569, %v2580
      %v2606 = vmul.f32 %v2570, %v2580
      %v2607 = vmul.f32 %v2571, %v2580
      %v2608 = vmul.f32 %v2572, %v2580
      %v2609 = vmul.f32 %v2573, %v2580
      %v2610 = vmul.f32 %v2574, %v2580
      %v2611 = vmul.f32 %v2575, %v2580
      %v2612 = vmul.f32 %v2576, %v2580
      %v2613 = vadd.f32 %v2512, %v2581
      %v2614 = vadd.f32 %v2513, %v2582
      %v2615 = vadd.f32 %v2514, %v2583
      %v2616 = vadd.f32 %v2515, %v2584
      %v2617 = vadd.f32 %v2516, %v2585
      %v2618 = vadd.f32 %v2517, %v2586
      %v2619 = vadd.f32 %v2518, %v2587
      %v2620 = vadd.f32 %v2519, %v2588
      %v2621 = vadd.f32 %v2520, %v2589
      %v2622 = vadd.f32 %v2521, %v2590
      %v2623 = vadd.f32 %v2522, %v2591
      %v2624 = vadd.f32 %v2523, %v2592
      %v2625 = vadd.f32 %v2524, %v2593
      %v2626 = vadd.f32 %v2525, %v2594
      %v2627 = vadd.f32 %v2526, %v2595
      %v2628 = vadd.f32 %v2527, %v2596
      %v2629 = vadd.f32 %v2528, %v2597
      %v2630 = vadd.f32 %v2529, %v2598
      %v2631 = vadd.f32 %v2530, %v2599
      %v2632 = vadd.f32 %v2531, %v2600
      %v2633 = vadd.f32 %v2532, %v2601
      %v2634 = vadd.f32 %v2533, %v2602
      %v2635 = vadd.f32 %v2534, %v2603
      %v2636 = vadd.f32 %v2535, %v2604
      %v2637 = vadd.f32 %v2536, %v2605
      %v2638 = vadd.f32 %v2537, %v2606
      %v2639 = vadd.f32 %v2538, %v2607
      %v2640 = vadd.f32 %v2539, %v2608
      %v2641 = vadd.f32 %v2540, %v2609
      %v2642 = vadd.f32 %v2541, %v2610
      %v2643 = vadd.f32 %v2542, %v2611
      %v2644 = vadd.f32 %v2543, %v2612
      %v2645 = vld [vmem:[%s2544 + $0x1] sm:$0xff]
      %v2646 = vld [vmem:[%s2544 + $0x9] sm:$0xff]
      %v2647 = vld [vmem:[%s2544 + $0x19] sm:$0xff]
      %v2648 = vld [vmem:[%s2544 + $0x21] sm:$0xff]
      %v2649 = vld [vmem:[%s2544 + $0x31] sm:$0xff]
      %v2650 = vld [vmem:[%s2544 + $0x39] sm:$0xff]
      %v2651 = vld [vmem:[%s2544 + $0x49] sm:$0xff]
      %v2652 = vld [vmem:[%s2544 + $0x51] sm:$0xff]
      %v2653 = vld [vmem:[%s2544 + $0x61] sm:$0xff]
      %v2654 = vld [vmem:[%s2544 + $0x69] sm:$0xff]
      %v2655 = vld [vmem:[%s2544 + $0x79] sm:$0xff]
      %v2656 = vld [vmem:[%s2544 + $0x81] sm:$0xff]
      %v2657 = vld [vmem:[%s2544 + $0x91] sm:$0xff]
      %v2658 = vld [vmem:[%s2544 + $0x99] sm:$0xff]
      %v2659 = vld [vmem:[%s2544 + $0xa9] sm:$0xff]
      %v2660 = vld [vmem:[%s2544 + $0xb1] sm:$0xff]
      %v2661 = vld [vmem:[%s2544 + $0xc1] sm:$0xff]
      %v2662 = vld [vmem:[%s2544 + $0xc9] sm:$0xff]
      %v2663 = vld [vmem:[%s2544 + $0xd9] sm:$0xff]
      %v2664 = vld [vmem:[%s2544 + $0xe1] sm:$0xff]
      %v2665 = vld [vmem:[%s2544 + $0xf1] sm:$0xff]
      %v2666 = vld [vmem:[%s2544 + $0xf9] sm:$0xff]
      %v2667 = vld [vmem:[%s2544 + $0x109] sm:$0xff]
      %v2668 = vld [vmem:[%s2544 + $0x111] sm:$0xff]
      %v2669 = vld [vmem:[%s2544 + $0x121] sm:$0xff]
      %v2670 = vld [vmem:[%s2544 + $0x129] sm:$0xff]
      %v2671 = vld [vmem:[%s2544 + $0x139] sm:$0xff]
      %v2672 = vld [vmem:[%s2544 + $0x141] sm:$0xff]
      %v2673 = vld [vmem:[%s2544 + $0x151] sm:$0xff]
      %v2674 = vld [vmem:[%s2544 + $0x159] sm:$0xff]
      %v2675 = vld [vmem:[%s2544 + $0x169] sm:$0xff]
      %v2676 = vld [vmem:[%s2544 + $0x171] sm:$0xff]
      %v2677 = vlaneseq
      %v2678 = vshrl.u32 %v2677, 7
      %v2679 = vsub.s32 6, %v2678
      %v2680 = vrot.slane %v390, %v2679
      %v2681 = vmul.f32 %v2645, %v2680
      %v2682 = vmul.f32 %v2646, %v2680
      %v2683 = vmul.f32 %v2647, %v2680
      %v2684 = vmul.f32 %v2648, %v2680
      %v2685 = vmul.f32 %v2649, %v2680
      %v2686 = vmul.f32 %v2650, %v2680
      %v2687 = vmul.f32 %v2651, %v2680
      %v2688 = vmul.f32 %v2652, %v2680
      %v2689 = vmul.f32 %v2653, %v2680
      %v2690 = vmul.f32 %v2654, %v2680
      %v2691 = vmul.f32 %v2655, %v2680
      %v2692 = vmul.f32 %v2656, %v2680
      %v2693 = vmul.f32 %v2657, %v2680
      %v2694 = vmul.f32 %v2658, %v2680
      %v2695 = vmul.f32 %v2659, %v2680
      %v2696 = vmul.f32 %v2660, %v2680
      %v2697 = vmul.f32 %v2661, %v2680
      %v2698 = vmul.f32 %v2662, %v2680
      %v2699 = vmul.f32 %v2663, %v2680
      %v2700 = vmul.f32 %v2664, %v2680
      %v2701 = vmul.f32 %v2665, %v2680
      %v2702 = vmul.f32 %v2666, %v2680
      %v2703 = vmul.f32 %v2667, %v2680
      %v2704 = vmul.f32 %v2668, %v2680
      %v2705 = vmul.f32 %v2669, %v2680
      %v2706 = vmul.f32 %v2670, %v2680
      %v2707 = vmul.f32 %v2671, %v2680
      %v2708 = vmul.f32 %v2672, %v2680
      %v2709 = vmul.f32 %v2673, %v2680
      %v2710 = vmul.f32 %v2674, %v2680
      %v2711 = vmul.f32 %v2675, %v2680
      %v2712 = vmul.f32 %v2676, %v2680
      %v2713 = vadd.f32 %v2613, %v2681
      %v2714 = vadd.f32 %v2614, %v2682
      %v2715 = vadd.f32 %v2615, %v2683
      %v2716 = vadd.f32 %v2616, %v2684
      %v2717 = vadd.f32 %v2617, %v2685
      %v2718 = vadd.f32 %v2618, %v2686
      %v2719 = vadd.f32 %v2619, %v2687
      %v2720 = vadd.f32 %v2620, %v2688
      %v2721 = vadd.f32 %v2621, %v2689
      %v2722 = vadd.f32 %v2622, %v2690
      %v2723 = vadd.f32 %v2623, %v2691
      %v2724 = vadd.f32 %v2624, %v2692
      %v2725 = vadd.f32 %v2625, %v2693
      %v2726 = vadd.f32 %v2626, %v2694
      %v2727 = vadd.f32 %v2627, %v2695
      %v2728 = vadd.f32 %v2628, %v2696
      %v2729 = vadd.f32 %v2629, %v2697
      %v2730 = vadd.f32 %v2630, %v2698
      %v2731 = vadd.f32 %v2631, %v2699
      %v2732 = vadd.f32 %v2632, %v2700
      %v2733 = vadd.f32 %v2633, %v2701
      %v2734 = vadd.f32 %v2634, %v2702
      %v2735 = vadd.f32 %v2635, %v2703
      %v2736 = vadd.f32 %v2636, %v2704
      %v2737 = vadd.f32 %v2637, %v2705
      %v2738 = vadd.f32 %v2638, %v2706
      %v2739 = vadd.f32 %v2639, %v2707
      %v2740 = vadd.f32 %v2640, %v2708
      %v2741 = vadd.f32 %v2641, %v2709
      %v2742 = vadd.f32 %v2642, %v2710
      %v2743 = vadd.f32 %v2643, %v2711
      %v2744 = vadd.f32 %v2644, %v2712
      %v2745 = vld [vmem:[%s2544 + $0x2] sm:$0xff]
      %v2746 = vld [vmem:[%s2544 + $0xa] sm:$0xff]
      %v2747 = vld [vmem:[%s2544 + $0x1a] sm:$0xff]
      %v2748 = vld [vmem:[%s2544 + $0x22] sm:$0xff]
      %v2749 = vld [vmem:[%s2544 + $0x32] sm:$0xff]
      %v2750 = vld [vmem:[%s2544 + $0x3a] sm:$0xff]
      %v2751 = vld [vmem:[%s2544 + $0x4a] sm:$0xff]
      %v2752 = vld [vmem:[%s2544 + $0x52] sm:$0xff]
      %v2753 = vld [vmem:[%s2544 + $0x62] sm:$0xff]
      %v2754 = vld [vmem:[%s2544 + $0x6a] sm:$0xff]
      %v2755 = vld [vmem:[%s2544 + $0x7a] sm:$0xff]
      %v2756 = vld [vmem:[%s2544 + $0x82] sm:$0xff]
      %v2757 = vld [vmem:[%s2544 + $0x92] sm:$0xff]
      %v2758 = vld [vmem:[%s2544 + $0x9a] sm:$0xff]
      %v2759 = vld [vmem:[%s2544 + $0xaa] sm:$0xff]
      %v2760 = vld [vmem:[%s2544 + $0xb2] sm:$0xff]
      %v2761 = vld [vmem:[%s2544 + $0xc2] sm:$0xff]
      %v2762 = vld [vmem:[%s2544 + $0xca] sm:$0xff]
      %v2763 = vld [vmem:[%s2544 + $0xda] sm:$0xff]
      %v2764 = vld [vmem:[%s2544 + $0xe2] sm:$0xff]
      %v2765 = vld [vmem:[%s2544 + $0xf2] sm:$0xff]
      %v2766 = vld [vmem:[%s2544 + $0xfa] sm:$0xff]
      %v2767 = vld [vmem:[%s2544 + $0x10a] sm:$0xff]
      %v2768 = vld [vmem:[%s2544 + $0x112] sm:$0xff]
      %v2769 = vld [vmem:[%s2544 + $0x122] sm:$0xff]
      %v2770 = vld [vmem:[%s2544 + $0x12a] sm:$0xff]
      %v2771 = vld [vmem:[%s2544 + $0x13a] sm:$0xff]
      %v2772 = vld [vmem:[%s2544 + $0x142] sm:$0xff]
      %v2773 = vld [vmem:[%s2544 + $0x152] sm:$0xff]
      %v2774 = vld [vmem:[%s2544 + $0x15a] sm:$0xff]
      %v2775 = vld [vmem:[%s2544 + $0x16a] sm:$0xff]
      %v2776 = vld [vmem:[%s2544 + $0x172] sm:$0xff]
      %v2777 = vlaneseq
      %v2778 = vshrl.u32 %v2777, 7
      %v2779 = vsub.s32 7, %v2778
      %v2780 = vrot.slane %v390, %v2779
      %v2781 = vmul.f32 %v2745, %v2780
      %v2782 = vmul.f32 %v2746, %v2780
      %v2783 = vmul.f32 %v2747, %v2780
      %v2784 = vmul.f32 %v2748, %v2780
      %v2785 = vmul.f32 %v2749, %v2780
      %v2786 = vmul.f32 %v2750, %v2780
      %v2787 = vmul.f32 %v2751, %v2780
      %v2788 = vmul.f32 %v2752, %v2780
      %v2789 = vmul.f32 %v2753, %v2780
      %v2790 = vmul.f32 %v2754, %v2780
      %v2791 = vmul.f32 %v2755, %v2780
      %v2792 = vmul.f32 %v2756, %v2780
      %v2793 = vmul.f32 %v2757, %v2780
      %v2794 = vmul.f32 %v2758, %v2780
      %v2795 = vmul.f32 %v2759, %v2780
      %v2796 = vmul.f32 %v2760, %v2780
      %v2797 = vmul.f32 %v2761, %v2780
      %v2798 = vmul.f32 %v2762, %v2780
      %v2799 = vmul.f32 %v2763, %v2780
      %v2800 = vmul.f32 %v2764, %v2780
      %v2801 = vmul.f32 %v2765, %v2780
      %v2802 = vmul.f32 %v2766, %v2780
      %v2803 = vmul.f32 %v2767, %v2780
      %v2804 = vmul.f32 %v2768, %v2780
      %v2805 = vmul.f32 %v2769, %v2780
      %v2806 = vmul.f32 %v2770, %v2780
      %v2807 = vmul.f32 %v2771, %v2780
      %v2808 = vmul.f32 %v2772, %v2780
      %v2809 = vmul.f32 %v2773, %v2780
      %v2810 = vmul.f32 %v2774, %v2780
      %v2811 = vmul.f32 %v2775, %v2780
      %v2812 = vmul.f32 %v2776, %v2780
      %v2813 = vadd.f32 %v2713, %v2781
      %v2814 = vadd.f32 %v2714, %v2782
      %v2815 = vadd.f32 %v2715, %v2783
      %v2816 = vadd.f32 %v2716, %v2784
      %v2817 = vadd.f32 %v2717, %v2785
      %v2818 = vadd.f32 %v2718, %v2786
      %v2819 = vadd.f32 %v2719, %v2787
      %v2820 = vadd.f32 %v2720, %v2788
      %v2821 = vadd.f32 %v2721, %v2789
      %v2822 = vadd.f32 %v2722, %v2790
      %v2823 = vadd.f32 %v2723, %v2791
      %v2824 = vadd.f32 %v2724, %v2792
      %v2825 = vadd.f32 %v2725, %v2793
      %v2826 = vadd.f32 %v2726, %v2794
      %v2827 = vadd.f32 %v2727, %v2795
      %v2828 = vadd.f32 %v2728, %v2796
      %v2829 = vadd.f32 %v2729, %v2797
      %v2830 = vadd.f32 %v2730, %v2798
      %v2831 = vadd.f32 %v2731, %v2799
      %v2832 = vadd.f32 %v2732, %v2800
      %v2833 = vadd.f32 %v2733, %v2801
      %v2834 = vadd.f32 %v2734, %v2802
      %v2835 = vadd.f32 %v2735, %v2803
      %v2836 = vadd.f32 %v2736, %v2804
      %v2837 = vadd.f32 %v2737, %v2805
      %v2838 = vadd.f32 %v2738, %v2806
      %v2839 = vadd.f32 %v2739, %v2807
      %v2840 = vadd.f32 %v2740, %v2808
      %v2841 = vadd.f32 %v2741, %v2809
      %v2842 = vadd.f32 %v2742, %v2810
      %v2843 = vadd.f32 %v2743, %v2811
      %v2844 = vadd.f32 %v2744, %v2812
      %v2845 = vld [vmem:[%s2544 + $0x3] sm:$0xff]
      %v2846 = vld [vmem:[%s2544 + $0xb] sm:$0xff]
      %v2847 = vld [vmem:[%s2544 + $0x1b] sm:$0xff]
      %v2848 = vld [vmem:[%s2544 + $0x23] sm:$0xff]
      %v2849 = vld [vmem:[%s2544 + $0x33] sm:$0xff]
      %v2850 = vld [vmem:[%s2544 + $0x3b] sm:$0xff]
      %v2851 = vld [vmem:[%s2544 + $0x4b] sm:$0xff]
      %v2852 = vld [vmem:[%s2544 + $0x53] sm:$0xff]
      %v2853 = vld [vmem:[%s2544 + $0x63] sm:$0xff]
      %v2854 = vld [vmem:[%s2544 + $0x6b] sm:$0xff]
      %v2855 = vld [vmem:[%s2544 + $0x7b] sm:$0xff]
      %v2856 = vld [vmem:[%s2544 + $0x83] sm:$0xff]
      %v2857 = vld [vmem:[%s2544 + $0x93] sm:$0xff]
      %v2858 = vld [vmem:[%s2544 + $0x9b] sm:$0xff]
      %v2859 = vld [vmem:[%s2544 + $0xab] sm:$0xff]
      %v2860 = vld [vmem:[%s2544 + $0xb3] sm:$0xff]
      %v2861 = vld [vmem:[%s2544 + $0xc3] sm:$0xff]
      %v2862 = vld [vmem:[%s2544 + $0xcb] sm:$0xff]
      %v2863 = vld [vmem:[%s2544 + $0xdb] sm:$0xff]
      %v2864 = vld [vmem:[%s2544 + $0xe3] sm:$0xff]
      %v2865 = vld [vmem:[%s2544 + $0xf3] sm:$0xff]
      %v2866 = vld [vmem:[%s2544 + $0xfb] sm:$0xff]
      %v2867 = vld [vmem:[%s2544 + $0x10b] sm:$0xff]
      %v2868 = vld [vmem:[%s2544 + $0x113] sm:$0xff]
      %v2869 = vld [vmem:[%s2544 + $0x123] sm:$0xff]
      %v2870 = vld [vmem:[%s2544 + $0x12b] sm:$0xff]
      %v2871 = vld [vmem:[%s2544 + $0x13b] sm:$0xff]
      %v2872 = vld [vmem:[%s2544 + $0x143] sm:$0xff]
      %v2873 = vld [vmem:[%s2544 + $0x153] sm:$0xff]
      %v2874 = vld [vmem:[%s2544 + $0x15b] sm:$0xff]
      %v2875 = vld [vmem:[%s2544 + $0x16b] sm:$0xff]
      %v2876 = vld [vmem:[%s2544 + $0x173] sm:$0xff]
      %v2877 = vlaneseq
      %v2878 = vshrl.u32 %v2877, 7
      %v2879 = vsub.s32 0, %v2878
      %v2880 = vrot.slane %v391, %v2879
      %v2881 = vmul.f32 %v2845, %v2880
      %v2882 = vmul.f32 %v2846, %v2880
      %v2883 = vmul.f32 %v2847, %v2880
      %v2884 = vmul.f32 %v2848, %v2880
      %v2885 = vmul.f32 %v2849, %v2880
      %v2886 = vmul.f32 %v2850, %v2880
      %v2887 = vmul.f32 %v2851, %v2880
      %v2888 = vmul.f32 %v2852, %v2880
      %v2889 = vmul.f32 %v2853, %v2880
      %v2890 = vmul.f32 %v2854, %v2880
      %v2891 = vmul.f32 %v2855, %v2880
      %v2892 = vmul.f32 %v2856, %v2880
      %v2893 = vmul.f32 %v2857, %v2880
      %v2894 = vmul.f32 %v2858, %v2880
      %v2895 = vmul.f32 %v2859, %v2880
      %v2896 = vmul.f32 %v2860, %v2880
      %v2897 = vmul.f32 %v2861, %v2880
      %v2898 = vmul.f32 %v2862, %v2880
      %v2899 = vmul.f32 %v2863, %v2880
      %v2900 = vmul.f32 %v2864, %v2880
      %v2901 = vmul.f32 %v2865, %v2880
      %v2902 = vmul.f32 %v2866, %v2880
      %v2903 = vmul.f32 %v2867, %v2880
      %v2904 = vmul.f32 %v2868, %v2880
      %v2905 = vmul.f32 %v2869, %v2880
      %v2906 = vmul.f32 %v2870, %v2880
      %v2907 = vmul.f32 %v2871, %v2880
      %v2908 = vmul.f32 %v2872, %v2880
      %v2909 = vmul.f32 %v2873, %v2880
      %v2910 = vmul.f32 %v2874, %v2880
      %v2911 = vmul.f32 %v2875, %v2880
      %v2912 = vmul.f32 %v2876, %v2880
      %v2913 = vadd.f32 %v2813, %v2881
      %v2914 = vadd.f32 %v2814, %v2882
      %v2915 = vadd.f32 %v2815, %v2883
      %v2916 = vadd.f32 %v2816, %v2884
      %v2917 = vadd.f32 %v2817, %v2885
      %v2918 = vadd.f32 %v2818, %v2886
      %v2919 = vadd.f32 %v2819, %v2887
      %v2920 = vadd.f32 %v2820, %v2888
      %v2921 = vadd.f32 %v2821, %v2889
      %v2922 = vadd.f32 %v2822, %v2890
      %v2923 = vadd.f32 %v2823, %v2891
      %v2924 = vadd.f32 %v2824, %v2892
      %v2925 = vadd.f32 %v2825, %v2893
      %v2926 = vadd.f32 %v2826, %v2894
      %v2927 = vadd.f32 %v2827, %v2895
      %v2928 = vadd.f32 %v2828, %v2896
      %v2929 = vadd.f32 %v2829, %v2897
      %v2930 = vadd.f32 %v2830, %v2898
      %v2931 = vadd.f32 %v2831, %v2899
      %v2932 = vadd.f32 %v2832, %v2900
      %v2933 = vadd.f32 %v2833, %v2901
      %v2934 = vadd.f32 %v2834, %v2902
      %v2935 = vadd.f32 %v2835, %v2903
      %v2936 = vadd.f32 %v2836, %v2904
      %v2937 = vadd.f32 %v2837, %v2905
      %v2938 = vadd.f32 %v2838, %v2906
      %v2939 = vadd.f32 %v2839, %v2907
      %v2940 = vadd.f32 %v2840, %v2908
      %v2941 = vadd.f32 %v2841, %v2909
      %v2942 = vadd.f32 %v2842, %v2910
      %v2943 = vadd.f32 %v2843, %v2911
      %v2944 = vadd.f32 %v2844, %v2912
      %v2945 = vld [vmem:[%s2544 + $0x4] sm:$0xff]
      %v2946 = vld [vmem:[%s2544 + $0xc] sm:$0xff]
      %v2947 = vld [vmem:[%s2544 + $0x1c] sm:$0xff]
      %v2948 = vld [vmem:[%s2544 + $0x24] sm:$0xff]
      %v2949 = vld [vmem:[%s2544 + $0x34] sm:$0xff]
      %v2950 = vld [vmem:[%s2544 + $0x3c] sm:$0xff]
      %v2951 = vld [vmem:[%s2544 + $0x4c] sm:$0xff]
      %v2952 = vld [vmem:[%s2544 + $0x54] sm:$0xff]
      %v2953 = vld [vmem:[%s2544 + $0x64] sm:$0xff]
      %v2954 = vld [vmem:[%s2544 + $0x6c] sm:$0xff]
      %v2955 = vld [vmem:[%s2544 + $0x7c] sm:$0xff]
      %v2956 = vld [vmem:[%s2544 + $0x84] sm:$0xff]
      %v2957 = vld [vmem:[%s2544 + $0x94] sm:$0xff]
      %v2958 = vld [vmem:[%s2544 + $0x9c] sm:$0xff]
      %v2959 = vld [vmem:[%s2544 + $0xac] sm:$0xff]
      %v2960 = vld [vmem:[%s2544 + $0xb4] sm:$0xff]
      %v2961 = vld [vmem:[%s2544 + $0xc4] sm:$0xff]
      %v2962 = vld [vmem:[%s2544 + $0xcc] sm:$0xff]
      %v2963 = vld [vmem:[%s2544 + $0xdc] sm:$0xff]
      %v2964 = vld [vmem:[%s2544 + $0xe4] sm:$0xff]
      %v2965 = vld [vmem:[%s2544 + $0xf4] sm:$0xff]
      %v2966 = vld [vmem:[%s2544 + $0xfc] sm:$0xff]
      %v2967 = vld [vmem:[%s2544 + $0x10c] sm:$0xff]
      %v2968 = vld [vmem:[%s2544 + $0x114] sm:$0xff]
      %v2969 = vld [vmem:[%s2544 + $0x124] sm:$0xff]
      %v2970 = vld [vmem:[%s2544 + $0x12c] sm:$0xff]
      %v2971 = vld [vmem:[%s2544 + $0x13c] sm:$0xff]
      %v2972 = vld [vmem:[%s2544 + $0x144] sm:$0xff]
      %v2973 = vld [vmem:[%s2544 + $0x154] sm:$0xff]
      %v2974 = vld [vmem:[%s2544 + $0x15c] sm:$0xff]
      %v2975 = vld [vmem:[%s2544 + $0x16c] sm:$0xff]
      %v2976 = vld [vmem:[%s2544 + $0x174] sm:$0xff]
      %v2977 = vlaneseq
      %v2978 = vshrl.u32 %v2977, 7
      %v2979 = vsub.s32 1, %v2978
      %v2980 = vrot.slane %v391, %v2979
      %v2981 = vmul.f32 %v2945, %v2980
      %v2982 = vmul.f32 %v2946, %v2980
      %v2983 = vmul.f32 %v2947, %v2980
      %v2984 = vmul.f32 %v2948, %v2980
      %v2985 = vmul.f32 %v2949, %v2980
      %v2986 = vmul.f32 %v2950, %v2980
      %v2987 = vmul.f32 %v2951, %v2980
      %v2988 = vmul.f32 %v2952, %v2980
      %v2989 = vmul.f32 %v2953, %v2980
      %v2990 = vmul.f32 %v2954, %v2980
      %v2991 = vmul.f32 %v2955, %v2980
      %v2992 = vmul.f32 %v2956, %v2980
      %v2993 = vmul.f32 %v2957, %v2980
      %v2994 = vmul.f32 %v2958, %v2980
      %v2995 = vmul.f32 %v2959, %v2980
      %v2996 = vmul.f32 %v2960, %v2980
      %v2997 = vmul.f32 %v2961, %v2980
      %v2998 = vmul.f32 %v2962, %v2980
      %v2999 = vmul.f32 %v2963, %v2980
      %v3000 = vmul.f32 %v2964, %v2980
      %v3001 = vmul.f32 %v2965, %v2980
      %v3002 = vmul.f32 %v2966, %v2980
      %v3003 = vmul.f32 %v2967, %v2980
      %v3004 = vmul.f32 %v2968, %v2980
      %v3005 = vmul.f32 %v2969, %v2980
      %v3006 = vmul.f32 %v2970, %v2980
      %v3007 = vmul.f32 %v2971, %v2980
      %v3008 = vmul.f32 %v2972, %v2980
      %v3009 = vmul.f32 %v2973, %v2980
      %v3010 = vmul.f32 %v2974, %v2980
      %v3011 = vmul.f32 %v2975, %v2980
      %v3012 = vmul.f32 %v2976, %v2980
      %v3013 = vadd.f32 %v2913, %v2981
      %v3014 = vadd.f32 %v2914, %v2982
      %v3015 = vadd.f32 %v2915, %v2983
      %v3016 = vadd.f32 %v2916, %v2984
      %v3017 = vadd.f32 %v2917, %v2985
      %v3018 = vadd.f32 %v2918, %v2986
      %v3019 = vadd.f32 %v2919, %v2987
      %v3020 = vadd.f32 %v2920, %v2988
      %v3021 = vadd.f32 %v2921, %v2989
      %v3022 = vadd.f32 %v2922, %v2990
      %v3023 = vadd.f32 %v2923, %v2991
      %v3024 = vadd.f32 %v2924, %v2992
      %v3025 = vadd.f32 %v2925, %v2993
      %v3026 = vadd.f32 %v2926, %v2994
      %v3027 = vadd.f32 %v2927, %v2995
      %v3028 = vadd.f32 %v2928, %v2996
      %v3029 = vadd.f32 %v2929, %v2997
      %v3030 = vadd.f32 %v2930, %v2998
      %v3031 = vadd.f32 %v2931, %v2999
      %v3032 = vadd.f32 %v2932, %v3000
      %v3033 = vadd.f32 %v2933, %v3001
      %v3034 = vadd.f32 %v2934, %v3002
      %v3035 = vadd.f32 %v2935, %v3003
      %v3036 = vadd.f32 %v2936, %v3004
      %v3037 = vadd.f32 %v2937, %v3005
      %v3038 = vadd.f32 %v2938, %v3006
      %v3039 = vadd.f32 %v2939, %v3007
      %v3040 = vadd.f32 %v2940, %v3008
      %v3041 = vadd.f32 %v2941, %v3009
      %v3042 = vadd.f32 %v2942, %v3010
      %v3043 = vadd.f32 %v2943, %v3011
      %v3044 = vadd.f32 %v2944, %v3012
      %v3045 = vld [vmem:[%s2544 + $0x5] sm:$0xff]
      %v3046 = vld [vmem:[%s2544 + $0xd] sm:$0xff]
      %v3047 = vld [vmem:[%s2544 + $0x1d] sm:$0xff]
      %v3048 = vld [vmem:[%s2544 + $0x25] sm:$0xff]
      %v3049 = vld [vmem:[%s2544 + $0x35] sm:$0xff]
      %v3050 = vld [vmem:[%s2544 + $0x3d] sm:$0xff]
      %v3051 = vld [vmem:[%s2544 + $0x4d] sm:$0xff]
      %v3052 = vld [vmem:[%s2544 + $0x55] sm:$0xff]
      %v3053 = vld [vmem:[%s2544 + $0x65] sm:$0xff]
      %v3054 = vld [vmem:[%s2544 + $0x6d] sm:$0xff]
      %v3055 = vld [vmem:[%s2544 + $0x7d] sm:$0xff]
      %v3056 = vld [vmem:[%s2544 + $0x85] sm:$0xff]
      %v3057 = vld [vmem:[%s2544 + $0x95] sm:$0xff]
      %v3058 = vld [vmem:[%s2544 + $0x9d] sm:$0xff]
      %v3059 = vld [vmem:[%s2544 + $0xad] sm:$0xff]
      %v3060 = vld [vmem:[%s2544 + $0xb5] sm:$0xff]
      %v3061 = vld [vmem:[%s2544 + $0xc5] sm:$0xff]
      %v3062 = vld [vmem:[%s2544 + $0xcd] sm:$0xff]
      %v3063 = vld [vmem:[%s2544 + $0xdd] sm:$0xff]
      %v3064 = vld [vmem:[%s2544 + $0xe5] sm:$0xff]
      %v3065 = vld [vmem:[%s2544 + $0xf5] sm:$0xff]
      %v3066 = vld [vmem:[%s2544 + $0xfd] sm:$0xff]
      %v3067 = vld [vmem:[%s2544 + $0x10d] sm:$0xff]
      %v3068 = vld [vmem:[%s2544 + $0x115] sm:$0xff]
      %v3069 = vld [vmem:[%s2544 + $0x125] sm:$0xff]
      %v3070 = vld [vmem:[%s2544 + $0x12d] sm:$0xff]
      %v3071 = vld [vmem:[%s2544 + $0x13d] sm:$0xff]
      %v3072 = vld [vmem:[%s2544 + $0x145] sm:$0xff]
      %v3073 = vld [vmem:[%s2544 + $0x155] sm:$0xff]
      %v3074 = vld [vmem:[%s2544 + $0x15d] sm:$0xff]
      %v3075 = vld [vmem:[%s2544 + $0x16d] sm:$0xff]
      %v3076 = vld [vmem:[%s2544 + $0x175] sm:$0xff]
      %v3077 = vlaneseq
      %v3078 = vshrl.u32 %v3077, 7
      %v3079 = vsub.s32 2, %v3078
      %v3080 = vrot.slane %v391, %v3079
      %v3081 = vmul.f32 %v3045, %v3080
      %v3082 = vmul.f32 %v3046, %v3080
      %v3083 = vmul.f32 %v3047, %v3080
      %v3084 = vmul.f32 %v3048, %v3080
      %v3085 = vmul.f32 %v3049, %v3080
      %v3086 = vmul.f32 %v3050, %v3080
      %v3087 = vmul.f32 %v3051, %v3080
      %v3088 = vmul.f32 %v3052, %v3080
      %v3089 = vmul.f32 %v3053, %v3080
      %v3090 = vmul.f32 %v3054, %v3080
      %v3091 = vmul.f32 %v3055, %v3080
      %v3092 = vmul.f32 %v3056, %v3080
      %v3093 = vmul.f32 %v3057, %v3080
      %v3094 = vmul.f32 %v3058, %v3080
      %v3095 = vmul.f32 %v3059, %v3080
      %v3096 = vmul.f32 %v3060, %v3080
      %v3097 = vmul.f32 %v3061, %v3080
      %v3098 = vmul.f32 %v3062, %v3080
      %v3099 = vmul.f32 %v3063, %v3080
      %v3100 = vmul.f32 %v3064, %v3080
      %v3101 = vmul.f32 %v3065, %v3080
      %v3102 = vmul.f32 %v3066, %v3080
      %v3103 = vmul.f32 %v3067, %v3080
      %v3104 = vmul.f32 %v3068, %v3080
      %v3105 = vmul.f32 %v3069, %v3080
      %v3106 = vmul.f32 %v3070, %v3080
      %v3107 = vmul.f32 %v3071, %v3080
      %v3108 = vmul.f32 %v3072, %v3080
      %v3109 = vmul.f32 %v3073, %v3080
      %v3110 = vmul.f32 %v3074, %v3080
      %v3111 = vmul.f32 %v3075, %v3080
      %v3112 = vmul.f32 %v3076, %v3080
      %v3113 = vadd.f32 %v3013, %v3081
      %v3114 = vadd.f32 %v3014, %v3082
      %v3115 = vadd.f32 %v3015, %v3083
      %v3116 = vadd.f32 %v3016, %v3084
      %v3117 = vadd.f32 %v3017, %v3085
      %v3118 = vadd.f32 %v3018, %v3086
      %v3119 = vadd.f32 %v3019, %v3087
      %v3120 = vadd.f32 %v3020, %v3088
      %v3121 = vadd.f32 %v3021, %v3089
      %v3122 = vadd.f32 %v3022, %v3090
      %v3123 = vadd.f32 %v3023, %v3091
      %v3124 = vadd.f32 %v3024, %v3092
      %v3125 = vadd.f32 %v3025, %v3093
      %v3126 = vadd.f32 %v3026, %v3094
      %v3127 = vadd.f32 %v3027, %v3095
      %v3128 = vadd.f32 %v3028, %v3096
      %v3129 = vadd.f32 %v3029, %v3097
      %v3130 = vadd.f32 %v3030, %v3098
      %v3131 = vadd.f32 %v3031, %v3099
      %v3132 = vadd.f32 %v3032, %v3100
      %v3133 = vadd.f32 %v3033, %v3101
      %v3134 = vadd.f32 %v3034, %v3102
      %v3135 = vadd.f32 %v3035, %v3103
      %v3136 = vadd.f32 %v3036, %v3104
      %v3137 = vadd.f32 %v3037, %v3105
      %v3138 = vadd.f32 %v3038, %v3106
      %v3139 = vadd.f32 %v3039, %v3107
      %v3140 = vadd.f32 %v3040, %v3108
      %v3141 = vadd.f32 %v3041, %v3109
      %v3142 = vadd.f32 %v3042, %v3110
      %v3143 = vadd.f32 %v3043, %v3111
      %v3144 = vadd.f32 %v3044, %v3112
      %v3145 = vld [vmem:[%s2544 + $0x6] sm:$0xff]
      %v3146 = vld [vmem:[%s2544 + $0xe] sm:$0xff]
      %v3147 = vld [vmem:[%s2544 + $0x1e] sm:$0xff]
      %v3148 = vld [vmem:[%s2544 + $0x26] sm:$0xff]
      %v3149 = vld [vmem:[%s2544 + $0x36] sm:$0xff]
      %v3150 = vld [vmem:[%s2544 + $0x3e] sm:$0xff]
      %v3151 = vld [vmem:[%s2544 + $0x4e] sm:$0xff]
      %v3152 = vld [vmem:[%s2544 + $0x56] sm:$0xff]
      %v3153 = vld [vmem:[%s2544 + $0x66] sm:$0xff]
      %v3154 = vld [vmem:[%s2544 + $0x6e] sm:$0xff]
      %v3155 = vld [vmem:[%s2544 + $0x7e] sm:$0xff]
      %v3156 = vld [vmem:[%s2544 + $0x86] sm:$0xff]
      %v3157 = vld [vmem:[%s2544 + $0x96] sm:$0xff]
      %v3158 = vld [vmem:[%s2544 + $0x9e] sm:$0xff]
      %v3159 = vld [vmem:[%s2544 + $0xae] sm:$0xff]
      %v3160 = vld [vmem:[%s2544 + $0xb6] sm:$0xff]
      %v3161 = vld [vmem:[%s2544 + $0xc6] sm:$0xff]
      %v3162 = vld [vmem:[%s2544 + $0xce] sm:$0xff]
      %v3163 = vld [vmem:[%s2544 + $0xde] sm:$0xff]
      %v3164 = vld [vmem:[%s2544 + $0xe6] sm:$0xff]
      %v3165 = vld [vmem:[%s2544 + $0xf6] sm:$0xff]
      %v3166 = vld [vmem:[%s2544 + $0xfe] sm:$0xff]
      %v3167 = vld [vmem:[%s2544 + $0x10e] sm:$0xff]
      %v3168 = vld [vmem:[%s2544 + $0x116] sm:$0xff]
      %v3169 = vld [vmem:[%s2544 + $0x126] sm:$0xff]
      %v3170 = vld [vmem:[%s2544 + $0x12e] sm:$0xff]
      %v3171 = vld [vmem:[%s2544 + $0x13e] sm:$0xff]
      %v3172 = vld [vmem:[%s2544 + $0x146] sm:$0xff]
      %v3173 = vld [vmem:[%s2544 + $0x156] sm:$0xff]
      %v3174 = vld [vmem:[%s2544 + $0x15e] sm:$0xff]
      %v3175 = vld [vmem:[%s2544 + $0x16e] sm:$0xff]
      %v3176 = vld [vmem:[%s2544 + $0x176] sm:$0xff]
      %v3177 = vlaneseq
      %v3178 = vshrl.u32 %v3177, 7
      %v3179 = vsub.s32 3, %v3178
      %v3180 = vrot.slane %v391, %v3179
      %v3181 = vmul.f32 %v3145, %v3180
      %v3182 = vmul.f32 %v3146, %v3180
      %v3183 = vmul.f32 %v3147, %v3180
      %v3184 = vmul.f32 %v3148, %v3180
      %v3185 = vmul.f32 %v3149, %v3180
      %v3186 = vmul.f32 %v3150, %v3180
      %v3187 = vmul.f32 %v3151, %v3180
      %v3188 = vmul.f32 %v3152, %v3180
      %v3189 = vmul.f32 %v3153, %v3180
      %v3190 = vmul.f32 %v3154, %v3180
      %v3191 = vmul.f32 %v3155, %v3180
      %v3192 = vmul.f32 %v3156, %v3180
      %v3193 = vmul.f32 %v3157, %v3180
      %v3194 = vmul.f32 %v3158, %v3180
      %v3195 = vmul.f32 %v3159, %v3180
      %v3196 = vmul.f32 %v3160, %v3180
      %v3197 = vmul.f32 %v3161, %v3180
      %v3198 = vmul.f32 %v3162, %v3180
      %v3199 = vmul.f32 %v3163, %v3180
      %v3200 = vmul.f32 %v3164, %v3180
      %v3201 = vmul.f32 %v3165, %v3180
      %v3202 = vmul.f32 %v3166, %v3180
      %v3203 = vmul.f32 %v3167, %v3180
      %v3204 = vmul.f32 %v3168, %v3180
      %v3205 = vmul.f32 %v3169, %v3180
      %v3206 = vmul.f32 %v3170, %v3180
      %v3207 = vmul.f32 %v3171, %v3180
      %v3208 = vmul.f32 %v3172, %v3180
      %v3209 = vmul.f32 %v3173, %v3180
      %v3210 = vmul.f32 %v3174, %v3180
      %v3211 = vmul.f32 %v3175, %v3180
      %v3212 = vmul.f32 %v3176, %v3180
      %v3213 = vadd.f32 %v3113, %v3181
      %v3214 = vadd.f32 %v3114, %v3182
      %v3215 = vadd.f32 %v3115, %v3183
      %v3216 = vadd.f32 %v3116, %v3184
      %v3217 = vadd.f32 %v3117, %v3185
      %v3218 = vadd.f32 %v3118, %v3186
      %v3219 = vadd.f32 %v3119, %v3187
      %v3220 = vadd.f32 %v3120, %v3188
      %v3221 = vadd.f32 %v3121, %v3189
      %v3222 = vadd.f32 %v3122, %v3190
      %v3223 = vadd.f32 %v3123, %v3191
      %v3224 = vadd.f32 %v3124, %v3192
      %v3225 = vadd.f32 %v3125, %v3193
      %v3226 = vadd.f32 %v3126, %v3194
      %v3227 = vadd.f32 %v3127, %v3195
      %v3228 = vadd.f32 %v3128, %v3196
      %v3229 = vadd.f32 %v3129, %v3197
      %v3230 = vadd.f32 %v3130, %v3198
      %v3231 = vadd.f32 %v3131, %v3199
      %v3232 = vadd.f32 %v3132, %v3200
      %v3233 = vadd.f32 %v3133, %v3201
      %v3234 = vadd.f32 %v3134, %v3202
      %v3235 = vadd.f32 %v3135, %v3203
      %v3236 = vadd.f32 %v3136, %v3204
      %v3237 = vadd.f32 %v3137, %v3205
      %v3238 = vadd.f32 %v3138, %v3206
      %v3239 = vadd.f32 %v3139, %v3207
      %v3240 = vadd.f32 %v3140, %v3208
      %v3241 = vadd.f32 %v3141, %v3209
      %v3242 = vadd.f32 %v3142, %v3210
      %v3243 = vadd.f32 %v3143, %v3211
      %v3244 = vadd.f32 %v3144, %v3212
      %s3245 = scalar_lea.vmem %s381, 96
      %v3246 = vld [vmem:[%s3245] sm:$0xff]
      %v3247 = vld [vmem:[%s3245 + $0x8] sm:$0xff]
      %v3248 = vld [vmem:[%s3245 + $0x18] sm:$0xff]
      %v3249 = vld [vmem:[%s3245 + $0x20] sm:$0xff]
      %v3250 = vld [vmem:[%s3245 + $0x30] sm:$0xff]
      %v3251 = vld [vmem:[%s3245 + $0x38] sm:$0xff]
      %v3252 = vld [vmem:[%s3245 + $0x48] sm:$0xff]
      %v3253 = vld [vmem:[%s3245 + $0x50] sm:$0xff]
      %v3254 = vld [vmem:[%s3245 + $0x60] sm:$0xff]
      %v3255 = vld [vmem:[%s3245 + $0x68] sm:$0xff]
      %v3256 = vld [vmem:[%s3245 + $0x78] sm:$0xff]
      %v3257 = vld [vmem:[%s3245 + $0x80] sm:$0xff]
      %v3258 = vld [vmem:[%s3245 + $0x90] sm:$0xff]
      %v3259 = vld [vmem:[%s3245 + $0x98] sm:$0xff]
      %v3260 = vld [vmem:[%s3245 + $0xa8] sm:$0xff]
      %v3261 = vld [vmem:[%s3245 + $0xb0] sm:$0xff]
      %v3262 = vld [vmem:[%s3245 + $0xc0] sm:$0xff]
      %v3263 = vld [vmem:[%s3245 + $0xc8] sm:$0xff]
      %v3264 = vld [vmem:[%s3245 + $0xd8] sm:$0xff]
      %v3265 = vld [vmem:[%s3245 + $0xe0] sm:$0xff]
      %v3266 = vld [vmem:[%s3245 + $0xf0] sm:$0xff]
      %v3267 = vld [vmem:[%s3245 + $0xf8] sm:$0xff]
      %v3268 = vld [vmem:[%s3245 + $0x108] sm:$0xff]
      %v3269 = vld [vmem:[%s3245 + $0x110] sm:$0xff]
      %v3270 = vld [vmem:[%s3245 + $0x120] sm:$0xff]
      %v3271 = vld [vmem:[%s3245 + $0x128] sm:$0xff]
      %v3272 = vld [vmem:[%s3245 + $0x138] sm:$0xff]
      %v3273 = vld [vmem:[%s3245 + $0x140] sm:$0xff]
      %v3274 = vld [vmem:[%s3245 + $0x150] sm:$0xff]
      %v3275 = vld [vmem:[%s3245 + $0x158] sm:$0xff]
      %v3276 = vld [vmem:[%s3245 + $0x168] sm:$0xff]
      %v3277 = vld [vmem:[%s3245 + $0x170] sm:$0xff]
      %v3278 = vlaneseq
      %v3279 = vshrl.u32 %v3278, 7
      %v3280 = vsub.s32 4, %v3279
      %v3281 = vrot.slane %v391, %v3280
      %v3282 = vmul.f32 %v3246, %v3281
      %v3283 = vmul.f32 %v3247, %v3281
      %v3284 = vmul.f32 %v3248, %v3281
      %v3285 = vmul.f32 %v3249, %v3281
      %v3286 = vmul.f32 %v3250, %v3281
      %v3287 = vmul.f32 %v3251, %v3281
      %v3288 = vmul.f32 %v3252, %v3281
      %v3289 = vmul.f32 %v3253, %v3281
      %v3290 = vmul.f32 %v3254, %v3281
      %v3291 = vmul.f32 %v3255, %v3281
      %v3292 = vmul.f32 %v3256, %v3281
      %v3293 = vmul.f32 %v3257, %v3281
      %v3294 = vmul.f32 %v3258, %v3281
      %v3295 = vmul.f32 %v3259, %v3281
      %v3296 = vmul.f32 %v3260, %v3281
      %v3297 = vmul.f32 %v3261, %v3281
      %v3298 = vmul.f32 %v3262, %v3281
      %v3299 = vmul.f32 %v3263, %v3281
      %v3300 = vmul.f32 %v3264, %v3281
      %v3301 = vmul.f32 %v3265, %v3281
      %v3302 = vmul.f32 %v3266, %v3281
      %v3303 = vmul.f32 %v3267, %v3281
      %v3304 = vmul.f32 %v3268, %v3281
      %v3305 = vmul.f32 %v3269, %v3281
      %v3306 = vmul.f32 %v3270, %v3281
      %v3307 = vmul.f32 %v3271, %v3281
      %v3308 = vmul.f32 %v3272, %v3281
      %v3309 = vmul.f32 %v3273, %v3281
      %v3310 = vmul.f32 %v3274, %v3281
      %v3311 = vmul.f32 %v3275, %v3281
      %v3312 = vmul.f32 %v3276, %v3281
      %v3313 = vmul.f32 %v3277, %v3281
      %v3314 = vadd.f32 %v3213, %v3282
      %v3315 = vadd.f32 %v3214, %v3283
      %v3316 = vadd.f32 %v3215, %v3284
      %v3317 = vadd.f32 %v3216, %v3285
      %v3318 = vadd.f32 %v3217, %v3286
      %v3319 = vadd.f32 %v3218, %v3287
      %v3320 = vadd.f32 %v3219, %v3288
      %v3321 = vadd.f32 %v3220, %v3289
      %v3322 = vadd.f32 %v3221, %v3290
      %v3323 = vadd.f32 %v3222, %v3291
      %v3324 = vadd.f32 %v3223, %v3292
      %v3325 = vadd.f32 %v3224, %v3293
      %v3326 = vadd.f32 %v3225, %v3294
      %v3327 = vadd.f32 %v3226, %v3295
      %v3328 = vadd.f32 %v3227, %v3296
      %v3329 = vadd.f32 %v3228, %v3297
      %v3330 = vadd.f32 %v3229, %v3298
      %v3331 = vadd.f32 %v3230, %v3299
      %v3332 = vadd.f32 %v3231, %v3300
      %v3333 = vadd.f32 %v3232, %v3301
      %v3334 = vadd.f32 %v3233, %v3302
      %v3335 = vadd.f32 %v3234, %v3303
      %v3336 = vadd.f32 %v3235, %v3304
      %v3337 = vadd.f32 %v3236, %v3305
      %v3338 = vadd.f32 %v3237, %v3306
      %v3339 = vadd.f32 %v3238, %v3307
      %v3340 = vadd.f32 %v3239, %v3308
      %v3341 = vadd.f32 %v3240, %v3309
      %v3342 = vadd.f32 %v3241, %v3310
      %v3343 = vadd.f32 %v3242, %v3311
      %v3344 = vadd.f32 %v3243, %v3312
      %v3345 = vadd.f32 %v3244, %v3313
      %v3346 = vld [vmem:[%s3245 + $0x1] sm:$0xff]
      %v3347 = vld [vmem:[%s3245 + $0x9] sm:$0xff]
      %v3348 = vld [vmem:[%s3245 + $0x19] sm:$0xff]
      %v3349 = vld [vmem:[%s3245 + $0x21] sm:$0xff]
      %v3350 = vld [vmem:[%s3245 + $0x31] sm:$0xff]
      %v3351 = vld [vmem:[%s3245 + $0x39] sm:$0xff]
      %v3352 = vld [vmem:[%s3245 + $0x49] sm:$0xff]
      %v3353 = vld [vmem:[%s3245 + $0x51] sm:$0xff]
      %v3354 = vld [vmem:[%s3245 + $0x61] sm:$0xff]
      %v3355 = vld [vmem:[%s3245 + $0x69] sm:$0xff]
      %v3356 = vld [vmem:[%s3245 + $0x79] sm:$0xff]
      %v3357 = vld [vmem:[%s3245 + $0x81] sm:$0xff]
      %v3358 = vld [vmem:[%s3245 + $0x91] sm:$0xff]
      %v3359 = vld [vmem:[%s3245 + $0x99] sm:$0xff]
      %v3360 = vld [vmem:[%s3245 + $0xa9] sm:$0xff]
      %v3361 = vld [vmem:[%s3245 + $0xb1] sm:$0xff]
      %v3362 = vld [vmem:[%s3245 + $0xc1] sm:$0xff]
      %v3363 = vld [vmem:[%s3245 + $0xc9] sm:$0xff]
      %v3364 = vld [vmem:[%s3245 + $0xd9] sm:$0xff]
      %v3365 = vld [vmem:[%s3245 + $0xe1] sm:$0xff]
      %v3366 = vld [vmem:[%s3245 + $0xf1] sm:$0xff]
      %v3367 = vld [vmem:[%s3245 + $0xf9] sm:$0xff]
      %v3368 = vld [vmem:[%s3245 + $0x109] sm:$0xff]
      %v3369 = vld [vmem:[%s3245 + $0x111] sm:$0xff]
      %v3370 = vld [vmem:[%s3245 + $0x121] sm:$0xff]
      %v3371 = vld [vmem:[%s3245 + $0x129] sm:$0xff]
      %v3372 = vld [vmem:[%s3245 + $0x139] sm:$0xff]
      %v3373 = vld [vmem:[%s3245 + $0x141] sm:$0xff]
      %v3374 = vld [vmem:[%s3245 + $0x151] sm:$0xff]
      %v3375 = vld [vmem:[%s3245 + $0x159] sm:$0xff]
      %v3376 = vld [vmem:[%s3245 + $0x169] sm:$0xff]
      %v3377 = vld [vmem:[%s3245 + $0x171] sm:$0xff]
      %v3378 = vlaneseq
      %v3379 = vshrl.u32 %v3378, 7
      %v3380 = vsub.s32 5, %v3379
      %v3381 = vrot.slane %v391, %v3380
      %v3382 = vmul.f32 %v3346, %v3381
      %v3383 = vmul.f32 %v3347, %v3381
      %v3384 = vmul.f32 %v3348, %v3381
      %v3385 = vmul.f32 %v3349, %v3381
      %v3386 = vmul.f32 %v3350, %v3381
      %v3387 = vmul.f32 %v3351, %v3381
      %v3388 = vmul.f32 %v3352, %v3381
      %v3389 = vmul.f32 %v3353, %v3381
      %v3390 = vmul.f32 %v3354, %v3381
      %v3391 = vmul.f32 %v3355, %v3381
      %v3392 = vmul.f32 %v3356, %v3381
      %v3393 = vmul.f32 %v3357, %v3381
      %v3394 = vmul.f32 %v3358, %v3381
      %v3395 = vmul.f32 %v3359, %v3381
      %v3396 = vmul.f32 %v3360, %v3381
      %v3397 = vmul.f32 %v3361, %v3381
      %v3398 = vmul.f32 %v3362, %v3381
      %v3399 = vmul.f32 %v3363, %v3381
      %v3400 = vmul.f32 %v3364, %v3381
      %v3401 = vmul.f32 %v3365, %v3381
      %v3402 = vmul.f32 %v3366, %v3381
      %v3403 = vmul.f32 %v3367, %v3381
      %v3404 = vmul.f32 %v3368, %v3381
      %v3405 = vmul.f32 %v3369, %v3381
      %v3406 = vmul.f32 %v3370, %v3381
      %v3407 = vmul.f32 %v3371, %v3381
      %v3408 = vmul.f32 %v3372, %v3381
      %v3409 = vmul.f32 %v3373, %v3381
      %v3410 = vmul.f32 %v3374, %v3381
      %v3411 = vmul.f32 %v3375, %v3381
      %v3412 = vmul.f32 %v3376, %v3381
      %v3413 = vmul.f32 %v3377, %v3381
      %v3414 = vadd.f32 %v3314, %v3382
      %v3415 = vadd.f32 %v3315, %v3383
      %v3416 = vadd.f32 %v3316, %v3384
      %v3417 = vadd.f32 %v3317, %v3385
      %v3418 = vadd.f32 %v3318, %v3386
      %v3419 = vadd.f32 %v3319, %v3387
      %v3420 = vadd.f32 %v3320, %v3388
      %v3421 = vadd.f32 %v3321, %v3389
      %v3422 = vadd.f32 %v3322, %v3390
      %v3423 = vadd.f32 %v3323, %v3391
      %v3424 = vadd.f32 %v3324, %v3392
      %v3425 = vadd.f32 %v3325, %v3393
      %v3426 = vadd.f32 %v3326, %v3394
      %v3427 = vadd.f32 %v3327, %v3395
      %v3428 = vadd.f32 %v3328, %v3396
      %v3429 = vadd.f32 %v3329, %v3397
      %v3430 = vadd.f32 %v3330, %v3398
      %v3431 = vadd.f32 %v3331, %v3399
      %v3432 = vadd.f32 %v3332, %v3400
      %v3433 = vadd.f32 %v3333, %v3401
      %v3434 = vadd.f32 %v3334, %v3402
      %v3435 = vadd.f32 %v3335, %v3403
      %v3436 = vadd.f32 %v3336, %v3404
      %v3437 = vadd.f32 %v3337, %v3405
      %v3438 = vadd.f32 %v3338, %v3406
      %v3439 = vadd.f32 %v3339, %v3407
      %v3440 = vadd.f32 %v3340, %v3408
      %v3441 = vadd.f32 %v3341, %v3409
      %v3442 = vadd.f32 %v3342, %v3410
      %v3443 = vadd.f32 %v3343, %v3411
      %v3444 = vadd.f32 %v3344, %v3412
      %v3445 = vadd.f32 %v3345, %v3413
      %v3446 = vld [vmem:[%s3245 + $0x2] sm:$0xff]
      %v3447 = vld [vmem:[%s3245 + $0xa] sm:$0xff]
      %v3448 = vld [vmem:[%s3245 + $0x1a] sm:$0xff]
      %v3449 = vld [vmem:[%s3245 + $0x22] sm:$0xff]
      %v3450 = vld [vmem:[%s3245 + $0x32] sm:$0xff]
      %v3451 = vld [vmem:[%s3245 + $0x3a] sm:$0xff]
      %v3452 = vld [vmem:[%s3245 + $0x4a] sm:$0xff]
      %v3453 = vld [vmem:[%s3245 + $0x52] sm:$0xff]
      %v3454 = vld [vmem:[%s3245 + $0x62] sm:$0xff]
      %v3455 = vld [vmem:[%s3245 + $0x6a] sm:$0xff]
      %v3456 = vld [vmem:[%s3245 + $0x7a] sm:$0xff]
      %v3457 = vld [vmem:[%s3245 + $0x82] sm:$0xff]
      %v3458 = vld [vmem:[%s3245 + $0x92] sm:$0xff]
      %v3459 = vld [vmem:[%s3245 + $0x9a] sm:$0xff]
      %v3460 = vld [vmem:[%s3245 + $0xaa] sm:$0xff]
      %v3461 = vld [vmem:[%s3245 + $0xb2] sm:$0xff]
      %v3462 = vld [vmem:[%s3245 + $0xc2] sm:$0xff]
      %v3463 = vld [vmem:[%s3245 + $0xca] sm:$0xff]
      %v3464 = vld [vmem:[%s3245 + $0xda] sm:$0xff]
      %v3465 = vld [vmem:[%s3245 + $0xe2] sm:$0xff]
      %v3466 = vld [vmem:[%s3245 + $0xf2] sm:$0xff]
      %v3467 = vld [vmem:[%s3245 + $0xfa] sm:$0xff]
      %v3468 = vld [vmem:[%s3245 + $0x10a] sm:$0xff]
      %v3469 = vld [vmem:[%s3245 + $0x112] sm:$0xff]
      %v3470 = vld [vmem:[%s3245 + $0x122] sm:$0xff]
      %v3471 = vld [vmem:[%s3245 + $0x12a] sm:$0xff]
      %v3472 = vld [vmem:[%s3245 + $0x13a] sm:$0xff]
      %v3473 = vld [vmem:[%s3245 + $0x142] sm:$0xff]
      %v3474 = vld [vmem:[%s3245 + $0x152] sm:$0xff]
      %v3475 = vld [vmem:[%s3245 + $0x15a] sm:$0xff]
      %v3476 = vld [vmem:[%s3245 + $0x16a] sm:$0xff]
      %v3477 = vld [vmem:[%s3245 + $0x172] sm:$0xff]
      %v3478 = vlaneseq
      %v3479 = vshrl.u32 %v3478, 7
      %v3480 = vsub.s32 6, %v3479
      %v3481 = vrot.slane %v391, %v3480
      %v3482 = vmul.f32 %v3446, %v3481
      %v3483 = vmul.f32 %v3447, %v3481
      %v3484 = vmul.f32 %v3448, %v3481
      %v3485 = vmul.f32 %v3449, %v3481
      %v3486 = vmul.f32 %v3450, %v3481
      %v3487 = vmul.f32 %v3451, %v3481
      %v3488 = vmul.f32 %v3452, %v3481
      %v3489 = vmul.f32 %v3453, %v3481
      %v3490 = vmul.f32 %v3454, %v3481
      %v3491 = vmul.f32 %v3455, %v3481
      %v3492 = vmul.f32 %v3456, %v3481
      %v3493 = vmul.f32 %v3457, %v3481
      %v3494 = vmul.f32 %v3458, %v3481
      %v3495 = vmul.f32 %v3459, %v3481
      %v3496 = vmul.f32 %v3460, %v3481
      %v3497 = vmul.f32 %v3461, %v3481
      %v3498 = vmul.f32 %v3462, %v3481
      %v3499 = vmul.f32 %v3463, %v3481
      %v3500 = vmul.f32 %v3464, %v3481
      %v3501 = vmul.f32 %v3465, %v3481
      %v3502 = vmul.f32 %v3466, %v3481
      %v3503 = vmul.f32 %v3467, %v3481
      %v3504 = vmul.f32 %v3468, %v3481
      %v3505 = vmul.f32 %v3469, %v3481
      %v3506 = vmul.f32 %v3470, %v3481
      %v3507 = vmul.f32 %v3471, %v3481
      %v3508 = vmul.f32 %v3472, %v3481
      %v3509 = vmul.f32 %v3473, %v3481
      %v3510 = vmul.f32 %v3474, %v3481
      %v3511 = vmul.f32 %v3475, %v3481
      %v3512 = vmul.f32 %v3476, %v3481
      %v3513 = vmul.f32 %v3477, %v3481
      %v3514 = vadd.f32 %v3414, %v3482
      %v3515 = vadd.f32 %v3415, %v3483
      %v3516 = vadd.f32 %v3416, %v3484
      %v3517 = vadd.f32 %v3417, %v3485
      %v3518 = vadd.f32 %v3418, %v3486
      %v3519 = vadd.f32 %v3419, %v3487
      %v3520 = vadd.f32 %v3420, %v3488
      %v3521 = vadd.f32 %v3421, %v3489
      %v3522 = vadd.f32 %v3422, %v3490
      %v3523 = vadd.f32 %v3423, %v3491
      %v3524 = vadd.f32 %v3424, %v3492
      %v3525 = vadd.f32 %v3425, %v3493
      %v3526 = vadd.f32 %v3426, %v3494
      %v3527 = vadd.f32 %v3427, %v3495
      %v3528 = vadd.f32 %v3428, %v3496
      %v3529 = vadd.f32 %v3429, %v3497
      %v3530 = vadd.f32 %v3430, %v3498
      %v3531 = vadd.f32 %v3431, %v3499
      %v3532 = vadd.f32 %v3432, %v3500
      %v3533 = vadd.f32 %v3433, %v3501
      %v3534 = vadd.f32 %v3434, %v3502
      %v3535 = vadd.f32 %v3435, %v3503
      %v3536 = vadd.f32 %v3436, %v3504
      %v3537 = vadd.f32 %v3437, %v3505
      %v3538 = vadd.f32 %v3438, %v3506
      %v3539 = vadd.f32 %v3439, %v3507
      %v3540 = vadd.f32 %v3440, %v3508
      %v3541 = vadd.f32 %v3441, %v3509
      %v3542 = vadd.f32 %v3442, %v3510
      %v3543 = vadd.f32 %v3443, %v3511
      %v3544 = vadd.f32 %v3444, %v3512
      %v3545 = vadd.f32 %v3445, %v3513
      %v3546 = vld [vmem:[%s3245 + $0x3] sm:$0xff]
      %v3547 = vld [vmem:[%s3245 + $0xb] sm:$0xff]
      %v3548 = vld [vmem:[%s3245 + $0x1b] sm:$0xff]
      %v3549 = vld [vmem:[%s3245 + $0x23] sm:$0xff]
      %v3550 = vld [vmem:[%s3245 + $0x33] sm:$0xff]
      %v3551 = vld [vmem:[%s3245 + $0x3b] sm:$0xff]
      %v3552 = vld [vmem:[%s3245 + $0x4b] sm:$0xff]
      %v3553 = vld [vmem:[%s3245 + $0x53] sm:$0xff]
      %v3554 = vld [vmem:[%s3245 + $0x63] sm:$0xff]
      %v3555 = vld [vmem:[%s3245 + $0x6b] sm:$0xff]
      %v3556 = vld [vmem:[%s3245 + $0x7b] sm:$0xff]
      %v3557 = vld [vmem:[%s3245 + $0x83] sm:$0xff]
      %v3558 = vld [vmem:[%s3245 + $0x93] sm:$0xff]
      %v3559 = vld [vmem:[%s3245 + $0x9b] sm:$0xff]
      %v3560 = vld [vmem:[%s3245 + $0xab] sm:$0xff]
      %v3561 = vld [vmem:[%s3245 + $0xb3] sm:$0xff]
      %v3562 = vld [vmem:[%s3245 + $0xc3] sm:$0xff]
      %v3563 = vld [vmem:[%s3245 + $0xcb] sm:$0xff]
      %v3564 = vld [vmem:[%s3245 + $0xdb] sm:$0xff]
      %v3565 = vld [vmem:[%s3245 + $0xe3] sm:$0xff]
      %v3566 = vld [vmem:[%s3245 + $0xf3] sm:$0xff]
      %v3567 = vld [vmem:[%s3245 + $0xfb] sm:$0xff]
      %v3568 = vld [vmem:[%s3245 + $0x10b] sm:$0xff]
      %v3569 = vld [vmem:[%s3245 + $0x113] sm:$0xff]
      %v3570 = vld [vmem:[%s3245 + $0x123] sm:$0xff]
      %v3571 = vld [vmem:[%s3245 + $0x12b] sm:$0xff]
      %v3572 = vld [vmem:[%s3245 + $0x13b] sm:$0xff]
      %v3573 = vld [vmem:[%s3245 + $0x143] sm:$0xff]
      %v3574 = vld [vmem:[%s3245 + $0x153] sm:$0xff]
      %v3575 = vld [vmem:[%s3245 + $0x15b] sm:$0xff]
      %v3576 = vld [vmem:[%s3245 + $0x16b] sm:$0xff]
      %v3577 = vld [vmem:[%s3245 + $0x173] sm:$0xff]
      %v3578 = vlaneseq
      %v3579 = vshrl.u32 %v3578, 7
      %v3580 = vsub.s32 7, %v3579
      %v3581 = vrot.slane %v391, %v3580
      %v3582 = vmul.f32 %v3546, %v3581
      %v3583 = vmul.f32 %v3547, %v3581
      %v3584 = vmul.f32 %v3548, %v3581
      %v3585 = vmul.f32 %v3549, %v3581
      %v3586 = vmul.f32 %v3550, %v3581
      %v3587 = vmul.f32 %v3551, %v3581
      %v3588 = vmul.f32 %v3552, %v3581
      %v3589 = vmul.f32 %v3553, %v3581
      %v3590 = vmul.f32 %v3554, %v3581
      %v3591 = vmul.f32 %v3555, %v3581
      %v3592 = vmul.f32 %v3556, %v3581
      %v3593 = vmul.f32 %v3557, %v3581
      %v3594 = vmul.f32 %v3558, %v3581
      %v3595 = vmul.f32 %v3559, %v3581
      %v3596 = vmul.f32 %v3560, %v3581
      %v3597 = vmul.f32 %v3561, %v3581
      %v3598 = vmul.f32 %v3562, %v3581
      %v3599 = vmul.f32 %v3563, %v3581
      %v3600 = vmul.f32 %v3564, %v3581
      %v3601 = vmul.f32 %v3565, %v3581
      %v3602 = vmul.f32 %v3566, %v3581
      %v3603 = vmul.f32 %v3567, %v3581
      %v3604 = vmul.f32 %v3568, %v3581
      %v3605 = vmul.f32 %v3569, %v3581
      %v3606 = vmul.f32 %v3570, %v3581
      %v3607 = vmul.f32 %v3571, %v3581
      %v3608 = vmul.f32 %v3572, %v3581
      %v3609 = vmul.f32 %v3573, %v3581
      %v3610 = vmul.f32 %v3574, %v3581
      %v3611 = vmul.f32 %v3575, %v3581
      %v3612 = vmul.f32 %v3576, %v3581
      %v3613 = vmul.f32 %v3577, %v3581
      %v3614 = vadd.f32 %v3514, %v3582
      %v3615 = vadd.f32 %v3515, %v3583
      %v3616 = vadd.f32 %v3516, %v3584
      %v3617 = vadd.f32 %v3517, %v3585
      %v3618 = vadd.f32 %v3518, %v3586
      %v3619 = vadd.f32 %v3519, %v3587
      %v3620 = vadd.f32 %v3520, %v3588
      %v3621 = vadd.f32 %v3521, %v3589
      %v3622 = vadd.f32 %v3522, %v3590
      %v3623 = vadd.f32 %v3523, %v3591
      %v3624 = vadd.f32 %v3524, %v3592
      %v3625 = vadd.f32 %v3525, %v3593
      %v3626 = vadd.f32 %v3526, %v3594
      %v3627 = vadd.f32 %v3527, %v3595
      %v3628 = vadd.f32 %v3528, %v3596
      %v3629 = vadd.f32 %v3529, %v3597
      %v3630 = vadd.f32 %v3530, %v3598
      %v3631 = vadd.f32 %v3531, %v3599
      %v3632 = vadd.f32 %v3532, %v3600
      %v3633 = vadd.f32 %v3533, %v3601
      %v3634 = vadd.f32 %v3534, %v3602
      %v3635 = vadd.f32 %v3535, %v3603
      %v3636 = vadd.f32 %v3536, %v3604
      %v3637 = vadd.f32 %v3537, %v3605
      %v3638 = vadd.f32 %v3538, %v3606
      %v3639 = vadd.f32 %v3539, %v3607
      %v3640 = vadd.f32 %v3540, %v3608
      %v3641 = vadd.f32 %v3541, %v3609
      %v3642 = vadd.f32 %v3542, %v3610
      %v3643 = vadd.f32 %v3543, %v3611
      %v3644 = vadd.f32 %v3544, %v3612
      %v3645 = vadd.f32 %v3545, %v3613
      %v3646 = vld [vmem:[%s3245 + $0x4] sm:$0xff]
      %v3647 = vld [vmem:[%s3245 + $0xc] sm:$0xff]
      %v3648 = vld [vmem:[%s3245 + $0x1c] sm:$0xff]
      %v3649 = vld [vmem:[%s3245 + $0x24] sm:$0xff]
      %v3650 = vld [vmem:[%s3245 + $0x34] sm:$0xff]
      %v3651 = vld [vmem:[%s3245 + $0x3c] sm:$0xff]
      %v3652 = vld [vmem:[%s3245 + $0x4c] sm:$0xff]
      %v3653 = vld [vmem:[%s3245 + $0x54] sm:$0xff]
      %v3654 = vld [vmem:[%s3245 + $0x64] sm:$0xff]
      %v3655 = vld [vmem:[%s3245 + $0x6c] sm:$0xff]
      %v3656 = vld [vmem:[%s3245 + $0x7c] sm:$0xff]
      %v3657 = vld [vmem:[%s3245 + $0x84] sm:$0xff]
      %v3658 = vld [vmem:[%s3245 + $0x94] sm:$0xff]
      %v3659 = vld [vmem:[%s3245 + $0x9c] sm:$0xff]
      %v3660 = vld [vmem:[%s3245 + $0xac] sm:$0xff]
      %v3661 = vld [vmem:[%s3245 + $0xb4] sm:$0xff]
      %v3662 = vld [vmem:[%s3245 + $0xc4] sm:$0xff]
      %v3663 = vld [vmem:[%s3245 + $0xcc] sm:$0xff]
      %v3664 = vld [vmem:[%s3245 + $0xdc] sm:$0xff]
      %v3665 = vld [vmem:[%s3245 + $0xe4] sm:$0xff]
      %v3666 = vld [vmem:[%s3245 + $0xf4] sm:$0xff]
      %v3667 = vld [vmem:[%s3245 + $0xfc] sm:$0xff]
      %v3668 = vld [vmem:[%s3245 + $0x10c] sm:$0xff]
      %v3669 = vld [vmem:[%s3245 + $0x114] sm:$0xff]
      %v3670 = vld [vmem:[%s3245 + $0x124] sm:$0xff]
      %v3671 = vld [vmem:[%s3245 + $0x12c] sm:$0xff]
      %v3672 = vld [vmem:[%s3245 + $0x13c] sm:$0xff]
      %v3673 = vld [vmem:[%s3245 + $0x144] sm:$0xff]
      %v3674 = vld [vmem:[%s3245 + $0x154] sm:$0xff]
      %v3675 = vld [vmem:[%s3245 + $0x15c] sm:$0xff]
      %v3676 = vld [vmem:[%s3245 + $0x16c] sm:$0xff]
      %v3677 = vld [vmem:[%s3245 + $0x174] sm:$0xff]
      %v3678 = vlaneseq
      %v3679 = vshrl.u32 %v3678, 7
      %v3680 = vsub.s32 0, %v3679
      %v3681 = vrot.slane %v392, %v3680
      %v3682 = vmul.f32 %v3646, %v3681
      %v3683 = vmul.f32 %v3647, %v3681
      %v3684 = vmul.f32 %v3648, %v3681
      %v3685 = vmul.f32 %v3649, %v3681
      %v3686 = vmul.f32 %v3650, %v3681
      %v3687 = vmul.f32 %v3651, %v3681
      %v3688 = vmul.f32 %v3652, %v3681
      %v3689 = vmul.f32 %v3653, %v3681
      %v3690 = vmul.f32 %v3654, %v3681
      %v3691 = vmul.f32 %v3655, %v3681
      %v3692 = vmul.f32 %v3656, %v3681
      %v3693 = vmul.f32 %v3657, %v3681
      %v3694 = vmul.f32 %v3658, %v3681
      %v3695 = vmul.f32 %v3659, %v3681
      %v3696 = vmul.f32 %v3660, %v3681
      %v3697 = vmul.f32 %v3661, %v3681
      %v3698 = vmul.f32 %v3662, %v3681
      %v3699 = vmul.f32 %v3663, %v3681
      %v3700 = vmul.f32 %v3664, %v3681
      %v3701 = vmul.f32 %v3665, %v3681
      %v3702 = vmul.f32 %v3666, %v3681
      %v3703 = vmul.f32 %v3667, %v3681
      %v3704 = vmul.f32 %v3668, %v3681
      %v3705 = vmul.f32 %v3669, %v3681
      %v3706 = vmul.f32 %v3670, %v3681
      %v3707 = vmul.f32 %v3671, %v3681
      %v3708 = vmul.f32 %v3672, %v3681
      %v3709 = vmul.f32 %v3673, %v3681
      %v3710 = vmul.f32 %v3674, %v3681
      %v3711 = vmul.f32 %v3675, %v3681
      %v3712 = vmul.f32 %v3676, %v3681
      %v3713 = vmul.f32 %v3677, %v3681
      %v3714 = vadd.f32 %v3614, %v3682
      %v3715 = vadd.f32 %v3615, %v3683
      %v3716 = vadd.f32 %v3616, %v3684
      %v3717 = vadd.f32 %v3617, %v3685
      %v3718 = vadd.f32 %v3618, %v3686
      %v3719 = vadd.f32 %v3619, %v3687
      %v3720 = vadd.f32 %v3620, %v3688
      %v3721 = vadd.f32 %v3621, %v3689
      %v3722 = vadd.f32 %v3622, %v3690
      %v3723 = vadd.f32 %v3623, %v3691
      %v3724 = vadd.f32 %v3624, %v3692
      %v3725 = vadd.f32 %v3625, %v3693
      %v3726 = vadd.f32 %v3626, %v3694
      %v3727 = vadd.f32 %v3627, %v3695
      %v3728 = vadd.f32 %v3628, %v3696
      %v3729 = vadd.f32 %v3629, %v3697
      %v3730 = vadd.f32 %v3630, %v3698
      %v3731 = vadd.f32 %v3631, %v3699
      %v3732 = vadd.f32 %v3632, %v3700
      %v3733 = vadd.f32 %v3633, %v3701
      %v3734 = vadd.f32 %v3634, %v3702
      %v3735 = vadd.f32 %v3635, %v3703
      %v3736 = vadd.f32 %v3636, %v3704
      %v3737 = vadd.f32 %v3637, %v3705
      %v3738 = vadd.f32 %v3638, %v3706
      %v3739 = vadd.f32 %v3639, %v3707
      %v3740 = vadd.f32 %v3640, %v3708
      %v3741 = vadd.f32 %v3641, %v3709
      %v3742 = vadd.f32 %v3642, %v3710
      %v3743 = vadd.f32 %v3643, %v3711
      %v3744 = vadd.f32 %v3644, %v3712
      %v3745 = vadd.f32 %v3645, %v3713
      %v3746 = vld [vmem:[%s3245 + $0x5] sm:$0xff]
      %v3747 = vld [vmem:[%s3245 + $0xd] sm:$0xff]
      %v3748 = vld [vmem:[%s3245 + $0x1d] sm:$0xff]
      %v3749 = vld [vmem:[%s3245 + $0x25] sm:$0xff]
      %v3750 = vld [vmem:[%s3245 + $0x35] sm:$0xff]
      %v3751 = vld [vmem:[%s3245 + $0x3d] sm:$0xff]
      %v3752 = vld [vmem:[%s3245 + $0x4d] sm:$0xff]
      %v3753 = vld [vmem:[%s3245 + $0x55] sm:$0xff]
      %v3754 = vld [vmem:[%s3245 + $0x65] sm:$0xff]
      %v3755 = vld [vmem:[%s3245 + $0x6d] sm:$0xff]
      %v3756 = vld [vmem:[%s3245 + $0x7d] sm:$0xff]
      %v3757 = vld [vmem:[%s3245 + $0x85] sm:$0xff]
      %v3758 = vld [vmem:[%s3245 + $0x95] sm:$0xff]
      %v3759 = vld [vmem:[%s3245 + $0x9d] sm:$0xff]
      %v3760 = vld [vmem:[%s3245 + $0xad] sm:$0xff]
      %v3761 = vld [vmem:[%s3245 + $0xb5] sm:$0xff]
      %v3762 = vld [vmem:[%s3245 + $0xc5] sm:$0xff]
      %v3763 = vld [vmem:[%s3245 + $0xcd] sm:$0xff]
      %v3764 = vld [vmem:[%s3245 + $0xdd] sm:$0xff]
      %v3765 = vld [vmem:[%s3245 + $0xe5] sm:$0xff]
      %v3766 = vld [vmem:[%s3245 + $0xf5] sm:$0xff]
      %v3767 = vld [vmem:[%s3245 + $0xfd] sm:$0xff]
      %v3768 = vld [vmem:[%s3245 + $0x10d] sm:$0xff]
      %v3769 = vld [vmem:[%s3245 + $0x115] sm:$0xff]
      %v3770 = vld [vmem:[%s3245 + $0x125] sm:$0xff]
      %v3771 = vld [vmem:[%s3245 + $0x12d] sm:$0xff]
      %v3772 = vld [vmem:[%s3245 + $0x13d] sm:$0xff]
      %v3773 = vld [vmem:[%s3245 + $0x145] sm:$0xff]
      %v3774 = vld [vmem:[%s3245 + $0x155] sm:$0xff]
      %v3775 = vld [vmem:[%s3245 + $0x15d] sm:$0xff]
      %v3776 = vld [vmem:[%s3245 + $0x16d] sm:$0xff]
      %v3777 = vld [vmem:[%s3245 + $0x175] sm:$0xff]
      %v3778 = vlaneseq
      %v3779 = vshrl.u32 %v3778, 7
      %v3780 = vsub.s32 1, %v3779
      %v3781 = vrot.slane %v392, %v3780
      %v3782 = vmul.f32 %v3746, %v3781
      %v3783 = vmul.f32 %v3747, %v3781
      %v3784 = vmul.f32 %v3748, %v3781
      %v3785 = vmul.f32 %v3749, %v3781
      %v3786 = vmul.f32 %v3750, %v3781
      %v3787 = vmul.f32 %v3751, %v3781
      %v3788 = vmul.f32 %v3752, %v3781
      %v3789 = vmul.f32 %v3753, %v3781
      %v3790 = vmul.f32 %v3754, %v3781
      %v3791 = vmul.f32 %v3755, %v3781
      %v3792 = vmul.f32 %v3756, %v3781
      %v3793 = vmul.f32 %v3757, %v3781
      %v3794 = vmul.f32 %v3758, %v3781
      %v3795 = vmul.f32 %v3759, %v3781
      %v3796 = vmul.f32 %v3760, %v3781
      %v3797 = vmul.f32 %v3761, %v3781
      %v3798 = vmul.f32 %v3762, %v3781
      %v3799 = vmul.f32 %v3763, %v3781
      %v3800 = vmul.f32 %v3764, %v3781
      %v3801 = vmul.f32 %v3765, %v3781
      %v3802 = vmul.f32 %v3766, %v3781
      %v3803 = vmul.f32 %v3767, %v3781
      %v3804 = vmul.f32 %v3768, %v3781
      %v3805 = vmul.f32 %v3769, %v3781
      %v3806 = vmul.f32 %v3770, %v3781
      %v3807 = vmul.f32 %v3771, %v3781
      %v3808 = vmul.f32 %v3772, %v3781
      %v3809 = vmul.f32 %v3773, %v3781
      %v3810 = vmul.f32 %v3774, %v3781
      %v3811 = vmul.f32 %v3775, %v3781
      %v3812 = vmul.f32 %v3776, %v3781
      %v3813 = vmul.f32 %v3777, %v3781
      %v3814 = vadd.f32 %v3714, %v3782
      %v3815 = vadd.f32 %v3715, %v3783
      %v3816 = vadd.f32 %v3716, %v3784
      %v3817 = vadd.f32 %v3717, %v3785
      %v3818 = vadd.f32 %v3718, %v3786
      %v3819 = vadd.f32 %v3719, %v3787
      %v3820 = vadd.f32 %v3720, %v3788
      %v3821 = vadd.f32 %v3721, %v3789
      %v3822 = vadd.f32 %v3722, %v3790
      %v3823 = vadd.f32 %v3723, %v3791
      %v3824 = vadd.f32 %v3724, %v3792
      %v3825 = vadd.f32 %v3725, %v3793
      %v3826 = vadd.f32 %v3726, %v3794
      %v3827 = vadd.f32 %v3727, %v3795
      %v3828 = vadd.f32 %v3728, %v3796
      %v3829 = vadd.f32 %v3729, %v3797
      %v3830 = vadd.f32 %v3730, %v3798
      %v3831 = vadd.f32 %v3731, %v3799
      %v3832 = vadd.f32 %v3732, %v3800
      %v3833 = vadd.f32 %v3733, %v3801
      %v3834 = vadd.f32 %v3734, %v3802
      %v3835 = vadd.f32 %v3735, %v3803
      %v3836 = vadd.f32 %v3736, %v3804
      %v3837 = vadd.f32 %v3737, %v3805
      %v3838 = vadd.f32 %v3738, %v3806
      %v3839 = vadd.f32 %v3739, %v3807
      %v3840 = vadd.f32 %v3740, %v3808
      %v3841 = vadd.f32 %v3741, %v3809
      %v3842 = vadd.f32 %v3742, %v3810
      %v3843 = vadd.f32 %v3743, %v3811
      %v3844 = vadd.f32 %v3744, %v3812
      %v3845 = vadd.f32 %v3745, %v3813
      %v3846 = vld [vmem:[%s3245 + $0x6] sm:$0xff]
      %v3847 = vld [vmem:[%s3245 + $0xe] sm:$0xff]
      %v3848 = vld [vmem:[%s3245 + $0x1e] sm:$0xff]
      %v3849 = vld [vmem:[%s3245 + $0x26] sm:$0xff]
      %v3850 = vld [vmem:[%s3245 + $0x36] sm:$0xff]
      %v3851 = vld [vmem:[%s3245 + $0x3e] sm:$0xff]
      %v3852 = vld [vmem:[%s3245 + $0x4e] sm:$0xff]
      %v3853 = vld [vmem:[%s3245 + $0x56] sm:$0xff]
      %v3854 = vld [vmem:[%s3245 + $0x66] sm:$0xff]
      %v3855 = vld [vmem:[%s3245 + $0x6e] sm:$0xff]
      %v3856 = vld [vmem:[%s3245 + $0x7e] sm:$0xff]
      %v3857 = vld [vmem:[%s3245 + $0x86] sm:$0xff]
      %v3858 = vld [vmem:[%s3245 + $0x96] sm:$0xff]
      %v3859 = vld [vmem:[%s3245 + $0x9e] sm:$0xff]
      %v3860 = vld [vmem:[%s3245 + $0xae] sm:$0xff]
      %v3861 = vld [vmem:[%s3245 + $0xb6] sm:$0xff]
      %v3862 = vld [vmem:[%s3245 + $0xc6] sm:$0xff]
      %v3863 = vld [vmem:[%s3245 + $0xce] sm:$0xff]
      %v3864 = vld [vmem:[%s3245 + $0xde] sm:$0xff]
      %v3865 = vld [vmem:[%s3245 + $0xe6] sm:$0xff]
      %v3866 = vld [vmem:[%s3245 + $0xf6] sm:$0xff]
      %v3867 = vld [vmem:[%s3245 + $0xfe] sm:$0xff]
      %v3868 = vld [vmem:[%s3245 + $0x10e] sm:$0xff]
      %v3869 = vld [vmem:[%s3245 + $0x116] sm:$0xff]
      %v3870 = vld [vmem:[%s3245 + $0x126] sm:$0xff]
      %v3871 = vld [vmem:[%s3245 + $0x12e] sm:$0xff]
      %v3872 = vld [vmem:[%s3245 + $0x13e] sm:$0xff]
      %v3873 = vld [vmem:[%s3245 + $0x146] sm:$0xff]
      %v3874 = vld [vmem:[%s3245 + $0x156] sm:$0xff]
      %v3875 = vld [vmem:[%s3245 + $0x15e] sm:$0xff]
      %v3876 = vld [vmem:[%s3245 + $0x16e] sm:$0xff]
      %v3877 = vld [vmem:[%s3245 + $0x176] sm:$0xff]
      %v3878 = vlaneseq
      %v3879 = vshrl.u32 %v3878, 7
      %v3880 = vsub.s32 2, %v3879
      %v3881 = vrot.slane %v392, %v3880
      %v3882 = vmul.f32 %v3846, %v3881
      %v3883 = vmul.f32 %v3847, %v3881
      %v3884 = vmul.f32 %v3848, %v3881
      %v3885 = vmul.f32 %v3849, %v3881
      %v3886 = vmul.f32 %v3850, %v3881
      %v3887 = vmul.f32 %v3851, %v3881
      %v3888 = vmul.f32 %v3852, %v3881
      %v3889 = vmul.f32 %v3853, %v3881
      %v3890 = vmul.f32 %v3854, %v3881
      %v3891 = vmul.f32 %v3855, %v3881
      %v3892 = vmul.f32 %v3856, %v3881
      %v3893 = vmul.f32 %v3857, %v3881
      %v3894 = vmul.f32 %v3858, %v3881
      %v3895 = vmul.f32 %v3859, %v3881
      %v3896 = vmul.f32 %v3860, %v3881
      %v3897 = vmul.f32 %v3861, %v3881
      %v3898 = vmul.f32 %v3862, %v3881
      %v3899 = vmul.f32 %v3863, %v3881
      %v3900 = vmul.f32 %v3864, %v3881
      %v3901 = vmul.f32 %v3865, %v3881
      %v3902 = vmul.f32 %v3866, %v3881
      %v3903 = vmul.f32 %v3867, %v3881
      %v3904 = vmul.f32 %v3868, %v3881
      %v3905 = vmul.f32 %v3869, %v3881
      %v3906 = vmul.f32 %v3870, %v3881
      %v3907 = vmul.f32 %v3871, %v3881
      %v3908 = vmul.f32 %v3872, %v3881
      %v3909 = vmul.f32 %v3873, %v3881
      %v3910 = vmul.f32 %v3874, %v3881
      %v3911 = vmul.f32 %v3875, %v3881
      %v3912 = vmul.f32 %v3876, %v3881
      %v3913 = vmul.f32 %v3877, %v3881
      %v3914 = vadd.f32 %v3814, %v3882
      %v3915 = vadd.f32 %v3815, %v3883
      %v3916 = vadd.f32 %v3816, %v3884
      %v3917 = vadd.f32 %v3817, %v3885
      %v3918 = vadd.f32 %v3818, %v3886
      %v3919 = vadd.f32 %v3819, %v3887
      %v3920 = vadd.f32 %v3820, %v3888
      %v3921 = vadd.f32 %v3821, %v3889
      %v3922 = vadd.f32 %v3822, %v3890
      %v3923 = vadd.f32 %v3823, %v3891
      %v3924 = vadd.f32 %v3824, %v3892
      %v3925 = vadd.f32 %v3825, %v3893
      %v3926 = vadd.f32 %v3826, %v3894
      %v3927 = vadd.f32 %v3827, %v3895
      %v3928 = vadd.f32 %v3828, %v3896
      %v3929 = vadd.f32 %v3829, %v3897
      %v3930 = vadd.f32 %v3830, %v3898
      %v3931 = vadd.f32 %v3831, %v3899
      %v3932 = vadd.f32 %v3832, %v3900
      %v3933 = vadd.f32 %v3833, %v3901
      %v3934 = vadd.f32 %v3834, %v3902
      %v3935 = vadd.f32 %v3835, %v3903
      %v3936 = vadd.f32 %v3836, %v3904
      %v3937 = vadd.f32 %v3837, %v3905
      %v3938 = vadd.f32 %v3838, %v3906
      %v3939 = vadd.f32 %v3839, %v3907
      %v3940 = vadd.f32 %v3840, %v3908
      %v3941 = vadd.f32 %v3841, %v3909
      %v3942 = vadd.f32 %v3842, %v3910
      %v3943 = vadd.f32 %v3843, %v3911
      %v3944 = vadd.f32 %v3844, %v3912
      %v3945 = vadd.f32 %v3845, %v3913
      %s3946 = scalar_lea.vmem %s381, 120
      %v3947 = vld [vmem:[%s3946] sm:$0xff]
      %v3948 = vld [vmem:[%s3946 + $0x8] sm:$0xff]
      %v3949 = vld [vmem:[%s3946 + $0x18] sm:$0xff]
      %v3950 = vld [vmem:[%s3946 + $0x20] sm:$0xff]
      %v3951 = vld [vmem:[%s3946 + $0x30] sm:$0xff]
      %v3952 = vld [vmem:[%s3946 + $0x38] sm:$0xff]
      %v3953 = vld [vmem:[%s3946 + $0x48] sm:$0xff]
      %v3954 = vld [vmem:[%s3946 + $0x50] sm:$0xff]
      %v3955 = vld [vmem:[%s3946 + $0x60] sm:$0xff]
      %v3956 = vld [vmem:[%s3946 + $0x68] sm:$0xff]
      %v3957 = vld [vmem:[%s3946 + $0x78] sm:$0xff]
      %v3958 = vld [vmem:[%s3946 + $0x80] sm:$0xff]
      %v3959 = vld [vmem:[%s3946 + $0x90] sm:$0xff]
      %v3960 = vld [vmem:[%s3946 + $0x98] sm:$0xff]
      %v3961 = vld [vmem:[%s3946 + $0xa8] sm:$0xff]
      %v3962 = vld [vmem:[%s3946 + $0xb0] sm:$0xff]
      %v3963 = vld [vmem:[%s3946 + $0xc0] sm:$0xff]
      %v3964 = vld [vmem:[%s3946 + $0xc8] sm:$0xff]
      %v3965 = vld [vmem:[%s3946 + $0xd8] sm:$0xff]
      %v3966 = vld [vmem:[%s3946 + $0xe0] sm:$0xff]
      %v3967 = vld [vmem:[%s3946 + $0xf0] sm:$0xff]
      %v3968 = vld [vmem:[%s3946 + $0xf8] sm:$0xff]
      %v3969 = vld [vmem:[%s3946 + $0x108] sm:$0xff]
      %v3970 = vld [vmem:[%s3946 + $0x110] sm:$0xff]
      %v3971 = vld [vmem:[%s3946 + $0x120] sm:$0xff]
      %v3972 = vld [vmem:[%s3946 + $0x128] sm:$0xff]
      %v3973 = vld [vmem:[%s3946 + $0x138] sm:$0xff]
      %v3974 = vld [vmem:[%s3946 + $0x140] sm:$0xff]
      %v3975 = vld [vmem:[%s3946 + $0x150] sm:$0xff]
      %v3976 = vld [vmem:[%s3946 + $0x158] sm:$0xff]
      %v3977 = vld [vmem:[%s3946 + $0x168] sm:$0xff]
      %v3978 = vld [vmem:[%s3946 + $0x170] sm:$0xff]
      %v3979 = vlaneseq
      %v3980 = vshrl.u32 %v3979, 7
      %v3981 = vsub.s32 3, %v3980
      %v3982 = vrot.slane %v392, %v3981
      %v3983 = vmul.f32 %v3947, %v3982
      %v3984 = vmul.f32 %v3948, %v3982
      %v3985 = vmul.f32 %v3949, %v3982
      %v3986 = vmul.f32 %v3950, %v3982
      %v3987 = vmul.f32 %v3951, %v3982
      %v3988 = vmul.f32 %v3952, %v3982
      %v3989 = vmul.f32 %v3953, %v3982
      %v3990 = vmul.f32 %v3954, %v3982
      %v3991 = vmul.f32 %v3955, %v3982
      %v3992 = vmul.f32 %v3956, %v3982
      %v3993 = vmul.f32 %v3957, %v3982
      %v3994 = vmul.f32 %v3958, %v3982
      %v3995 = vmul.f32 %v3959, %v3982
      %v3996 = vmul.f32 %v3960, %v3982
      %v3997 = vmul.f32 %v3961, %v3982
      %v3998 = vmul.f32 %v3962, %v3982
      %v3999 = vmul.f32 %v3963, %v3982
      %v4000 = vmul.f32 %v3964, %v3982
      %v4001 = vmul.f32 %v3965, %v3982
      %v4002 = vmul.f32 %v3966, %v3982
      %v4003 = vmul.f32 %v3967, %v3982
      %v4004 = vmul.f32 %v3968, %v3982
      %v4005 = vmul.f32 %v3969, %v3982
      %v4006 = vmul.f32 %v3970, %v3982
      %v4007 = vmul.f32 %v3971, %v3982
      %v4008 = vmul.f32 %v3972, %v3982
      %v4009 = vmul.f32 %v3973, %v3982
      %v4010 = vmul.f32 %v3974, %v3982
      %v4011 = vmul.f32 %v3975, %v3982
      %v4012 = vmul.f32 %v3976, %v3982
      %v4013 = vmul.f32 %v3977, %v3982
      %v4014 = vmul.f32 %v3978, %v3982
      %v4015 = vadd.f32 %v3914, %v3983
      %v4016 = vadd.f32 %v3915, %v3984
      %v4017 = vadd.f32 %v3916, %v3985
      %v4018 = vadd.f32 %v3917, %v3986
      %v4019 = vadd.f32 %v3918, %v3987
      %v4020 = vadd.f32 %v3919, %v3988
      %v4021 = vadd.f32 %v3920, %v3989
      %v4022 = vadd.f32 %v3921, %v3990
      %v4023 = vadd.f32 %v3922, %v3991
      %v4024 = vadd.f32 %v3923, %v3992
      %v4025 = vadd.f32 %v3924, %v3993
      %v4026 = vadd.f32 %v3925, %v3994
      %v4027 = vadd.f32 %v3926, %v3995
      %v4028 = vadd.f32 %v3927, %v3996
      %v4029 = vadd.f32 %v3928, %v3997
      %v4030 = vadd.f32 %v3929, %v3998
      %v4031 = vadd.f32 %v3930, %v3999
      %v4032 = vadd.f32 %v3931, %v4000
      %v4033 = vadd.f32 %v3932, %v4001
      %v4034 = vadd.f32 %v3933, %v4002
      %v4035 = vadd.f32 %v3934, %v4003
      %v4036 = vadd.f32 %v3935, %v4004
      %v4037 = vadd.f32 %v3936, %v4005
      %v4038 = vadd.f32 %v3937, %v4006
      %v4039 = vadd.f32 %v3938, %v4007
      %v4040 = vadd.f32 %v3939, %v4008
      %v4041 = vadd.f32 %v3940, %v4009
      %v4042 = vadd.f32 %v3941, %v4010
      %v4043 = vadd.f32 %v3942, %v4011
      %v4044 = vadd.f32 %v3943, %v4012
      %v4045 = vadd.f32 %v3944, %v4013
      %v4046 = vadd.f32 %v3945, %v4014
      %v4047 = vld [vmem:[%s3946 + $0x1] sm:$0xff]
      %v4048 = vld [vmem:[%s3946 + $0x9] sm:$0xff]
      %v4049 = vld [vmem:[%s3946 + $0x19] sm:$0xff]
      %v4050 = vld [vmem:[%s3946 + $0x21] sm:$0xff]
      %v4051 = vld [vmem:[%s3946 + $0x31] sm:$0xff]
      %v4052 = vld [vmem:[%s3946 + $0x39] sm:$0xff]
      %v4053 = vld [vmem:[%s3946 + $0x49] sm:$0xff]
      %v4054 = vld [vmem:[%s3946 + $0x51] sm:$0xff]
      %v4055 = vld [vmem:[%s3946 + $0x61] sm:$0xff]
      %v4056 = vld [vmem:[%s3946 + $0x69] sm:$0xff]
      %v4057 = vld [vmem:[%s3946 + $0x79] sm:$0xff]
      %v4058 = vld [vmem:[%s3946 + $0x81] sm:$0xff]
      %v4059 = vld [vmem:[%s3946 + $0x91] sm:$0xff]
      %v4060 = vld [vmem:[%s3946 + $0x99] sm:$0xff]
      %v4061 = vld [vmem:[%s3946 + $0xa9] sm:$0xff]
      %v4062 = vld [vmem:[%s3946 + $0xb1] sm:$0xff]
      %v4063 = vld [vmem:[%s3946 + $0xc1] sm:$0xff]
      %v4064 = vld [vmem:[%s3946 + $0xc9] sm:$0xff]
      %v4065 = vld [vmem:[%s3946 + $0xd9] sm:$0xff]
      %v4066 = vld [vmem:[%s3946 + $0xe1] sm:$0xff]
      %v4067 = vld [vmem:[%s3946 + $0xf1] sm:$0xff]
      %v4068 = vld [vmem:[%s3946 + $0xf9] sm:$0xff]
      %v4069 = vld [vmem:[%s3946 + $0x109] sm:$0xff]
      %v4070 = vld [vmem:[%s3946 + $0x111] sm:$0xff]
      %v4071 = vld [vmem:[%s3946 + $0x121] sm:$0xff]
      %v4072 = vld [vmem:[%s3946 + $0x129] sm:$0xff]
      %v4073 = vld [vmem:[%s3946 + $0x139] sm:$0xff]
      %v4074 = vld [vmem:[%s3946 + $0x141] sm:$0xff]
      %v4075 = vld [vmem:[%s3946 + $0x151] sm:$0xff]
      %v4076 = vld [vmem:[%s3946 + $0x159] sm:$0xff]
      %v4077 = vld [vmem:[%s3946 + $0x169] sm:$0xff]
      %v4078 = vld [vmem:[%s3946 + $0x171] sm:$0xff]
      %v4079 = vlaneseq
      %v4080 = vshrl.u32 %v4079, 7
      %v4081 = vsub.s32 4, %v4080
      %v4082 = vrot.slane %v392, %v4081
      %v4083 = vmul.f32 %v4047, %v4082
      %v4084 = vmul.f32 %v4048, %v4082
      %v4085 = vmul.f32 %v4049, %v4082
      %v4086 = vmul.f32 %v4050, %v4082
      %v4087 = vmul.f32 %v4051, %v4082
      %v4088 = vmul.f32 %v4052, %v4082
      %v4089 = vmul.f32 %v4053, %v4082
      %v4090 = vmul.f32 %v4054, %v4082
      %v4091 = vmul.f32 %v4055, %v4082
      %v4092 = vmul.f32 %v4056, %v4082
      %v4093 = vmul.f32 %v4057, %v4082
      %v4094 = vmul.f32 %v4058, %v4082
      %v4095 = vmul.f32 %v4059, %v4082
      %v4096 = vmul.f32 %v4060, %v4082
      %v4097 = vmul.f32 %v4061, %v4082
      %v4098 = vmul.f32 %v4062, %v4082
      %v4099 = vmul.f32 %v4063, %v4082
      %v4100 = vmul.f32 %v4064, %v4082
      %v4101 = vmul.f32 %v4065, %v4082
      %v4102 = vmul.f32 %v4066, %v4082
      %v4103 = vmul.f32 %v4067, %v4082
      %v4104 = vmul.f32 %v4068, %v4082
      %v4105 = vmul.f32 %v4069, %v4082
      %v4106 = vmul.f32 %v4070, %v4082
      %v4107 = vmul.f32 %v4071, %v4082
      %v4108 = vmul.f32 %v4072, %v4082
      %v4109 = vmul.f32 %v4073, %v4082
      %v4110 = vmul.f32 %v4074, %v4082
      %v4111 = vmul.f32 %v4075, %v4082
      %v4112 = vmul.f32 %v4076, %v4082
      %v4113 = vmul.f32 %v4077, %v4082
      %v4114 = vmul.f32 %v4078, %v4082
      %v4115 = vadd.f32 %v4015, %v4083
      %v4116 = vadd.f32 %v4016, %v4084
      %v4117 = vadd.f32 %v4017, %v4085
      %v4118 = vadd.f32 %v4018, %v4086
      %v4119 = vadd.f32 %v4019, %v4087
      %v4120 = vadd.f32 %v4020, %v4088
      %v4121 = vadd.f32 %v4021, %v4089
      %v4122 = vadd.f32 %v4022, %v4090
      %v4123 = vadd.f32 %v4023, %v4091
      %v4124 = vadd.f32 %v4024, %v4092
      %v4125 = vadd.f32 %v4025, %v4093
      %v4126 = vadd.f32 %v4026, %v4094
      %v4127 = vadd.f32 %v4027, %v4095
      %v4128 = vadd.f32 %v4028, %v4096
      %v4129 = vadd.f32 %v4029, %v4097
      %v4130 = vadd.f32 %v4030, %v4098
      %v4131 = vadd.f32 %v4031, %v4099
      %v4132 = vadd.f32 %v4032, %v4100
      %v4133 = vadd.f32 %v4033, %v4101
      %v4134 = vadd.f32 %v4034, %v4102
      %v4135 = vadd.f32 %v4035, %v4103
      %v4136 = vadd.f32 %v4036, %v4104
      %v4137 = vadd.f32 %v4037, %v4105
      %v4138 = vadd.f32 %v4038, %v4106
      %v4139 = vadd.f32 %v4039, %v4107
      %v4140 = vadd.f32 %v4040, %v4108
      %v4141 = vadd.f32 %v4041, %v4109
      %v4142 = vadd.f32 %v4042, %v4110
      %v4143 = vadd.f32 %v4043, %v4111
      %v4144 = vadd.f32 %v4044, %v4112
      %v4145 = vadd.f32 %v4045, %v4113
      %v4146 = vadd.f32 %v4046, %v4114
      %v4147 = vld [vmem:[%s3946 + $0x2] sm:$0xff]
      %v4148 = vld [vmem:[%s3946 + $0xa] sm:$0xff]
      %v4149 = vld [vmem:[%s3946 + $0x1a] sm:$0xff]
      %v4150 = vld [vmem:[%s3946 + $0x22] sm:$0xff]
      %v4151 = vld [vmem:[%s3946 + $0x32] sm:$0xff]
      %v4152 = vld [vmem:[%s3946 + $0x3a] sm:$0xff]
      %v4153 = vld [vmem:[%s3946 + $0x4a] sm:$0xff]
      %v4154 = vld [vmem:[%s3946 + $0x52] sm:$0xff]
      %v4155 = vld [vmem:[%s3946 + $0x62] sm:$0xff]
      %v4156 = vld [vmem:[%s3946 + $0x6a] sm:$0xff]
      %v4157 = vld [vmem:[%s3946 + $0x7a] sm:$0xff]
      %v4158 = vld [vmem:[%s3946 + $0x82] sm:$0xff]
      %v4159 = vld [vmem:[%s3946 + $0x92] sm:$0xff]
      %v4160 = vld [vmem:[%s3946 + $0x9a] sm:$0xff]
      %v4161 = vld [vmem:[%s3946 + $0xaa] sm:$0xff]
      %v4162 = vld [vmem:[%s3946 + $0xb2] sm:$0xff]
      %v4163 = vld [vmem:[%s3946 + $0xc2] sm:$0xff]
      %v4164 = vld [vmem:[%s3946 + $0xca] sm:$0xff]
      %v4165 = vld [vmem:[%s3946 + $0xda] sm:$0xff]
      %v4166 = vld [vmem:[%s3946 + $0xe2] sm:$0xff]
      %v4167 = vld [vmem:[%s3946 + $0xf2] sm:$0xff]
      %v4168 = vld [vmem:[%s3946 + $0xfa] sm:$0xff]
      %v4169 = vld [vmem:[%s3946 + $0x10a] sm:$0xff]
      %v4170 = vld [vmem:[%s3946 + $0x112] sm:$0xff]
      %v4171 = vld [vmem:[%s3946 + $0x122] sm:$0xff]
      %v4172 = vld [vmem:[%s3946 + $0x12a] sm:$0xff]
      %v4173 = vld [vmem:[%s3946 + $0x13a] sm:$0xff]
      %v4174 = vld [vmem:[%s3946 + $0x142] sm:$0xff]
      %v4175 = vld [vmem:[%s3946 + $0x152] sm:$0xff]
      %v4176 = vld [vmem:[%s3946 + $0x15a] sm:$0xff]
      %v4177 = vld [vmem:[%s3946 + $0x16a] sm:$0xff]
      %v4178 = vld [vmem:[%s3946 + $0x172] sm:$0xff]
      %v4179 = vlaneseq
      %v4180 = vshrl.u32 %v4179, 7
      %v4181 = vsub.s32 5, %v4180
      %v4182 = vrot.slane %v392, %v4181
      %v4183 = vmul.f32 %v4147, %v4182
      %v4184 = vmul.f32 %v4148, %v4182
      %v4185 = vmul.f32 %v4149, %v4182
      %v4186 = vmul.f32 %v4150, %v4182
      %v4187 = vmul.f32 %v4151, %v4182
      %v4188 = vmul.f32 %v4152, %v4182
      %v4189 = vmul.f32 %v4153, %v4182
      %v4190 = vmul.f32 %v4154, %v4182
      %v4191 = vmul.f32 %v4155, %v4182
      %v4192 = vmul.f32 %v4156, %v4182
      %v4193 = vmul.f32 %v4157, %v4182
      %v4194 = vmul.f32 %v4158, %v4182
      %v4195 = vmul.f32 %v4159, %v4182
      %v4196 = vmul.f32 %v4160, %v4182
      %v4197 = vmul.f32 %v4161, %v4182
      %v4198 = vmul.f32 %v4162, %v4182
      %v4199 = vmul.f32 %v4163, %v4182
      %v4200 = vmul.f32 %v4164, %v4182
      %v4201 = vmul.f32 %v4165, %v4182
      %v4202 = vmul.f32 %v4166, %v4182
      %v4203 = vmul.f32 %v4167, %v4182
      %v4204 = vmul.f32 %v4168, %v4182
      %v4205 = vmul.f32 %v4169, %v4182
      %v4206 = vmul.f32 %v4170, %v4182
      %v4207 = vmul.f32 %v4171, %v4182
      %v4208 = vmul.f32 %v4172, %v4182
      %v4209 = vmul.f32 %v4173, %v4182
      %v4210 = vmul.f32 %v4174, %v4182
      %v4211 = vmul.f32 %v4175, %v4182
      %v4212 = vmul.f32 %v4176, %v4182
      %v4213 = vmul.f32 %v4177, %v4182
      %v4214 = vmul.f32 %v4178, %v4182
      %v4215 = vadd.f32 %v4115, %v4183
      %v4216 = vadd.f32 %v4116, %v4184
      %v4217 = vadd.f32 %v4117, %v4185
      %v4218 = vadd.f32 %v4118, %v4186
      %v4219 = vadd.f32 %v4119, %v4187
      %v4220 = vadd.f32 %v4120, %v4188
      %v4221 = vadd.f32 %v4121, %v4189
      %v4222 = vadd.f32 %v4122, %v4190
      %v4223 = vadd.f32 %v4123, %v4191
      %v4224 = vadd.f32 %v4124, %v4192
      %v4225 = vadd.f32 %v4125, %v4193
      %v4226 = vadd.f32 %v4126, %v4194
      %v4227 = vadd.f32 %v4127, %v4195
      %v4228 = vadd.f32 %v4128, %v4196
      %v4229 = vadd.f32 %v4129, %v4197
      %v4230 = vadd.f32 %v4130, %v4198
      %v4231 = vadd.f32 %v4131, %v4199
      %v4232 = vadd.f32 %v4132, %v4200
      %v4233 = vadd.f32 %v4133, %v4201
      %v4234 = vadd.f32 %v4134, %v4202
      %v4235 = vadd.f32 %v4135, %v4203
      %v4236 = vadd.f32 %v4136, %v4204
      %v4237 = vadd.f32 %v4137, %v4205
      %v4238 = vadd.f32 %v4138, %v4206
      %v4239 = vadd.f32 %v4139, %v4207
      %v4240 = vadd.f32 %v4140, %v4208
      %v4241 = vadd.f32 %v4141, %v4209
      %v4242 = vadd.f32 %v4142, %v4210
      %v4243 = vadd.f32 %v4143, %v4211
      %v4244 = vadd.f32 %v4144, %v4212
      %v4245 = vadd.f32 %v4145, %v4213
      %v4246 = vadd.f32 %v4146, %v4214
      %v4247 = vld [vmem:[%s3946 + $0x3] sm:$0xff]
      %v4248 = vld [vmem:[%s3946 + $0xb] sm:$0xff]
      %v4249 = vld [vmem:[%s3946 + $0x1b] sm:$0xff]
      %v4250 = vld [vmem:[%s3946 + $0x23] sm:$0xff]
      %v4251 = vld [vmem:[%s3946 + $0x33] sm:$0xff]
      %v4252 = vld [vmem:[%s3946 + $0x3b] sm:$0xff]
      %v4253 = vld [vmem:[%s3946 + $0x4b] sm:$0xff]
      %v4254 = vld [vmem:[%s3946 + $0x53] sm:$0xff]
      %v4255 = vld [vmem:[%s3946 + $0x63] sm:$0xff]
      %v4256 = vld [vmem:[%s3946 + $0x6b] sm:$0xff]
      %v4257 = vld [vmem:[%s3946 + $0x7b] sm:$0xff]
      %v4258 = vld [vmem:[%s3946 + $0x83] sm:$0xff]
      %v4259 = vld [vmem:[%s3946 + $0x93] sm:$0xff]
      %v4260 = vld [vmem:[%s3946 + $0x9b] sm:$0xff]
      %v4261 = vld [vmem:[%s3946 + $0xab] sm:$0xff]
      %v4262 = vld [vmem:[%s3946 + $0xb3] sm:$0xff]
      %v4263 = vld [vmem:[%s3946 + $0xc3] sm:$0xff]
      %v4264 = vld [vmem:[%s3946 + $0xcb] sm:$0xff]
      %v4265 = vld [vmem:[%s3946 + $0xdb] sm:$0xff]
      %v4266 = vld [vmem:[%s3946 + $0xe3] sm:$0xff]
      %v4267 = vld [vmem:[%s3946 + $0xf3] sm:$0xff]
      %v4268 = vld [vmem:[%s3946 + $0xfb] sm:$0xff]
      %v4269 = vld [vmem:[%s3946 + $0x10b] sm:$0xff]
      %v4270 = vld [vmem:[%s3946 + $0x113] sm:$0xff]
      %v4271 = vld [vmem:[%s3946 + $0x123] sm:$0xff]
      %v4272 = vld [vmem:[%s3946 + $0x12b] sm:$0xff]
      %v4273 = vld [vmem:[%s3946 + $0x13b] sm:$0xff]
      %v4274 = vld [vmem:[%s3946 + $0x143] sm:$0xff]
      %v4275 = vld [vmem:[%s3946 + $0x153] sm:$0xff]
      %v4276 = vld [vmem:[%s3946 + $0x15b] sm:$0xff]
      %v4277 = vld [vmem:[%s3946 + $0x16b] sm:$0xff]
      %v4278 = vld [vmem:[%s3946 + $0x173] sm:$0xff]
      %v4279 = vlaneseq
      %v4280 = vshrl.u32 %v4279, 7
      %v4281 = vsub.s32 6, %v4280
      %v4282 = vrot.slane %v392, %v4281
      %v4283 = vmul.f32 %v4247, %v4282
      %v4284 = vmul.f32 %v4248, %v4282
      %v4285 = vmul.f32 %v4249, %v4282
      %v4286 = vmul.f32 %v4250, %v4282
      %v4287 = vmul.f32 %v4251, %v4282
      %v4288 = vmul.f32 %v4252, %v4282
      %v4289 = vmul.f32 %v4253, %v4282
      %v4290 = vmul.f32 %v4254, %v4282
      %v4291 = vmul.f32 %v4255, %v4282
      %v4292 = vmul.f32 %v4256, %v4282
      %v4293 = vmul.f32 %v4257, %v4282
      %v4294 = vmul.f32 %v4258, %v4282
      %v4295 = vmul.f32 %v4259, %v4282
      %v4296 = vmul.f32 %v4260, %v4282
      %v4297 = vmul.f32 %v4261, %v4282
      %v4298 = vmul.f32 %v4262, %v4282
      %v4299 = vmul.f32 %v4263, %v4282
      %v4300 = vmul.f32 %v4264, %v4282
      %v4301 = vmul.f32 %v4265, %v4282
      %v4302 = vmul.f32 %v4266, %v4282
      %v4303 = vmul.f32 %v4267, %v4282
      %v4304 = vmul.f32 %v4268, %v4282
      %v4305 = vmul.f32 %v4269, %v4282
      %v4306 = vmul.f32 %v4270, %v4282
      %v4307 = vmul.f32 %v4271, %v4282
      %v4308 = vmul.f32 %v4272, %v4282
      %v4309 = vmul.f32 %v4273, %v4282
      %v4310 = vmul.f32 %v4274, %v4282
      %v4311 = vmul.f32 %v4275, %v4282
      %v4312 = vmul.f32 %v4276, %v4282
      %v4313 = vmul.f32 %v4277, %v4282
      %v4314 = vmul.f32 %v4278, %v4282
      %v4315 = vadd.f32 %v4215, %v4283
      %v4316 = vadd.f32 %v4216, %v4284
      %v4317 = vadd.f32 %v4217, %v4285
      %v4318 = vadd.f32 %v4218, %v4286
      %v4319 = vadd.f32 %v4219, %v4287
      %v4320 = vadd.f32 %v4220, %v4288
      %v4321 = vadd.f32 %v4221, %v4289
      %v4322 = vadd.f32 %v4222, %v4290
      %v4323 = vadd.f32 %v4223, %v4291
      %v4324 = vadd.f32 %v4224, %v4292
      %v4325 = vadd.f32 %v4225, %v4293
      %v4326 = vadd.f32 %v4226, %v4294
      %v4327 = vadd.f32 %v4227, %v4295
      %v4328 = vadd.f32 %v4228, %v4296
      %v4329 = vadd.f32 %v4229, %v4297
      %v4330 = vadd.f32 %v4230, %v4298
      %v4331 = vadd.f32 %v4231, %v4299
      %v4332 = vadd.f32 %v4232, %v4300
      %v4333 = vadd.f32 %v4233, %v4301
      %v4334 = vadd.f32 %v4234, %v4302
      %v4335 = vadd.f32 %v4235, %v4303
      %v4336 = vadd.f32 %v4236, %v4304
      %v4337 = vadd.f32 %v4237, %v4305
      %v4338 = vadd.f32 %v4238, %v4306
      %v4339 = vadd.f32 %v4239, %v4307
      %v4340 = vadd.f32 %v4240, %v4308
      %v4341 = vadd.f32 %v4241, %v4309
      %v4342 = vadd.f32 %v4242, %v4310
      %v4343 = vadd.f32 %v4243, %v4311
      %v4344 = vadd.f32 %v4244, %v4312
      %v4345 = vadd.f32 %v4245, %v4313
      %v4346 = vadd.f32 %v4246, %v4314
      %v4347 = vld [vmem:[%s3946 + $0x4] sm:$0xff]
      %v4348 = vld [vmem:[%s3946 + $0xc] sm:$0xff]
      %v4349 = vld [vmem:[%s3946 + $0x1c] sm:$0xff]
      %v4350 = vld [vmem:[%s3946 + $0x24] sm:$0xff]
      %v4351 = vld [vmem:[%s3946 + $0x34] sm:$0xff]
      %v4352 = vld [vmem:[%s3946 + $0x3c] sm:$0xff]
      %v4353 = vld [vmem:[%s3946 + $0x4c] sm:$0xff]
      %v4354 = vld [vmem:[%s3946 + $0x54] sm:$0xff]
      %v4355 = vld [vmem:[%s3946 + $0x64] sm:$0xff]
      %v4356 = vld [vmem:[%s3946 + $0x6c] sm:$0xff]
      %v4357 = vld [vmem:[%s3946 + $0x7c] sm:$0xff]
      %v4358 = vld [vmem:[%s3946 + $0x84] sm:$0xff]
      %v4359 = vld [vmem:[%s3946 + $0x94] sm:$0xff]
      %v4360 = vld [vmem:[%s3946 + $0x9c] sm:$0xff]
      %v4361 = vld [vmem:[%s3946 + $0xac] sm:$0xff]
      %v4362 = vld [vmem:[%s3946 + $0xb4] sm:$0xff]
      %v4363 = vld [vmem:[%s3946 + $0xc4] sm:$0xff]
      %v4364 = vld [vmem:[%s3946 + $0xcc] sm:$0xff]
      %v4365 = vld [vmem:[%s3946 + $0xdc] sm:$0xff]
      %v4366 = vld [vmem:[%s3946 + $0xe4] sm:$0xff]
      %v4367 = vld [vmem:[%s3946 + $0xf4] sm:$0xff]
      %v4368 = vld [vmem:[%s3946 + $0xfc] sm:$0xff]
      %v4369 = vld [vmem:[%s3946 + $0x10c] sm:$0xff]
      %v4370 = vld [vmem:[%s3946 + $0x114] sm:$0xff]
      %v4371 = vld [vmem:[%s3946 + $0x124] sm:$0xff]
      %v4372 = vld [vmem:[%s3946 + $0x12c] sm:$0xff]
      %v4373 = vld [vmem:[%s3946 + $0x13c] sm:$0xff]
      %v4374 = vld [vmem:[%s3946 + $0x144] sm:$0xff]
      %v4375 = vld [vmem:[%s3946 + $0x154] sm:$0xff]
      %v4376 = vld [vmem:[%s3946 + $0x15c] sm:$0xff]
      %v4377 = vld [vmem:[%s3946 + $0x16c] sm:$0xff]
      %v4378 = vld [vmem:[%s3946 + $0x174] sm:$0xff]
      %v4379 = vlaneseq
      %v4380 = vshrl.u32 %v4379, 7
      %v4381 = vsub.s32 7, %v4380
      %v4382 = vrot.slane %v392, %v4381
      %v4383 = vmul.f32 %v4347, %v4382
      %v4384 = vmul.f32 %v4348, %v4382
      %v4385 = vmul.f32 %v4349, %v4382
      %v4386 = vmul.f32 %v4350, %v4382
      %v4387 = vmul.f32 %v4351, %v4382
      %v4388 = vmul.f32 %v4352, %v4382
      %v4389 = vmul.f32 %v4353, %v4382
      %v4390 = vmul.f32 %v4354, %v4382
      %v4391 = vmul.f32 %v4355, %v4382
      %v4392 = vmul.f32 %v4356, %v4382
      %v4393 = vmul.f32 %v4357, %v4382
      %v4394 = vmul.f32 %v4358, %v4382
      %v4395 = vmul.f32 %v4359, %v4382
      %v4396 = vmul.f32 %v4360, %v4382
      %v4397 = vmul.f32 %v4361, %v4382
      %v4398 = vmul.f32 %v4362, %v4382
      %v4399 = vmul.f32 %v4363, %v4382
      %v4400 = vmul.f32 %v4364, %v4382
      %v4401 = vmul.f32 %v4365, %v4382
      %v4402 = vmul.f32 %v4366, %v4382
      %v4403 = vmul.f32 %v4367, %v4382
      %v4404 = vmul.f32 %v4368, %v4382
      %v4405 = vmul.f32 %v4369, %v4382
      %v4406 = vmul.f32 %v4370, %v4382
      %v4407 = vmul.f32 %v4371, %v4382
      %v4408 = vmul.f32 %v4372, %v4382
      %v4409 = vmul.f32 %v4373, %v4382
      %v4410 = vmul.f32 %v4374, %v4382
      %v4411 = vmul.f32 %v4375, %v4382
      %v4412 = vmul.f32 %v4376, %v4382
      %v4413 = vmul.f32 %v4377, %v4382
      %v4414 = vmul.f32 %v4378, %v4382
      %v4415 = vadd.f32 %v4315, %v4383
      %v4416 = vadd.f32 %v4316, %v4384
      %v4417 = vadd.f32 %v4317, %v4385
      %v4418 = vadd.f32 %v4318, %v4386
      %v4419 = vadd.f32 %v4319, %v4387
      %v4420 = vadd.f32 %v4320, %v4388
      %v4421 = vadd.f32 %v4321, %v4389
      %v4422 = vadd.f32 %v4322, %v4390
      %v4423 = vadd.f32 %v4323, %v4391
      %v4424 = vadd.f32 %v4324, %v4392
      %v4425 = vadd.f32 %v4325, %v4393
      %v4426 = vadd.f32 %v4326, %v4394
      %v4427 = vadd.f32 %v4327, %v4395
      %v4428 = vadd.f32 %v4328, %v4396
      %v4429 = vadd.f32 %v4329, %v4397
      %v4430 = vadd.f32 %v4330, %v4398
      %v4431 = vadd.f32 %v4331, %v4399
      %v4432 = vadd.f32 %v4332, %v4400
      %v4433 = vadd.f32 %v4333, %v4401
      %v4434 = vadd.f32 %v4334, %v4402
      %v4435 = vadd.f32 %v4335, %v4403
      %v4436 = vadd.f32 %v4336, %v4404
      %v4437 = vadd.f32 %v4337, %v4405
      %v4438 = vadd.f32 %v4338, %v4406
      %v4439 = vadd.f32 %v4339, %v4407
      %v4440 = vadd.f32 %v4340, %v4408
      %v4441 = vadd.f32 %v4341, %v4409
      %v4442 = vadd.f32 %v4342, %v4410
      %v4443 = vadd.f32 %v4343, %v4411
      %v4444 = vadd.f32 %v4344, %v4412
      %v4445 = vadd.f32 %v4345, %v4413
      %v4446 = vadd.f32 %v4346, %v4414
      %v4447 = vld [vmem:[%s3946 + $0x5] sm:$0xff]
      %v4448 = vld [vmem:[%s3946 + $0xd] sm:$0xff]
      %v4449 = vld [vmem:[%s3946 + $0x1d] sm:$0xff]
      %v4450 = vld [vmem:[%s3946 + $0x25] sm:$0xff]
      %v4451 = vld [vmem:[%s3946 + $0x35] sm:$0xff]
      %v4452 = vld [vmem:[%s3946 + $0x3d] sm:$0xff]
      %v4453 = vld [vmem:[%s3946 + $0x4d] sm:$0xff]
      %v4454 = vld [vmem:[%s3946 + $0x55] sm:$0xff]
      %v4455 = vld [vmem:[%s3946 + $0x65] sm:$0xff]
      %v4456 = vld [vmem:[%s3946 + $0x6d] sm:$0xff]
      %v4457 = vld [vmem:[%s3946 + $0x7d] sm:$0xff]
      %v4458 = vld [vmem:[%s3946 + $0x85] sm:$0xff]
      %v4459 = vld [vmem:[%s3946 + $0x95] sm:$0xff]
      %v4460 = vld [vmem:[%s3946 + $0x9d] sm:$0xff]
      %v4461 = vld [vmem:[%s3946 + $0xad] sm:$0xff]
      %v4462 = vld [vmem:[%s3946 + $0xb5] sm:$0xff]
      %v4463 = vld [vmem:[%s3946 + $0xc5] sm:$0xff]
      %v4464 = vld [vmem:[%s3946 + $0xcd] sm:$0xff]
      %v4465 = vld [vmem:[%s3946 + $0xdd] sm:$0xff]
      %v4466 = vld [vmem:[%s3946 + $0xe5] sm:$0xff]
      %v4467 = vld [vmem:[%s3946 + $0xf5] sm:$0xff]
      %v4468 = vld [vmem:[%s3946 + $0xfd] sm:$0xff]
      %v4469 = vld [vmem:[%s3946 + $0x10d] sm:$0xff]
      %v4470 = vld [vmem:[%s3946 + $0x115] sm:$0xff]
      %v4471 = vld [vmem:[%s3946 + $0x125] sm:$0xff]
      %v4472 = vld [vmem:[%s3946 + $0x12d] sm:$0xff]
      %v4473 = vld [vmem:[%s3946 + $0x13d] sm:$0xff]
      %v4474 = vld [vmem:[%s3946 + $0x145] sm:$0xff]
      %v4475 = vld [vmem:[%s3946 + $0x155] sm:$0xff]
      %v4476 = vld [vmem:[%s3946 + $0x15d] sm:$0xff]
      %v4477 = vld [vmem:[%s3946 + $0x16d] sm:$0xff]
      %v4478 = vld [vmem:[%s3946 + $0x175] sm:$0xff]
      %v4479 = vlaneseq
      %v4480 = vshrl.u32 %v4479, 7
      %v4481 = vsub.s32 0, %v4480
      %v4482 = vrot.slane %v393, %v4481
      %v4483 = vmul.f32 %v4447, %v4482
      %v4484 = vmul.f32 %v4448, %v4482
      %v4485 = vmul.f32 %v4449, %v4482
      %v4486 = vmul.f32 %v4450, %v4482
      %v4487 = vmul.f32 %v4451, %v4482
      %v4488 = vmul.f32 %v4452, %v4482
      %v4489 = vmul.f32 %v4453, %v4482
      %v4490 = vmul.f32 %v4454, %v4482
      %v4491 = vmul.f32 %v4455, %v4482
      %v4492 = vmul.f32 %v4456, %v4482
      %v4493 = vmul.f32 %v4457, %v4482
      %v4494 = vmul.f32 %v4458, %v4482
      %v4495 = vmul.f32 %v4459, %v4482
      %v4496 = vmul.f32 %v4460, %v4482
      %v4497 = vmul.f32 %v4461, %v4482
      %v4498 = vmul.f32 %v4462, %v4482
      %v4499 = vmul.f32 %v4463, %v4482
      %v4500 = vmul.f32 %v4464, %v4482
      %v4501 = vmul.f32 %v4465, %v4482
      %v4502 = vmul.f32 %v4466, %v4482
      %v4503 = vmul.f32 %v4467, %v4482
      %v4504 = vmul.f32 %v4468, %v4482
      %v4505 = vmul.f32 %v4469, %v4482
      %v4506 = vmul.f32 %v4470, %v4482
      %v4507 = vmul.f32 %v4471, %v4482
      %v4508 = vmul.f32 %v4472, %v4482
      %v4509 = vmul.f32 %v4473, %v4482
      %v4510 = vmul.f32 %v4474, %v4482
      %v4511 = vmul.f32 %v4475, %v4482
      %v4512 = vmul.f32 %v4476, %v4482
      %v4513 = vmul.f32 %v4477, %v4482
      %v4514 = vmul.f32 %v4478, %v4482
      %v4515 = vadd.f32 %v4415, %v4483
      %v4516 = vadd.f32 %v4416, %v4484
      %v4517 = vadd.f32 %v4417, %v4485
      %v4518 = vadd.f32 %v4418, %v4486
      %v4519 = vadd.f32 %v4419, %v4487
      %v4520 = vadd.f32 %v4420, %v4488
      %v4521 = vadd.f32 %v4421, %v4489
      %v4522 = vadd.f32 %v4422, %v4490
      %v4523 = vadd.f32 %v4423, %v4491
      %v4524 = vadd.f32 %v4424, %v4492
      %v4525 = vadd.f32 %v4425, %v4493
      %v4526 = vadd.f32 %v4426, %v4494
      %v4527 = vadd.f32 %v4427, %v4495
      %v4528 = vadd.f32 %v4428, %v4496
      %v4529 = vadd.f32 %v4429, %v4497
      %v4530 = vadd.f32 %v4430, %v4498
      %v4531 = vadd.f32 %v4431, %v4499
      %v4532 = vadd.f32 %v4432, %v4500
      %v4533 = vadd.f32 %v4433, %v4501
      %v4534 = vadd.f32 %v4434, %v4502
      %v4535 = vadd.f32 %v4435, %v4503
      %v4536 = vadd.f32 %v4436, %v4504
      %v4537 = vadd.f32 %v4437, %v4505
      %v4538 = vadd.f32 %v4438, %v4506
      %v4539 = vadd.f32 %v4439, %v4507
      %v4540 = vadd.f32 %v4440, %v4508
      %v4541 = vadd.f32 %v4441, %v4509
      %v4542 = vadd.f32 %v4442, %v4510
      %v4543 = vadd.f32 %v4443, %v4511
      %v4544 = vadd.f32 %v4444, %v4512
      %v4545 = vadd.f32 %v4445, %v4513
      %v4546 = vadd.f32 %v4446, %v4514
      %v4547 = vld [vmem:[%s3946 + $0x6] sm:$0xff]
      %v4548 = vld [vmem:[%s3946 + $0xe] sm:$0xff]
      %v4549 = vld [vmem:[%s3946 + $0x1e] sm:$0xff]
      %v4550 = vld [vmem:[%s3946 + $0x26] sm:$0xff]
      %v4551 = vld [vmem:[%s3946 + $0x36] sm:$0xff]
      %v4552 = vld [vmem:[%s3946 + $0x3e] sm:$0xff]
      %v4553 = vld [vmem:[%s3946 + $0x4e] sm:$0xff]
      %v4554 = vld [vmem:[%s3946 + $0x56] sm:$0xff]
      %v4555 = vld [vmem:[%s3946 + $0x66] sm:$0xff]
      %v4556 = vld [vmem:[%s3946 + $0x6e] sm:$0xff]
      %v4557 = vld [vmem:[%s3946 + $0x7e] sm:$0xff]
      %v4558 = vld [vmem:[%s3946 + $0x86] sm:$0xff]
      %v4559 = vld [vmem:[%s3946 + $0x96] sm:$0xff]
      %v4560 = vld [vmem:[%s3946 + $0x9e] sm:$0xff]
      %v4561 = vld [vmem:[%s3946 + $0xae] sm:$0xff]
      %v4562 = vld [vmem:[%s3946 + $0xb6] sm:$0xff]
      %v4563 = vld [vmem:[%s3946 + $0xc6] sm:$0xff]
      %v4564 = vld [vmem:[%s3946 + $0xce] sm:$0xff]
      %v4565 = vld [vmem:[%s3946 + $0xde] sm:$0xff]
      %v4566 = vld [vmem:[%s3946 + $0xe6] sm:$0xff]
      %v4567 = vld [vmem:[%s3946 + $0xf6] sm:$0xff]
      %v4568 = vld [vmem:[%s3946 + $0xfe] sm:$0xff]
      %v4569 = vld [vmem:[%s3946 + $0x10e] sm:$0xff]
      %v4570 = vld [vmem:[%s3946 + $0x116] sm:$0xff]
      %v4571 = vld [vmem:[%s3946 + $0x126] sm:$0xff]
      %v4572 = vld [vmem:[%s3946 + $0x12e] sm:$0xff]
      %v4573 = vld [vmem:[%s3946 + $0x13e] sm:$0xff]
      %v4574 = vld [vmem:[%s3946 + $0x146] sm:$0xff]
      %v4575 = vld [vmem:[%s3946 + $0x156] sm:$0xff]
      %v4576 = vld [vmem:[%s3946 + $0x15e] sm:$0xff]
      %v4577 = vld [vmem:[%s3946 + $0x16e] sm:$0xff]
      %v4578 = vld [vmem:[%s3946 + $0x176] sm:$0xff]
      %v4579 = vlaneseq
      %v4580 = vshrl.u32 %v4579, 7
      %v4581 = vsub.s32 1, %v4580
      %v4582 = vrot.slane %v393, %v4581
      %v4583 = vmul.f32 %v4547, %v4582
      %v4584 = vmul.f32 %v4548, %v4582
      %v4585 = vmul.f32 %v4549, %v4582
      %v4586 = vmul.f32 %v4550, %v4582
      %v4587 = vmul.f32 %v4551, %v4582
      %v4588 = vmul.f32 %v4552, %v4582
      %v4589 = vmul.f32 %v4553, %v4582
      %v4590 = vmul.f32 %v4554, %v4582
      %v4591 = vmul.f32 %v4555, %v4582
      %v4592 = vmul.f32 %v4556, %v4582
      %v4593 = vmul.f32 %v4557, %v4582
      %v4594 = vmul.f32 %v4558, %v4582
      %v4595 = vmul.f32 %v4559, %v4582
      %v4596 = vmul.f32 %v4560, %v4582
      %v4597 = vmul.f32 %v4561, %v4582
      %v4598 = vmul.f32 %v4562, %v4582
      %v4599 = vmul.f32 %v4563, %v4582
      %v4600 = vmul.f32 %v4564, %v4582
      %v4601 = vmul.f32 %v4565, %v4582
      %v4602 = vmul.f32 %v4566, %v4582
      %v4603 = vmul.f32 %v4567, %v4582
      %v4604 = vmul.f32 %v4568, %v4582
      %v4605 = vmul.f32 %v4569, %v4582
      %v4606 = vmul.f32 %v4570, %v4582
      %v4607 = vmul.f32 %v4571, %v4582
      %v4608 = vmul.f32 %v4572, %v4582
      %v4609 = vmul.f32 %v4573, %v4582
      %v4610 = vmul.f32 %v4574, %v4582
      %v4611 = vmul.f32 %v4575, %v4582
      %v4612 = vmul.f32 %v4576, %v4582
      %v4613 = vmul.f32 %v4577, %v4582
      %v4614 = vmul.f32 %v4578, %v4582
      %v4615 = vadd.f32 %v4515, %v4583
      %v4616 = vadd.f32 %v4516, %v4584
      %v4617 = vadd.f32 %v4517, %v4585
      %v4618 = vadd.f32 %v4518, %v4586
      %v4619 = vadd.f32 %v4519, %v4587
      %v4620 = vadd.f32 %v4520, %v4588
      %v4621 = vadd.f32 %v4521, %v4589
      %v4622 = vadd.f32 %v4522, %v4590
      %v4623 = vadd.f32 %v4523, %v4591
      %v4624 = vadd.f32 %v4524, %v4592
      %v4625 = vadd.f32 %v4525, %v4593
      %v4626 = vadd.f32 %v4526, %v4594
      %v4627 = vadd.f32 %v4527, %v4595
      %v4628 = vadd.f32 %v4528, %v4596
      %v4629 = vadd.f32 %v4529, %v4597
      %v4630 = vadd.f32 %v4530, %v4598
      %v4631 = vadd.f32 %v4531, %v4599
      %v4632 = vadd.f32 %v4532, %v4600
      %v4633 = vadd.f32 %v4533, %v4601
      %v4634 = vadd.f32 %v4534, %v4602
      %v4635 = vadd.f32 %v4535, %v4603
      %v4636 = vadd.f32 %v4536, %v4604
      %v4637 = vadd.f32 %v4537, %v4605
      %v4638 = vadd.f32 %v4538, %v4606
      %v4639 = vadd.f32 %v4539, %v4607
      %v4640 = vadd.f32 %v4540, %v4608
      %v4641 = vadd.f32 %v4541, %v4609
      %v4642 = vadd.f32 %v4542, %v4610
      %v4643 = vadd.f32 %v4543, %v4611
      %v4644 = vadd.f32 %v4544, %v4612
      %v4645 = vadd.f32 %v4545, %v4613
      %v4646 = vadd.f32 %v4546, %v4614
      %s4647 = scalar_lea.vmem %s381, 144
      %v4648 = vld [vmem:[%s4647] sm:$0xff]
      %v4649 = vld [vmem:[%s4647 + $0x8] sm:$0xff]
      %v4650 = vld [vmem:[%s4647 + $0x18] sm:$0xff]
      %v4651 = vld [vmem:[%s4647 + $0x20] sm:$0xff]
      %v4652 = vld [vmem:[%s4647 + $0x30] sm:$0xff]
      %v4653 = vld [vmem:[%s4647 + $0x38] sm:$0xff]
      %v4654 = vld [vmem:[%s4647 + $0x48] sm:$0xff]
      %v4655 = vld [vmem:[%s4647 + $0x50] sm:$0xff]
      %v4656 = vld [vmem:[%s4647 + $0x60] sm:$0xff]
      %v4657 = vld [vmem:[%s4647 + $0x68] sm:$0xff]
      %v4658 = vld [vmem:[%s4647 + $0x78] sm:$0xff]
      %v4659 = vld [vmem:[%s4647 + $0x80] sm:$0xff]
      %v4660 = vld [vmem:[%s4647 + $0x90] sm:$0xff]
      %v4661 = vld [vmem:[%s4647 + $0x98] sm:$0xff]
      %v4662 = vld [vmem:[%s4647 + $0xa8] sm:$0xff]
      %v4663 = vld [vmem:[%s4647 + $0xb0] sm:$0xff]
      %v4664 = vld [vmem:[%s4647 + $0xc0] sm:$0xff]
      %v4665 = vld [vmem:[%s4647 + $0xc8] sm:$0xff]
      %v4666 = vld [vmem:[%s4647 + $0xd8] sm:$0xff]
      %v4667 = vld [vmem:[%s4647 + $0xe0] sm:$0xff]
      %v4668 = vld [vmem:[%s4647 + $0xf0] sm:$0xff]
      %v4669 = vld [vmem:[%s4647 + $0xf8] sm:$0xff]
      %v4670 = vld [vmem:[%s4647 + $0x108] sm:$0xff]
      %v4671 = vld [vmem:[%s4647 + $0x110] sm:$0xff]
      %v4672 = vld [vmem:[%s4647 + $0x120] sm:$0xff]
      %v4673 = vld [vmem:[%s4647 + $0x128] sm:$0xff]
      %v4674 = vld [vmem:[%s4647 + $0x138] sm:$0xff]
      %v4675 = vld [vmem:[%s4647 + $0x140] sm:$0xff]
      %v4676 = vld [vmem:[%s4647 + $0x150] sm:$0xff]
      %v4677 = vld [vmem:[%s4647 + $0x158] sm:$0xff]
      %v4678 = vld [vmem:[%s4647 + $0x168] sm:$0xff]
      %v4679 = vld [vmem:[%s4647 + $0x170] sm:$0xff]
      %v4680 = vlaneseq
      %v4681 = vshrl.u32 %v4680, 7
      %v4682 = vsub.s32 2, %v4681
      %v4683 = vrot.slane %v393, %v4682
      %v4684 = vmul.f32 %v4648, %v4683
      %v4685 = vmul.f32 %v4649, %v4683
      %v4686 = vmul.f32 %v4650, %v4683
      %v4687 = vmul.f32 %v4651, %v4683
      %v4688 = vmul.f32 %v4652, %v4683
      %v4689 = vmul.f32 %v4653, %v4683
      %v4690 = vmul.f32 %v4654, %v4683
      %v4691 = vmul.f32 %v4655, %v4683
      %v4692 = vmul.f32 %v4656, %v4683
      %v4693 = vmul.f32 %v4657, %v4683
      %v4694 = vmul.f32 %v4658, %v4683
      %v4695 = vmul.f32 %v4659, %v4683
      %v4696 = vmul.f32 %v4660, %v4683
      %v4697 = vmul.f32 %v4661, %v4683
      %v4698 = vmul.f32 %v4662, %v4683
      %v4699 = vmul.f32 %v4663, %v4683
      %v4700 = vmul.f32 %v4664, %v4683
      %v4701 = vmul.f32 %v4665, %v4683
      %v4702 = vmul.f32 %v4666, %v4683
      %v4703 = vmul.f32 %v4667, %v4683
      %v4704 = vmul.f32 %v4668, %v4683
      %v4705 = vmul.f32 %v4669, %v4683
      %v4706 = vmul.f32 %v4670, %v4683
      %v4707 = vmul.f32 %v4671, %v4683
      %v4708 = vmul.f32 %v4672, %v4683
      %v4709 = vmul.f32 %v4673, %v4683
      %v4710 = vmul.f32 %v4674, %v4683
      %v4711 = vmul.f32 %v4675, %v4683
      %v4712 = vmul.f32 %v4676, %v4683
      %v4713 = vmul.f32 %v4677, %v4683
      %v4714 = vmul.f32 %v4678, %v4683
      %v4715 = vmul.f32 %v4679, %v4683
      %v4716 = vadd.f32 %v4615, %v4684
      %v4717 = vadd.f32 %v4616, %v4685
      %v4718 = vadd.f32 %v4617, %v4686
      %v4719 = vadd.f32 %v4618, %v4687
      %v4720 = vadd.f32 %v4619, %v4688
      %v4721 = vadd.f32 %v4620, %v4689
      %v4722 = vadd.f32 %v4621, %v4690
      %v4723 = vadd.f32 %v4622, %v4691
      %v4724 = vadd.f32 %v4623, %v4692
      %v4725 = vadd.f32 %v4624, %v4693
      %v4726 = vadd.f32 %v4625, %v4694
      %v4727 = vadd.f32 %v4626, %v4695
      %v4728 = vadd.f32 %v4627, %v4696
      %v4729 = vadd.f32 %v4628, %v4697
      %v4730 = vadd.f32 %v4629, %v4698
      %v4731 = vadd.f32 %v4630, %v4699
      %v4732 = vadd.f32 %v4631, %v4700
      %v4733 = vadd.f32 %v4632, %v4701
      %v4734 = vadd.f32 %v4633, %v4702
      %v4735 = vadd.f32 %v4634, %v4703
      %v4736 = vadd.f32 %v4635, %v4704
      %v4737 = vadd.f32 %v4636, %v4705
      %v4738 = vadd.f32 %v4637, %v4706
      %v4739 = vadd.f32 %v4638, %v4707
      %v4740 = vadd.f32 %v4639, %v4708
      %v4741 = vadd.f32 %v4640, %v4709
      %v4742 = vadd.f32 %v4641, %v4710
      %v4743 = vadd.f32 %v4642, %v4711
      %v4744 = vadd.f32 %v4643, %v4712
      %v4745 = vadd.f32 %v4644, %v4713
      %v4746 = vadd.f32 %v4645, %v4714
      %v4747 = vadd.f32 %v4646, %v4715
      %v4748 = vld [vmem:[%s4647 + $0x1] sm:$0xff]
      %v4749 = vld [vmem:[%s4647 + $0x9] sm:$0xff]
      %v4750 = vld [vmem:[%s4647 + $0x19] sm:$0xff]
      %v4751 = vld [vmem:[%s4647 + $0x21] sm:$0xff]
      %v4752 = vld [vmem:[%s4647 + $0x31] sm:$0xff]
      %v4753 = vld [vmem:[%s4647 + $0x39] sm:$0xff]
      %v4754 = vld [vmem:[%s4647 + $0x49] sm:$0xff]
      %v4755 = vld [vmem:[%s4647 + $0x51] sm:$0xff]
      %v4756 = vld [vmem:[%s4647 + $0x61] sm:$0xff]
      %v4757 = vld [vmem:[%s4647 + $0x69] sm:$0xff]
      %v4758 = vld [vmem:[%s4647 + $0x79] sm:$0xff]
      %v4759 = vld [vmem:[%s4647 + $0x81] sm:$0xff]
      %v4760 = vld [vmem:[%s4647 + $0x91] sm:$0xff]
      %v4761 = vld [vmem:[%s4647 + $0x99] sm:$0xff]
      %v4762 = vld [vmem:[%s4647 + $0xa9] sm:$0xff]
      %v4763 = vld [vmem:[%s4647 + $0xb1] sm:$0xff]
      %v4764 = vld [vmem:[%s4647 + $0xc1] sm:$0xff]
      %v4765 = vld [vmem:[%s4647 + $0xc9] sm:$0xff]
      %v4766 = vld [vmem:[%s4647 + $0xd9] sm:$0xff]
      %v4767 = vld [vmem:[%s4647 + $0xe1] sm:$0xff]
      %v4768 = vld [vmem:[%s4647 + $0xf1] sm:$0xff]
      %v4769 = vld [vmem:[%s4647 + $0xf9] sm:$0xff]
      %v4770 = vld [vmem:[%s4647 + $0x109] sm:$0xff]
      %v4771 = vld [vmem:[%s4647 + $0x111] sm:$0xff]
      %v4772 = vld [vmem:[%s4647 + $0x121] sm:$0xff]
      %v4773 = vld [vmem:[%s4647 + $0x129] sm:$0xff]
      %v4774 = vld [vmem:[%s4647 + $0x139] sm:$0xff]
      %v4775 = vld [vmem:[%s4647 + $0x141] sm:$0xff]
      %v4776 = vld [vmem:[%s4647 + $0x151] sm:$0xff]
      %v4777 = vld [vmem:[%s4647 + $0x159] sm:$0xff]
      %v4778 = vld [vmem:[%s4647 + $0x169] sm:$0xff]
      %v4779 = vld [vmem:[%s4647 + $0x171] sm:$0xff]
      %v4780 = vlaneseq
      %v4781 = vshrl.u32 %v4780, 7
      %v4782 = vsub.s32 3, %v4781
      %v4783 = vrot.slane %v393, %v4782
      %v4784 = vmul.f32 %v4748, %v4783
      %v4785 = vmul.f32 %v4749, %v4783
      %v4786 = vmul.f32 %v4750, %v4783
      %v4787 = vmul.f32 %v4751, %v4783
      %v4788 = vmul.f32 %v4752, %v4783
      %v4789 = vmul.f32 %v4753, %v4783
      %v4790 = vmul.f32 %v4754, %v4783
      %v4791 = vmul.f32 %v4755, %v4783
      %v4792 = vmul.f32 %v4756, %v4783
      %v4793 = vmul.f32 %v4757, %v4783
      %v4794 = vmul.f32 %v4758, %v4783
      %v4795 = vmul.f32 %v4759, %v4783
      %v4796 = vmul.f32 %v4760, %v4783
      %v4797 = vmul.f32 %v4761, %v4783
      %v4798 = vmul.f32 %v4762, %v4783
      %v4799 = vmul.f32 %v4763, %v4783
      %v4800 = vmul.f32 %v4764, %v4783
      %v4801 = vmul.f32 %v4765, %v4783
      %v4802 = vmul.f32 %v4766, %v4783
      %v4803 = vmul.f32 %v4767, %v4783
      %v4804 = vmul.f32 %v4768, %v4783
      %v4805 = vmul.f32 %v4769, %v4783
      %v4806 = vmul.f32 %v4770, %v4783
      %v4807 = vmul.f32 %v4771, %v4783
      %v4808 = vmul.f32 %v4772, %v4783
      %v4809 = vmul.f32 %v4773, %v4783
      %v4810 = vmul.f32 %v4774, %v4783
      %v4811 = vmul.f32 %v4775, %v4783
      %v4812 = vmul.f32 %v4776, %v4783
      %v4813 = vmul.f32 %v4777, %v4783
      %v4814 = vmul.f32 %v4778, %v4783
      %v4815 = vmul.f32 %v4779, %v4783
      %v4816 = vadd.f32 %v4716, %v4784
      %v4817 = vadd.f32 %v4717, %v4785
      %v4818 = vadd.f32 %v4718, %v4786
      %v4819 = vadd.f32 %v4719, %v4787
      %v4820 = vadd.f32 %v4720, %v4788
      %v4821 = vadd.f32 %v4721, %v4789
      %v4822 = vadd.f32 %v4722, %v4790
      %v4823 = vadd.f32 %v4723, %v4791
      %v4824 = vadd.f32 %v4724, %v4792
      %v4825 = vadd.f32 %v4725, %v4793
      %v4826 = vadd.f32 %v4726, %v4794
      %v4827 = vadd.f32 %v4727, %v4795
      %v4828 = vadd.f32 %v4728, %v4796
      %v4829 = vadd.f32 %v4729, %v4797
      %v4830 = vadd.f32 %v4730, %v4798
      %v4831 = vadd.f32 %v4731, %v4799
      %v4832 = vadd.f32 %v4732, %v4800
      %v4833 = vadd.f32 %v4733, %v4801
      %v4834 = vadd.f32 %v4734, %v4802
      %v4835 = vadd.f32 %v4735, %v4803
      %v4836 = vadd.f32 %v4736, %v4804
      %v4837 = vadd.f32 %v4737, %v4805
      %v4838 = vadd.f32 %v4738, %v4806
      %v4839 = vadd.f32 %v4739, %v4807
      %v4840 = vadd.f32 %v4740, %v4808
      %v4841 = vadd.f32 %v4741, %v4809
      %v4842 = vadd.f32 %v4742, %v4810
      %v4843 = vadd.f32 %v4743, %v4811
      %v4844 = vadd.f32 %v4744, %v4812
      %v4845 = vadd.f32 %v4745, %v4813
      %v4846 = vadd.f32 %v4746, %v4814
      %v4847 = vadd.f32 %v4747, %v4815
      %v4848 = vld [vmem:[%s4647 + $0x2] sm:$0xff]
      %v4849 = vld [vmem:[%s4647 + $0xa] sm:$0xff]
      %v4850 = vld [vmem:[%s4647 + $0x1a] sm:$0xff]
      %v4851 = vld [vmem:[%s4647 + $0x22] sm:$0xff]
      %v4852 = vld [vmem:[%s4647 + $0x32] sm:$0xff]
      %v4853 = vld [vmem:[%s4647 + $0x3a] sm:$0xff]
      %v4854 = vld [vmem:[%s4647 + $0x4a] sm:$0xff]
      %v4855 = vld [vmem:[%s4647 + $0x52] sm:$0xff]
      %v4856 = vld [vmem:[%s4647 + $0x62] sm:$0xff]
      %v4857 = vld [vmem:[%s4647 + $0x6a] sm:$0xff]
      %v4858 = vld [vmem:[%s4647 + $0x7a] sm:$0xff]
      %v4859 = vld [vmem:[%s4647 + $0x82] sm:$0xff]
      %v4860 = vld [vmem:[%s4647 + $0x92] sm:$0xff]
      %v4861 = vld [vmem:[%s4647 + $0x9a] sm:$0xff]
      %v4862 = vld [vmem:[%s4647 + $0xaa] sm:$0xff]
      %v4863 = vld [vmem:[%s4647 + $0xb2] sm:$0xff]
      %v4864 = vld [vmem:[%s4647 + $0xc2] sm:$0xff]
      %v4865 = vld [vmem:[%s4647 + $0xca] sm:$0xff]
      %v4866 = vld [vmem:[%s4647 + $0xda] sm:$0xff]
      %v4867 = vld [vmem:[%s4647 + $0xe2] sm:$0xff]
      %v4868 = vld [vmem:[%s4647 + $0xf2] sm:$0xff]
      %v4869 = vld [vmem:[%s4647 + $0xfa] sm:$0xff]
      %v4870 = vld [vmem:[%s4647 + $0x10a] sm:$0xff]
      %v4871 = vld [vmem:[%s4647 + $0x112] sm:$0xff]
      %v4872 = vld [vmem:[%s4647 + $0x122] sm:$0xff]
      %v4873 = vld [vmem:[%s4647 + $0x12a] sm:$0xff]
      %v4874 = vld [vmem:[%s4647 + $0x13a] sm:$0xff]
      %v4875 = vld [vmem:[%s4647 + $0x142] sm:$0xff]
      %v4876 = vld [vmem:[%s4647 + $0x152] sm:$0xff]
      %v4877 = vld [vmem:[%s4647 + $0x15a] sm:$0xff]
      %v4878 = vld [vmem:[%s4647 + $0x16a] sm:$0xff]
      %v4879 = vld [vmem:[%s4647 + $0x172] sm:$0xff]
      %v4880 = vlaneseq
      %v4881 = vshrl.u32 %v4880, 7
      %v4882 = vsub.s32 4, %v4881
      %v4883 = vrot.slane %v393, %v4882
      %v4884 = vmul.f32 %v4848, %v4883
      %v4885 = vmul.f32 %v4849, %v4883
      %v4886 = vmul.f32 %v4850, %v4883
      %v4887 = vmul.f32 %v4851, %v4883
      %v4888 = vmul.f32 %v4852, %v4883
      %v4889 = vmul.f32 %v4853, %v4883
      %v4890 = vmul.f32 %v4854, %v4883
      %v4891 = vmul.f32 %v4855, %v4883
      %v4892 = vmul.f32 %v4856, %v4883
      %v4893 = vmul.f32 %v4857, %v4883
      %v4894 = vmul.f32 %v4858, %v4883
      %v4895 = vmul.f32 %v4859, %v4883
      %v4896 = vmul.f32 %v4860, %v4883
      %v4897 = vmul.f32 %v4861, %v4883
      %v4898 = vmul.f32 %v4862, %v4883
      %v4899 = vmul.f32 %v4863, %v4883
      %v4900 = vmul.f32 %v4864, %v4883
      %v4901 = vmul.f32 %v4865, %v4883
      %v4902 = vmul.f32 %v4866, %v4883
      %v4903 = vmul.f32 %v4867, %v4883
      %v4904 = vmul.f32 %v4868, %v4883
      %v4905 = vmul.f32 %v4869, %v4883
      %v4906 = vmul.f32 %v4870, %v4883
      %v4907 = vmul.f32 %v4871, %v4883
      %v4908 = vmul.f32 %v4872, %v4883
      %v4909 = vmul.f32 %v4873, %v4883
      %v4910 = vmul.f32 %v4874, %v4883
      %v4911 = vmul.f32 %v4875, %v4883
      %v4912 = vmul.f32 %v4876, %v4883
      %v4913 = vmul.f32 %v4877, %v4883
      %v4914 = vmul.f32 %v4878, %v4883
      %v4915 = vmul.f32 %v4879, %v4883
      %v4916 = vadd.f32 %v4816, %v4884
      %v4917 = vadd.f32 %v4817, %v4885
      %v4918 = vadd.f32 %v4818, %v4886
      %v4919 = vadd.f32 %v4819, %v4887
      %v4920 = vadd.f32 %v4820, %v4888
      %v4921 = vadd.f32 %v4821, %v4889
      %v4922 = vadd.f32 %v4822, %v4890
      %v4923 = vadd.f32 %v4823, %v4891
      %v4924 = vadd.f32 %v4824, %v4892
      %v4925 = vadd.f32 %v4825, %v4893
      %v4926 = vadd.f32 %v4826, %v4894
      %v4927 = vadd.f32 %v4827, %v4895
      %v4928 = vadd.f32 %v4828, %v4896
      %v4929 = vadd.f32 %v4829, %v4897
      %v4930 = vadd.f32 %v4830, %v4898
      %v4931 = vadd.f32 %v4831, %v4899
      %v4932 = vadd.f32 %v4832, %v4900
      %v4933 = vadd.f32 %v4833, %v4901
      %v4934 = vadd.f32 %v4834, %v4902
      %v4935 = vadd.f32 %v4835, %v4903
      %v4936 = vadd.f32 %v4836, %v4904
      %v4937 = vadd.f32 %v4837, %v4905
      %v4938 = vadd.f32 %v4838, %v4906
      %v4939 = vadd.f32 %v4839, %v4907
      %v4940 = vadd.f32 %v4840, %v4908
      %v4941 = vadd.f32 %v4841, %v4909
      %v4942 = vadd.f32 %v4842, %v4910
      %v4943 = vadd.f32 %v4843, %v4911
      %v4944 = vadd.f32 %v4844, %v4912
      %v4945 = vadd.f32 %v4845, %v4913
      %v4946 = vadd.f32 %v4846, %v4914
      %v4947 = vadd.f32 %v4847, %v4915
      %v4948 = vld [vmem:[%s4647 + $0x3] sm:$0xff]
      %v4949 = vld [vmem:[%s4647 + $0xb] sm:$0xff]
      %v4950 = vld [vmem:[%s4647 + $0x1b] sm:$0xff]
      %v4951 = vld [vmem:[%s4647 + $0x23] sm:$0xff]
      %v4952 = vld [vmem:[%s4647 + $0x33] sm:$0xff]
      %v4953 = vld [vmem:[%s4647 + $0x3b] sm:$0xff]
      %v4954 = vld [vmem:[%s4647 + $0x4b] sm:$0xff]
      %v4955 = vld [vmem:[%s4647 + $0x53] sm:$0xff]
      %v4956 = vld [vmem:[%s4647 + $0x63] sm:$0xff]
      %v4957 = vld [vmem:[%s4647 + $0x6b] sm:$0xff]
      %v4958 = vld [vmem:[%s4647 + $0x7b] sm:$0xff]
      %v4959 = vld [vmem:[%s4647 + $0x83] sm:$0xff]
      %v4960 = vld [vmem:[%s4647 + $0x93] sm:$0xff]
      %v4961 = vld [vmem:[%s4647 + $0x9b] sm:$0xff]
      %v4962 = vld [vmem:[%s4647 + $0xab] sm:$0xff]
      %v4963 = vld [vmem:[%s4647 + $0xb3] sm:$0xff]
      %v4964 = vld [vmem:[%s4647 + $0xc3] sm:$0xff]
      %v4965 = vld [vmem:[%s4647 + $0xcb] sm:$0xff]
      %v4966 = vld [vmem:[%s4647 + $0xdb] sm:$0xff]
      %v4967 = vld [vmem:[%s4647 + $0xe3] sm:$0xff]
      %v4968 = vld [vmem:[%s4647 + $0xf3] sm:$0xff]
      %v4969 = vld [vmem:[%s4647 + $0xfb] sm:$0xff]
      %v4970 = vld [vmem:[%s4647 + $0x10b] sm:$0xff]
      %v4971 = vld [vmem:[%s4647 + $0x113] sm:$0xff]
      %v4972 = vld [vmem:[%s4647 + $0x123] sm:$0xff]
      %v4973 = vld [vmem:[%s4647 + $0x12b] sm:$0xff]
      %v4974 = vld [vmem:[%s4647 + $0x13b] sm:$0xff]
      %v4975 = vld [vmem:[%s4647 + $0x143] sm:$0xff]
      %v4976 = vld [vmem:[%s4647 + $0x153] sm:$0xff]
      %v4977 = vld [vmem:[%s4647 + $0x15b] sm:$0xff]
      %v4978 = vld [vmem:[%s4647 + $0x16b] sm:$0xff]
      %v4979 = vld [vmem:[%s4647 + $0x173] sm:$0xff]
      %v4980 = vlaneseq
      %v4981 = vshrl.u32 %v4980, 7
      %v4982 = vsub.s32 5, %v4981
      %v4983 = vrot.slane %v393, %v4982
      %v4984 = vmul.f32 %v4948, %v4983
      %v4985 = vmul.f32 %v4949, %v4983
      %v4986 = vmul.f32 %v4950, %v4983
      %v4987 = vmul.f32 %v4951, %v4983
      %v4988 = vmul.f32 %v4952, %v4983
      %v4989 = vmul.f32 %v4953, %v4983
      %v4990 = vmul.f32 %v4954, %v4983
      %v4991 = vmul.f32 %v4955, %v4983
      %v4992 = vmul.f32 %v4956, %v4983
      %v4993 = vmul.f32 %v4957, %v4983
      %v4994 = vmul.f32 %v4958, %v4983
      %v4995 = vmul.f32 %v4959, %v4983
      %v4996 = vmul.f32 %v4960, %v4983
      %v4997 = vmul.f32 %v4961, %v4983
      %v4998 = vmul.f32 %v4962, %v4983
      %v4999 = vmul.f32 %v4963, %v4983
      %v5000 = vmul.f32 %v4964, %v4983
      %v5001 = vmul.f32 %v4965, %v4983
      %v5002 = vmul.f32 %v4966, %v4983
      %v5003 = vmul.f32 %v4967, %v4983
      %v5004 = vmul.f32 %v4968, %v4983
      %v5005 = vmul.f32 %v4969, %v4983
      %v5006 = vmul.f32 %v4970, %v4983
      %v5007 = vmul.f32 %v4971, %v4983
      %v5008 = vmul.f32 %v4972, %v4983
      %v5009 = vmul.f32 %v4973, %v4983
      %v5010 = vmul.f32 %v4974, %v4983
      %v5011 = vmul.f32 %v4975, %v4983
      %v5012 = vmul.f32 %v4976, %v4983
      %v5013 = vmul.f32 %v4977, %v4983
      %v5014 = vmul.f32 %v4978, %v4983
      %v5015 = vmul.f32 %v4979, %v4983
      %v5016 = vadd.f32 %v4916, %v4984
      %v5017 = vadd.f32 %v4917, %v4985
      %v5018 = vadd.f32 %v4918, %v4986
      %v5019 = vadd.f32 %v4919, %v4987
      %v5020 = vadd.f32 %v4920, %v4988
      %v5021 = vadd.f32 %v4921, %v4989
      %v5022 = vadd.f32 %v4922, %v4990
      %v5023 = vadd.f32 %v4923, %v4991
      %v5024 = vadd.f32 %v4924, %v4992
      %v5025 = vadd.f32 %v4925, %v4993
      %v5026 = vadd.f32 %v4926, %v4994
      %v5027 = vadd.f32 %v4927, %v4995
      %v5028 = vadd.f32 %v4928, %v4996
      %v5029 = vadd.f32 %v4929, %v4997
      %v5030 = vadd.f32 %v4930, %v4998
      %v5031 = vadd.f32 %v4931, %v4999
      %v5032 = vadd.f32 %v4932, %v5000
      %v5033 = vadd.f32 %v4933, %v5001
      %v5034 = vadd.f32 %v4934, %v5002
      %v5035 = vadd.f32 %v4935, %v5003
      %v5036 = vadd.f32 %v4936, %v5004
      %v5037 = vadd.f32 %v4937, %v5005
      %v5038 = vadd.f32 %v4938, %v5006
      %v5039 = vadd.f32 %v4939, %v5007
      %v5040 = vadd.f32 %v4940, %v5008
      %v5041 = vadd.f32 %v4941, %v5009
      %v5042 = vadd.f32 %v4942, %v5010
      %v5043 = vadd.f32 %v4943, %v5011
      %v5044 = vadd.f32 %v4944, %v5012
      %v5045 = vadd.f32 %v4945, %v5013
      %v5046 = vadd.f32 %v4946, %v5014
      %v5047 = vadd.f32 %v4947, %v5015
      %v5048 = vld [vmem:[%s4647 + $0x4] sm:$0xff]
      %v5049 = vld [vmem:[%s4647 + $0xc] sm:$0xff]
      %v5050 = vld [vmem:[%s4647 + $0x1c] sm:$0xff]
      %v5051 = vld [vmem:[%s4647 + $0x24] sm:$0xff]
      %v5052 = vld [vmem:[%s4647 + $0x34] sm:$0xff]
      %v5053 = vld [vmem:[%s4647 + $0x3c] sm:$0xff]
      %v5054 = vld [vmem:[%s4647 + $0x4c] sm:$0xff]
      %v5055 = vld [vmem:[%s4647 + $0x54] sm:$0xff]
      %v5056 = vld [vmem:[%s4647 + $0x64] sm:$0xff]
      %v5057 = vld [vmem:[%s4647 + $0x6c] sm:$0xff]
      %v5058 = vld [vmem:[%s4647 + $0x7c] sm:$0xff]
      %v5059 = vld [vmem:[%s4647 + $0x84] sm:$0xff]
      %v5060 = vld [vmem:[%s4647 + $0x94] sm:$0xff]
      %v5061 = vld [vmem:[%s4647 + $0x9c] sm:$0xff]
      %v5062 = vld [vmem:[%s4647 + $0xac] sm:$0xff]
      %v5063 = vld [vmem:[%s4647 + $0xb4] sm:$0xff]
      %v5064 = vld [vmem:[%s4647 + $0xc4] sm:$0xff]
      %v5065 = vld [vmem:[%s4647 + $0xcc] sm:$0xff]
      %v5066 = vld [vmem:[%s4647 + $0xdc] sm:$0xff]
      %v5067 = vld [vmem:[%s4647 + $0xe4] sm:$0xff]
      %v5068 = vld [vmem:[%s4647 + $0xf4] sm:$0xff]
      %v5069 = vld [vmem:[%s4647 + $0xfc] sm:$0xff]
      %v5070 = vld [vmem:[%s4647 + $0x10c] sm:$0xff]
      %v5071 = vld [vmem:[%s4647 + $0x114] sm:$0xff]
      %v5072 = vld [vmem:[%s4647 + $0x124] sm:$0xff]
      %v5073 = vld [vmem:[%s4647 + $0x12c] sm:$0xff]
      %v5074 = vld [vmem:[%s4647 + $0x13c] sm:$0xff]
      %v5075 = vld [vmem:[%s4647 + $0x144] sm:$0xff]
      %v5076 = vld [vmem:[%s4647 + $0x154] sm:$0xff]
      %v5077 = vld [vmem:[%s4647 + $0x15c] sm:$0xff]
      %v5078 = vld [vmem:[%s4647 + $0x16c] sm:$0xff]
      %v5079 = vld [vmem:[%s4647 + $0x174] sm:$0xff]
      %v5080 = vlaneseq
      %v5081 = vshrl.u32 %v5080, 7
      %v5082 = vsub.s32 6, %v5081
      %v5083 = vrot.slane %v393, %v5082
      %v5084 = vmul.f32 %v5048, %v5083
      %v5085 = vmul.f32 %v5049, %v5083
      %v5086 = vmul.f32 %v5050, %v5083
      %v5087 = vmul.f32 %v5051, %v5083
      %v5088 = vmul.f32 %v5052, %v5083
      %v5089 = vmul.f32 %v5053, %v5083
      %v5090 = vmul.f32 %v5054, %v5083
      %v5091 = vmul.f32 %v5055, %v5083
      %v5092 = vmul.f32 %v5056, %v5083
      %v5093 = vmul.f32 %v5057, %v5083
      %v5094 = vmul.f32 %v5058, %v5083
      %v5095 = vmul.f32 %v5059, %v5083
      %v5096 = vmul.f32 %v5060, %v5083
      %v5097 = vmul.f32 %v5061, %v5083
      %v5098 = vmul.f32 %v5062, %v5083
      %v5099 = vmul.f32 %v5063, %v5083
      %v5100 = vmul.f32 %v5064, %v5083
      %v5101 = vmul.f32 %v5065, %v5083
      %v5102 = vmul.f32 %v5066, %v5083
      %v5103 = vmul.f32 %v5067, %v5083
      %v5104 = vmul.f32 %v5068, %v5083
      %v5105 = vmul.f32 %v5069, %v5083
      %v5106 = vmul.f32 %v5070, %v5083
      %v5107 = vmul.f32 %v5071, %v5083
      %v5108 = vmul.f32 %v5072, %v5083
      %v5109 = vmul.f32 %v5073, %v5083
      %v5110 = vmul.f32 %v5074, %v5083
      %v5111 = vmul.f32 %v5075, %v5083
      %v5112 = vmul.f32 %v5076, %v5083
      %v5113 = vmul.f32 %v5077, %v5083
      %v5114 = vmul.f32 %v5078, %v5083
      %v5115 = vmul.f32 %v5079, %v5083
      %v5116 = vadd.f32 %v5016, %v5084
      %v5117 = vadd.f32 %v5017, %v5085
      %v5118 = vadd.f32 %v5018, %v5086
      %v5119 = vadd.f32 %v5019, %v5087
      %v5120 = vadd.f32 %v5020, %v5088
      %v5121 = vadd.f32 %v5021, %v5089
      %v5122 = vadd.f32 %v5022, %v5090
      %v5123 = vadd.f32 %v5023, %v5091
      %v5124 = vadd.f32 %v5024, %v5092
      %v5125 = vadd.f32 %v5025, %v5093
      %v5126 = vadd.f32 %v5026, %v5094
      %v5127 = vadd.f32 %v5027, %v5095
      %v5128 = vadd.f32 %v5028, %v5096
      %v5129 = vadd.f32 %v5029, %v5097
      %v5130 = vadd.f32 %v5030, %v5098
      %v5131 = vadd.f32 %v5031, %v5099
      %v5132 = vadd.f32 %v5032, %v5100
      %v5133 = vadd.f32 %v5033, %v5101
      %v5134 = vadd.f32 %v5034, %v5102
      %v5135 = vadd.f32 %v5035, %v5103
      %v5136 = vadd.f32 %v5036, %v5104
      %v5137 = vadd.f32 %v5037, %v5105
      %v5138 = vadd.f32 %v5038, %v5106
      %v5139 = vadd.f32 %v5039, %v5107
      %v5140 = vadd.f32 %v5040, %v5108
      %v5141 = vadd.f32 %v5041, %v5109
      %v5142 = vadd.f32 %v5042, %v5110
      %v5143 = vadd.f32 %v5043, %v5111
      %v5144 = vadd.f32 %v5044, %v5112
      %v5145 = vadd.f32 %v5045, %v5113
      %v5146 = vadd.f32 %v5046, %v5114
      %v5147 = vadd.f32 %v5047, %v5115
      %v5148 = vld [vmem:[%s4647 + $0x5] sm:$0xff]
      %v5149 = vld [vmem:[%s4647 + $0xd] sm:$0xff]
      %v5150 = vld [vmem:[%s4647 + $0x1d] sm:$0xff]
      %v5151 = vld [vmem:[%s4647 + $0x25] sm:$0xff]
      %v5152 = vld [vmem:[%s4647 + $0x35] sm:$0xff]
      %v5153 = vld [vmem:[%s4647 + $0x3d] sm:$0xff]
      %v5154 = vld [vmem:[%s4647 + $0x4d] sm:$0xff]
      %v5155 = vld [vmem:[%s4647 + $0x55] sm:$0xff]
      %v5156 = vld [vmem:[%s4647 + $0x65] sm:$0xff]
      %v5157 = vld [vmem:[%s4647 + $0x6d] sm:$0xff]
      %v5158 = vld [vmem:[%s4647 + $0x7d] sm:$0xff]
      %v5159 = vld [vmem:[%s4647 + $0x85] sm:$0xff]
      %v5160 = vld [vmem:[%s4647 + $0x95] sm:$0xff]
      %v5161 = vld [vmem:[%s4647 + $0x9d] sm:$0xff]
      %v5162 = vld [vmem:[%s4647 + $0xad] sm:$0xff]
      %v5163 = vld [vmem:[%s4647 + $0xb5] sm:$0xff]
      %v5164 = vld [vmem:[%s4647 + $0xc5] sm:$0xff]
      %v5165 = vld [vmem:[%s4647 + $0xcd] sm:$0xff]
      %v5166 = vld [vmem:[%s4647 + $0xdd] sm:$0xff]
      %v5167 = vld [vmem:[%s4647 + $0xe5] sm:$0xff]
      %v5168 = vld [vmem:[%s4647 + $0xf5] sm:$0xff]
      %v5169 = vld [vmem:[%s4647 + $0xfd] sm:$0xff]
      %v5170 = vld [vmem:[%s4647 + $0x10d] sm:$0xff]
      %v5171 = vld [vmem:[%s4647 + $0x115] sm:$0xff]
      %v5172 = vld [vmem:[%s4647 + $0x125] sm:$0xff]
      %v5173 = vld [vmem:[%s4647 + $0x12d] sm:$0xff]
      %v5174 = vld [vmem:[%s4647 + $0x13d] sm:$0xff]
      %v5175 = vld [vmem:[%s4647 + $0x145] sm:$0xff]
      %v5176 = vld [vmem:[%s4647 + $0x155] sm:$0xff]
      %v5177 = vld [vmem:[%s4647 + $0x15d] sm:$0xff]
      %v5178 = vld [vmem:[%s4647 + $0x16d] sm:$0xff]
      %v5179 = vld [vmem:[%s4647 + $0x175] sm:$0xff]
      %v5180 = vlaneseq
      %v5181 = vshrl.u32 %v5180, 7
      %v5182 = vsub.s32 7, %v5181
      %v5183 = vrot.slane %v393, %v5182
      %v5184 = vmul.f32 %v5148, %v5183
      %v5185 = vmul.f32 %v5149, %v5183
      %v5186 = vmul.f32 %v5150, %v5183
      %v5187 = vmul.f32 %v5151, %v5183
      %v5188 = vmul.f32 %v5152, %v5183
      %v5189 = vmul.f32 %v5153, %v5183
      %v5190 = vmul.f32 %v5154, %v5183
      %v5191 = vmul.f32 %v5155, %v5183
      %v5192 = vmul.f32 %v5156, %v5183
      %v5193 = vmul.f32 %v5157, %v5183
      %v5194 = vmul.f32 %v5158, %v5183
      %v5195 = vmul.f32 %v5159, %v5183
      %v5196 = vmul.f32 %v5160, %v5183
      %v5197 = vmul.f32 %v5161, %v5183
      %v5198 = vmul.f32 %v5162, %v5183
      %v5199 = vmul.f32 %v5163, %v5183
      %v5200 = vmul.f32 %v5164, %v5183
      %v5201 = vmul.f32 %v5165, %v5183
      %v5202 = vmul.f32 %v5166, %v5183
      %v5203 = vmul.f32 %v5167, %v5183
      %v5204 = vmul.f32 %v5168, %v5183
      %v5205 = vmul.f32 %v5169, %v5183
      %v5206 = vmul.f32 %v5170, %v5183
      %v5207 = vmul.f32 %v5171, %v5183
      %v5208 = vmul.f32 %v5172, %v5183
      %v5209 = vmul.f32 %v5173, %v5183
      %v5210 = vmul.f32 %v5174, %v5183
      %v5211 = vmul.f32 %v5175, %v5183
      %v5212 = vmul.f32 %v5176, %v5183
      %v5213 = vmul.f32 %v5177, %v5183
      %v5214 = vmul.f32 %v5178, %v5183
      %v5215 = vmul.f32 %v5179, %v5183
      %v5216 = vadd.f32 %v5116, %v5184
      %v5217 = vadd.f32 %v5117, %v5185
      %v5218 = vadd.f32 %v5118, %v5186
      %v5219 = vadd.f32 %v5119, %v5187
      %v5220 = vadd.f32 %v5120, %v5188
      %v5221 = vadd.f32 %v5121, %v5189
      %v5222 = vadd.f32 %v5122, %v5190
      %v5223 = vadd.f32 %v5123, %v5191
      %v5224 = vadd.f32 %v5124, %v5192
      %v5225 = vadd.f32 %v5125, %v5193
      %v5226 = vadd.f32 %v5126, %v5194
      %v5227 = vadd.f32 %v5127, %v5195
      %v5228 = vadd.f32 %v5128, %v5196
      %v5229 = vadd.f32 %v5129, %v5197
      %v5230 = vadd.f32 %v5130, %v5198
      %v5231 = vadd.f32 %v5131, %v5199
      %v5232 = vadd.f32 %v5132, %v5200
      %v5233 = vadd.f32 %v5133, %v5201
      %v5234 = vadd.f32 %v5134, %v5202
      %v5235 = vadd.f32 %v5135, %v5203
      %v5236 = vadd.f32 %v5136, %v5204
      %v5237 = vadd.f32 %v5137, %v5205
      %v5238 = vadd.f32 %v5138, %v5206
      %v5239 = vadd.f32 %v5139, %v5207
      %v5240 = vadd.f32 %v5140, %v5208
      %v5241 = vadd.f32 %v5141, %v5209
      %v5242 = vadd.f32 %v5142, %v5210
      %v5243 = vadd.f32 %v5143, %v5211
      %v5244 = vadd.f32 %v5144, %v5212
      %v5245 = vadd.f32 %v5145, %v5213
      %v5246 = vadd.f32 %v5146, %v5214
      %v5247 = vadd.f32 %v5147, %v5215
      %v5248 = vld [vmem:[%s4647 + $0x6] sm:$0xff]
      %v5249 = vld [vmem:[%s4647 + $0xe] sm:$0xff]
      %v5250 = vld [vmem:[%s4647 + $0x1e] sm:$0xff]
      %v5251 = vld [vmem:[%s4647 + $0x26] sm:$0xff]
      %v5252 = vld [vmem:[%s4647 + $0x36] sm:$0xff]
      %v5253 = vld [vmem:[%s4647 + $0x3e] sm:$0xff]
      %v5254 = vld [vmem:[%s4647 + $0x4e] sm:$0xff]
      %v5255 = vld [vmem:[%s4647 + $0x56] sm:$0xff]
      %v5256 = vld [vmem:[%s4647 + $0x66] sm:$0xff]
      %v5257 = vld [vmem:[%s4647 + $0x6e] sm:$0xff]
      %v5258 = vld [vmem:[%s4647 + $0x7e] sm:$0xff]
      %v5259 = vld [vmem:[%s4647 + $0x86] sm:$0xff]
      %v5260 = vld [vmem:[%s4647 + $0x96] sm:$0xff]
      %v5261 = vld [vmem:[%s4647 + $0x9e] sm:$0xff]
      %v5262 = vld [vmem:[%s4647 + $0xae] sm:$0xff]
      %v5263 = vld [vmem:[%s4647 + $0xb6] sm:$0xff]
      %v5264 = vld [vmem:[%s4647 + $0xc6] sm:$0xff]
      %v5265 = vld [vmem:[%s4647 + $0xce] sm:$0xff]
      %v5266 = vld [vmem:[%s4647 + $0xde] sm:$0xff]
      %v5267 = vld [vmem:[%s4647 + $0xe6] sm:$0xff]
      %v5268 = vld [vmem:[%s4647 + $0xf6] sm:$0xff]
      %v5269 = vld [vmem:[%s4647 + $0xfe] sm:$0xff]
      %v5270 = vld [vmem:[%s4647 + $0x10e] sm:$0xff]
      %v5271 = vld [vmem:[%s4647 + $0x116] sm:$0xff]
      %v5272 = vld [vmem:[%s4647 + $0x126] sm:$0xff]
      %v5273 = vld [vmem:[%s4647 + $0x12e] sm:$0xff]
      %v5274 = vld [vmem:[%s4647 + $0x13e] sm:$0xff]
      %v5275 = vld [vmem:[%s4647 + $0x146] sm:$0xff]
      %v5276 = vld [vmem:[%s4647 + $0x156] sm:$0xff]
      %v5277 = vld [vmem:[%s4647 + $0x15e] sm:$0xff]
      %v5278 = vld [vmem:[%s4647 + $0x16e] sm:$0xff]
      %v5279 = vld [vmem:[%s4647 + $0x176] sm:$0xff]
      %v5280 = vlaneseq
      %v5281 = vshrl.u32 %v5280, 7
      %v5282 = vsub.s32 0, %v5281
      %v5283 = vrot.slane %v394, %v5282
      %v5284 = vmul.f32 %v5248, %v5283
      %v5285 = vmul.f32 %v5249, %v5283
      %v5286 = vmul.f32 %v5250, %v5283
      %v5287 = vmul.f32 %v5251, %v5283
      %v5288 = vmul.f32 %v5252, %v5283
      %v5289 = vmul.f32 %v5253, %v5283
      %v5290 = vmul.f32 %v5254, %v5283
      %v5291 = vmul.f32 %v5255, %v5283
      %v5292 = vmul.f32 %v5256, %v5283
      %v5293 = vmul.f32 %v5257, %v5283
      %v5294 = vmul.f32 %v5258, %v5283
      %v5295 = vmul.f32 %v5259, %v5283
      %v5296 = vmul.f32 %v5260, %v5283
      %v5297 = vmul.f32 %v5261, %v5283
      %v5298 = vmul.f32 %v5262, %v5283
      %v5299 = vmul.f32 %v5263, %v5283
      %v5300 = vmul.f32 %v5264, %v5283
      %v5301 = vmul.f32 %v5265, %v5283
      %v5302 = vmul.f32 %v5266, %v5283
      %v5303 = vmul.f32 %v5267, %v5283
      %v5304 = vmul.f32 %v5268, %v5283
      %v5305 = vmul.f32 %v5269, %v5283
      %v5306 = vmul.f32 %v5270, %v5283
      %v5307 = vmul.f32 %v5271, %v5283
      %v5308 = vmul.f32 %v5272, %v5283
      %v5309 = vmul.f32 %v5273, %v5283
      %v5310 = vmul.f32 %v5274, %v5283
      %v5311 = vmul.f32 %v5275, %v5283
      %v5312 = vmul.f32 %v5276, %v5283
      %v5313 = vmul.f32 %v5277, %v5283
      %v5314 = vmul.f32 %v5278, %v5283
      %v5315 = vmul.f32 %v5279, %v5283
      %v5316 = vadd.f32 %v5216, %v5284
      %v5317 = vadd.f32 %v5217, %v5285
      %v5318 = vadd.f32 %v5218, %v5286
      %v5319 = vadd.f32 %v5219, %v5287
      %v5320 = vadd.f32 %v5220, %v5288
      %v5321 = vadd.f32 %v5221, %v5289
      %v5322 = vadd.f32 %v5222, %v5290
      %v5323 = vadd.f32 %v5223, %v5291
      %v5324 = vadd.f32 %v5224, %v5292
      %v5325 = vadd.f32 %v5225, %v5293
      %v5326 = vadd.f32 %v5226, %v5294
      %v5327 = vadd.f32 %v5227, %v5295
      %v5328 = vadd.f32 %v5228, %v5296
      %v5329 = vadd.f32 %v5229, %v5297
      %v5330 = vadd.f32 %v5230, %v5298
      %v5331 = vadd.f32 %v5231, %v5299
      %v5332 = vadd.f32 %v5232, %v5300
      %v5333 = vadd.f32 %v5233, %v5301
      %v5334 = vadd.f32 %v5234, %v5302
      %v5335 = vadd.f32 %v5235, %v5303
      %v5336 = vadd.f32 %v5236, %v5304
      %v5337 = vadd.f32 %v5237, %v5305
      %v5338 = vadd.f32 %v5238, %v5306
      %v5339 = vadd.f32 %v5239, %v5307
      %v5340 = vadd.f32 %v5240, %v5308
      %v5341 = vadd.f32 %v5241, %v5309
      %v5342 = vadd.f32 %v5242, %v5310
      %v5343 = vadd.f32 %v5243, %v5311
      %v5344 = vadd.f32 %v5244, %v5312
      %v5345 = vadd.f32 %v5245, %v5313
      %v5346 = vadd.f32 %v5246, %v5314
      %v5347 = vadd.f32 %v5247, %v5315
      %5348 = vadd.xlane.f32.xlu0 %v5316
      %v5349 = vpop.xlane.xlu0 %5348
      %5350 = vadd.xlane.f32.xlu0 %v5317
      %v5351 = vpop.xlane.xlu0 %5350
      %5352 = vadd.xlane.f32.xlu0 %v5318
      %v5353 = vpop.xlane.xlu0 %5352
      %5354 = vadd.xlane.f32.xlu0 %v5319
      %v5355 = vpop.xlane.xlu0 %5354
      %5356 = vadd.xlane.f32.xlu0 %v5320
      %v5357 = vpop.xlane.xlu0 %5356
      %5358 = vadd.xlane.f32.xlu0 %v5321
      %v5359 = vpop.xlane.xlu0 %5358
      %5360 = vadd.xlane.f32.xlu0 %v5322
      %v5361 = vpop.xlane.xlu0 %5360
      %5362 = vadd.xlane.f32.xlu0 %v5323
      %v5363 = vpop.xlane.xlu0 %5362
      %5364 = vadd.xlane.f32.xlu0 %v5324
      %v5365 = vpop.xlane.xlu0 %5364
      %5366 = vadd.xlane.f32.xlu0 %v5325
      %v5367 = vpop.xlane.xlu0 %5366
      %5368 = vadd.xlane.f32.xlu0 %v5326
      %v5369 = vpop.xlane.xlu0 %5368
      %5370 = vadd.xlane.f32.xlu0 %v5327
      %v5371 = vpop.xlane.xlu0 %5370
      %5372 = vadd.xlane.f32.xlu0 %v5328
      %v5373 = vpop.xlane.xlu0 %5372
      %5374 = vadd.xlane.f32.xlu0 %v5329
      %v5375 = vpop.xlane.xlu0 %5374
      %5376 = vadd.xlane.f32.xlu0 %v5330
      %v5377 = vpop.xlane.xlu0 %5376
      %5378 = vadd.xlane.f32.xlu0 %v5331
      %v5379 = vpop.xlane.xlu0 %5378
      %5380 = vadd.xlane.f32.xlu0 %v5332
      %v5381 = vpop.xlane.xlu0 %5380
      %5382 = vadd.xlane.f32.xlu0 %v5333
      %v5383 = vpop.xlane.xlu0 %5382
      %5384 = vadd.xlane.f32.xlu0 %v5334
      %v5385 = vpop.xlane.xlu0 %5384
      %5386 = vadd.xlane.f32.xlu0 %v5335
      %v5387 = vpop.xlane.xlu0 %5386
      %5388 = vadd.xlane.f32.xlu0 %v5336
      %v5389 = vpop.xlane.xlu0 %5388
      %5390 = vadd.xlane.f32.xlu0 %v5337
      %v5391 = vpop.xlane.xlu0 %5390
      %5392 = vadd.xlane.f32.xlu0 %v5338
      %v5393 = vpop.xlane.xlu0 %5392
      %5394 = vadd.xlane.f32.xlu0 %v5339
      %v5395 = vpop.xlane.xlu0 %5394
      %5396 = vadd.xlane.f32.xlu0 %v5340
      %v5397 = vpop.xlane.xlu0 %5396
      %5398 = vadd.xlane.f32.xlu0 %v5341
      %v5399 = vpop.xlane.xlu0 %5398
      %5400 = vadd.xlane.f32.xlu0 %v5342
      %v5401 = vpop.xlane.xlu0 %5400
      %5402 = vadd.xlane.f32.xlu0 %v5343
      %v5403 = vpop.xlane.xlu0 %5402
      %5404 = vadd.xlane.f32.xlu0 %v5344
      %v5405 = vpop.xlane.xlu0 %5404
      %5406 = vadd.xlane.f32.xlu0 %v5345
      %v5407 = vpop.xlane.xlu0 %5406
      %5408 = vadd.xlane.f32.xlu0 %v5346
      %v5409 = vpop.xlane.xlu0 %5408
      %5410 = vadd.xlane.f32.xlu0 %v5347
      %v5411 = vpop.xlane.xlu0 %5410
      %v5412 = vmul.f32 %v5349, 0.25
      %v5413 = vmul.f32 %v5351, 0.25
      %v5414 = vmul.f32 %v5353, 0.25
      %v5415 = vmul.f32 %v5355, 0.25
      %v5416 = vmul.f32 %v5357, 0.25
      %v5417 = vmul.f32 %v5359, 0.25
      %v5418 = vmul.f32 %v5361, 0.25
      %v5419 = vmul.f32 %v5363, 0.25
      %v5420 = vmul.f32 %v5365, 0.25
      %v5421 = vmul.f32 %v5367, 0.25
      %v5422 = vmul.f32 %v5369, 0.25
      %v5423 = vmul.f32 %v5371, 0.25
      %v5424 = vmul.f32 %v5373, 0.25
      %v5425 = vmul.f32 %v5375, 0.25
      %v5426 = vmul.f32 %v5377, 0.25
      %v5427 = vmul.f32 %v5379, 0.25
      %v5428 = vmul.f32 %v5381, 0.25
      %v5429 = vmul.f32 %v5383, 0.25
      %v5430 = vmul.f32 %v5385, 0.25
      %v5431 = vmul.f32 %v5387, 0.25
      %v5432 = vmul.f32 %v5389, 0.25
      %v5433 = vmul.f32 %v5391, 0.25
      %v5434 = vmul.f32 %v5393, 0.25
      %v5435 = vmul.f32 %v5395, 0.25
      %v5436 = vmul.f32 %v5397, 0.25
      %v5437 = vmul.f32 %v5399, 0.25
      %v5438 = vmul.f32 %v5401, 0.25
      %v5439 = vmul.f32 %v5403, 0.25
      %v5440 = vmul.f32 %v5405, 0.25
      %v5441 = vmul.f32 %v5407, 0.25
      %v5442 = vmul.f32 %v5409, 0.25
      %v5443 = vmul.f32 %v5411, 0.25
      %v5444 = vsub.f32 %v5316, %v5412
      %v5445 = vsub.f32 %v5317, %v5413
      %v5446 = vsub.f32 %v5318, %v5414
      %v5447 = vsub.f32 %v5319, %v5415
      %v5448 = vsub.f32 %v5320, %v5416
      %v5449 = vsub.f32 %v5321, %v5417
      %v5450 = vsub.f32 %v5322, %v5418
      %v5451 = vsub.f32 %v5323, %v5419
      %v5452 = vsub.f32 %v5324, %v5420
      %v5453 = vsub.f32 %v5325, %v5421
      %v5454 = vsub.f32 %v5326, %v5422
      %v5455 = vsub.f32 %v5327, %v5423
      %v5456 = vsub.f32 %v5328, %v5424
      %v5457 = vsub.f32 %v5329, %v5425
      %v5458 = vsub.f32 %v5330, %v5426
      %v5459 = vsub.f32 %v5331, %v5427
      %v5460 = vsub.f32 %v5332, %v5428
      %v5461 = vsub.f32 %v5333, %v5429
      %v5462 = vsub.f32 %v5334, %v5430
      %v5463 = vsub.f32 %v5335, %v5431
      %v5464 = vsub.f32 %v5336, %v5432
      %v5465 = vsub.f32 %v5337, %v5433
      %v5466 = vsub.f32 %v5338, %v5434
      %v5467 = vsub.f32 %v5339, %v5435
      %v5468 = vsub.f32 %v5340, %v5436
      %v5469 = vsub.f32 %v5341, %v5437
      %v5470 = vsub.f32 %v5342, %v5438
      %v5471 = vsub.f32 %v5343, %v5439
      %v5472 = vsub.f32 %v5344, %v5440
      %v5473 = vsub.f32 %v5345, %v5441
      %v5474 = vsub.f32 %v5346, %v5442
      %v5475 = vsub.f32 %v5347, %v5443
      %v5476 = vmul.f32 %v5444, %v5444
      %v5477 = vmul.f32 %v5445, %v5445
      %v5478 = vmul.f32 %v5446, %v5446
      %v5479 = vmul.f32 %v5447, %v5447
      %v5480 = vmul.f32 %v5448, %v5448
      %v5481 = vmul.f32 %v5449, %v5449
      %v5482 = vmul.f32 %v5450, %v5450
      %v5483 = vmul.f32 %v5451, %v5451
      %v5484 = vmul.f32 %v5452, %v5452
      %v5485 = vmul.f32 %v5453, %v5453
      %v5486 = vmul.f32 %v5454, %v5454
      %v5487 = vmul.f32 %v5455, %v5455
      %v5488 = vmul.f32 %v5456, %v5456
      %v5489 = vmul.f32 %v5457, %v5457
      %v5490 = vmul.f32 %v5458, %v5458
      %v5491 = vmul.f32 %v5459, %v5459
      %v5492 = vmul.f32 %v5460, %v5460
      %v5493 = vmul.f32 %v5461, %v5461
      %v5494 = vmul.f32 %v5462, %v5462
      %v5495 = vmul.f32 %v5463, %v5463
      %v5496 = vmul.f32 %v5464, %v5464
      %v5497 = vmul.f32 %v5465, %v5465
      %v5498 = vmul.f32 %v5466, %v5466
      %v5499 = vmul.f32 %v5467, %v5467
      %v5500 = vmul.f32 %v5468, %v5468
      %v5501 = vmul.f32 %v5469, %v5469
      %v5502 = vmul.f32 %v5470, %v5470
      %v5503 = vmul.f32 %v5471, %v5471
      %v5504 = vmul.f32 %v5472, %v5472
      %v5505 = vmul.f32 %v5473, %v5473
      %v5506 = vmul.f32 %v5474, %v5474
      %v5507 = vmul.f32 %v5475, %v5475
      %5508 = vadd.xlane.f32.xlu0 %v5476
      %v5509 = vpop.xlane.xlu0 %5508
      %5510 = vadd.xlane.f32.xlu0 %v5477
      %v5511 = vpop.xlane.xlu0 %5510
      %5512 = vadd.xlane.f32.xlu0 %v5478
      %v5513 = vpop.xlane.xlu0 %5512
      %5514 = vadd.xlane.f32.xlu0 %v5479
      %v5515 = vpop.xlane.xlu0 %5514
      %5516 = vadd.xlane.f32.xlu0 %v5480
      %v5517 = vpop.xlane.xlu0 %5516
      %5518 = vadd.xlane.f32.xlu0 %v5481
      %v5519 = vpop.xlane.xlu0 %5518
      %5520 = vadd.xlane.f32.xlu0 %v5482
      %v5521 = vpop.xlane.xlu0 %5520
      %5522 = vadd.xlane.f32.xlu0 %v5483
      %v5523 = vpop.xlane.xlu0 %5522
      %5524 = vadd.xlane.f32.xlu0 %v5484
      %v5525 = vpop.xlane.xlu0 %5524
      %5526 = vadd.xlane.f32.xlu0 %v5485
      %v5527 = vpop.xlane.xlu0 %5526
      %5528 = vadd.xlane.f32.xlu0 %v5486
      %v5529 = vpop.xlane.xlu0 %5528
      %5530 = vadd.xlane.f32.xlu0 %v5487
      %v5531 = vpop.xlane.xlu0 %5530
      %5532 = vadd.xlane.f32.xlu0 %v5488
      %v5533 = vpop.xlane.xlu0 %5532
      %5534 = vadd.xlane.f32.xlu0 %v5489
      %v5535 = vpop.xlane.xlu0 %5534
      %5536 = vadd.xlane.f32.xlu0 %v5490
      %v5537 = vpop.xlane.xlu0 %5536
      %5538 = vadd.xlane.f32.xlu0 %v5491
      %v5539 = vpop.xlane.xlu0 %5538
      %5540 = vadd.xlane.f32.xlu0 %v5492
      %v5541 = vpop.xlane.xlu0 %5540
      %5542 = vadd.xlane.f32.xlu0 %v5493
      %v5543 = vpop.xlane.xlu0 %5542
      %5544 = vadd.xlane.f32.xlu0 %v5494
      %v5545 = vpop.xlane.xlu0 %5544
      %5546 = vadd.xlane.f32.xlu0 %v5495
      %v5547 = vpop.xlane.xlu0 %5546
      %5548 = vadd.xlane.f32.xlu0 %v5496
      %v5549 = vpop.xlane.xlu0 %5548
      %5550 = vadd.xlane.f32.xlu0 %v5497
      %v5551 = vpop.xlane.xlu0 %5550
      %5552 = vadd.xlane.f32.xlu0 %v5498
      %v5553 = vpop.xlane.xlu0 %5552
      %5554 = vadd.xlane.f32.xlu0 %v5499
      %v5555 = vpop.xlane.xlu0 %5554
      %5556 = vadd.xlane.f32.xlu0 %v5500
      %v5557 = vpop.xlane.xlu0 %5556
      %5558 = vadd.xlane.f32.xlu0 %v5501
      %v5559 = vpop.xlane.xlu0 %5558
      %5560 = vadd.xlane.f32.xlu0 %v5502
      %v5561 = vpop.xlane.xlu0 %5560
      %5562 = vadd.xlane.f32.xlu0 %v5503
      %v5563 = vpop.xlane.xlu0 %5562
      %5564 = vadd.xlane.f32.xlu0 %v5504
      %v5565 = vpop.xlane.xlu0 %5564
      %5566 = vadd.xlane.f32.xlu0 %v5505
      %v5567 = vpop.xlane.xlu0 %5566
      %5568 = vadd.xlane.f32.xlu0 %v5506
      %v5569 = vpop.xlane.xlu0 %5568
      %5570 = vadd.xlane.f32.xlu0 %v5507
      %v5571 = vpop.xlane.xlu0 %5570
      %v5572 = vmul.f32 %v5412, %v5412
      %v5573 = vmul.f32 %v5413, %v5413
      %v5574 = vmul.f32 %v5414, %v5414
      %v5575 = vmul.f32 %v5415, %v5415
      %v5576 = vmul.f32 %v5416, %v5416
      %v5577 = vmul.f32 %v5417, %v5417
      %v5578 = vmul.f32 %v5418, %v5418
      %v5579 = vmul.f32 %v5419, %v5419
      %v5580 = vmul.f32 %v5420, %v5420
      %v5581 = vmul.f32 %v5421, %v5421
      %v5582 = vmul.f32 %v5422, %v5422
      %v5583 = vmul.f32 %v5423, %v5423
      %v5584 = vmul.f32 %v5424, %v5424
      %v5585 = vmul.f32 %v5425, %v5425
      %v5586 = vmul.f32 %v5426, %v5426
      %v5587 = vmul.f32 %v5427, %v5427
      %v5588 = vmul.f32 %v5428, %v5428
      %v5589 = vmul.f32 %v5429, %v5429
      %v5590 = vmul.f32 %v5430, %v5430
      %v5591 = vmul.f32 %v5431, %v5431
      %v5592 = vmul.f32 %v5432, %v5432
      %v5593 = vmul.f32 %v5433, %v5433
      %v5594 = vmul.f32 %v5434, %v5434
      %v5595 = vmul.f32 %v5435, %v5435
      %v5596 = vmul.f32 %v5436, %v5436
      %v5597 = vmul.f32 %v5437, %v5437
      %v5598 = vmul.f32 %v5438, %v5438
      %v5599 = vmul.f32 %v5439, %v5439
      %v5600 = vmul.f32 %v5440, %v5440
      %v5601 = vmul.f32 %v5441, %v5441
      %v5602 = vmul.f32 %v5442, %v5442
      %v5603 = vmul.f32 %v5443, %v5443
      %v5604 = vmul.f32 %v5572, 124.0
      %v5605 = vmul.f32 %v5573, 124.0
      %v5606 = vmul.f32 %v5574, 124.0
      %v5607 = vmul.f32 %v5575, 124.0
      %v5608 = vmul.f32 %v5576, 124.0
      %v5609 = vmul.f32 %v5577, 124.0
      %v5610 = vmul.f32 %v5578, 124.0
      %v5611 = vmul.f32 %v5579, 124.0
      %v5612 = vmul.f32 %v5580, 124.0
      %v5613 = vmul.f32 %v5581, 124.0
      %v5614 = vmul.f32 %v5582, 124.0
      %v5615 = vmul.f32 %v5583, 124.0
      %v5616 = vmul.f32 %v5584, 124.0
      %v5617 = vmul.f32 %v5585, 124.0
      %v5618 = vmul.f32 %v5586, 124.0
      %v5619 = vmul.f32 %v5587, 124.0
      %v5620 = vmul.f32 %v5588, 124.0
      %v5621 = vmul.f32 %v5589, 124.0
      %v5622 = vmul.f32 %v5590, 124.0
      %v5623 = vmul.f32 %v5591, 124.0
      %v5624 = vmul.f32 %v5592, 124.0
      %v5625 = vmul.f32 %v5593, 124.0
      %v5626 = vmul.f32 %v5594, 124.0
      %v5627 = vmul.f32 %v5595, 124.0
      %v5628 = vmul.f32 %v5596, 124.0
      %v5629 = vmul.f32 %v5597, 124.0
      %v5630 = vmul.f32 %v5598, 124.0
      %v5631 = vmul.f32 %v5599, 124.0
      %v5632 = vmul.f32 %v5600, 124.0
      %v5633 = vmul.f32 %v5601, 124.0
      %v5634 = vmul.f32 %v5602, 124.0
      %v5635 = vmul.f32 %v5603, 124.0
      %v5636 = vsub.f32 %v5509, %v5604
      %v5637 = vsub.f32 %v5511, %v5605
      %v5638 = vsub.f32 %v5513, %v5606
      %v5639 = vsub.f32 %v5515, %v5607
      %v5640 = vsub.f32 %v5517, %v5608
      %v5641 = vsub.f32 %v5519, %v5609
      %v5642 = vsub.f32 %v5521, %v5610
      %v5643 = vsub.f32 %v5523, %v5611
      %v5644 = vsub.f32 %v5525, %v5612
      %v5645 = vsub.f32 %v5527, %v5613
      %v5646 = vsub.f32 %v5529, %v5614
      %v5647 = vsub.f32 %v5531, %v5615
      %v5648 = vsub.f32 %v5533, %v5616
      %v5649 = vsub.f32 %v5535, %v5617
      %v5650 = vsub.f32 %v5537, %v5618
      %v5651 = vsub.f32 %v5539, %v5619
      %v5652 = vsub.f32 %v5541, %v5620
      %v5653 = vsub.f32 %v5543, %v5621
      %v5654 = vsub.f32 %v5545, %v5622
      %v5655 = vsub.f32 %v5547, %v5623
      %v5656 = vsub.f32 %v5549, %v5624
      %v5657 = vsub.f32 %v5551, %v5625
      %v5658 = vsub.f32 %v5553, %v5626
      %v5659 = vsub.f32 %v5555, %v5627
      %v5660 = vsub.f32 %v5557, %v5628
      %v5661 = vsub.f32 %v5559, %v5629
      %v5662 = vsub.f32 %v5561, %v5630
      %v5663 = vsub.f32 %v5563, %v5631
      %v5664 = vsub.f32 %v5565, %v5632
      %v5665 = vsub.f32 %v5567, %v5633
      %v5666 = vsub.f32 %v5569, %v5634
      %v5667 = vsub.f32 %v5571, %v5635
      %v5668 = vmul.f32 %v5636, 0.25
      %v5669 = vmul.f32 %v5637, 0.25
      %v5670 = vmul.f32 %v5638, 0.25
      %v5671 = vmul.f32 %v5639, 0.25
      %v5672 = vmul.f32 %v5640, 0.25
      %v5673 = vmul.f32 %v5641, 0.25
      %v5674 = vmul.f32 %v5642, 0.25
      %v5675 = vmul.f32 %v5643, 0.25
      %v5676 = vmul.f32 %v5644, 0.25
      %v5677 = vmul.f32 %v5645, 0.25
      %v5678 = vmul.f32 %v5646, 0.25
      %v5679 = vmul.f32 %v5647, 0.25
      %v5680 = vmul.f32 %v5648, 0.25
      %v5681 = vmul.f32 %v5649, 0.25
      %v5682 = vmul.f32 %v5650, 0.25
      %v5683 = vmul.f32 %v5651, 0.25
      %v5684 = vmul.f32 %v5652, 0.25
      %v5685 = vmul.f32 %v5653, 0.25
      %v5686 = vmul.f32 %v5654, 0.25
      %v5687 = vmul.f32 %v5655, 0.25
      %v5688 = vmul.f32 %v5656, 0.25
      %v5689 = vmul.f32 %v5657, 0.25
      %v5690 = vmul.f32 %v5658, 0.25
      %v5691 = vmul.f32 %v5659, 0.25
      %v5692 = vmul.f32 %v5660, 0.25
      %v5693 = vmul.f32 %v5661, 0.25
      %v5694 = vmul.f32 %v5662, 0.25
      %v5695 = vmul.f32 %v5663, 0.25
      %v5696 = vmul.f32 %v5664, 0.25
      %v5697 = vmul.f32 %v5665, 0.25
      %v5698 = vmul.f32 %v5666, 0.25
      %v5699 = vmul.f32 %v5667, 0.25
      %v5700 = vadd.f32 %v5668, 1e-06
      %v5701 = vadd.f32 %v5669, 1e-06
      %v5702 = vadd.f32 %v5670, 1e-06
      %v5703 = vadd.f32 %v5671, 1e-06
      %v5704 = vadd.f32 %v5672, 1e-06
      %v5705 = vadd.f32 %v5673, 1e-06
      %v5706 = vadd.f32 %v5674, 1e-06
      %v5707 = vadd.f32 %v5675, 1e-06
      %v5708 = vadd.f32 %v5676, 1e-06
      %v5709 = vadd.f32 %v5677, 1e-06
      %v5710 = vadd.f32 %v5678, 1e-06
      %v5711 = vadd.f32 %v5679, 1e-06
      %v5712 = vadd.f32 %v5680, 1e-06
      %v5713 = vadd.f32 %v5681, 1e-06
      %v5714 = vadd.f32 %v5682, 1e-06
      %v5715 = vadd.f32 %v5683, 1e-06
      %v5716 = vadd.f32 %v5684, 1e-06
      %v5717 = vadd.f32 %v5685, 1e-06
      %v5718 = vadd.f32 %v5686, 1e-06
      %v5719 = vadd.f32 %v5687, 1e-06
      %v5720 = vadd.f32 %v5688, 1e-06
      %v5721 = vadd.f32 %v5689, 1e-06
      %v5722 = vadd.f32 %v5690, 1e-06
      %v5723 = vadd.f32 %v5691, 1e-06
      %v5724 = vadd.f32 %v5692, 1e-06
      %v5725 = vadd.f32 %v5693, 1e-06
      %v5726 = vadd.f32 %v5694, 1e-06
      %v5727 = vadd.f32 %v5695, 1e-06
      %v5728 = vadd.f32 %v5696, 1e-06
      %v5729 = vadd.f32 %v5697, 1e-06
      %v5730 = vadd.f32 %v5698, 1e-06
      %v5731 = vadd.f32 %v5699, 1e-06
      %v5732 = vrsqrt.pop %v5700
      %v5733 = vrsqrt.pop %v5701
      %v5734 = vrsqrt.pop %v5702
      %v5735 = vrsqrt.pop %v5703
      %v5736 = vrsqrt.pop %v5704
      %v5737 = vrsqrt.pop %v5705
      %v5738 = vrsqrt.pop %v5706
      %v5739 = vrsqrt.pop %v5707
      %v5740 = vrsqrt.pop %v5708
      %v5741 = vrsqrt.pop %v5709
      %v5742 = vrsqrt.pop %v5710
      %v5743 = vrsqrt.pop %v5711
      %v5744 = vrsqrt.pop %v5712
      %v5745 = vrsqrt.pop %v5713
      %v5746 = vrsqrt.pop %v5714
      %v5747 = vrsqrt.pop %v5715
      %v5748 = vrsqrt.pop %v5716
      %v5749 = vrsqrt.pop %v5717
      %v5750 = vrsqrt.pop %v5718
      %v5751 = vrsqrt.pop %v5719
      %v5752 = vrsqrt.pop %v5720
      %v5753 = vrsqrt.pop %v5721
      %v5754 = vrsqrt.pop %v5722
      %v5755 = vrsqrt.pop %v5723
      %v5756 = vrsqrt.pop %v5724
      %v5757 = vrsqrt.pop %v5725
      %v5758 = vrsqrt.pop %v5726
      %v5759 = vrsqrt.pop %v5727
      %v5760 = vrsqrt.pop %v5728
      %v5761 = vrsqrt.pop %v5729
      %v5762 = vrsqrt.pop %v5730
      %v5763 = vrsqrt.pop %v5731
      %v5764 = vmul.f32 %v5444, %v5732
      %v5765 = vmul.f32 %v5445, %v5733
      %v5766 = vmul.f32 %v5446, %v5734
      %v5767 = vmul.f32 %v5447, %v5735
      %v5768 = vmul.f32 %v5448, %v5736
      %v5769 = vmul.f32 %v5449, %v5737
      %v5770 = vmul.f32 %v5450, %v5738
      %v5771 = vmul.f32 %v5451, %v5739
      %v5772 = vmul.f32 %v5452, %v5740
      %v5773 = vmul.f32 %v5453, %v5741
      %v5774 = vmul.f32 %v5454, %v5742
      %v5775 = vmul.f32 %v5455, %v5743
      %v5776 = vmul.f32 %v5456, %v5744
      %v5777 = vmul.f32 %v5457, %v5745
      %v5778 = vmul.f32 %v5458, %v5746
      %v5779 = vmul.f32 %v5459, %v5747
      %v5780 = vmul.f32 %v5460, %v5748
      %v5781 = vmul.f32 %v5461, %v5749
      %v5782 = vmul.f32 %v5462, %v5750
      %v5783 = vmul.f32 %v5463, %v5751
      %v5784 = vmul.f32 %v5464, %v5752
      %v5785 = vmul.f32 %v5465, %v5753
      %v5786 = vmul.f32 %v5466, %v5754
      %v5787 = vmul.f32 %v5467, %v5755
      %v5788 = vmul.f32 %v5468, %v5756
      %v5789 = vmul.f32 %v5469, %v5757
      %v5790 = vmul.f32 %v5470, %v5758
      %v5791 = vmul.f32 %v5471, %v5759
      %v5792 = vmul.f32 %v5472, %v5760
      %v5793 = vmul.f32 %v5473, %v5761
      %v5794 = vmul.f32 %v5474, %v5762
      %v5795 = vmul.f32 %v5475, %v5763
      %v5797 = vlaneseq
      %v5798 = vshrl.u32 %v5797, 7
      %v5799 = vsub.s32 0, %v5798
      %v5800 = vrot.slane %v396, %v5799
      %v5802 = vmul.f32 %v5764, %v5800
      %v5803 = vmul.f32 %v5765, %v5800
      %v5804 = vmul.f32 %v5766, %v5800
      %v5805 = vmul.f32 %v5767, %v5800
      %v5806 = vmul.f32 %v5768, %v5800
      %v5807 = vmul.f32 %v5769, %v5800
      %v5808 = vmul.f32 %v5770, %v5800
      %v5809 = vmul.f32 %v5771, %v5800
      %v5810 = vmul.f32 %v5772, %v5800
      %v5811 = vmul.f32 %v5773, %v5800
      %v5812 = vmul.f32 %v5774, %v5800
      %v5813 = vmul.f32 %v5775, %v5800
      %v5814 = vmul.f32 %v5776, %v5800
      %v5815 = vmul.f32 %v5777, %v5800
      %v5816 = vmul.f32 %v5778, %v5800
      %v5817 = vmul.f32 %v5779, %v5800
      %v5818 = vmul.f32 %v5780, %v5800
      %v5819 = vmul.f32 %v5781, %v5800
      %v5820 = vmul.f32 %v5782, %v5800
      %v5821 = vmul.f32 %v5783, %v5800
      %v5822 = vmul.f32 %v5784, %v5800
      %v5823 = vmul.f32 %v5785, %v5800
      %v5824 = vmul.f32 %v5786, %v5800
      %v5825 = vmul.f32 %v5787, %v5800
      %v5826 = vmul.f32 %v5788, %v5800
      %v5827 = vmul.f32 %v5789, %v5800
      %v5828 = vmul.f32 %v5790, %v5800
      %v5829 = vmul.f32 %v5791, %v5800
      %v5830 = vmul.f32 %v5792, %v5800
      %v5831 = vmul.f32 %v5793, %v5800
      %v5832 = vmul.f32 %v5794, %v5800
      %v5833 = vmul.f32 %v5795, %v5800
      %v5835 = vlaneseq
      %v5836 = vshrl.u32 %v5835, 7
      %v5837 = vsub.s32 0, %v5836
      %v5838 = vrot.slane %v397, %v5837
      %v5840 = vadd.f32 %v5802, %v5838
      %v5841 = vadd.f32 %v5803, %v5838
      %v5842 = vadd.f32 %v5804, %v5838
      %v5843 = vadd.f32 %v5805, %v5838
      %v5844 = vadd.f32 %v5806, %v5838
      %v5845 = vadd.f32 %v5807, %v5838
      %v5846 = vadd.f32 %v5808, %v5838
      %v5847 = vadd.f32 %v5809, %v5838
      %v5848 = vadd.f32 %v5810, %v5838
      %v5849 = vadd.f32 %v5811, %v5838
      %v5850 = vadd.f32 %v5812, %v5838
      %v5851 = vadd.f32 %v5813, %v5838
      %v5852 = vadd.f32 %v5814, %v5838
      %v5853 = vadd.f32 %v5815, %v5838
      %v5854 = vadd.f32 %v5816, %v5838
      %v5855 = vadd.f32 %v5817, %v5838
      %v5856 = vadd.f32 %v5818, %v5838
      %v5857 = vadd.f32 %v5819, %v5838
      %v5858 = vadd.f32 %v5820, %v5838
      %v5859 = vadd.f32 %v5821, %v5838
      %v5860 = vadd.f32 %v5822, %v5838
      %v5861 = vadd.f32 %v5823, %v5838
      %v5862 = vadd.f32 %v5824, %v5838
      %v5863 = vadd.f32 %v5825, %v5838
      %v5864 = vadd.f32 %v5826, %v5838
      %v5865 = vadd.f32 %v5827, %v5838
      %v5866 = vadd.f32 %v5828, %v5838
      %v5867 = vadd.f32 %v5829, %v5838
      %v5868 = vadd.f32 %v5830, %v5838
      %v5869 = vadd.f32 %v5831, %v5838
      %v5870 = vadd.f32 %v5832, %v5838
      %v5871 = vadd.f32 %v5833, %v5838
      %v5872 = vpack.c.bf16 %v5841, %v5840
      %v5873 = vpack.c.bf16 %v5843, %v5842
      %v5874 = vpack.c.bf16 %v5845, %v5844
      %v5875 = vpack.c.bf16 %v5847, %v5846
      %v5876 = vpack.c.bf16 %v5849, %v5848
      %v5877 = vpack.c.bf16 %v5851, %v5850
      %v5878 = vpack.c.bf16 %v5853, %v5852
      %v5879 = vpack.c.bf16 %v5855, %v5854
      %v5880 = vpack.c.bf16 %v5857, %v5856
      %v5881 = vpack.c.bf16 %v5859, %v5858
      %v5882 = vpack.c.bf16 %v5861, %v5860
      %v5883 = vpack.c.bf16 %v5863, %v5862
      %v5884 = vpack.c.bf16 %v5865, %v5864
      %v5885 = vpack.c.bf16 %v5867, %v5866
      %v5886 = vpack.c.bf16 %v5869, %v5868
      %v5887 = vpack.c.bf16 %v5871, %v5870
      %v5889 = vlaneseq
      %v5890 = vshrl.u32 %v5889, 7
      %v5891 = vsub.s32 0, %v5890
      %v5892 = vrot.slane %v414, %v5891
      %v5910 = vunpack.c.l.b16 %v398
      %v5911 = vunpack.c.l.b16 %v399
      %v5912 = vunpack.c.l.b16 %v400
      %v5913 = vunpack.c.l.b16 %v401
      %v5914 = vunpack.c.l.b16 %v402
      %v5915 = vunpack.c.l.b16 %v403
      %v5916 = vunpack.c.l.b16 %v404
      %v5917 = vunpack.c.l.b16 %v405
      %v5918 = vunpack.c.l.b16 %v406
      %v5919 = vunpack.c.l.b16 %v407
      %v5920 = vunpack.c.l.b16 %v408
      %v5921 = vunpack.c.l.b16 %v409
      %v5922 = vunpack.c.l.b16 %v410
      %v5923 = vunpack.c.l.b16 %v411
      %v5924 = vunpack.c.l.b16 %v412
      %v5925 = vunpack.c.l.b16 %v413
      %v5926 = vpack.c.b16 %v5911, %v5910
      %v5927 = vpack.c.b16 %v5913, %v5912
      %v5928 = vpack.c.b16 %v5915, %v5914
      %v5929 = vpack.c.b16 %v5917, %v5916
      %v5930 = vpack.c.b16 %v5919, %v5918
      %v5931 = vpack.c.b16 %v5921, %v5920
      %v5932 = vpack.c.b16 %v5923, %v5922
      %v5933 = vpack.c.b16 %v5925, %v5924
      %5942 = vmatprep.subr.bf16.mxu0 0
      %5943 = vmatpush1.bf16.msra.mxu0 %v5926
      %5944 = vmatprep.subr.bf16.mxu0 0
      %5945 = vmatpush1.bf16.msra.mxu0 %v5927
      %5946 = vmatprep.subr.bf16.mxu0 0
      %5947 = vmatpush1.bf16.msra.mxu0 %v5928
      %5948 = vmatprep.subr.bf16.mxu0 0
      %5949 = vmatpush1.bf16.msra.mxu0 %v5929
      %5950 = vmatprep.subr.bf16.mxu0 0
      %5951 = vmatpush1.bf16.msra.mxu0 %v5930
      %5952 = vmatprep.subr.bf16.mxu0 0
      %5953 = vmatpush1.bf16.msra.mxu0 %v5931
      %5954 = vmatprep.subr.bf16.mxu0 0
      %5955 = vmatpush1.bf16.msra.mxu0 %v5932
      %5956 = vmatprep.subr.bf16.mxu0 0
      %5957 = vmatpush1.bf16.msra.mxu0 %v5933
      %5958 = vmatprep.subr.bf16.mxu0 0
      %5959 = vmatpush1.bf16.msra.mxu0 0
      %5960 = vmatprep.subr.bf16.mxu0 0
      %5961 = vmatpush1.bf16.msra.mxu0 0
      %5962 = vmatprep.subr.bf16.mxu0 0
      %5963 = vmatpush1.bf16.msra.mxu0 0
      %5964 = vmatprep.subr.bf16.mxu0 0
      %5965 = vmatpush1.bf16.msra.mxu0 0
      %5966 = vmatprep.subr.bf16.mxu0 0
      %5967 = vmatpush1.bf16.msra.mxu0 0
      %5968 = vmatprep.subr.bf16.mxu0 0
      %5969 = vmatpush1.bf16.msra.mxu0 0
      %5970 = vmatprep.subr.bf16.mxu0 0
      %5971 = vmatpush1.bf16.msra.mxu0 0
      %5972 = vmatprep.subr.bf16.mxu0 0
      %5973 = vmatpush1.bf16.msra.mxu0 0
      %5974 = vmatprep.mubr.bf16.mxu0 0
      %5975 = vmatmul.mubr.bf16.gmra.mrb[0].mxu0 %v5872
      %v5976 = vpop.f32.mrb[0].mxu0
      %v5977 = vadd.f32 %v5892, %v5976
      %v5978 = vpop.f32.mrb[0].mxu0
      %v5979 = vpop.f32.mrb[0].mxu0
      %v5980 = vadd.f32 %v5892, %v5979
      %v5981 = vpop.f32.mrb[0].mxu0
      %5982 = vmatprep.mubr.bf16.mxu0 0
      %5983 = vmatmul.mubr.bf16.gmra.mrb[0].mxu0 %v5873
      %v5984 = vpop.f32.mrb[0].mxu0
      %v5985 = vadd.f32 %v5892, %v5984
      %v5986 = vpop.f32.mrb[0].mxu0
      %v5987 = vpop.f32.mrb[0].mxu0
      %v5988 = vadd.f32 %v5892, %v5987
      %v5989 = vpop.f32.mrb[0].mxu0
      %5990 = vmatprep.mubr.bf16.mxu0 0
      %5991 = vmatmul.mubr.bf16.gmra.mrb[0].mxu0 %v5874
      %v5992 = vpop.f32.mrb[0].mxu0
      %v5993 = vadd.f32 %v5892, %v5992
      %v5994 = vpop.f32.mrb[0].mxu0
      %v5995 = vpop.f32.mrb[0].mxu0
      %v5996 = vadd.f32 %v5892, %v5995
      %v5997 = vpop.f32.mrb[0].mxu0
      %5998 = vmatprep.mubr.bf16.mxu0 0
      %5999 = vmatmul.mubr.bf16.gmra.mrb[0].mxu0 %v5875
      %v6000 = vpop.f32.mrb[0].mxu0
      %v6001 = vadd.f32 %v5892, %v6000
      %v6002 = vpop.f32.mrb[0].mxu0
      %v6003 = vpop.f32.mrb[0].mxu0
      %v6004 = vadd.f32 %v5892, %v6003
      %v6005 = vpop.f32.mrb[0].mxu0
      %6006 = vmatprep.mubr.bf16.mxu0 0
      %6007 = vmatmul.mubr.bf16.gmra.mrb[0].mxu0 %v5876
      %v6008 = vpop.f32.mrb[0].mxu0
      %v6009 = vadd.f32 %v5892, %v6008
      %v6010 = vpop.f32.mrb[0].mxu0
      %v6011 = vpop.f32.mrb[0].mxu0
      %v6012 = vadd.f32 %v5892, %v6011
      %v6013 = vpop.f32.mrb[0].mxu0
      %6014 = vmatprep.mubr.bf16.mxu0 0
      %6015 = vmatmul.mubr.bf16.gmra.mrb[0].mxu0 %v5877
      %v6016 = vpop.f32.mrb[0].mxu0
      %v6017 = vadd.f32 %v5892, %v6016
      %v6018 = vpop.f32.mrb[0].mxu0
      %v6019 = vpop.f32.mrb[0].mxu0
      %v6020 = vadd.f32 %v5892, %v6019
      %v6021 = vpop.f32.mrb[0].mxu0
      %6022 = vmatprep.mubr.bf16.mxu0 0
      %6023 = vmatmul.mubr.bf16.gmra.mrb[0].mxu0 %v5878
      %v6024 = vpop.f32.mrb[0].mxu0
      %v6025 = vadd.f32 %v5892, %v6024
      %v6026 = vpop.f32.mrb[0].mxu0
      %v6027 = vpop.f32.mrb[0].mxu0
      %v6028 = vadd.f32 %v5892, %v6027
      %v6029 = vpop.f32.mrb[0].mxu0
      %6030 = vmatprep.mubr.bf16.mxu0 0
      %6031 = vmatmul.mubr.bf16.gmra.mrb[0].mxu0 %v5879
      %v6032 = vpop.f32.mrb[0].mxu0
      %v6033 = vadd.f32 %v5892, %v6032
      %v6034 = vpop.f32.mrb[0].mxu0
      %v6035 = vpop.f32.mrb[0].mxu0
      %v6036 = vadd.f32 %v5892, %v6035
      %v6037 = vpop.f32.mrb[0].mxu0
      %6038 = vmatprep.mubr.bf16.mxu0 0
      %6039 = vmatmul.mubr.bf16.gmra.mrb[0].mxu0 %v5880
      %v6040 = vpop.f32.mrb[0].mxu0
      %v6041 = vadd.f32 %v5892, %v6040
      %v6042 = vpop.f32.mrb[0].mxu0
      %v6043 = vpop.f32.mrb[0].mxu0
      %v6044 = vadd.f32 %v5892, %v6043
      %v6045 = vpop.f32.mrb[0].mxu0
      %6046 = vmatprep.mubr.bf16.mxu0 0
      %6047 = vmatmul.mubr.bf16.gmra.mrb[0].mxu0 %v5881
      %v6048 = vpop.f32.mrb[0].mxu0
      %v6049 = vadd.f32 %v5892, %v6048
      %v6050 = vpop.f32.mrb[0].mxu0
      %v6051 = vpop.f32.mrb[0].mxu0
      %v6052 = vadd.f32 %v5892, %v6051
      %v6053 = vpop.f32.mrb[0].mxu0
      %6054 = vmatprep.mubr.bf16.mxu0 0
      %6055 = vmatmul.mubr.bf16.gmra.mrb[0].mxu0 %v5882
      %v6056 = vpop.f32.mrb[0].mxu0
      %v6057 = vadd.f32 %v5892, %v6056
      %v6058 = vpop.f32.mrb[0].mxu0
      %v6059 = vpop.f32.mrb[0].mxu0
      %v6060 = vadd.f32 %v5892, %v6059
      %v6061 = vpop.f32.mrb[0].mxu0
      %6062 = vmatprep.mubr.bf16.mxu0 0
      %6063 = vmatmul.mubr.bf16.gmra.mrb[0].mxu0 %v5883
      %v6064 = vpop.f32.mrb[0].mxu0
      %v6065 = vadd.f32 %v5892, %v6064
      %v6066 = vpop.f32.mrb[0].mxu0
      %v6067 = vpop.f32.mrb[0].mxu0
      %v6068 = vadd.f32 %v5892, %v6067
      %v6069 = vpop.f32.mrb[0].mxu0
      %6070 = vmatprep.mubr.bf16.mxu0 0
      %6071 = vmatmul.mubr.bf16.gmra.mrb[0].mxu0 %v5884
      %v6072 = vpop.f32.mrb[0].mxu0
      %v6073 = vadd.f32 %v5892, %v6072
      %v6074 = vpop.f32.mrb[0].mxu0
      %v6075 = vpop.f32.mrb[0].mxu0
      %v6076 = vadd.f32 %v5892, %v6075
      %v6077 = vpop.f32.mrb[0].mxu0
      %6078 = vmatprep.mubr.bf16.mxu0 0
      %6079 = vmatmul.mubr.bf16.gmra.mrb[0].mxu0 %v5885
      %v6080 = vpop.f32.mrb[0].mxu0
      %v6081 = vadd.f32 %v5892, %v6080
      %v6082 = vpop.f32.mrb[0].mxu0
      %v6083 = vpop.f32.mrb[0].mxu0
      %v6084 = vadd.f32 %v5892, %v6083
      %v6085 = vpop.f32.mrb[0].mxu0
      %6086 = vmatprep.mubr.bf16.mxu0 0
      %6087 = vmatmul.mubr.bf16.gmra.mrb[0].mxu0 %v5886
      %v6088 = vpop.f32.mrb[0].mxu0
      %v6089 = vadd.f32 %v5892, %v6088
      %v6090 = vpop.f32.mrb[0].mxu0
      %v6091 = vpop.f32.mrb[0].mxu0
      %v6092 = vadd.f32 %v5892, %v6091
      %v6093 = vpop.f32.mrb[0].mxu0
      %6094 = vmatprep.mubr.bf16.mxu0 0
      %6095 = vmatmul.mubr.bf16.gmra.mrb[0].mxu0 %v5887
      %v6096 = vpop.f32.mrb[0].mxu0
      %v6097 = vadd.f32 %v5892, %v6096
      %v6098 = vpop.f32.mrb[0].mxu0
      %v6099 = vpop.f32.mrb[0].mxu0
      %v6100 = vadd.f32 %v5892, %v6099
      %v6101 = vpop.f32.mrb[0].mxu0
      %6102 = vdwg.mxu0
      %v6103 = vmul.f32 %v5977, %v5977
      %v6104 = vmul.f32 %v5980, %v5980
      %v6105 = vmul.f32 %v5985, %v5985
      %v6106 = vmul.f32 %v5988, %v5988
      %v6107 = vmul.f32 %v5993, %v5993
      %v6108 = vmul.f32 %v5996, %v5996
      %v6109 = vmul.f32 %v6001, %v6001
      %v6110 = vmul.f32 %v6004, %v6004
      %v6111 = vmul.f32 %v6009, %v6009
      %v6112 = vmul.f32 %v6012, %v6012
      %v6113 = vmul.f32 %v6017, %v6017
      %v6114 = vmul.f32 %v6020, %v6020
      %v6115 = vmul.f32 %v6025, %v6025
      %v6116 = vmul.f32 %v6028, %v6028
      %v6117 = vmul.f32 %v6033, %v6033
      %v6118 = vmul.f32 %v6036, %v6036
      %v6119 = vmul.f32 %v6041, %v6041
      %v6120 = vmul.f32 %v6044, %v6044
      %v6121 = vmul.f32 %v6049, %v6049
      %v6122 = vmul.f32 %v6052, %v6052
      %v6123 = vmul.f32 %v6057, %v6057
      %v6124 = vmul.f32 %v6060, %v6060
      %v6125 = vmul.f32 %v6065, %v6065
      %v6126 = vmul.f32 %v6068, %v6068
      %v6127 = vmul.f32 %v6073, %v6073
      %v6128 = vmul.f32 %v6076, %v6076
      %v6129 = vmul.f32 %v6081, %v6081
      %v6130 = vmul.f32 %v6084, %v6084
      %v6131 = vmul.f32 %v6089, %v6089
      %v6132 = vmul.f32 %v6092, %v6092
      %v6133 = vmul.f32 %v6097, %v6097
      %v6134 = vmul.f32 %v6100, %v6100
      %v6135 = vmul.f32 %v5977, %v6103
      %v6136 = vmul.f32 %v5980, %v6104
      %v6137 = vmul.f32 %v5985, %v6105
      %v6138 = vmul.f32 %v5988, %v6106
      %v6139 = vmul.f32 %v5993, %v6107
      %v6140 = vmul.f32 %v5996, %v6108
      %v6141 = vmul.f32 %v6001, %v6109
      %v6142 = vmul.f32 %v6004, %v6110
      %v6143 = vmul.f32 %v6009, %v6111
      %v6144 = vmul.f32 %v6012, %v6112
      %v6145 = vmul.f32 %v6017, %v6113
      %v6146 = vmul.f32 %v6020, %v6114
      %v6147 = vmul.f32 %v6025, %v6115
      %v6148 = vmul.f32 %v6028, %v6116
      %v6149 = vmul.f32 %v6033, %v6117
      %v6150 = vmul.f32 %v6036, %v6118
      %v6151 = vmul.f32 %v6041, %v6119
      %v6152 = vmul.f32 %v6044, %v6120
      %v6153 = vmul.f32 %v6049, %v6121
      %v6154 = vmul.f32 %v6052, %v6122
      %v6155 = vmul.f32 %v6057, %v6123
      %v6156 = vmul.f32 %v6060, %v6124
      %v6157 = vmul.f32 %v6065, %v6125
      %v6158 = vmul.f32 %v6068, %v6126
      %v6159 = vmul.f32 %v6073, %v6127
      %v6160 = vmul.f32 %v6076, %v6128
      %v6161 = vmul.f32 %v6081, %v6129
      %v6162 = vmul.f32 %v6084, %v6130
      %v6163 = vmul.f32 %v6089, %v6131
      %v6164 = vmul.f32 %v6092, %v6132
      %v6165 = vmul.f32 %v6097, %v6133
      %v6166 = vmul.f32 %v6100, %v6134
      %v6167 = vmul.f32 %v6135, 0.044715
      %v6168 = vmul.f32 %v6136, 0.044715
      %v6169 = vmul.f32 %v6137, 0.044715
      %v6170 = vmul.f32 %v6138, 0.044715
      %v6171 = vmul.f32 %v6139, 0.044715
      %v6172 = vmul.f32 %v6140, 0.044715
      %v6173 = vmul.f32 %v6141, 0.044715
      %v6174 = vmul.f32 %v6142, 0.044715
      %v6175 = vmul.f32 %v6143, 0.044715
      %v6176 = vmul.f32 %v6144, 0.044715
      %v6177 = vmul.f32 %v6145, 0.044715
      %v6178 = vmul.f32 %v6146, 0.044715
      %v6179 = vmul.f32 %v6147, 0.044715
      %v6180 = vmul.f32 %v6148, 0.044715
      %v6181 = vmul.f32 %v6149, 0.044715
      %v6182 = vmul.f32 %v6150, 0.044715
      %v6183 = vmul.f32 %v6151, 0.044715
      %v6184 = vmul.f32 %v6152, 0.044715
      %v6185 = vmul.f32 %v6153, 0.044715
      %v6186 = vmul.f32 %v6154, 0.044715
      %v6187 = vmul.f32 %v6155, 0.044715
      %v6188 = vmul.f32 %v6156, 0.044715
      %v6189 = vmul.f32 %v6157, 0.044715
      %v6190 = vmul.f32 %v6158, 0.044715
      %v6191 = vmul.f32 %v6159, 0.044715
      %v6192 = vmul.f32 %v6160, 0.044715
      %v6193 = vmul.f32 %v6161, 0.044715
      %v6194 = vmul.f32 %v6162, 0.044715
      %v6195 = vmul.f32 %v6163, 0.044715
      %v6196 = vmul.f32 %v6164, 0.044715
      %v6197 = vmul.f32 %v6165, 0.044715
      %v6198 = vmul.f32 %v6166, 0.044715
      %v6199 = vadd.f32 %v5977, %v6167
      %v6200 = vadd.f32 %v5980, %v6168
      %v6201 = vadd.f32 %v5985, %v6169
      %v6202 = vadd.f32 %v5988, %v6170
      %v6203 = vadd.f32 %v5993, %v6171
      %v6204 = vadd.f32 %v5996, %v6172
      %v6205 = vadd.f32 %v6001, %v6173
      %v6206 = vadd.f32 %v6004, %v6174
      %v6207 = vadd.f32 %v6009, %v6175
      %v6208 = vadd.f32 %v6012, %v6176
      %v6209 = vadd.f32 %v6017, %v6177
      %v6210 = vadd.f32 %v6020, %v6178
      %v6211 = vadd.f32 %v6025, %v6179
      %v6212 = vadd.f32 %v6028, %v6180
      %v6213 = vadd.f32 %v6033, %v6181
      %v6214 = vadd.f32 %v6036, %v6182
      %v6215 = vadd.f32 %v6041, %v6183
      %v6216 = vadd.f32 %v6044, %v6184
      %v6217 = vadd.f32 %v6049, %v6185
      %v6218 = vadd.f32 %v6052, %v6186
      %v6219 = vadd.f32 %v6057, %v6187
      %v6220 = vadd.f32 %v6060, %v6188
      %v6221 = vadd.f32 %v6065, %v6189
      %v6222 = vadd.f32 %v6068, %v6190
      %v6223 = vadd.f32 %v6073, %v6191
      %v6224 = vadd.f32 %v6076, %v6192
      %v6225 = vadd.f32 %v6081, %v6193
      %v6226 = vadd.f32 %v6084, %v6194
      %v6227 = vadd.f32 %v6089, %v6195
      %v6228 = vadd.f32 %v6092, %v6196
      %v6229 = vadd.f32 %v6097, %v6197
      %v6230 = vadd.f32 %v6100, %v6198
      %v6231 = vmul.f32 %v6199, 0.7978846
      %v6232 = vmul.f32 %v6200, 0.7978846
      %v6233 = vmul.f32 %v6201, 0.7978846
      %v6234 = vmul.f32 %v6202, 0.7978846
      %v6235 = vmul.f32 %v6203, 0.7978846
      %v6236 = vmul.f32 %v6204, 0.7978846
      %v6237 = vmul.f32 %v6205, 0.7978846
      %v6238 = vmul.f32 %v6206, 0.7978846
      %v6239 = vmul.f32 %v6207, 0.7978846
      %v6240 = vmul.f32 %v6208, 0.7978846
      %v6241 = vmul.f32 %v6209, 0.7978846
      %v6242 = vmul.f32 %v6210, 0.7978846
      %v6243 = vmul.f32 %v6211, 0.7978846
      %v6244 = vmul.f32 %v6212, 0.7978846
      %v6245 = vmul.f32 %v6213, 0.7978846
      %v6246 = vmul.f32 %v6214, 0.7978846
      %v6247 = vmul.f32 %v6215, 0.7978846
      %v6248 = vmul.f32 %v6216, 0.7978846
      %v6249 = vmul.f32 %v6217, 0.7978846
      %v6250 = vmul.f32 %v6218, 0.7978846
      %v6251 = vmul.f32 %v6219, 0.7978846
      %v6252 = vmul.f32 %v6220, 0.7978846
      %v6253 = vmul.f32 %v6221, 0.7978846
      %v6254 = vmul.f32 %v6222, 0.7978846
      %v6255 = vmul.f32 %v6223, 0.7978846
      %v6256 = vmul.f32 %v6224, 0.7978846
      %v6257 = vmul.f32 %v6225, 0.7978846
      %v6258 = vmul.f32 %v6226, 0.7978846
      %v6259 = vmul.f32 %v6227, 0.7978846
      %v6260 = vmul.f32 %v6228, 0.7978846
      %v6261 = vmul.f32 %v6229, 0.7978846
      %v6262 = vmul.f32 %v6230, 0.7978846
      %v6263 = vtanh.pop %v6231
      %v6264 = vtanh.pop %v6232
      %v6265 = vtanh.pop %v6233
      %v6266 = vtanh.pop %v6234
      %v6267 = vtanh.pop %v6235
      %v6268 = vtanh.pop %v6236
      %v6269 = vtanh.pop %v6237
      %v6270 = vtanh.pop %v6238
      %v6271 = vtanh.pop %v6239
      %v6272 = vtanh.pop %v6240
      %v6273 = vtanh.pop %v6241
      %v6274 = vtanh.pop %v6242
      %v6275 = vtanh.pop %v6243
      %v6276 = vtanh.pop %v6244
      %v6277 = vtanh.pop %v6245
      %v6278 = vtanh.pop %v6246
      %v6279 = vtanh.pop %v6247
      %v6280 = vtanh.pop %v6248
      %v6281 = vtanh.pop %v6249
      %v6282 = vtanh.pop %v6250
      %v6283 = vtanh.pop %v6251
      %v6284 = vtanh.pop %v6252
      %v6285 = vtanh.pop %v6253
      %v6286 = vtanh.pop %v6254
      %v6287 = vtanh.pop %v6255
      %v6288 = vtanh.pop %v6256
      %v6289 = vtanh.pop %v6257
      %v6290 = vtanh.pop %v6258
      %v6291 = vtanh.pop %v6259
      %v6292 = vtanh.pop %v6260
      %v6293 = vtanh.pop %v6261
      %v6294 = vtanh.pop %v6262
      %v6295 = vadd.f32 %v6263, 1.0
      %v6296 = vadd.f32 %v6264, 1.0
      %v6297 = vadd.f32 %v6265, 1.0
      %v6298 = vadd.f32 %v6266, 1.0
      %v6299 = vadd.f32 %v6267, 1.0
      %v6300 = vadd.f32 %v6268, 1.0
      %v6301 = vadd.f32 %v6269, 1.0
      %v6302 = vadd.f32 %v6270, 1.0
      %v6303 = vadd.f32 %v6271, 1.0
      %v6304 = vadd.f32 %v6272, 1.0
      %v6305 = vadd.f32 %v6273, 1.0
      %v6306 = vadd.f32 %v6274, 1.0
      %v6307 = vadd.f32 %v6275, 1.0
      %v6308 = vadd.f32 %v6276, 1.0
      %v6309 = vadd.f32 %v6277, 1.0
      %v6310 = vadd.f32 %v6278, 1.0
      %v6311 = vadd.f32 %v6279, 1.0
      %v6312 = vadd.f32 %v6280, 1.0
      %v6313 = vadd.f32 %v6281, 1.0
      %v6314 = vadd.f32 %v6282, 1.0
      %v6315 = vadd.f32 %v6283, 1.0
      %v6316 = vadd.f32 %v6284, 1.0
      %v6317 = vadd.f32 %v6285, 1.0
      %v6318 = vadd.f32 %v6286, 1.0
      %v6319 = vadd.f32 %v6287, 1.0
      %v6320 = vadd.f32 %v6288, 1.0
      %v6321 = vadd.f32 %v6289, 1.0
      %v6322 = vadd.f32 %v6290, 1.0
      %v6323 = vadd.f32 %v6291, 1.0
      %v6324 = vadd.f32 %v6292, 1.0
      %v6325 = vadd.f32 %v6293, 1.0
      %v6326 = vadd.f32 %v6294, 1.0
      %v6327 = vmul.f32 %v6295, 0.5
      %v6328 = vmul.f32 %v6296, 0.5
      %v6329 = vmul.f32 %v6297, 0.5
      %v6330 = vmul.f32 %v6298, 0.5
      %v6331 = vmul.f32 %v6299, 0.5
      %v6332 = vmul.f32 %v6300, 0.5
      %v6333 = vmul.f32 %v6301, 0.5
      %v6334 = vmul.f32 %v6302, 0.5
      %v6335 = vmul.f32 %v6303, 0.5
      %v6336 = vmul.f32 %v6304, 0.5
      %v6337 = vmul.f32 %v6305, 0.5
      %v6338 = vmul.f32 %v6306, 0.5
      %v6339 = vmul.f32 %v6307, 0.5
      %v6340 = vmul.f32 %v6308, 0.5
      %v6341 = vmul.f32 %v6309, 0.5
      %v6342 = vmul.f32 %v6310, 0.5
      %v6343 = vmul.f32 %v6311, 0.5
      %v6344 = vmul.f32 %v6312, 0.5
      %v6345 = vmul.f32 %v6313, 0.5
      %v6346 = vmul.f32 %v6314, 0.5
      %v6347 = vmul.f32 %v6315, 0.5
      %v6348 = vmul.f32 %v6316, 0.5
      %v6349 = vmul.f32 %v6317, 0.5
      %v6350 = vmul.f32 %v6318, 0.5
      %v6351 = vmul.f32 %v6319, 0.5
      %v6352 = vmul.f32 %v6320, 0.5
      %v6353 = vmul.f32 %v6321, 0.5
      %v6354 = vmul.f32 %v6322, 0.5
      %v6355 = vmul.f32 %v6323, 0.5
      %v6356 = vmul.f32 %v6324, 0.5
      %v6357 = vmul.f32 %v6325, 0.5
      %v6358 = vmul.f32 %v6326, 0.5
      %v6359 = vmul.f32 %v5977, %v6327
      %v6360 = vmul.f32 %v5980, %v6328
      %v6361 = vmul.f32 %v5985, %v6329
      %v6362 = vmul.f32 %v5988, %v6330
      %v6363 = vmul.f32 %v5993, %v6331
      %v6364 = vmul.f32 %v5996, %v6332
      %v6365 = vmul.f32 %v6001, %v6333
      %v6366 = vmul.f32 %v6004, %v6334
      %v6367 = vmul.f32 %v6009, %v6335
      %v6368 = vmul.f32 %v6012, %v6336
      %v6369 = vmul.f32 %v6017, %v6337
      %v6370 = vmul.f32 %v6020, %v6338
      %v6371 = vmul.f32 %v6025, %v6339
      %v6372 = vmul.f32 %v6028, %v6340
      %v6373 = vmul.f32 %v6033, %v6341
      %v6374 = vmul.f32 %v6036, %v6342
      %v6375 = vmul.f32 %v6041, %v6343
      %v6376 = vmul.f32 %v6044, %v6344
      %v6377 = vmul.f32 %v6049, %v6345
      %v6378 = vmul.f32 %v6052, %v6346
      %v6379 = vmul.f32 %v6057, %v6347
      %v6380 = vmul.f32 %v6060, %v6348
      %v6381 = vmul.f32 %v6065, %v6349
      %v6382 = vmul.f32 %v6068, %v6350
      %v6383 = vmul.f32 %v6073, %v6351
      %v6384 = vmul.f32 %v6076, %v6352
      %v6385 = vmul.f32 %v6081, %v6353
      %v6386 = vmul.f32 %v6084, %v6354
      %v6387 = vmul.f32 %v6089, %v6355
      %v6388 = vmul.f32 %v6092, %v6356
      %v6389 = vmul.f32 %v6097, %v6357
      %v6390 = vmul.f32 %v6100, %v6358
      %v6391 = vld [vmem:[#allocation3] sm:$0x1]
      %v6392 = vmul.f32 %v6359, %v6359
      %v6393 = vmul.f32 %v6360, %v6360
      %v6394 = vmul.f32 %v6361, %v6361
      %v6395 = vmul.f32 %v6362, %v6362
      %v6396 = vmul.f32 %v6363, %v6363
      %v6397 = vmul.f32 %v6364, %v6364
      %v6398 = vmul.f32 %v6365, %v6365
      %v6399 = vmul.f32 %v6366, %v6366
      %v6400 = vmul.f32 %v6367, %v6367
      %v6401 = vmul.f32 %v6368, %v6368
      %v6402 = vmul.f32 %v6369, %v6369
      %v6403 = vmul.f32 %v6370, %v6370
      %v6404 = vmul.f32 %v6371, %v6371
      %v6405 = vmul.f32 %v6372, %v6372
      %v6406 = vmul.f32 %v6373, %v6373
      %v6407 = vmul.f32 %v6374, %v6374
      %v6408 = vmul.f32 %v6375, %v6375
      %v6409 = vmul.f32 %v6376, %v6376
      %v6410 = vmul.f32 %v6377, %v6377
      %v6411 = vmul.f32 %v6378, %v6378
      %v6412 = vmul.f32 %v6379, %v6379
      %v6413 = vmul.f32 %v6380, %v6380
      %v6414 = vmul.f32 %v6381, %v6381
      %v6415 = vmul.f32 %v6382, %v6382
      %v6416 = vmul.f32 %v6383, %v6383
      %v6417 = vmul.f32 %v6384, %v6384
      %v6418 = vmul.f32 %v6385, %v6385
      %v6419 = vmul.f32 %v6386, %v6386
      %v6420 = vmul.f32 %v6387, %v6387
      %v6421 = vmul.f32 %v6388, %v6388
      %v6422 = vmul.f32 %v6389, %v6389
      %v6423 = vmul.f32 %v6390, %v6390
      %v6424 = vadd.f32 %v6392, %v6393
      %v6425 = vadd.f32 %v6424, %v6394
      %v6426 = vadd.f32 %v6425, %v6395
      %v6427 = vadd.f32 %v6426, %v6396
      %v6428 = vadd.f32 %v6427, %v6397
      %v6429 = vadd.f32 %v6428, %v6398
      %v6430 = vadd.f32 %v6429, %v6399
      %v6431 = vadd.f32 %v6430, %v6400
      %v6432 = vadd.f32 %v6431, %v6401
      %v6433 = vadd.f32 %v6432, %v6402
      %v6434 = vadd.f32 %v6433, %v6403
      %v6435 = vadd.f32 %v6434, %v6404
      %v6436 = vadd.f32 %v6435, %v6405
      %v6437 = vadd.f32 %v6436, %v6406
      %v6438 = vadd.f32 %v6437, %v6407
      %v6439 = vadd.f32 %v6438, %v6408
      %v6440 = vadd.f32 %v6439, %v6409
      %v6441 = vadd.f32 %v6440, %v6410
      %v6442 = vadd.f32 %v6441, %v6411
      %v6443 = vadd.f32 %v6442, %v6412
      %v6444 = vadd.f32 %v6443, %v6413
      %v6445 = vadd.f32 %v6444, %v6414
      %v6446 = vadd.f32 %v6445, %v6415
      %v6447 = vadd.f32 %v6446, %v6416
      %v6448 = vadd.f32 %v6447, %v6417
      %v6449 = vadd.f32 %v6448, %v6418
      %v6450 = vadd.f32 %v6449, %v6419
      %v6451 = vadd.f32 %v6450, %v6420
      %v6452 = vadd.f32 %v6451, %v6421
      %v6453 = vadd.f32 %v6452, %v6422
      %v6454 = vadd.f32 %v6453, %v6423
      %v6455 = vrot.slane %v6454, 4
      %v6456 = vadd.f32 %v6454, %v6455
      %v6457 = vrot.slane %v6456, 2
      %v6458 = vadd.f32 %v6456, %v6457
      %v6459 = vrot.slane %v6458, 1
      %v6460 = vadd.f32 %v6458, %v6459
      %v6461 = vadd.f32 %v6391, %v6460
      %6462 = vst [vmem:[#allocation3] sm:$0x1] %v6461
      %v6463 = vpack.c.bf16 %v6360, %v6359
      %v6464 = vpack.c.bf16 %v6362, %v6361
      %v6465 = vpack.c.bf16 %v6364, %v6363
      %v6466 = vpack.c.bf16 %v6366, %v6365
      %v6467 = vpack.c.bf16 %v6368, %v6367
      %v6468 = vpack.c.bf16 %v6370, %v6369
      %v6469 = vpack.c.bf16 %v6372, %v6371
      %v6470 = vpack.c.bf16 %v6374, %v6373
      %v6471 = vpack.c.bf16 %v6376, %v6375
      %v6472 = vpack.c.bf16 %v6378, %v6377
      %v6473 = vpack.c.bf16 %v6380, %v6379
      %v6474 = vpack.c.bf16 %v6382, %v6381
      %v6475 = vpack.c.bf16 %v6384, %v6383
      %v6476 = vpack.c.bf16 %v6386, %v6385
      %v6477 = vpack.c.bf16 %v6388, %v6387
      %v6478 = vpack.c.bf16 %v6390, %v6389
      %6479 = vst [vmem:[#allocation2] sm:$0xff] %v6463
      %6480 = vst [vmem:[#allocation2 + $0x8] sm:$0xff] %v6464
      %6481 = vst [vmem:[#allocation2 + $0x10] sm:$0xff] %v6465
      %6482 = vst [vmem:[#allocation2 + $0x18] sm:$0xff] %v6466
      %6483 = vst [vmem:[#allocation2 + $0x20] sm:$0xff] %v6467
      %6484 = vst [vmem:[#allocation2 + $0x28] sm:$0xff] %v6468
      %6485 = vst [vmem:[#allocation2 + $0x30] sm:$0xff] %v6469
      %6486 = vst [vmem:[#allocation2 + $0x38] sm:$0xff] %v6470
      %6487 = vst [vmem:[#allocation2 + $0x40] sm:$0xff] %v6471
      %6488 = vst [vmem:[#allocation2 + $0x48] sm:$0xff] %v6472
      %6489 = vst [vmem:[#allocation2 + $0x50] sm:$0xff] %v6473
      %6490 = vst [vmem:[#allocation2 + $0x58] sm:$0xff] %v6474
      %6491 = vst [vmem:[#allocation2 + $0x60] sm:$0xff] %v6475
      %6492 = vst [vmem:[#allocation2 + $0x68] sm:$0xff] %v6476
      %6493 = vst [vmem:[#allocation2 + $0x70] sm:$0xff] %v6477
      %6494 = vst [vmem:[#allocation2 + $0x78] sm:$0xff] %v6478
      %v6495 = vld [vmem:[#allocation3] sm:$0x1]
      %v6496 = vrsqrt.pop %v6495
      %v6497 = vmul.f32 %v6495, %v6496
      %vm6498 = vcmp.eq.f32.partialorder %v6495, inf
      %v6499 = vsel %vm6498, %v6495, %v6497
      %vm6500 = vcmp.eq.f32.partialorder %v6495, 0.0
      %v6501 = vand.u32 %v6495, 2147483648
      %v6502 = vsel %vm6500, %v6501, %v6499
      %vm6503 = vcmask 1040384
      %v6504 = vsel %vm6503, %v6502, 0.0
      %6505 = vadd.xlane.f32.xlu0 %v6504
      %v6506 = vpop.xlane.xlu0 %6505
      %v6507 = vmul.f32 %v6506, 0.0625
      %v6508 = vadd.f32 %v6507, 1e-06
      %v6509 = vrcp.pop %v6508
      %v6510 = vmul.f32 %v6502, %v6509
      %v6511 = vmul.f32 %v415, %v6510
      %v6512 = vadd.f32 %v6511, 1.0
      %v6513 = vld [vmem:[#allocation2] sm:$0xff]
      %v6514 = vld [vmem:[#allocation2 + $0x8] sm:$0xff]
      %v6515 = vld [vmem:[#allocation2 + $0x10] sm:$0xff]
      %v6516 = vld [vmem:[#allocation2 + $0x18] sm:$0xff]
      %v6517 = vld [vmem:[#allocation2 + $0x20] sm:$0xff]
      %v6518 = vld [vmem:[#allocation2 + $0x28] sm:$0xff]
      %v6519 = vld [vmem:[#allocation2 + $0x30] sm:$0xff]
      %v6520 = vld [vmem:[#allocation2 + $0x38] sm:$0xff]
      %v6521 = vld [vmem:[#allocation2 + $0x40] sm:$0xff]
      %v6522 = vld [vmem:[#allocation2 + $0x48] sm:$0xff]
      %v6523 = vld [vmem:[#allocation2 + $0x50] sm:$0xff]
      %v6524 = vld [vmem:[#allocation2 + $0x58] sm:$0xff]
      %v6525 = vld [vmem:[#allocation2 + $0x60] sm:$0xff]
      %v6526 = vld [vmem:[#allocation2 + $0x68] sm:$0xff]
      %v6527 = vld [vmem:[#allocation2 + $0x70] sm:$0xff]
      %v6528 = vld [vmem:[#allocation2 + $0x78] sm:$0xff]
      %v6529 = vunpack.c.l.bf16 %v6513
      %v6530 = vunpack.c.h.bf16 %v6513
      %v6531 = vunpack.c.l.bf16 %v6514
      %v6532 = vunpack.c.h.bf16 %v6514
      %v6533 = vunpack.c.l.bf16 %v6515
      %v6534 = vunpack.c.h.bf16 %v6515
      %v6535 = vunpack.c.l.bf16 %v6516
      %v6536 = vunpack.c.h.bf16 %v6516
      %v6537 = vunpack.c.l.bf16 %v6517
      %v6538 = vunpack.c.h.bf16 %v6517
      %v6539 = vunpack.c.l.bf16 %v6518
      %v6540 = vunpack.c.h.bf16 %v6518
      %v6541 = vunpack.c.l.bf16 %v6519
      %v6542 = vunpack.c.h.bf16 %v6519
      %v6543 = vunpack.c.l.bf16 %v6520
      %v6544 = vunpack.c.h.bf16 %v6520
      %v6545 = vunpack.c.l.bf16 %v6521
      %v6546 = vunpack.c.h.bf16 %v6521
      %v6547 = vunpack.c.l.bf16 %v6522
      %v6548 = vunpack.c.h.bf16 %v6522
      %v6549 = vunpack.c.l.bf16 %v6523
      %v6550 = vunpack.c.h.bf16 %v6523
      %v6551 = vunpack.c.l.bf16 %v6524
      %v6552 = vunpack.c.h.bf16 %v6524
      %v6553 = vunpack.c.l.bf16 %v6525
      %v6554 = vunpack.c.h.bf16 %v6525
      %v6555 = vunpack.c.l.bf16 %v6526
      %v6556 = vunpack.c.h.bf16 %v6526
      %v6557 = vunpack.c.l.bf16 %v6527
      %v6558 = vunpack.c.h.bf16 %v6527
      %v6559 = vunpack.c.l.bf16 %v6528
      %v6560 = vunpack.c.h.bf16 %v6528
      %v6562 = vlaneseq
      %v6563 = vshrl.u32 %v6562, 7
      %v6564 = vsub.s32 0, %v6563
      %v6565 = vrot.slane %v6512, %v6564
      %v6567 = vmul.f32 %v6529, %v6565
      %v6568 = vmul.f32 %v6530, %v6565
      %v6569 = vmul.f32 %v6531, %v6565
      %v6570 = vmul.f32 %v6532, %v6565
      %v6571 = vmul.f32 %v6533, %v6565
      %v6572 = vmul.f32 %v6534, %v6565
      %v6573 = vmul.f32 %v6535, %v6565
      %v6574 = vmul.f32 %v6536, %v6565
      %v6575 = vmul.f32 %v6537, %v6565
      %v6576 = vmul.f32 %v6538, %v6565
      %v6577 = vmul.f32 %v6539, %v6565
      %v6578 = vmul.f32 %v6540, %v6565
      %v6579 = vmul.f32 %v6541, %v6565
      %v6580 = vmul.f32 %v6542, %v6565
      %v6581 = vmul.f32 %v6543, %v6565
      %v6582 = vmul.f32 %v6544, %v6565
      %v6583 = vmul.f32 %v6545, %v6565
      %v6584 = vmul.f32 %v6546, %v6565
      %v6585 = vmul.f32 %v6547, %v6565
      %v6586 = vmul.f32 %v6548, %v6565
      %v6587 = vmul.f32 %v6549, %v6565
      %v6588 = vmul.f32 %v6550, %v6565
      %v6589 = vmul.f32 %v6551, %v6565
      %v6590 = vmul.f32 %v6552, %v6565
      %v6591 = vmul.f32 %v6553, %v6565
      %v6592 = vmul.f32 %v6554, %v6565
      %v6593 = vmul.f32 %v6555, %v6565
      %v6594 = vmul.f32 %v6556, %v6565
      %v6595 = vmul.f32 %v6557, %v6565
      %v6596 = vmul.f32 %v6558, %v6565
      %v6597 = vmul.f32 %v6559, %v6565
      %v6598 = vmul.f32 %v6560, %v6565
      %v6600 = vlaneseq
      %v6601 = vshrl.u32 %v6600, 7
      %v6602 = vsub.s32 0, %v6601
      %v6603 = vrot.slane %v416, %v6602
      %v6605 = vadd.f32 %v6567, %v6603
      %v6606 = vadd.f32 %v6568, %v6603
      %v6607 = vadd.f32 %v6569, %v6603
      %v6608 = vadd.f32 %v6570, %v6603
      %v6609 = vadd.f32 %v6571, %v6603
      %v6610 = vadd.f32 %v6572, %v6603
      %v6611 = vadd.f32 %v6573, %v6603
      %v6612 = vadd.f32 %v6574, %v6603
      %v6613 = vadd.f32 %v6575, %v6603
      %v6614 = vadd.f32 %v6576, %v6603
      %v6615 = vadd.f32 %v6577, %v6603
      %v6616 = vadd.f32 %v6578, %v6603
      %v6617 = vadd.f32 %v6579, %v6603
      %v6618 = vadd.f32 %v6580, %v6603
      %v6619 = vadd.f32 %v6581, %v6603
      %v6620 = vadd.f32 %v6582, %v6603
      %v6621 = vadd.f32 %v6583, %v6603
      %v6622 = vadd.f32 %v6584, %v6603
      %v6623 = vadd.f32 %v6585, %v6603
      %v6624 = vadd.f32 %v6586, %v6603
      %v6625 = vadd.f32 %v6587, %v6603
      %v6626 = vadd.f32 %v6588, %v6603
      %v6627 = vadd.f32 %v6589, %v6603
      %v6628 = vadd.f32 %v6590, %v6603
      %v6629 = vadd.f32 %v6591, %v6603
      %v6630 = vadd.f32 %v6592, %v6603
      %v6631 = vadd.f32 %v6593, %v6603
      %v6632 = vadd.f32 %v6594, %v6603
      %v6633 = vadd.f32 %v6595, %v6603
      %v6634 = vadd.f32 %v6596, %v6603
      %v6635 = vadd.f32 %v6597, %v6603
      %v6636 = vadd.f32 %v6598, %v6603
      %v6637 = vpack.c.bf16 %v6606, %v6605
      %v6638 = vpack.c.bf16 %v6608, %v6607
      %v6639 = vpack.c.bf16 %v6610, %v6609
      %v6640 = vpack.c.bf16 %v6612, %v6611
      %v6641 = vpack.c.bf16 %v6614, %v6613
      %v6642 = vpack.c.bf16 %v6616, %v6615
      %v6643 = vpack.c.bf16 %v6618, %v6617
      %v6644 = vpack.c.bf16 %v6620, %v6619
      %v6645 = vpack.c.bf16 %v6622, %v6621
      %v6646 = vpack.c.bf16 %v6624, %v6623
      %v6647 = vpack.c.bf16 %v6626, %v6625
      %v6648 = vpack.c.bf16 %v6628, %v6627
      %v6649 = vpack.c.bf16 %v6630, %v6629
      %v6650 = vpack.c.bf16 %v6632, %v6631
      %v6651 = vpack.c.bf16 %v6634, %v6633
      %v6652 = vpack.c.bf16 %v6636, %v6635
      %v6654 = vlaneseq
      %v6655 = vshrl.u32 %v6654, 7
      %v6656 = vsub.s32 0, %v6655
      %v6657 = vrot.slane %v433, %v6656
      %v6675 = vunpack.c.l.b16 %v417
      %v6676 = vunpack.c.l.b16 %v418
      %v6677 = vunpack.c.l.b16 %v419
      %v6678 = vunpack.c.l.b16 %v420
      %v6679 = vunpack.c.l.b16 %v421
      %v6680 = vunpack.c.l.b16 %v422
      %v6681 = vunpack.c.l.b16 %v423
      %v6682 = vunpack.c.l.b16 %v424
      %v6683 = vunpack.c.l.b16 %v425
      %v6684 = vunpack.c.l.b16 %v426
      %v6685 = vunpack.c.l.b16 %v427
      %v6686 = vunpack.c.l.b16 %v428
      %v6687 = vunpack.c.l.b16 %v429
      %v6688 = vunpack.c.l.b16 %v430
      %v6689 = vunpack.c.l.b16 %v431
      %v6690 = vunpack.c.l.b16 %v432
      %v6691 = vpack.c.b16 %v6676, %v6675
      %v6692 = vpack.c.b16 %v6678, %v6677
      %v6693 = vpack.c.b16 %v6680, %v6679
      %v6694 = vpack.c.b16 %v6682, %v6681
      %v6695 = vpack.c.b16 %v6684, %v6683
      %v6696 = vpack.c.b16 %v6686, %v6685
      %v6697 = vpack.c.b16 %v6688, %v6687
      %v6698 = vpack.c.b16 %v6690, %v6689
      %6707 = vmatprep.subr.bf16.mxu0 0
      %6708 = vmatpush1.bf16.msra.mxu0 %v6691
      %6709 = vmatprep.subr.bf16.mxu0 0
      %6710 = vmatpush1.bf16.msra.mxu0 %v6692
      %6711 = vmatprep.subr.bf16.mxu0 0
      %6712 = vmatpush1.bf16.msra.mxu0 %v6693
      %6713 = vmatprep.subr.bf16.mxu0 0
      %6714 = vmatpush1.bf16.msra.mxu0 %v6694
      %6715 = vmatprep.subr.bf16.mxu0 0
      %6716 = vmatpush1.bf16.msra.mxu0 %v6695
      %6717 = vmatprep.subr.bf16.mxu0 0
      %6718 = vmatpush1.bf16.msra.mxu0 %v6696
      %6719 = vmatprep.subr.bf16.mxu0 0
      %6720 = vmatpush1.bf16.msra.mxu0 %v6697
      %6721 = vmatprep.subr.bf16.mxu0 0
      %6722 = vmatpush1.bf16.msra.mxu0 %v6698
      %6723 = vmatprep.subr.bf16.mxu0 0
      %6724 = vmatpush1.bf16.msra.mxu0 0
      %6725 = vmatprep.subr.bf16.mxu0 0
      %6726 = vmatpush1.bf16.msra.mxu0 0
      %6727 = vmatprep.subr.bf16.mxu0 0
      %6728 = vmatpush1.bf16.msra.mxu0 0
      %6729 = vmatprep.subr.bf16.mxu0 0
      %6730 = vmatpush1.bf16.msra.mxu0 0
      %6731 = vmatprep.subr.bf16.mxu0 0
      %6732 = vmatpush1.bf16.msra.mxu0 0
      %6733 = vmatprep.subr.bf16.mxu0 0
      %6734 = vmatpush1.bf16.msra.mxu0 0
      %6735 = vmatprep.subr.bf16.mxu0 0
      %6736 = vmatpush1.bf16.msra.mxu0 0
      %6737 = vmatprep.subr.bf16.mxu0 0
      %6738 = vmatpush1.bf16.msra.mxu0 0
      %6739 = vmatprep.mubr.bf16.mxu0 0
      %6740 = vmatmul.mubr.bf16.gmra.mrb[0].mxu0 %v6637
      %v6741 = vpop.f32.mrb[0].mxu0
      %v6742 = vadd.f32 %v6657, %v6741
      %v6743 = vpop.f32.mrb[0].mxu0
      %v6744 = vpop.f32.mrb[0].mxu0
      %v6745 = vadd.f32 %v6657, %v6744
      %v6746 = vpop.f32.mrb[0].mxu0
      %6747 = vmatprep.mubr.bf16.mxu0 0
      %6748 = vmatmul.mubr.bf16.gmra.mrb[0].mxu0 %v6638
      %v6749 = vpop.f32.mrb[0].mxu0
      %v6750 = vadd.f32 %v6657, %v6749
      %v6751 = vpop.f32.mrb[0].mxu0
      %v6752 = vpop.f32.mrb[0].mxu0
      %v6753 = vadd.f32 %v6657, %v6752
      %v6754 = vpop.f32.mrb[0].mxu0
      %6755 = vmatprep.mubr.bf16.mxu0 0
      %6756 = vmatmul.mubr.bf16.gmra.mrb[0].mxu0 %v6639
      %v6757 = vpop.f32.mrb[0].mxu0
      %v6758 = vadd.f32 %v6657, %v6757
      %v6759 = vpop.f32.mrb[0].mxu0
      %v6760 = vpop.f32.mrb[0].mxu0
      %v6761 = vadd.f32 %v6657, %v6760
      %v6762 = vpop.f32.mrb[0].mxu0
      %6763 = vmatprep.mubr.bf16.mxu0 0
      %6764 = vmatmul.mubr.bf16.gmra.mrb[0].mxu0 %v6640
      %v6765 = vpop.f32.mrb[0].mxu0
      %v6766 = vadd.f32 %v6657, %v6765
      %v6767 = vpop.f32.mrb[0].mxu0
      %v6768 = vpop.f32.mrb[0].mxu0
      %v6769 = vadd.f32 %v6657, %v6768
      %v6770 = vpop.f32.mrb[0].mxu0
      %6771 = vmatprep.mubr.bf16.mxu0 0
      %6772 = vmatmul.mubr.bf16.gmra.mrb[0].mxu0 %v6641
      %v6773 = vpop.f32.mrb[0].mxu0
      %v6774 = vadd.f32 %v6657, %v6773
      %v6775 = vpop.f32.mrb[0].mxu0
      %v6776 = vpop.f32.mrb[0].mxu0
      %v6777 = vadd.f32 %v6657, %v6776
      %v6778 = vpop.f32.mrb[0].mxu0
      %6779 = vmatprep.mubr.bf16.mxu0 0
      %6780 = vmatmul.mubr.bf16.gmra.mrb[0].mxu0 %v6642
      %v6781 = vpop.f32.mrb[0].mxu0
      %v6782 = vadd.f32 %v6657, %v6781
      %v6783 = vpop.f32.mrb[0].mxu0
      %v6784 = vpop.f32.mrb[0].mxu0
      %v6785 = vadd.f32 %v6657, %v6784
      %v6786 = vpop.f32.mrb[0].mxu0
      %6787 = vmatprep.mubr.bf16.mxu0 0
      %6788 = vmatmul.mubr.bf16.gmra.mrb[0].mxu0 %v6643
      %v6789 = vpop.f32.mrb[0].mxu0
      %v6790 = vadd.f32 %v6657, %v6789
      %v6791 = vpop.f32.mrb[0].mxu0
      %v6792 = vpop.f32.mrb[0].mxu0
      %v6793 = vadd.f32 %v6657, %v6792
      %v6794 = vpop.f32.mrb[0].mxu0
      %6795 = vmatprep.mubr.bf16.mxu0 0
      %6796 = vmatmul.mubr.bf16.gmra.mrb[0].mxu0 %v6644
      %v6797 = vpop.f32.mrb[0].mxu0
      %v6798 = vadd.f32 %v6657, %v6797
      %v6799 = vpop.f32.mrb[0].mxu0
      %v6800 = vpop.f32.mrb[0].mxu0
      %v6801 = vadd.f32 %v6657, %v6800
      %v6802 = vpop.f32.mrb[0].mxu0
      %6803 = vmatprep.mubr.bf16.mxu0 0
      %6804 = vmatmul.mubr.bf16.gmra.mrb[0].mxu0 %v6645
      %v6805 = vpop.f32.mrb[0].mxu0
      %v6806 = vadd.f32 %v6657, %v6805
      %v6807 = vpop.f32.mrb[0].mxu0
      %v6808 = vpop.f32.mrb[0].mxu0
      %v6809 = vadd.f32 %v6657, %v6808
      %v6810 = vpop.f32.mrb[0].mxu0
      %6811 = vmatprep.mubr.bf16.mxu0 0
      %6812 = vmatmul.mubr.bf16.gmra.mrb[0].mxu0 %v6646
      %v6813 = vpop.f32.mrb[0].mxu0
      %v6814 = vadd.f32 %v6657, %v6813
      %v6815 = vpop.f32.mrb[0].mxu0
      %v6816 = vpop.f32.mrb[0].mxu0
      %v6817 = vadd.f32 %v6657, %v6816
      %v6818 = vpop.f32.mrb[0].mxu0
      %6819 = vmatprep.mubr.bf16.mxu0 0
      %6820 = vmatmul.mubr.bf16.gmra.mrb[0].mxu0 %v6647
      %v6821 = vpop.f32.mrb[0].mxu0
      %v6822 = vadd.f32 %v6657, %v6821
      %v6823 = vpop.f32.mrb[0].mxu0
      %v6824 = vpop.f32.mrb[0].mxu0
      %v6825 = vadd.f32 %v6657, %v6824
      %v6826 = vpop.f32.mrb[0].mxu0
      %6827 = vmatprep.mubr.bf16.mxu0 0
      %6828 = vmatmul.mubr.bf16.gmra.mrb[0].mxu0 %v6648
      %v6829 = vpop.f32.mrb[0].mxu0
      %v6830 = vadd.f32 %v6657, %v6829
      %v6831 = vpop.f32.mrb[0].mxu0
      %v6832 = vpop.f32.mrb[0].mxu0
      %v6833 = vadd.f32 %v6657, %v6832
      %v6834 = vpop.f32.mrb[0].mxu0
      %6835 = vmatprep.mubr.bf16.mxu0 0
      %6836 = vmatmul.mubr.bf16.gmra.mrb[0].mxu0 %v6649
      %v6837 = vpop.f32.mrb[0].mxu0
      %v6838 = vadd.f32 %v6657, %v6837
      %v6839 = vpop.f32.mrb[0].mxu0
      %v6840 = vpop.f32.mrb[0].mxu0
      %v6841 = vadd.f32 %v6657, %v6840
      %v6842 = vpop.f32.mrb[0].mxu0
      %6843 = vmatprep.mubr.bf16.mxu0 0
      %6844 = vmatmul.mubr.bf16.gmra.mrb[0].mxu0 %v6650
      %v6845 = vpop.f32.mrb[0].mxu0
      %v6846 = vadd.f32 %v6657, %v6845
      %v6847 = vpop.f32.mrb[0].mxu0
      %v6848 = vpop.f32.mrb[0].mxu0
      %v6849 = vadd.f32 %v6657, %v6848
      %v6850 = vpop.f32.mrb[0].mxu0
      %6851 = vmatprep.mubr.bf16.mxu0 0
      %6852 = vmatmul.mubr.bf16.gmra.mrb[0].mxu0 %v6651
      %v6853 = vpop.f32.mrb[0].mxu0
      %v6854 = vadd.f32 %v6657, %v6853
      %v6855 = vpop.f32.mrb[0].mxu0
      %v6856 = vpop.f32.mrb[0].mxu0
      %v6857 = vadd.f32 %v6657, %v6856
      %v6858 = vpop.f32.mrb[0].mxu0
      %6859 = vmatprep.mubr.bf16.mxu0 0
      %6860 = vmatmul.mubr.bf16.gmra.mrb[0].mxu0 %v6652
      %v6861 = vpop.f32.mrb[0].mxu0
      %v6862 = vadd.f32 %v6657, %v6861
      %v6863 = vpop.f32.mrb[0].mxu0
      %v6864 = vpop.f32.mrb[0].mxu0
      %v6865 = vadd.f32 %v6657, %v6864
      %v6866 = vpop.f32.mrb[0].mxu0
      %6867 = vdwg.mxu0
      %v6868 = vld [vmem:[%s2544 + $0x3] sm:$0xff]
      %v6869 = vld [vmem:[%s2544 + $0xb] sm:$0xff]
      %v6870 = vld [vmem:[%s2544 + $0x1b] sm:$0xff]
      %v6871 = vld [vmem:[%s2544 + $0x23] sm:$0xff]
      %v6872 = vld [vmem:[%s2544 + $0x33] sm:$0xff]
      %v6873 = vld [vmem:[%s2544 + $0x3b] sm:$0xff]
      %v6874 = vld [vmem:[%s2544 + $0x4b] sm:$0xff]
      %v6875 = vld [vmem:[%s2544 + $0x53] sm:$0xff]
      %v6876 = vld [vmem:[%s2544 + $0x63] sm:$0xff]
      %v6877 = vld [vmem:[%s2544 + $0x6b] sm:$0xff]
      %v6878 = vld [vmem:[%s2544 + $0x7b] sm:$0xff]
      %v6879 = vld [vmem:[%s2544 + $0x83] sm:$0xff]
      %v6880 = vld [vmem:[%s2544 + $0x93] sm:$0xff]
      %v6881 = vld [vmem:[%s2544 + $0x9b] sm:$0xff]
      %v6882 = vld [vmem:[%s2544 + $0xab] sm:$0xff]
      %v6883 = vld [vmem:[%s2544 + $0xb3] sm:$0xff]
      %v6884 = vld [vmem:[%s2544 + $0xc3] sm:$0xff]
      %v6885 = vld [vmem:[%s2544 + $0xcb] sm:$0xff]
      %v6886 = vld [vmem:[%s2544 + $0xdb] sm:$0xff]
      %v6887 = vld [vmem:[%s2544 + $0xe3] sm:$0xff]
      %v6888 = vld [vmem:[%s2544 + $0xf3] sm:$0xff]
      %v6889 = vld [vmem:[%s2544 + $0xfb] sm:$0xff]
      %v6890 = vld [vmem:[%s2544 + $0x10b] sm:$0xff]
      %v6891 = vld [vmem:[%s2544 + $0x113] sm:$0xff]
      %v6892 = vld [vmem:[%s2544 + $0x123] sm:$0xff]
      %v6893 = vld [vmem:[%s2544 + $0x12b] sm:$0xff]
      %v6894 = vld [vmem:[%s2544 + $0x13b] sm:$0xff]
      %v6895 = vld [vmem:[%s2544 + $0x143] sm:$0xff]
      %v6896 = vld [vmem:[%s2544 + $0x153] sm:$0xff]
      %v6897 = vld [vmem:[%s2544 + $0x15b] sm:$0xff]
      %v6898 = vld [vmem:[%s2544 + $0x16b] sm:$0xff]
      %v6899 = vld [vmem:[%s2544 + $0x173] sm:$0xff]
      %v6900 = vadd.f32 %v6868, %v6742
      %v6901 = vadd.f32 %v6869, %v6745
      %v6902 = vadd.f32 %v6870, %v6750
      %v6903 = vadd.f32 %v6871, %v6753
      %v6904 = vadd.f32 %v6872, %v6758
      %v6905 = vadd.f32 %v6873, %v6761
      %v6906 = vadd.f32 %v6874, %v6766
      %v6907 = vadd.f32 %v6875, %v6769
      %v6908 = vadd.f32 %v6876, %v6774
      %v6909 = vadd.f32 %v6877, %v6777
      %v6910 = vadd.f32 %v6878, %v6782
      %v6911 = vadd.f32 %v6879, %v6785
      %v6912 = vadd.f32 %v6880, %v6790
      %v6913 = vadd.f32 %v6881, %v6793
      %v6914 = vadd.f32 %v6882, %v6798
      %v6915 = vadd.f32 %v6883, %v6801
      %v6916 = vadd.f32 %v6884, %v6806
      %v6917 = vadd.f32 %v6885, %v6809
      %v6918 = vadd.f32 %v6886, %v6814
      %v6919 = vadd.f32 %v6887, %v6817
      %v6920 = vadd.f32 %v6888, %v6822
      %v6921 = vadd.f32 %v6889, %v6825
      %v6922 = vadd.f32 %v6890, %v6830
      %v6923 = vadd.f32 %v6891, %v6833
      %v6924 = vadd.f32 %v6892, %v6838
      %v6925 = vadd.f32 %v6893, %v6841
      %v6926 = vadd.f32 %v6894, %v6846
      %v6927 = vadd.f32 %v6895, %v6849
      %v6928 = vadd.f32 %v6896, %v6854
      %v6929 = vadd.f32 %v6897, %v6857
      %v6930 = vadd.f32 %v6898, %v6862
      %v6931 = vadd.f32 %v6899, %v6865
      %6932 = vst [vmem:[%s386] sm:$0xff] %v6900
      %6933 = vst [vmem:[%s386 + $0x8] sm:$0xff] %v6901
      %6934 = vst [vmem:[%s386 + $0x10] sm:$0xff] %v6902
      %6935 = vst [vmem:[%s386 + $0x18] sm:$0xff] %v6903
      %6936 = vst [vmem:[%s386 + $0x20] sm:$0xff] %v6904
      %6937 = vst [vmem:[%s386 + $0x28] sm:$0xff] %v6905
      %6938 = vst [vmem:[%s386 + $0x30] sm:$0xff] %v6906
      %6939 = vst [vmem:[%s386 + $0x38] sm:$0xff] %v6907
      %6940 = vst [vmem:[%s386 + $0x40] sm:$0xff] %v6908
      %6941 = vst [vmem:[%s386 + $0x48] sm:$0xff] %v6909
      %6942 = vst [vmem:[%s386 + $0x50] sm:$0xff] %v6910
      %6943 = vst [vmem:[%s386 + $0x58] sm:$0xff] %v6911
      %6944 = vst [vmem:[%s386 + $0x60] sm:$0xff] %v6912
      %6945 = vst [vmem:[%s386 + $0x68] sm:$0xff] %v6913
      %6946 = vst [vmem:[%s386 + $0x70] sm:$0xff] %v6914
      %6947 = vst [vmem:[%s386 + $0x78] sm:$0xff] %v6915
      %6948 = vst [vmem:[%s386 + $0x80] sm:$0xff] %v6916
      %6949 = vst [vmem:[%s386 + $0x88] sm:$0xff] %v6917
      %6950 = vst [vmem:[%s386 + $0x90] sm:$0xff] %v6918
      %6951 = vst [vmem:[%s386 + $0x98] sm:$0xff] %v6919
      %6952 = vst [vmem:[%s386 + $0xa0] sm:$0xff] %v6920
      %6953 = vst [vmem:[%s386 + $0xa8] sm:$0xff] %v6921
      %6954 = vst [vmem:[%s386 + $0xb0] sm:$0xff] %v6922
      %6955 = vst [vmem:[%s386 + $0xb8] sm:$0xff] %v6923
      %6956 = vst [vmem:[%s386 + $0xc0] sm:$0xff] %v6924
      %6957 = vst [vmem:[%s386 + $0xc8] sm:$0xff] %v6925
      %6958 = vst [vmem:[%s386 + $0xd0] sm:$0xff] %v6926
      %6959 = vst [vmem:[%s386 + $0xd8] sm:$0xff] %v6927
      %6960 = vst [vmem:[%s386 + $0xe0] sm:$0xff] %v6928
      %6961 = vst [vmem:[%s386 + $0xe8] sm:$0xff] %v6929
      %6962 = vst [vmem:[%s386 + $0xf0] sm:$0xff] %v6930
      %6963 = vst [vmem:[%s386 + $0xf8] sm:$0xff] %v6931
      %p6964 = scmp.lt.s32.totalorder %s22, 1
      %s6965 = scalar_select %p6964, %s22, 1
      %s6966 = smul.addr %s6965, 32
      %s6967 = smul.addr %s6966, 8
      %s6968 = scalar_lea.vmem %s11, %s6967
      // Predicated region
      $region65: #{encoder_block.1} parent=63 // pred_check
        %p6969 = pneg %p276
      $region66: #{encoder_block.1} parent=63 // pred_check_branch
        %6971 = sbr.rel (%p6969) target = $region68
      $region67: #{encoder_block.1} parent=63 // pred_region
        _
      $region68: #{encoder_block.1} parent=63 // pred_fallthru
        _
    $region64: #{encoder_block.1} parent=5 // pred_fallthru
      _
    %p6972 = scmp.le.s32.totalorder 2, %s17
    // Predicated region
    $region69: #{encoder_block.1} parent=5 // pred_check
      %p6973 = pneg %p6972
    $region70: #{encoder_block.1} parent=5 // pred_check_branch
      %6975 = sbr.rel (%p6973) target = $region72
    $region71: #{encoder_block.1} parent=5 // pred_region
      %s6976 = ssub.s32 %s17, 2
      // Predicated region
      $region73: #{encoder_block.1} parent=71 // pred_check
        %p6977 = pneg %p282
      $region74: #{encoder_block.1} parent=71 // pred_check_branch
        %6979 = sbr.rel (%p6977) target = $region76
      $region75: #{encoder_block.1} parent=71 // pred_region
        %p6980 = scmp.lt.s32.totalorder %s23, 1
        %s6981 = scalar_select %p6980, %s23, 1
        %s6982 = smul.addr %s6981, 32
        %s6983 = smul.addr %s6982, 8
        %s6984 = scalar_lea.vmem %s11, %s6983
      $region76: #{encoder_block.1} parent=71 // pred_fallthru
        _
    $region72: #{encoder_block.1} parent=5 // pred_fallthru
      _
  $region6: #{encoder_block.1} parent=0 // loop_footer
    %s21 = sadd.s32 1, %s17
  $region7: #{encoder_block.1} parent=0 // loop_footer_branch
    %16 = sbr.rel target = $region3
  $region8: #{encoder_block.1} parent=0 // loop_exit
    _

</llo_original>
